<compile_context>
chip_gen: v6e
topology: v6e:2x2x1
jax: 0.10.0
libtpu: 0.0.40
codegen_flags: <defaults>
</compile_context>

<pallas_src>
import functools

import jax
import jax.numpy as jnp
from jax.experimental import pallas as pl
from jax.experimental.pallas import tpu as pltpu

EPS = 1e-5
LANE = 128          # Co padded to one full lane group (unmasked stores)
TM_TILED = 1024     # M tile for the (rarely used) two-pass fallback

# Static layer configuration: (Cin, Cout, kernel, stride) — never traced.
_LAYERS = (
    (3, 24, 5, 2),
    (24, 36, 5, 2),
    (36, 48, 3, 2),
    (48, 64, 3, 1),
    (64, 64, 3, 1),
)


def _round_up(a, b):
    return ((a + b - 1) // b) * b


def _vmem_config():
    """Per-chip scoped-VMEM limit and a single-block working-set budget.

    v5e/v6e have 128 MiB physical VMEM -> 64 MiB scoped limit; v7x has only
    64 MiB -> 32 MiB limit (keeps headroom for double-buffering / spills).
    """
    try:
        phys = pltpu.get_tpu_info().vmem_capacity_bytes
    except Exception:
        phys = 64 * 1024 * 1024            # v7x-safe fallback
    limit = max(32 * 1024 * 1024, min(phys // 2, 96 * 1024 * 1024))
    budget = (limit * 3) // 4              # working-set budget for fused path
    return limit, budget


VMEM_LIMIT, VMEM_BUDGET = _vmem_config()


# ---------------------------------------------------------------------------
# Kernel A: fused conv-matmul + BatchNorm(train) + ReLU (single block)
# ---------------------------------------------------------------------------
def _fused_conv_bn_relu_kernel(p_ref, w_ref, o_ref, *, m_true):
    # p_ref: (Mp, K) bf16 im2col patches (zero-padded rows only)
    # w_ref: (K, 128) bf16 weights (zero-padded output channels)
    y = jnp.dot(p_ref[...], w_ref[...], preferred_element_type=jnp.float32)
    inv_m = 1.0 / m_true
    mean = jnp.sum(y, axis=0, keepdims=True) * inv_m      # padded rows add 0
    ex2 = jnp.sum(y * y, axis=0, keepdims=True) * inv_m
    var = jnp.maximum(ex2 - mean * mean, 0.0)
    scale = jax.lax.rsqrt(var + EPS)                      # gamma = 1
    shift = -mean * scale                                 # beta  = 0
    o_ref[...] = jnp.maximum(y * scale + shift, 0.0).astype(o_ref.dtype)


# ---------------------------------------------------------------------------
# Kernel B1: tiled matmul + per-channel sum / sum-of-squares accumulation
#            (intermediate stored bf16, stats accumulated from f32)
# ---------------------------------------------------------------------------
def _matmul_stats_kernel(p_ref, w_ref, y_ref, sum_ref, ssq_ref):
    @pl.when(pl.program_id(0) == 0)
    def _():
        sum_ref[...] = jnp.zeros_like(sum_ref)
        ssq_ref[...] = jnp.zeros_like(ssq_ref)

    y = jnp.dot(p_ref[...], w_ref[...], preferred_element_type=jnp.float32)
    y_ref[...] = y.astype(y_ref.dtype)
    sum_ref[...] += jnp.sum(y, axis=0, keepdims=True)
    ssq_ref[...] += jnp.sum(y * y, axis=0, keepdims=True)


# ---------------------------------------------------------------------------
# Kernel B2: tiled BatchNorm(train) + ReLU epilogue (single FMA + max)
# ---------------------------------------------------------------------------
def _bn_relu_kernel(y_ref, sum_ref, ssq_ref, o_ref, *, m_true):
    inv_m = 1.0 / m_true
    mean = sum_ref[...] * inv_m
    var = jnp.maximum(ssq_ref[...] * inv_m - mean * mean, 0.0)
    scale = jax.lax.rsqrt(var + EPS)
    shift = -mean * scale
    y = y_ref[...].astype(jnp.float32)
    o_ref[...] = jnp.maximum(y * scale + shift, 0.0).astype(o_ref.dtype)


# ---------------------------------------------------------------------------
# Per-layer wrapper
# ---------------------------------------------------------------------------
def conv_bn_relu(patches, w_pad, m_true):
    """patches: (M, K) bf16; w_pad: (K, 128) bf16.  Returns (M, 128) bf16."""
    M, K = patches.shape

    # Fused single-block threshold derived from the VMEM budget:
    #   patches bf16 (x2 bufs) + f32 matmul result/temps + bf16 out (x2 bufs)
    per_row_bytes = 4 * K + 12 * LANE
    m_fused_max = max(256, VMEM_BUDGET // per_row_bytes)

    if M <= m_fused_max:
        m_pad = _round_up(M, 16)               # bf16 sublane-dense stores
        if m_pad != M:
            patches = jnp.pad(patches, ((0, m_pad - M), (0, 0)))
        out = pl.pallas_call(
            functools.partial(_fused_conv_bn_relu_kernel, m_true=float(m_true)),
            out_shape=jax.ShapeDtypeStruct((m_pad, LANE), jnp.bfloat16),
            grid=(1,),
            in_specs=[
                pl.BlockSpec((m_pad, K), lambda i: (0, 0)),
                pl.BlockSpec((K, LANE), lambda i: (0, 0)),
            ],
            out_specs=pl.BlockSpec((m_pad, LANE), lambda i: (0, 0)),
            compiler_params=pltpu.CompilerParams(
                dimension_semantics=("arbitrary",),
                vmem_limit_bytes=VMEM_LIMIT),
        )(patches, w_pad)
        return out[:M]

    # ---- Tiled two-pass fallback (only for very large M) -------------------
    tm = TM_TILED
    m_pad = _round_up(M, tm)
    if m_pad != M:
        # TODO(synk): handle the ragged last M tile in-kernel instead of
        #             padding the full patches array in HBM.
        patches = jnp.pad(patches, ((0, m_pad - M), (0, 0)))
    n_tiles = m_pad // tm

    # Pass 1: tiled matmul + batch-stat accumulation across the M axis.
    y, s1, s2 = pl.pallas_call(
        _matmul_stats_kernel,
        out_shape=(
            jax.ShapeDtypeStruct((m_pad, LANE), jnp.bfloat16),  # bf16 intermed.
            jax.ShapeDtypeStruct((1, LANE), jnp.float32),
            jax.ShapeDtypeStruct((1, LANE), jnp.float32),
        ),
        grid=(n_tiles,),
        in_specs=[
            pl.BlockSpec((tm, K), lambda i: (i, 0)),
            pl.BlockSpec((K, LANE), lambda i: (0, 0)),
        ],
        out_specs=(
            pl.BlockSpec((tm, LANE), lambda i: (i, 0)),
            pl.BlockSpec((1, LANE), lambda i: (0, 0)),   # resident accumulator
            pl.BlockSpec((1, LANE), lambda i: (0, 0)),   # resident accumulator
        ),
        compiler_params=pltpu.CompilerParams(
            dimension_semantics=("arbitrary",),
            vmem_limit_bytes=VMEM_LIMIT),
    )(patches, w_pad)

    # Pass 2: tiled normalize + ReLU ("parallel" -> megacore shardable).
    out = pl.pallas_call(
        functools.partial(_bn_relu_kernel, m_true=float(m_true)),
        out_shape=jax.ShapeDtypeStruct((m_pad, LANE), jnp.bfloat16),
        grid=(n_tiles,),
        in_specs=[
            pl.BlockSpec((tm, LANE), lambda i: (i, 0)),
            pl.BlockSpec((1, LANE), lambda i: (0, 0)),
            pl.BlockSpec((1, LANE), lambda i: (0, 0)),
        ],
        out_specs=pl.BlockSpec((tm, LANE), lambda i: (i, 0)),
        compiler_params=pltpu.CompilerParams(
            dimension_semantics=("parallel",),
            vmem_limit_bytes=VMEM_LIMIT),
    )(y, s1, s2)
    return out[:M]


# ---------------------------------------------------------------------------
# Plain-JAX glue: im2col patch extraction (valid padding, stride s)
# ---------------------------------------------------------------------------
def im2col(x_nhwc, k, s):
    N, H, W, C = x_nhwc.shape
    Ho = (H - k) // s + 1
    Wo = (W - k) // s + 1
    cols = []
    for kh in range(k):
        for kw in range(k):
            cols.append(x_nhwc[:, kh:kh + Ho * s:s, kw:kw + Wo * s:s, :])
    patches = jnp.stack(cols, axis=-2)                  # (N, Ho, Wo, k*k, C)
    return patches.reshape(N * Ho * Wo, k * k * C), Ho, Wo


# ---------------------------------------------------------------------------
# Parameter construction (deterministic, mirrors __init__)
# ---------------------------------------------------------------------------
def _xavier_uniform(key, co, ci, k):
    fan_in = ci * k * k
    fan_out = co * k * k
    bound = (6.0 / (fan_in + fan_out)) ** 0.5
    return jax.random.uniform(key, (co, ci, k, k), jnp.float32, -bound, bound)


def init_weights(key):
    """Tuple of (K, 128) bf16 channel-zero-padded weight matrices per conv."""
    weights = []
    keys = jax.random.split(key, len(_LAYERS))
    for kk, (ci, co, k, _s) in zip(keys, _LAYERS):
        w = _xavier_uniform(kk, co, ci, k)              # (Co, Ci, Kh, Kw)
        w_mat = jnp.transpose(w, (2, 3, 1, 0)).reshape(k * k * ci, co)
        w_pad = jnp.zeros((k * k * ci, LANE), jnp.float32).at[:, :co].set(w_mat)
        weights.append(w_pad.astype(jnp.bfloat16))
    # BatchNorm weight/bias after reset_parameters() are 1 / 0 -> folded away.
    return tuple(weights)


# ---------------------------------------------------------------------------
# Forward pass (mirrors CNN5Max.forward)
# ---------------------------------------------------------------------------
@jax.jit
def cnn5max_forward(x_nchw, weights):
    x = jnp.transpose(x_nchw, (0, 2, 3, 1)).astype(jnp.bfloat16)  # -> NHWC
    N = x.shape[0]
    for (ci, co, k, s), w_pad in zip(_LAYERS, weights):
        patches, Ho, Wo = im2col(x, k, s)
        M = patches.shape[0]                             # static -> Python int
        y = conv_bn_relu(patches, w_pad, M)              # (M, 128) bf16
        x = y[:, :co].reshape(N, Ho, Wo, co)
    return jnp.transpose(x, (0, 3, 1, 2)).astype(jnp.float32)     # -> NCHW


if __name__ == "__main__":
    key = jax.random.PRNGKey(0)
    k_x, k_w = jax.random.split(key)

    # Small input consistent with the conv stack (needs >= ~33x33 spatially).
    x = jax.random.normal(k_x, (2, 3, 64, 64), dtype=jnp.float32)  # NCHW
    weights = init_weights(k_w)

    out = cnn5max_forward(x, weights)
    out = jax.block_until_ready(out)

    assert out.shape == (2, 64, 2, 2), out.shape
    assert bool(jnp.all(jnp.isfinite(out)))
    print("KERNEL_OK")
</pallas_src>

<mosaic_0001>
module attributes {stable_mosaic.version = 11 : i64} {
  func.func @_fused_conv_bn_relu_kernel(%arg0: i32, %arg1: memref<1808x75xbf16, #tpu.memory_space<vmem>>, %arg2: memref<75x128xbf16, #tpu.memory_space<vmem>>, %arg3: memref<1808x128xbf16, #tpu.memory_space<vmem>>) attributes {dimension_semantics = [#tpu.dimension_semantics<arbitrary>], iteration_bounds = array<i64: 1>, scalar_prefetch = 0 : i64, scratch_operands = 0 : i64, tpu.core_type = #tpu.core_type<tc>, window_params = [{pipeline_mode = #tpu.pipeline_mode<synchronous>, transform_indices = @transform_0, window_bounds = array<i64: 1808, 75>}, {pipeline_mode = #tpu.pipeline_mode<synchronous>, transform_indices = @transform_1, window_bounds = array<i64: 75, 128>}, {pipeline_mode = #tpu.pipeline_mode<synchronous>, transform_indices = @transform_2, window_bounds = array<i64: 1808, 128>}]} {
    %c0 = arith.constant 0 : index
    %c0_0 = arith.constant 0 : index
    %0 = vector.load %arg1[%c0, %c0_0] : memref<1808x75xbf16, #tpu.memory_space<vmem>>, vector<1808x75xbf16>
    %c0_1 = arith.constant 0 : index
    %c0_2 = arith.constant 0 : index
    %1 = vector.load %arg2[%c0_1, %c0_2] : memref<75x128xbf16, #tpu.memory_space<vmem>>, vector<75x128xbf16>
    %cst = arith.constant dense<0.000000e+00> : vector<1808x128xf32>
    %2 = tpu.matmul %0, %1, %cst {dimension_numbers = #tpu.dot_dimension_numbers<[1], [0], [0], [1], [0, 0, 1, 1], [], []>} : vector<1808x75xbf16>, vector<75x128xbf16>, vector<1808x128xf32> -> vector<1808x128xf32>
    %cst_3 = arith.constant dense<0.000000e+00> : vector<128xf32>
    %3 = vector.multi_reduction <add>, %2, %cst_3 [0] : vector<1808x128xf32> to vector<128xf32>
    %4 = vector.shape_cast %3 : vector<128xf32> to vector<1x128xf32>
    %cst_4 = arith.constant 5.55555569E-4 : f32
    %5 = vector.broadcast %cst_4 : f32 to vector<1x128xf32>
    %6 = arith.mulf %4, %5 : vector<1x128xf32>
    %7 = arith.mulf %2, %2 : vector<1808x128xf32>
    %cst_5 = arith.constant dense<0.000000e+00> : vector<128xf32>
    %8 = vector.multi_reduction <add>, %7, %cst_5 [0] : vector<1808x128xf32> to vector<128xf32>
    %9 = vector.shape_cast %8 : vector<128xf32> to vector<1x128xf32>
    %cst_6 = arith.constant 5.55555569E-4 : f32
    %10 = vector.broadcast %cst_6 : f32 to vector<1x128xf32>
    %11 = arith.mulf %9, %10 : vector<1x128xf32>
    %12 = arith.mulf %6, %6 : vector<1x128xf32>
    %13 = arith.subf %11, %12 : vector<1x128xf32>
    %cst_7 = arith.constant 0.000000e+00 : f32
    %14 = vector.broadcast %cst_7 : f32 to vector<1x128xf32>
    %15 = arith.maximumf %13, %14 : vector<1x128xf32>
    %cst_8 = arith.constant 9.99999974E-6 : f32
    %16 = vector.broadcast %cst_8 : f32 to vector<1x128xf32>
    %17 = arith.addf %15, %16 : vector<1x128xf32>
    %18 = math.rsqrt %17 : vector<1x128xf32>
    %cst_9 = arith.constant 0.000000e+00 : f32
    %19 = vector.broadcast %cst_9 : f32 to vector<1x128xf32>
    %20 = arith.subf %19, %6 : vector<1x128xf32>
    %21 = arith.mulf %20, %18 : vector<1x128xf32>
    %22 = vector.broadcast %18 : vector<1x128xf32> to vector<1808x128xf32>
    %23 = arith.mulf %2, %22 : vector<1808x128xf32>
    %24 = vector.broadcast %21 : vector<1x128xf32> to vector<1808x128xf32>
    %25 = arith.addf %23, %24 : vector<1808x128xf32>
    %cst_10 = arith.constant 0.000000e+00 : f32
    %26 = vector.broadcast %cst_10 : f32 to vector<1808x128xf32>
    %27 = arith.maximumf %25, %26 : vector<1808x128xf32>
    %28 = arith.truncf %27 : vector<1808x128xf32> to vector<1808x128xbf16>
    %c0_11 = arith.constant 0 : index
    %c0_12 = arith.constant 0 : index
    %29 = vector.load %arg3[%c0_11, %c0_12] : memref<1808x128xbf16, #tpu.memory_space<vmem>>, vector<1808x128xbf16>
    tpu.vector_store %arg3[%c0_11, %c0_12], %28 {strides = array<i32>} : memref<1808x128xbf16, #tpu.memory_space<vmem>>, vector<1808x128xbf16>,
    return
  }
  func.func @transform_0(%arg0: i32) -> (i32, i32) {
    %c0_i32 = arith.constant 0 : i32
    %c0_i32_0 = arith.constant 0 : i32
    %c0_i32_1 = arith.constant 0 : i32
    return %c0_i32, %c0_i32_0 : i32, i32
  }
  func.func @transform_1(%arg0: i32) -> (i32, i32) {
    %c0_i32 = arith.constant 0 : i32
    %c0_i32_0 = arith.constant 0 : i32
    %c0_i32_1 = arith.constant 0 : i32
    return %c0_i32, %c0_i32_0 : i32, i32
  }
  func.func @transform_2(%arg0: i32) -> (i32, i32) {
    %c0_i32 = arith.constant 0 : i32
    %c0_i32_0 = arith.constant 0 : i32
    %c0_i32_1 = arith.constant 0 : i32
    return %c0_i32, %c0_i32_0 : i32, i32
  }
}

module attributes {stable_mosaic.version = 11 : i64} {
  func.func @_fused_conv_bn_relu_kernel(%arg0: i32, %arg1: memref<352x600xbf16, #tpu.memory_space<vmem>>, %arg2: memref<600x128xbf16, #tpu.memory_space<vmem>>, %arg3: memref<352x128xbf16, #tpu.memory_space<vmem>>) attributes {dimension_semantics = [#tpu.dimension_semantics<arbitrary>], iteration_bounds = array<i64: 1>, scalar_prefetch = 0 : i64, scratch_operands = 0 : i64, tpu.core_type = #tpu.core_type<tc>, window_params = [{pipeline_mode = #tpu.pipeline_mode<synchronous>, transform_indices = @transform_0, window_bounds = array<i64: 352, 600>}, {pipeline_mode = #tpu.pipeline_mode<synchronous>, transform_indices = @transform_1, window_bounds = array<i64: 600, 128>}, {pipeline_mode = #tpu.pipeline_mode<synchronous>, transform_indices = @transform_2, window_bounds = array<i64: 352, 128>}]} {
    %c0 = arith.constant 0 : index
    %c0_0 = arith.constant 0 : index
    %0 = vector.load %arg1[%c0, %c0_0] : memref<352x600xbf16, #tpu.memory_space<vmem>>, vector<352x600xbf16>
    %c0_1 = arith.constant 0 : index
    %c0_2 = arith.constant 0 : index
    %1 = vector.load %arg2[%c0_1, %c0_2] : memref<600x128xbf16, #tpu.memory_space<vmem>>, vector<600x128xbf16>
    %cst = arith.constant dense<0.000000e+00> : vector<352x128xf32>
    %2 = tpu.matmul %0, %1, %cst {dimension_numbers = #tpu.dot_dimension_numbers<[1], [0], [0], [1], [0, 0, 1, 1], [], []>} : vector<352x600xbf16>, vector<600x128xbf16>, vector<352x128xf32> -> vector<352x128xf32>
    %cst_3 = arith.constant dense<0.000000e+00> : vector<128xf32>
    %3 = vector.multi_reduction <add>, %2, %cst_3 [0] : vector<352x128xf32> to vector<128xf32>
    %4 = vector.shape_cast %3 : vector<128xf32> to vector<1x128xf32>
    %cst_4 = arith.constant 2.958580e-03 : f32
    %5 = vector.broadcast %cst_4 : f32 to vector<1x128xf32>
    %6 = arith.mulf %4, %5 : vector<1x128xf32>
    %7 = arith.mulf %2, %2 : vector<352x128xf32>
    %cst_5 = arith.constant dense<0.000000e+00> : vector<128xf32>
    %8 = vector.multi_reduction <add>, %7, %cst_5 [0] : vector<352x128xf32> to vector<128xf32>
    %9 = vector.shape_cast %8 : vector<128xf32> to vector<1x128xf32>
    %cst_6 = arith.constant 2.958580e-03 : f32
    %10 = vector.broadcast %cst_6 : f32 to vector<1x128xf32>
    %11 = arith.mulf %9, %10 : vector<1x128xf32>
    %12 = arith.mulf %6, %6 : vector<1x128xf32>
    %13 = arith.subf %11, %12 : vector<1x128xf32>
    %cst_7 = arith.constant 0.000000e+00 : f32
    %14 = vector.broadcast %cst_7 : f32 to vector<1x128xf32>
    %15 = arith.maximumf %13, %14 : vector<1x128xf32>
    %cst_8 = arith.constant 9.99999974E-6 : f32
    %16 = vector.broadcast %cst_8 : f32 to vector<1x128xf32>
    %17 = arith.addf %15, %16 : vector<1x128xf32>
    %18 = math.rsqrt %17 : vector<1x128xf32>
    %cst_9 = arith.constant 0.000000e+00 : f32
    %19 = vector.broadcast %cst_9 : f32 to vector<1x128xf32>
    %20 = arith.subf %19, %6 : vector<1x128xf32>
    %21 = arith.mulf %20, %18 : vector<1x128xf32>
    %22 = vector.broadcast %18 : vector<1x128xf32> to vector<352x128xf32>
    %23 = arith.mulf %2, %22 : vector<352x128xf32>
    %24 = vector.broadcast %21 : vector<1x128xf32> to vector<352x128xf32>
    %25 = arith.addf %23, %24 : vector<352x128xf32>
    %cst_10 = arith.constant 0.000000e+00 : f32
    %26 = vector.broadcast %cst_10 : f32 to vector<352x128xf32>
    %27 = arith.maximumf %25, %26 : vector<352x128xf32>
    %28 = arith.truncf %27 : vector<352x128xf32> to vector<352x128xbf16>
    %c0_11 = arith.constant 0 : index
    %c0_12 = arith.constant 0 : index
    %29 = vector.load %arg3[%c0_11, %c0_12] : memref<352x128xbf16, #tpu.memory_space<vmem>>, vector<352x128xbf16>
    tpu.vector_store %arg3[%c0_11, %c0_12], %28 {strides = array<i32>} : memref<352x128xbf16, #tpu.memory_space<vmem>>, vector<352x128xbf16>,
    return
  }
  func.func @transform_0(%arg0: i32) -> (i32, i32) {
    %c0_i32 = arith.constant 0 : i32
    %c0_i32_0 = arith.constant 0 : i32
    %c0_i32_1 = arith.constant 0 : i32
    return %c0_i32, %c0_i32_0 : i32, i32
  }
  func.func @transform_1(%arg0: i32) -> (i32, i32) {
    %c0_i32 = arith.constant 0 : i32
    %c0_i32_0 = arith.constant 0 : i32
    %c0_i32_1 = arith.constant 0 : i32
    return %c0_i32, %c0_i32_0 : i32, i32
  }
  func.func @transform_2(%arg0: i32) -> (i32, i32) {
    %c0_i32 = arith.constant 0 : i32
    %c0_i32_0 = arith.constant 0 : i32
    %c0_i32_1 = arith.constant 0 : i32
    return %c0_i32, %c0_i32_0 : i32, i32
  }
}

module attributes {stable_mosaic.version = 11 : i64} {
  func.func @_fused_conv_bn_relu_kernel(%arg0: i32, %arg1: memref<80x324xbf16, #tpu.memory_space<vmem>>, %arg2: memref<324x128xbf16, #tpu.memory_space<vmem>>, %arg3: memref<80x128xbf16, #tpu.memory_space<vmem>>) attributes {dimension_semantics = [#tpu.dimension_semantics<arbitrary>], iteration_bounds = array<i64: 1>, scalar_prefetch = 0 : i64, scratch_operands = 0 : i64, tpu.core_type = #tpu.core_type<tc>, window_params = [{pipeline_mode = #tpu.pipeline_mode<synchronous>, transform_indices = @transform_0, window_bounds = array<i64: 80, 324>}, {pipeline_mode = #tpu.pipeline_mode<synchronous>, transform_indices = @transform_1, window_bounds = array<i64: 324, 128>}, {pipeline_mode = #tpu.pipeline_mode<synchronous>, transform_indices = @transform_2, window_bounds = array<i64: 80, 128>}]} {
    %c0 = arith.constant 0 : index
    %c0_0 = arith.constant 0 : index
    %0 = vector.load %arg1[%c0, %c0_0] : memref<80x324xbf16, #tpu.memory_space<vmem>>, vector<80x324xbf16>
    %c0_1 = arith.constant 0 : index
    %c0_2 = arith.constant 0 : index
    %1 = vector.load %arg2[%c0_1, %c0_2] : memref<324x128xbf16, #tpu.memory_space<vmem>>, vector<324x128xbf16>
    %cst = arith.constant dense<0.000000e+00> : vector<80x128xf32>
    %2 = tpu.matmul %0, %1, %cst {dimension_numbers = #tpu.dot_dimension_numbers<[1], [0], [0], [1], [0, 0, 1, 1], [], []>} : vector<80x324xbf16>, vector<324x128xbf16>, vector<80x128xf32> -> vector<80x128xf32>
    %cst_3 = arith.constant dense<0.000000e+00> : vector<128xf32>
    %3 = vector.multi_reduction <add>, %2, %cst_3 [0] : vector<80x128xf32> to vector<128xf32>
    %4 = vector.shape_cast %3 : vector<128xf32> to vector<1x128xf32>
    %cst_4 = arith.constant 0.013888889 : f32
    %5 = vector.broadcast %cst_4 : f32 to vector<1x128xf32>
    %6 = arith.mulf %4, %5 : vector<1x128xf32>
    %7 = arith.mulf %2, %2 : vector<80x128xf32>
    %cst_5 = arith.constant dense<0.000000e+00> : vector<128xf32>
    %8 = vector.multi_reduction <add>, %7, %cst_5 [0] : vector<80x128xf32> to vector<128xf32>
    %9 = vector.shape_cast %8 : vector<128xf32> to vector<1x128xf32>
    %cst_6 = arith.constant 0.013888889 : f32
    %10 = vector.broadcast %cst_6 : f32 to vector<1x128xf32>
    %11 = arith.mulf %9, %10 : vector<1x128xf32>
    %12 = arith.mulf %6, %6 : vector<1x128xf32>
    %13 = arith.subf %11, %12 : vector<1x128xf32>
    %cst_7 = arith.constant 0.000000e+00 : f32
    %14 = vector.broadcast %cst_7 : f32 to vector<1x128xf32>
    %15 = arith.maximumf %13, %14 : vector<1x128xf32>
    %cst_8 = arith.constant 9.99999974E-6 : f32
    %16 = vector.broadcast %cst_8 : f32 to vector<1x128xf32>
    %17 = arith.addf %15, %16 : vector<1x128xf32>
    %18 = math.rsqrt %17 : vector<1x128xf32>
    %cst_9 = arith.constant 0.000000e+00 : f32
    %19 = vector.broadcast %cst_9 : f32 to vector<1x128xf32>
    %20 = arith.subf %19, %6 : vector<1x128xf32>
    %21 = arith.mulf %20, %18 : vector<1x128xf32>
    %22 = vector.broadcast %18 : vector<1x128xf32> to vector<80x128xf32>
    %23 = arith.mulf %2, %22 : vector<80x128xf32>
    %24 = vector.broadcast %21 : vector<1x128xf32> to vector<80x128xf32>
    %25 = arith.addf %23, %24 : vector<80x128xf32>
    %cst_10 = arith.constant 0.000000e+00 : f32
    %26 = vector.broadcast %cst_10 : f32 to vector<80x128xf32>
    %27 = arith.maximumf %25, %26 : vector<80x128xf32>
    %28 = arith.truncf %27 : vector<80x128xf32> to vector<80x128xbf16>
    %c0_11 = arith.constant 0 : index
    %c0_12 = arith.constant 0 : index
    %29 = vector.load %arg3[%c0_11, %c0_12] : memref<80x128xbf16, #tpu.memory_space<vmem>>, vector<80x128xbf16>
    tpu.vector_store %arg3[%c0_11, %c0_12], %28 {strides = array<i32>} : memref<80x128xbf16, #tpu.memory_space<vmem>>, vector<80x128xbf16>,
    return
  }
  func.func @transform_0(%arg0: i32) -> (i32, i32) {
    %c0_i32 = arith.constant 0 : i32
    %c0_i32_0 = arith.constant 0 : i32
    %c0_i32_1 = arith.constant 0 : i32
    return %c0_i32, %c0_i32_0 : i32, i32
  }
  func.func @transform_1(%arg0: i32) -> (i32, i32) {
    %c0_i32 = arith.constant 0 : i32
    %c0_i32_0 = arith.constant 0 : i32
    %c0_i32_1 = arith.constant 0 : i32
    return %c0_i32, %c0_i32_0 : i32, i32
  }
  func.func @transform_2(%arg0: i32) -> (i32, i32) {
    %c0_i32 = arith.constant 0 : i32
    %c0_i32_0 = arith.constant 0 : i32
    %c0_i32_1 = arith.constant 0 : i32
    return %c0_i32, %c0_i32_0 : i32, i32
  }
}

module attributes {stable_mosaic.version = 11 : i64} {
  func.func @_fused_conv_bn_relu_kernel(%arg0: i32, %arg1: memref<32x432xbf16, #tpu.memory_space<vmem>>, %arg2: memref<432x128xbf16, #tpu.memory_space<vmem>>, %arg3: memref<32x128xbf16, #tpu.memory_space<vmem>>) attributes {dimension_semantics = [#tpu.dimension_semantics<arbitrary>], iteration_bounds = array<i64: 1>, scalar_prefetch = 0 : i64, scratch_operands = 0 : i64, tpu.core_type = #tpu.core_type<tc>, window_params = [{pipeline_mode = #tpu.pipeline_mode<synchronous>, transform_indices = @transform_0, window_bounds = array<i64: 32, 432>}, {pipeline_mode = #tpu.pipeline_mode<synchronous>, transform_indices = @transform_1, window_bounds = array<i64: 432, 128>}, {pipeline_mode = #tpu.pipeline_mode<synchronous>, transform_indices = @transform_2, window_bounds = array<i64: 32, 128>}]} {
    %c0 = arith.constant 0 : index
    %c0_0 = arith.constant 0 : index
    %0 = vector.load %arg1[%c0, %c0_0] : memref<32x432xbf16, #tpu.memory_space<vmem>>, vector<32x432xbf16>
    %c0_1 = arith.constant 0 : index
    %c0_2 = arith.constant 0 : index
    %1 = vector.load %arg2[%c0_1, %c0_2] : memref<432x128xbf16, #tpu.memory_space<vmem>>, vector<432x128xbf16>
    %cst = arith.constant dense<0.000000e+00> : vector<32x128xf32>
    %2 = tpu.matmul %0, %1, %cst {dimension_numbers = #tpu.dot_dimension_numbers<[1], [0], [0], [1], [0, 0, 1, 1], [], []>} : vector<32x432xbf16>, vector<432x128xbf16>, vector<32x128xf32> -> vector<32x128xf32>
    %cst_3 = arith.constant dense<0.000000e+00> : vector<128xf32>
    %3 = vector.multi_reduction <add>, %2, %cst_3 [0] : vector<32x128xf32> to vector<128xf32>
    %4 = vector.shape_cast %3 : vector<128xf32> to vector<1x128xf32>
    %cst_4 = arith.constant 3.125000e-02 : f32
    %5 = vector.broadcast %cst_4 : f32 to vector<1x128xf32>
    %6 = arith.mulf %4, %5 : vector<1x128xf32>
    %7 = arith.mulf %2, %2 : vector<32x128xf32>
    %cst_5 = arith.constant dense<0.000000e+00> : vector<128xf32>
    %8 = vector.multi_reduction <add>, %7, %cst_5 [0] : vector<32x128xf32> to vector<128xf32>
    %9 = vector.shape_cast %8 : vector<128xf32> to vector<1x128xf32>
    %cst_6 = arith.constant 3.125000e-02 : f32
    %10 = vector.broadcast %cst_6 : f32 to vector<1x128xf32>
    %11 = arith.mulf %9, %10 : vector<1x128xf32>
    %12 = arith.mulf %6, %6 : vector<1x128xf32>
    %13 = arith.subf %11, %12 : vector<1x128xf32>
    %cst_7 = arith.constant 0.000000e+00 : f32
    %14 = vector.broadcast %cst_7 : f32 to vector<1x128xf32>
    %15 = arith.maximumf %13, %14 : vector<1x128xf32>
    %cst_8 = arith.constant 9.99999974E-6 : f32
    %16 = vector.broadcast %cst_8 : f32 to vector<1x128xf32>
    %17 = arith.addf %15, %16 : vector<1x128xf32>
    %18 = math.rsqrt %17 : vector<1x128xf32>
    %cst_9 = arith.constant 0.000000e+00 : f32
    %19 = vector.broadcast %cst_9 : f32 to vector<1x128xf32>
    %20 = arith.subf %19, %6 : vector<1x128xf32>
    %21 = arith.mulf %20, %18 : vector<1x128xf32>
    %22 = vector.broadcast %18 : vector<1x128xf32> to vector<32x128xf32>
    %23 = arith.mulf %2, %22 : vector<32x128xf32>
    %24 = vector.broadcast %21 : vector<1x128xf32> to vector<32x128xf32>
    %25 = arith.addf %23, %24 : vector<32x128xf32>
    %cst_10 = arith.constant 0.000000e+00 : f32
    %26 = vector.broadcast %cst_10 : f32 to vector<32x128xf32>
    %27 = arith.maximumf %25, %26 : vector<32x128xf32>
    %28 = arith.truncf %27 : vector<32x128xf32> to vector<32x128xbf16>
    %c0_11 = arith.constant 0 : index
    %c0_12 = arith.constant 0 : index
    %29 = vector.load %arg3[%c0_11, %c0_12] : memref<32x128xbf16, #tpu.memory_space<vmem>>, vector<32x128xbf16>
    tpu.vector_store %arg3[%c0_11, %c0_12], %28 {strides = array<i32>} : memref<32x128xbf16, #tpu.memory_space<vmem>>, vector<32x128xbf16>,
    return
  }
  func.func @transform_0(%arg0: i32) -> (i32, i32) {
    %c0_i32 = arith.constant 0 : i32
    %c0_i32_0 = arith.constant 0 : i32
    %c0_i32_1 = arith.constant 0 : i32
    return %c0_i32, %c0_i32_0 : i32, i32
  }
  func.func @transform_1(%arg0: i32) -> (i32, i32) {
    %c0_i32 = arith.constant 0 : i32
    %c0_i32_0 = arith.constant 0 : i32
    %c0_i32_1 = arith.constant 0 : i32
    return %c0_i32, %c0_i32_0 : i32, i32
  }
  func.func @transform_2(%arg0: i32) -> (i32, i32) {
    %c0_i32 = arith.constant 0 : i32
    %c0_i32_0 = arith.constant 0 : i32
    %c0_i32_1 = arith.constant 0 : i32
    return %c0_i32, %c0_i32_0 : i32, i32
  }
}

module attributes {stable_mosaic.version = 11 : i64} {
  func.func @_fused_conv_bn_relu_kernel(%arg0: i32, %arg1: memref<16x576xbf16, #tpu.memory_space<vmem>>, %arg2: memref<576x128xbf16, #tpu.memory_space<vmem>>, %arg3: memref<16x128xbf16, #tpu.memory_space<vmem>>) attributes {dimension_semantics = [#tpu.dimension_semantics<arbitrary>], iteration_bounds = array<i64: 1>, scalar_prefetch = 0 : i64, scratch_operands = 0 : i64, tpu.core_type = #tpu.core_type<tc>, window_params = [{pipeline_mode = #tpu.pipeline_mode<synchronous>, transform_indices = @transform_0, window_bounds = array<i64: 16, 576>}, {pipeline_mode = #tpu.pipeline_mode<synchronous>, transform_indices = @transform_1, window_bounds = array<i64: 576, 128>}, {pipeline_mode = #tpu.pipeline_mode<synchronous>, transform_indices = @transform_2, window_bounds = array<i64: 16, 128>}]} {
    %c0 = arith.constant 0 : index
    %c0_0 = arith.constant 0 : index
    %0 = vector.load %arg1[%c0, %c0_0] : memref<16x576xbf16, #tpu.memory_space<vmem>>, vector<16x576xbf16>
    %c0_1 = arith.constant 0 : index
    %c0_2 = arith.constant 0 : index
    %1 = vector.load %arg2[%c0_1, %c0_2] : memref<576x128xbf16, #tpu.memory_space<vmem>>, vector<576x128xbf16>
    %cst = arith.constant dense<0.000000e+00> : vector<16x128xf32>
    %2 = tpu.matmul %0, %1, %cst {dimension_numbers = #tpu.dot_dimension_numbers<[1], [0], [0], [1], [0, 0, 1, 1], [], []>} : vector<16x576xbf16>, vector<576x128xbf16>, vector<16x128xf32> -> vector<16x128xf32>
    %cst_3 = arith.constant dense<0.000000e+00> : vector<128xf32>
    %3 = vector.multi_reduction <add>, %2, %cst_3 [0] : vector<16x128xf32> to vector<128xf32>
    %4 = vector.shape_cast %3 : vector<128xf32> to vector<1x128xf32>
    %cst_4 = arith.constant 1.250000e-01 : f32
    %5 = vector.broadcast %cst_4 : f32 to vector<1x128xf32>
    %6 = arith.mulf %4, %5 : vector<1x128xf32>
    %7 = arith.mulf %2, %2 : vector<16x128xf32>
    %cst_5 = arith.constant dense<0.000000e+00> : vector<128xf32>
    %8 = vector.multi_reduction <add>, %7, %cst_5 [0] : vector<16x128xf32> to vector<128xf32>
    %9 = vector.shape_cast %8 : vector<128xf32> to vector<1x128xf32>
    %cst_6 = arith.constant 1.250000e-01 : f32
    %10 = vector.broadcast %cst_6 : f32 to vector<1x128xf32>
    %11 = arith.mulf %9, %10 : vector<1x128xf32>
    %12 = arith.mulf %6, %6 : vector<1x128xf32>
    %13 = arith.subf %11, %12 : vector<1x128xf32>
    %cst_7 = arith.constant 0.000000e+00 : f32
    %14 = vector.broadcast %cst_7 : f32 to vector<1x128xf32>
    %15 = arith.maximumf %13, %14 : vector<1x128xf32>
    %cst_8 = arith.constant 9.99999974E-6 : f32
    %16 = vector.broadcast %cst_8 : f32 to vector<1x128xf32>
    %17 = arith.addf %15, %16 : vector<1x128xf32>
    %18 = math.rsqrt %17 : vector<1x128xf32>
    %cst_9 = arith.constant 0.000000e+00 : f32
    %19 = vector.broadcast %cst_9 : f32 to vector<1x128xf32>
    %20 = arith.subf %19, %6 : vector<1x128xf32>
    %21 = arith.mulf %20, %18 : vector<1x128xf32>
    %22 = vector.broadcast %18 : vector<1x128xf32> to vector<16x128xf32>
    %23 = arith.mulf %2, %22 : vector<16x128xf32>
    %24 = vector.broadcast %21 : vector<1x128xf32> to vector<16x128xf32>
    %25 = arith.addf %23, %24 : vector<16x128xf32>
    %cst_10 = arith.constant 0.000000e+00 : f32
    %26 = vector.broadcast %cst_10 : f32 to vector<16x128xf32>
    %27 = arith.maximumf %25, %26 : vector<16x128xf32>
    %28 = arith.truncf %27 : vector<16x128xf32> to vector<16x128xbf16>
    %c0_11 = arith.constant 0 : index
    %c0_12 = arith.constant 0 : index
    %29 = vector.load %arg3[%c0_11, %c0_12] : memref<16x128xbf16, #tpu.memory_space<vmem>>, vector<16x128xbf16>
    tpu.vector_store %arg3[%c0_11, %c0_12], %28 {strides = array<i32>} : memref<16x128xbf16, #tpu.memory_space<vmem>>, vector<16x128xbf16>,
    return
  }
  func.func @transform_0(%arg0: i32) -> (i32, i32) {
    %c0_i32 = arith.constant 0 : i32
    %c0_i32_0 = arith.constant 0 : i32
    %c0_i32_1 = arith.constant 0 : i32
    return %c0_i32, %c0_i32_0 : i32, i32
  }
  func.func @transform_1(%arg0: i32) -> (i32, i32) {
    %c0_i32 = arith.constant 0 : i32
    %c0_i32_0 = arith.constant 0 : i32
    %c0_i32_1 = arith.constant 0 : i32
    return %c0_i32, %c0_i32_0 : i32, i32
  }
  func.func @transform_2(%arg0: i32) -> (i32, i32) {
    %c0_i32 = arith.constant 0 : i32
    %c0_i32_0 = arith.constant 0 : i32
    %c0_i32_1 = arith.constant 0 : i32
    return %c0_i32, %c0_i32_0 : i32, i32
  }
}

</mosaic_0001>

<llo_original>
// kernel: cnn5max_forward.5
$region0: #{cnn5max_forward.5}
  #allocation0 [shape = 'u32[]', space=smem, size = 0x4, offset = 0x4, fixed_abs, tag = 'smem constant byte address 0x4 - core index']
  #allocation1 [shape = 'u32[144,128]{1,0:T(1,128)}', space=vmem, size = 0x12000, scoped, tag = 'internal scratch']
  %s0 = inlined_call_operand.vmem [shape: bf16[1808,75], index: 0, kind: input, shape index: {}]
  %s1 = inlined_call_operand.vmem [shape: bf16[75,128], index: 1, kind: input, shape index: {}]
  %s2 = inlined_call_operand.vmem [shape: bf16[1808,128], index: 2, kind: output, shape index: {}]
  %s3 = sld [smem:[#allocation0]]
  $region18: #{cnn5max_forward.5} parent=0
    _
  %s5 = ssub.s32 1, %s3
  %s6 = scalar_select 0, %s5, %s3
  // Predicated region
  $region2: #{cnn5max_forward.5} parent=0 // pred_check
    _
  $region3: #{cnn5max_forward.5} parent=0 // pred_check_branch
    %8 = sbr.rel (0) target = $region5
  $region4: #{cnn5max_forward.5} parent=0 // pred_region
    _
  $region5: #{cnn5max_forward.5} parent=0 // pred_fallthru
    _
  // Predicated region
  $region6: #{cnn5max_forward.5} parent=0 // pred_check
    _
  $region7: #{cnn5max_forward.5} parent=0 // pred_check_branch
    %10 = sbr.rel (0) target = $region9
  $region8: #{cnn5max_forward.5} parent=0 // pred_region
    _
  $region9: #{cnn5max_forward.5} parent=0 // pred_fallthru
    _
  %v12 = vld [vmem:[%s0] sm:$0xf]
  %v13 = vld [vmem:[%s0 + $0x4] sm:$0xf]
  %v14 = vld [vmem:[%s0 + $0x8] sm:$0xf]
  %v15 = vld [vmem:[%s0 + $0xc] sm:$0xf]
  %v16 = vld [vmem:[%s0 + $0x10] sm:$0xf]
  %v17 = vld [vmem:[%s0 + $0x14] sm:$0xf]
  %v18 = vld [vmem:[%s0 + $0x18] sm:$0xf]
  %v19 = vld [vmem:[%s0 + $0x1c] sm:$0xf]
  %v20 = vld [vmem:[%s0 + $0x20] sm:$0xf]
  %v21 = vld [vmem:[%s0 + $0x24] sm:$0xf]
  %v22 = vld [vmem:[%s0 + $0x28] sm:$0xf]
  %v23 = vld [vmem:[%s0 + $0x2c] sm:$0xf]
  %v24 = vld [vmem:[%s0 + $0x30] sm:$0xf]
  %v25 = vld [vmem:[%s0 + $0x34] sm:$0xf]
  %v26 = vld [vmem:[%s0 + $0x38] sm:$0xf]
  %v27 = vld [vmem:[%s0 + $0x3c] sm:$0xf]
  %v28 = vld [vmem:[%s0 + $0x40] sm:$0xf]
  %v29 = vld [vmem:[%s0 + $0x44] sm:$0xf]
  %v30 = vld [vmem:[%s0 + $0x48] sm:$0xf]
  %v31 = vld [vmem:[%s0 + $0x4c] sm:$0xf]
  %v32 = vld [vmem:[%s0 + $0x50] sm:$0xf]
  %v33 = vld [vmem:[%s0 + $0x54] sm:$0xf]
  %v34 = vld [vmem:[%s0 + $0x58] sm:$0xf]
  %v35 = vld [vmem:[%s0 + $0x5c] sm:$0xf]
  %v36 = vld [vmem:[%s0 + $0x60] sm:$0xf]
  %v37 = vld [vmem:[%s0 + $0x64] sm:$0xf]
  %v38 = vld [vmem:[%s0 + $0x68] sm:$0xf]
  %v39 = vld [vmem:[%s0 + $0x6c] sm:$0xf]
  %v40 = vld [vmem:[%s0 + $0x70] sm:$0xf]
  %v41 = vld [vmem:[%s0 + $0x74] sm:$0xf]
  %v42 = vld [vmem:[%s0 + $0x78] sm:$0xf]
  %v43 = vld [vmem:[%s0 + $0x7c] sm:$0xf]
  %v44 = vld [vmem:[%s0 + $0x80] sm:$0xf]
  %v45 = vld [vmem:[%s0 + $0x84] sm:$0xf]
  %v46 = vld [vmem:[%s0 + $0x88] sm:$0xf]
  %v47 = vld [vmem:[%s0 + $0x8c] sm:$0xf]
  %v48 = vld [vmem:[%s0 + $0x90] sm:$0xf]
  %v49 = vld [vmem:[%s0 + $0x94] sm:$0xf]
  %v50 = vld [vmem:[%s0 + $0x98] sm:$0xf]
  %v51 = vld [vmem:[%s0 + $0x9c] sm:$0xf]
  %v52 = vld [vmem:[%s0 + $0xa0] sm:$0xf]
  %v53 = vld [vmem:[%s0 + $0xa4] sm:$0xf]
  %v54 = vld [vmem:[%s0 + $0xa8] sm:$0xf]
  %v55 = vld [vmem:[%s0 + $0xac] sm:$0xf]
  %v56 = vld [vmem:[%s0 + $0xb0] sm:$0xf]
  %v57 = vld [vmem:[%s0 + $0xb4] sm:$0xf]
  %v58 = vld [vmem:[%s0 + $0xb8] sm:$0xf]
  %v59 = vld [vmem:[%s0 + $0xbc] sm:$0xf]
  %v60 = vld [vmem:[%s0 + $0xc0] sm:$0xf]
  %v61 = vld [vmem:[%s0 + $0xc4] sm:$0xf]
  %v62 = vld [vmem:[%s0 + $0xc8] sm:$0xf]
  %v63 = vld [vmem:[%s0 + $0xcc] sm:$0xf]
  %v64 = vld [vmem:[%s0 + $0xd0] sm:$0xf]
  %v65 = vld [vmem:[%s0 + $0xd4] sm:$0xf]
  %v66 = vld [vmem:[%s0 + $0xd8] sm:$0xf]
  %v67 = vld [vmem:[%s0 + $0xdc] sm:$0xf]
  %v68 = vld [vmem:[%s0 + $0xe0] sm:$0xf]
  %v69 = vld [vmem:[%s0 + $0xe4] sm:$0xf]
  %v70 = vld [vmem:[%s0 + $0xe8] sm:$0xf]
  %v71 = vld [vmem:[%s0 + $0xec] sm:$0xf]
  %v72 = vld [vmem:[%s0 + $0xf0] sm:$0xf]
  %v73 = vld [vmem:[%s0 + $0xf4] sm:$0xf]
  %v74 = vld [vmem:[%s0 + $0xf8] sm:$0xf]
  %v75 = vld [vmem:[%s0 + $0xfc] sm:$0xf]
  %v76 = vld [vmem:[%s0 + $0x100] sm:$0xf]
  %v77 = vld [vmem:[%s0 + $0x104] sm:$0xf]
  %v78 = vld [vmem:[%s0 + $0x108] sm:$0xf]
  %v79 = vld [vmem:[%s0 + $0x10c] sm:$0xf]
  %v80 = vld [vmem:[%s0 + $0x110] sm:$0xf]
  %v81 = vld [vmem:[%s0 + $0x114] sm:$0xf]
  %v82 = vld [vmem:[%s0 + $0x118] sm:$0xf]
  %v83 = vld [vmem:[%s0 + $0x11c] sm:$0xf]
  %v84 = vld [vmem:[%s0 + $0x120] sm:$0xf]
  %v85 = vld [vmem:[%s0 + $0x124] sm:$0xf]
  %v86 = vld [vmem:[%s0 + $0x128] sm:$0xf]
  %v87 = vld [vmem:[%s0 + $0x12c] sm:$0xf]
  %v88 = vld [vmem:[%s0 + $0x130] sm:$0xf]
  %v89 = vld [vmem:[%s0 + $0x134] sm:$0xf]
  %v90 = vld [vmem:[%s0 + $0x138] sm:$0xf]
  %v91 = vld [vmem:[%s0 + $0x13c] sm:$0xf]
  %v92 = vld [vmem:[%s0 + $0x140] sm:$0xf]
  %v93 = vld [vmem:[%s0 + $0x144] sm:$0xf]
  %v94 = vld [vmem:[%s0 + $0x148] sm:$0xf]
  %v95 = vld [vmem:[%s0 + $0x14c] sm:$0xf]
  %v96 = vld [vmem:[%s0 + $0x150] sm:$0xf]
  %v97 = vld [vmem:[%s0 + $0x154] sm:$0xf]
  %v98 = vld [vmem:[%s0 + $0x158] sm:$0xf]
  %v99 = vld [vmem:[%s0 + $0x15c] sm:$0xf]
  %v100 = vld [vmem:[%s0 + $0x160] sm:$0xf]
  %v101 = vld [vmem:[%s0 + $0x164] sm:$0xf]
  %v102 = vld [vmem:[%s0 + $0x168] sm:$0xf]
  %v103 = vld [vmem:[%s0 + $0x16c] sm:$0xf]
  %v104 = vld [vmem:[%s0 + $0x170] sm:$0xf]
  %v105 = vld [vmem:[%s0 + $0x174] sm:$0xf]
  %v106 = vld [vmem:[%s0 + $0x178] sm:$0xf]
  %v107 = vld [vmem:[%s0 + $0x17c] sm:$0xf]
  %v108 = vld [vmem:[%s0 + $0x180] sm:$0xf]
  %v109 = vld [vmem:[%s0 + $0x184] sm:$0xf]
  %v110 = vld [vmem:[%s0 + $0x188] sm:$0xf]
  %v111 = vld [vmem:[%s0 + $0x18c] sm:$0xf]
  %v112 = vld [vmem:[%s0 + $0x190] sm:$0xf]
  %v113 = vld [vmem:[%s0 + $0x194] sm:$0xf]
  %v114 = vld [vmem:[%s0 + $0x198] sm:$0xf]
  %v115 = vld [vmem:[%s0 + $0x19c] sm:$0xf]
  %v116 = vld [vmem:[%s0 + $0x1a0] sm:$0xf]
  %v117 = vld [vmem:[%s0 + $0x1a4] sm:$0xf]
  %v118 = vld [vmem:[%s0 + $0x1a8] sm:$0xf]
  %v119 = vld [vmem:[%s0 + $0x1ac] sm:$0xf]
  %v120 = vld [vmem:[%s0 + $0x1b0] sm:$0xf]
  %v121 = vld [vmem:[%s0 + $0x1b4] sm:$0xf]
  %v122 = vld [vmem:[%s0 + $0x1b8] sm:$0xf]
  %v123 = vld [vmem:[%s0 + $0x1bc] sm:$0xf]
  %v124 = vld [vmem:[%s0 + $0x1c0] sm:$0xf]
  %v125 = vld [vmem:[%s0 + $0x1c4] sm:$0xf]
  %v126 = vld [vmem:[%s0 + $0x1c8] sm:$0xf]
  %v127 = vld [vmem:[%s0 + $0x1cc] sm:$0xf]
  %v128 = vld [vmem:[%s0 + $0x1d0] sm:$0xf]
  %v129 = vld [vmem:[%s0 + $0x1d4] sm:$0xf]
  %v130 = vld [vmem:[%s0 + $0x1d8] sm:$0xf]
  %v131 = vld [vmem:[%s0 + $0x1dc] sm:$0xf]
  %v132 = vld [vmem:[%s0 + $0x1e0] sm:$0xf]
  %v133 = vld [vmem:[%s0 + $0x1e4] sm:$0xf]
  %v134 = vld [vmem:[%s0 + $0x1e8] sm:$0xf]
  %v135 = vld [vmem:[%s0 + $0x1ec] sm:$0xf]
  %v136 = vld [vmem:[%s0 + $0x1f0] sm:$0xf]
  %v137 = vld [vmem:[%s0 + $0x1f4] sm:$0xf]
  %v138 = vld [vmem:[%s0 + $0x1f8] sm:$0xf]
  %v139 = vld [vmem:[%s0 + $0x1fc] sm:$0xf]
  %v140 = vld [vmem:[%s0 + $0x200] sm:$0xf]
  %v141 = vld [vmem:[%s0 + $0x204] sm:$0xf]
  %v142 = vld [vmem:[%s0 + $0x208] sm:$0xf]
  %v143 = vld [vmem:[%s0 + $0x20c] sm:$0xf]
  %v144 = vld [vmem:[%s0 + $0x210] sm:$0xf]
  %v145 = vld [vmem:[%s0 + $0x214] sm:$0xf]
  %v146 = vld [vmem:[%s0 + $0x218] sm:$0xf]
  %v147 = vld [vmem:[%s0 + $0x21c] sm:$0xf]
  %v148 = vld [vmem:[%s0 + $0x220] sm:$0xf]
  %v149 = vld [vmem:[%s0 + $0x224] sm:$0xf]
  %v150 = vld [vmem:[%s0 + $0x228] sm:$0xf]
  %v151 = vld [vmem:[%s0 + $0x22c] sm:$0xf]
  %v152 = vld [vmem:[%s0 + $0x230] sm:$0xf]
  %v153 = vld [vmem:[%s0 + $0x234] sm:$0xf]
  %v154 = vld [vmem:[%s0 + $0x238] sm:$0xf]
  %v155 = vld [vmem:[%s0 + $0x23c] sm:$0xf]
  %v156 = vld [vmem:[%s0 + $0x240] sm:$0xf]
  %v157 = vld [vmem:[%s0 + $0x244] sm:$0xf]
  %v158 = vld [vmem:[%s0 + $0x248] sm:$0xf]
  %v159 = vld [vmem:[%s0 + $0x24c] sm:$0xf]
  %v160 = vld [vmem:[%s0 + $0x250] sm:$0xf]
  %v161 = vld [vmem:[%s0 + $0x254] sm:$0xf]
  %v162 = vld [vmem:[%s0 + $0x258] sm:$0xf]
  %v163 = vld [vmem:[%s0 + $0x25c] sm:$0xf]
  %v164 = vld [vmem:[%s0 + $0x260] sm:$0xf]
  %v165 = vld [vmem:[%s0 + $0x264] sm:$0xf]
  %v166 = vld [vmem:[%s0 + $0x268] sm:$0xf]
  %v167 = vld [vmem:[%s0 + $0x26c] sm:$0xf]
  %v168 = vld [vmem:[%s0 + $0x270] sm:$0xf]
  %v169 = vld [vmem:[%s0 + $0x274] sm:$0xf]
  %v170 = vld [vmem:[%s0 + $0x278] sm:$0xf]
  %v171 = vld [vmem:[%s0 + $0x27c] sm:$0xf]
  %v172 = vld [vmem:[%s0 + $0x280] sm:$0xf]
  %v173 = vld [vmem:[%s0 + $0x284] sm:$0xf]
  %v174 = vld [vmem:[%s0 + $0x288] sm:$0xf]
  %v175 = vld [vmem:[%s0 + $0x28c] sm:$0xf]
  %v176 = vld [vmem:[%s0 + $0x290] sm:$0xf]
  %v177 = vld [vmem:[%s0 + $0x294] sm:$0xf]
  %v178 = vld [vmem:[%s0 + $0x298] sm:$0xf]
  %v179 = vld [vmem:[%s0 + $0x29c] sm:$0xf]
  %v180 = vld [vmem:[%s0 + $0x2a0] sm:$0xf]
  %v181 = vld [vmem:[%s0 + $0x2a4] sm:$0xf]
  %v182 = vld [vmem:[%s0 + $0x2a8] sm:$0xf]
  %v183 = vld [vmem:[%s0 + $0x2ac] sm:$0xf]
  %v184 = vld [vmem:[%s0 + $0x2b0] sm:$0xf]
  %v185 = vld [vmem:[%s0 + $0x2b4] sm:$0xf]
  %v186 = vld [vmem:[%s0 + $0x2b8] sm:$0xf]
  %v187 = vld [vmem:[%s0 + $0x2bc] sm:$0xf]
  %v188 = vld [vmem:[%s0 + $0x2c0] sm:$0xf]
  %v189 = vld [vmem:[%s0 + $0x2c4] sm:$0xf]
  %v190 = vld [vmem:[%s0 + $0x2c8] sm:$0xf]
  %v191 = vld [vmem:[%s0 + $0x2cc] sm:$0xf]
  %v192 = vld [vmem:[%s0 + $0x2d0] sm:$0xf]
  %v193 = vld [vmem:[%s0 + $0x2d4] sm:$0xf]
  %v194 = vld [vmem:[%s0 + $0x2d8] sm:$0xf]
  %v195 = vld [vmem:[%s0 + $0x2dc] sm:$0xf]
  %v196 = vld [vmem:[%s0 + $0x2e0] sm:$0xf]
  %v197 = vld [vmem:[%s0 + $0x2e4] sm:$0xf]
  %v198 = vld [vmem:[%s0 + $0x2e8] sm:$0xf]
  %v199 = vld [vmem:[%s0 + $0x2ec] sm:$0xf]
  %v200 = vld [vmem:[%s0 + $0x2f0] sm:$0xf]
  %v201 = vld [vmem:[%s0 + $0x2f4] sm:$0xf]
  %v202 = vld [vmem:[%s0 + $0x2f8] sm:$0xf]
  %v203 = vld [vmem:[%s0 + $0x2fc] sm:$0xf]
  %v204 = vld [vmem:[%s0 + $0x300] sm:$0xf]
  %v205 = vld [vmem:[%s0 + $0x304] sm:$0xf]
  %v206 = vld [vmem:[%s0 + $0x308] sm:$0xf]
  %v207 = vld [vmem:[%s0 + $0x30c] sm:$0xf]
  %v208 = vld [vmem:[%s0 + $0x310] sm:$0xf]
  %v209 = vld [vmem:[%s0 + $0x314] sm:$0xf]
  %v210 = vld [vmem:[%s0 + $0x318] sm:$0xf]
  %v211 = vld [vmem:[%s0 + $0x31c] sm:$0xf]
  %v212 = vld [vmem:[%s0 + $0x320] sm:$0xf]
  %v213 = vld [vmem:[%s0 + $0x324] sm:$0xf]
  %v214 = vld [vmem:[%s0 + $0x328] sm:$0xf]
  %v215 = vld [vmem:[%s0 + $0x32c] sm:$0xf]
  %v216 = vld [vmem:[%s0 + $0x330] sm:$0xf]
  %v217 = vld [vmem:[%s0 + $0x334] sm:$0xf]
  %v218 = vld [vmem:[%s0 + $0x338] sm:$0xf]
  %v219 = vld [vmem:[%s0 + $0x33c] sm:$0xf]
  %v220 = vld [vmem:[%s0 + $0x340] sm:$0xf]
  %v221 = vld [vmem:[%s0 + $0x344] sm:$0xf]
  %v222 = vld [vmem:[%s0 + $0x348] sm:$0xf]
  %v223 = vld [vmem:[%s0 + $0x34c] sm:$0xf]
  %v224 = vld [vmem:[%s0 + $0x350] sm:$0xf]
  %v225 = vld [vmem:[%s0 + $0x354] sm:$0xf]
  %v226 = vld [vmem:[%s0 + $0x358] sm:$0xf]
  %v227 = vld [vmem:[%s0 + $0x35c] sm:$0xf]
  %v228 = vld [vmem:[%s0 + $0x360] sm:$0xf]
  %v229 = vld [vmem:[%s0 + $0x364] sm:$0xf]
  %v230 = vld [vmem:[%s0 + $0x368] sm:$0xf]
  %v231 = vld [vmem:[%s0 + $0x36c] sm:$0xf]
  %v232 = vld [vmem:[%s0 + $0x370] sm:$0xf]
  %v233 = vld [vmem:[%s0 + $0x374] sm:$0xf]
  %v234 = vld [vmem:[%s0 + $0x378] sm:$0xf]
  %v235 = vld [vmem:[%s0 + $0x37c] sm:$0xf]
  %v236 = vld [vmem:[%s0 + $0x380] sm:$0xf]
  %v237 = vld [vmem:[%s0 + $0x384] sm:$0xf]
  %v238 = vld [vmem:[%s1] sm:$0xf]
  %v239 = vld [vmem:[%s1 + $0x4] sm:$0xf]
  %v240 = vld [vmem:[%s1 + $0x8] sm:$0xf]
  %v241 = vld [vmem:[%s1 + $0xc] sm:$0xf]
  %v242 = vld [vmem:[%s1 + $0x10] sm:$0xf]
  %v243 = vld [vmem:[%s1 + $0x14] sm:$0xf]
  %v244 = vld [vmem:[%s1 + $0x18] sm:$0xf]
  %v245 = vld [vmem:[%s1 + $0x1c] sm:$0xf]
  %v246 = vld [vmem:[%s1 + $0x20] sm:$0xf]
  %v247 = vld [vmem:[%s1 + $0x24] sm:$0x3]
  %v474 = vunpack.c.l.b16 %v12
  %v475 = vunpack.c.l.b16 %v13
  %v476 = vunpack.c.l.b16 %v14
  %v477 = vunpack.c.l.b16 %v15
  %v478 = vunpack.c.l.b16 %v16
  %v479 = vunpack.c.l.b16 %v17
  %v480 = vunpack.c.l.b16 %v18
  %v481 = vunpack.c.l.b16 %v19
  %v482 = vunpack.c.l.b16 %v20
  %v483 = vunpack.c.l.b16 %v21
  %v484 = vunpack.c.l.b16 %v22
  %v485 = vunpack.c.l.b16 %v23
  %v486 = vunpack.c.l.b16 %v24
  %v487 = vunpack.c.l.b16 %v25
  %v488 = vunpack.c.l.b16 %v26
  %v489 = vunpack.c.l.b16 %v27
  %v490 = vunpack.c.l.b16 %v28
  %v491 = vunpack.c.l.b16 %v29
  %v492 = vunpack.c.l.b16 %v30
  %v493 = vunpack.c.l.b16 %v31
  %v494 = vunpack.c.l.b16 %v32
  %v495 = vunpack.c.l.b16 %v33
  %v496 = vunpack.c.l.b16 %v34
  %v497 = vunpack.c.l.b16 %v35
  %v498 = vunpack.c.l.b16 %v36
  %v499 = vunpack.c.l.b16 %v37
  %v500 = vunpack.c.l.b16 %v38
  %v501 = vunpack.c.l.b16 %v39
  %v502 = vunpack.c.l.b16 %v40
  %v503 = vunpack.c.l.b16 %v41
  %v504 = vunpack.c.l.b16 %v42
  %v505 = vunpack.c.l.b16 %v43
  %v506 = vunpack.c.l.b16 %v44
  %v507 = vunpack.c.l.b16 %v45
  %v508 = vunpack.c.l.b16 %v46
  %v509 = vunpack.c.l.b16 %v47
  %v510 = vunpack.c.l.b16 %v48
  %v511 = vunpack.c.l.b16 %v49
  %v512 = vunpack.c.l.b16 %v50
  %v513 = vunpack.c.l.b16 %v51
  %v514 = vunpack.c.l.b16 %v52
  %v515 = vunpack.c.l.b16 %v53
  %v516 = vunpack.c.l.b16 %v54
  %v517 = vunpack.c.l.b16 %v55
  %v518 = vunpack.c.l.b16 %v56
  %v519 = vunpack.c.l.b16 %v57
  %v520 = vunpack.c.l.b16 %v58
  %v521 = vunpack.c.l.b16 %v59
  %v522 = vunpack.c.l.b16 %v60
  %v523 = vunpack.c.l.b16 %v61
  %v524 = vunpack.c.l.b16 %v62
  %v525 = vunpack.c.l.b16 %v63
  %v526 = vunpack.c.l.b16 %v64
  %v527 = vunpack.c.l.b16 %v65
  %v528 = vunpack.c.l.b16 %v66
  %v529 = vunpack.c.l.b16 %v67
  %v530 = vunpack.c.l.b16 %v68
  %v531 = vunpack.c.l.b16 %v69
  %v532 = vunpack.c.l.b16 %v70
  %v533 = vunpack.c.l.b16 %v71
  %v534 = vunpack.c.l.b16 %v72
  %v535 = vunpack.c.l.b16 %v73
  %v536 = vunpack.c.l.b16 %v74
  %v537 = vunpack.c.l.b16 %v75
  %v538 = vunpack.c.l.b16 %v76
  %v539 = vunpack.c.l.b16 %v77
  %v540 = vunpack.c.l.b16 %v78
  %v541 = vunpack.c.l.b16 %v79
  %v542 = vunpack.c.l.b16 %v80
  %v543 = vunpack.c.l.b16 %v81
  %v544 = vunpack.c.l.b16 %v82
  %v545 = vunpack.c.l.b16 %v83
  %v546 = vunpack.c.l.b16 %v84
  %v547 = vunpack.c.l.b16 %v85
  %v548 = vunpack.c.l.b16 %v86
  %v549 = vunpack.c.l.b16 %v87
  %v550 = vunpack.c.l.b16 %v88
  %v551 = vunpack.c.l.b16 %v89
  %v552 = vunpack.c.l.b16 %v90
  %v553 = vunpack.c.l.b16 %v91
  %v554 = vunpack.c.l.b16 %v92
  %v555 = vunpack.c.l.b16 %v93
  %v556 = vunpack.c.l.b16 %v94
  %v557 = vunpack.c.l.b16 %v95
  %v558 = vunpack.c.l.b16 %v96
  %v559 = vunpack.c.l.b16 %v97
  %v560 = vunpack.c.l.b16 %v98
  %v561 = vunpack.c.l.b16 %v99
  %v562 = vunpack.c.l.b16 %v100
  %v563 = vunpack.c.l.b16 %v101
  %v564 = vunpack.c.l.b16 %v102
  %v565 = vunpack.c.l.b16 %v103
  %v566 = vunpack.c.l.b16 %v104
  %v567 = vunpack.c.l.b16 %v105
  %v568 = vunpack.c.l.b16 %v106
  %v569 = vunpack.c.l.b16 %v107
  %v570 = vunpack.c.l.b16 %v108
  %v571 = vunpack.c.l.b16 %v109
  %v572 = vunpack.c.l.b16 %v110
  %v573 = vunpack.c.l.b16 %v111
  %v574 = vunpack.c.l.b16 %v112
  %v575 = vunpack.c.l.b16 %v113
  %v576 = vunpack.c.l.b16 %v114
  %v577 = vunpack.c.l.b16 %v115
  %v578 = vunpack.c.l.b16 %v116
  %v579 = vunpack.c.l.b16 %v117
  %v580 = vunpack.c.l.b16 %v118
  %v581 = vunpack.c.l.b16 %v119
  %v582 = vunpack.c.l.b16 %v120
  %v583 = vunpack.c.l.b16 %v121
  %v584 = vunpack.c.l.b16 %v122
  %v585 = vunpack.c.l.b16 %v123
  %v586 = vunpack.c.l.b16 %v124
  %v587 = vunpack.c.l.b16 %v125
  %v588 = vunpack.c.l.b16 %v126
  %v589 = vunpack.c.l.b16 %v127
  %v590 = vunpack.c.l.b16 %v128
  %v591 = vunpack.c.l.b16 %v129
  %v592 = vunpack.c.l.b16 %v130
  %v593 = vunpack.c.l.b16 %v131
  %v594 = vunpack.c.l.b16 %v132
  %v595 = vunpack.c.l.b16 %v133
  %v596 = vunpack.c.l.b16 %v134
  %v597 = vunpack.c.l.b16 %v135
  %v598 = vunpack.c.l.b16 %v136
  %v599 = vunpack.c.l.b16 %v137
  %v600 = vunpack.c.l.b16 %v138
  %v601 = vunpack.c.l.b16 %v139
  %v602 = vunpack.c.l.b16 %v140
  %v603 = vunpack.c.l.b16 %v141
  %v604 = vunpack.c.l.b16 %v142
  %v605 = vunpack.c.l.b16 %v143
  %v606 = vunpack.c.l.b16 %v144
  %v607 = vunpack.c.l.b16 %v145
  %v608 = vunpack.c.l.b16 %v146
  %v609 = vunpack.c.l.b16 %v147
  %v610 = vunpack.c.l.b16 %v148
  %v611 = vunpack.c.l.b16 %v149
  %v612 = vunpack.c.l.b16 %v150
  %v613 = vunpack.c.l.b16 %v151
  %v614 = vunpack.c.l.b16 %v152
  %v615 = vunpack.c.l.b16 %v153
  %v616 = vunpack.c.l.b16 %v154
  %v617 = vunpack.c.l.b16 %v155
  %v618 = vunpack.c.l.b16 %v156
  %v619 = vunpack.c.l.b16 %v157
  %v620 = vunpack.c.l.b16 %v158
  %v621 = vunpack.c.l.b16 %v159
  %v622 = vunpack.c.l.b16 %v160
  %v623 = vunpack.c.l.b16 %v161
  %v624 = vunpack.c.l.b16 %v162
  %v625 = vunpack.c.l.b16 %v163
  %v626 = vunpack.c.l.b16 %v164
  %v627 = vunpack.c.l.b16 %v165
  %v628 = vunpack.c.l.b16 %v166
  %v629 = vunpack.c.l.b16 %v167
  %v630 = vunpack.c.l.b16 %v168
  %v631 = vunpack.c.l.b16 %v169
  %v632 = vunpack.c.l.b16 %v170
  %v633 = vunpack.c.l.b16 %v171
  %v634 = vunpack.c.l.b16 %v172
  %v635 = vunpack.c.l.b16 %v173
  %v636 = vunpack.c.l.b16 %v174
  %v637 = vunpack.c.l.b16 %v175
  %v638 = vunpack.c.l.b16 %v176
  %v639 = vunpack.c.l.b16 %v177
  %v640 = vunpack.c.l.b16 %v178
  %v641 = vunpack.c.l.b16 %v179
  %v642 = vunpack.c.l.b16 %v180
  %v643 = vunpack.c.l.b16 %v181
  %v644 = vunpack.c.l.b16 %v182
  %v645 = vunpack.c.l.b16 %v183
  %v646 = vunpack.c.l.b16 %v184
  %v647 = vunpack.c.l.b16 %v185
  %v648 = vunpack.c.l.b16 %v186
  %v649 = vunpack.c.l.b16 %v187
  %v650 = vunpack.c.l.b16 %v188
  %v651 = vunpack.c.l.b16 %v189
  %v652 = vunpack.c.l.b16 %v190
  %v653 = vunpack.c.l.b16 %v191
  %v654 = vunpack.c.l.b16 %v192
  %v655 = vunpack.c.l.b16 %v193
  %v656 = vunpack.c.l.b16 %v194
  %v657 = vunpack.c.l.b16 %v195
  %v658 = vunpack.c.l.b16 %v196
  %v659 = vunpack.c.l.b16 %v197
  %v660 = vunpack.c.l.b16 %v198
  %v661 = vunpack.c.l.b16 %v199
  %v662 = vunpack.c.l.b16 %v200
  %v663 = vunpack.c.l.b16 %v201
  %v664 = vunpack.c.l.b16 %v202
  %v665 = vunpack.c.l.b16 %v203
  %v666 = vunpack.c.l.b16 %v204
  %v667 = vunpack.c.l.b16 %v205
  %v668 = vunpack.c.l.b16 %v206
  %v669 = vunpack.c.l.b16 %v207
  %v670 = vunpack.c.l.b16 %v208
  %v671 = vunpack.c.l.b16 %v209
  %v672 = vunpack.c.l.b16 %v210
  %v673 = vunpack.c.l.b16 %v211
  %v674 = vunpack.c.l.b16 %v212
  %v675 = vunpack.c.l.b16 %v213
  %v676 = vunpack.c.l.b16 %v214
  %v677 = vunpack.c.l.b16 %v215
  %v678 = vunpack.c.l.b16 %v216
  %v679 = vunpack.c.l.b16 %v217
  %v680 = vunpack.c.l.b16 %v218
  %v681 = vunpack.c.l.b16 %v219
  %v682 = vunpack.c.l.b16 %v220
  %v683 = vunpack.c.l.b16 %v221
  %v684 = vunpack.c.l.b16 %v222
  %v685 = vunpack.c.l.b16 %v223
  %v686 = vunpack.c.l.b16 %v224
  %v687 = vunpack.c.l.b16 %v225
  %v688 = vunpack.c.l.b16 %v226
  %v689 = vunpack.c.l.b16 %v227
  %v690 = vunpack.c.l.b16 %v228
  %v691 = vunpack.c.l.b16 %v229
  %v692 = vunpack.c.l.b16 %v230
  %v693 = vunpack.c.l.b16 %v231
  %v694 = vunpack.c.l.b16 %v232
  %v695 = vunpack.c.l.b16 %v233
  %v696 = vunpack.c.l.b16 %v234
  %v697 = vunpack.c.l.b16 %v235
  %v698 = vunpack.c.l.b16 %v236
  %v699 = vunpack.c.l.b16 %v237
  %v700 = vpack.c.b16 %v475, %v474
  %v701 = vpack.c.b16 %v477, %v476
  %v702 = vpack.c.b16 %v479, %v478
  %v703 = vpack.c.b16 %v481, %v480
  %v704 = vpack.c.b16 %v483, %v482
  %v705 = vpack.c.b16 %v485, %v484
  %v706 = vpack.c.b16 %v487, %v486
  %v707 = vpack.c.b16 %v489, %v488
  %v708 = vpack.c.b16 %v491, %v490
  %v709 = vpack.c.b16 %v493, %v492
  %v710 = vpack.c.b16 %v495, %v494
  %v711 = vpack.c.b16 %v497, %v496
  %v712 = vpack.c.b16 %v499, %v498
  %v713 = vpack.c.b16 %v501, %v500
  %v714 = vpack.c.b16 %v503, %v502
  %v715 = vpack.c.b16 %v505, %v504
  %v716 = vpack.c.b16 %v507, %v506
  %v717 = vpack.c.b16 %v509, %v508
  %v718 = vpack.c.b16 %v511, %v510
  %v719 = vpack.c.b16 %v513, %v512
  %v720 = vpack.c.b16 %v515, %v514
  %v721 = vpack.c.b16 %v517, %v516
  %v722 = vpack.c.b16 %v519, %v518
  %v723 = vpack.c.b16 %v521, %v520
  %v724 = vpack.c.b16 %v523, %v522
  %v725 = vpack.c.b16 %v525, %v524
  %v726 = vpack.c.b16 %v527, %v526
  %v727 = vpack.c.b16 %v529, %v528
  %v728 = vpack.c.b16 %v531, %v530
  %v729 = vpack.c.b16 %v533, %v532
  %v730 = vpack.c.b16 %v535, %v534
  %v731 = vpack.c.b16 %v537, %v536
  %v732 = vpack.c.b16 %v539, %v538
  %v733 = vpack.c.b16 %v541, %v540
  %v734 = vpack.c.b16 %v543, %v542
  %v735 = vpack.c.b16 %v545, %v544
  %v736 = vpack.c.b16 %v547, %v546
  %v737 = vpack.c.b16 %v549, %v548
  %v738 = vpack.c.b16 %v551, %v550
  %v739 = vpack.c.b16 %v553, %v552
  %v740 = vpack.c.b16 %v555, %v554
  %v741 = vpack.c.b16 %v557, %v556
  %v742 = vpack.c.b16 %v559, %v558
  %v743 = vpack.c.b16 %v561, %v560
  %v744 = vpack.c.b16 %v563, %v562
  %v745 = vpack.c.b16 %v565, %v564
  %v746 = vpack.c.b16 %v567, %v566
  %v747 = vpack.c.b16 %v569, %v568
  %v748 = vpack.c.b16 %v571, %v570
  %v749 = vpack.c.b16 %v573, %v572
  %v750 = vpack.c.b16 %v575, %v574
  %v751 = vpack.c.b16 %v577, %v576
  %v752 = vpack.c.b16 %v579, %v578
  %v753 = vpack.c.b16 %v581, %v580
  %v754 = vpack.c.b16 %v583, %v582
  %v755 = vpack.c.b16 %v585, %v584
  %v756 = vpack.c.b16 %v587, %v586
  %v757 = vpack.c.b16 %v589, %v588
  %v758 = vpack.c.b16 %v591, %v590
  %v759 = vpack.c.b16 %v593, %v592
  %v760 = vpack.c.b16 %v595, %v594
  %v761 = vpack.c.b16 %v597, %v596
  %v762 = vpack.c.b16 %v599, %v598
  %v763 = vpack.c.b16 %v601, %v600
  %v764 = vpack.c.b16 %v603, %v602
  %v765 = vpack.c.b16 %v605, %v604
  %v766 = vpack.c.b16 %v607, %v606
  %v767 = vpack.c.b16 %v609, %v608
  %v768 = vpack.c.b16 %v611, %v610
  %v769 = vpack.c.b16 %v613, %v612
  %v770 = vpack.c.b16 %v615, %v614
  %v771 = vpack.c.b16 %v617, %v616
  %v772 = vpack.c.b16 %v619, %v618
  %v773 = vpack.c.b16 %v621, %v620
  %v774 = vpack.c.b16 %v623, %v622
  %v775 = vpack.c.b16 %v625, %v624
  %v776 = vpack.c.b16 %v627, %v626
  %v777 = vpack.c.b16 %v629, %v628
  %v778 = vpack.c.b16 %v631, %v630
  %v779 = vpack.c.b16 %v633, %v632
  %v780 = vpack.c.b16 %v635, %v634
  %v781 = vpack.c.b16 %v637, %v636
  %v782 = vpack.c.b16 %v639, %v638
  %v783 = vpack.c.b16 %v641, %v640
  %v784 = vpack.c.b16 %v643, %v642
  %v785 = vpack.c.b16 %v645, %v644
  %v786 = vpack.c.b16 %v647, %v646
  %v787 = vpack.c.b16 %v649, %v648
  %v788 = vpack.c.b16 %v651, %v650
  %v789 = vpack.c.b16 %v653, %v652
  %v790 = vpack.c.b16 %v655, %v654
  %v791 = vpack.c.b16 %v657, %v656
  %v792 = vpack.c.b16 %v659, %v658
  %v793 = vpack.c.b16 %v661, %v660
  %v794 = vpack.c.b16 %v663, %v662
  %v795 = vpack.c.b16 %v665, %v664
  %v796 = vpack.c.b16 %v667, %v666
  %v797 = vpack.c.b16 %v669, %v668
  %v798 = vpack.c.b16 %v671, %v670
  %v799 = vpack.c.b16 %v673, %v672
  %v800 = vpack.c.b16 %v675, %v674
  %v801 = vpack.c.b16 %v677, %v676
  %v802 = vpack.c.b16 %v679, %v678
  %v803 = vpack.c.b16 %v681, %v680
  %v804 = vpack.c.b16 %v683, %v682
  %v805 = vpack.c.b16 %v685, %v684
  %v806 = vpack.c.b16 %v687, %v686
  %v807 = vpack.c.b16 %v689, %v688
  %v808 = vpack.c.b16 %v691, %v690
  %v809 = vpack.c.b16 %v693, %v692
  %v810 = vpack.c.b16 %v695, %v694
  %v811 = vpack.c.b16 %v697, %v696
  %v812 = vpack.c.b16 %v699, %v698
  %v823 = vunpack.c.l.b16 %v238
  %v824 = vunpack.c.l.b16 %v239
  %v825 = vunpack.c.l.b16 %v240
  %v826 = vunpack.c.l.b16 %v241
  %v827 = vunpack.c.l.b16 %v242
  %v828 = vunpack.c.l.b16 %v243
  %v829 = vunpack.c.l.b16 %v244
  %v830 = vunpack.c.l.b16 %v245
  %v831 = vunpack.c.l.b16 %v246
  %v832 = vunpack.c.l.b16 %v247
  %v833 = vpack.c.b16 %v824, %v823
  %v834 = vpack.c.b16 %v826, %v825
  %v835 = vpack.c.b16 %v828, %v827
  %v836 = vpack.c.b16 %v830, %v829
  %v837 = vpack.c.b16 %v832, %v831
  %vm842 = vcmask 613376
  %v844 = vsel %vm842, %v700, 0
  %v847 = vsel %vm842, %v701, 0
  %v850 = vsel %vm842, %v702, 0
  %v853 = vsel %vm842, %v703, 0
  %v856 = vsel %vm842, %v704, 0
  %v859 = vsel %vm842, %v705, 0
  %v862 = vsel %vm842, %v706, 0
  %v865 = vsel %vm842, %v707, 0
  %v868 = vsel %vm842, %v708, 0
  %v871 = vsel %vm842, %v709, 0
  %v874 = vsel %vm842, %v710, 0
  %v877 = vsel %vm842, %v711, 0
  %v880 = vsel %vm842, %v712, 0
  %v883 = vsel %vm842, %v713, 0
  %v886 = vsel %vm842, %v714, 0
  %v889 = vsel %vm842, %v715, 0
  %v892 = vsel %vm842, %v716, 0
  %v895 = vsel %vm842, %v717, 0
  %v898 = vsel %vm842, %v718, 0
  %v901 = vsel %vm842, %v719, 0
  %v904 = vsel %vm842, %v720, 0
  %v907 = vsel %vm842, %v721, 0
  %v910 = vsel %vm842, %v722, 0
  %v913 = vsel %vm842, %v723, 0
  %v916 = vsel %vm842, %v724, 0
  %v919 = vsel %vm842, %v725, 0
  %v922 = vsel %vm842, %v726, 0
  %v925 = vsel %vm842, %v727, 0
  %v928 = vsel %vm842, %v728, 0
  %v931 = vsel %vm842, %v729, 0
  %v934 = vsel %vm842, %v730, 0
  %v937 = vsel %vm842, %v731, 0
  %v940 = vsel %vm842, %v732, 0
  %v943 = vsel %vm842, %v733, 0
  %v946 = vsel %vm842, %v734, 0
  %v949 = vsel %vm842, %v735, 0
  %v952 = vsel %vm842, %v736, 0
  %v955 = vsel %vm842, %v737, 0
  %v958 = vsel %vm842, %v738, 0
  %v961 = vsel %vm842, %v739, 0
  %v964 = vsel %vm842, %v740, 0
  %v967 = vsel %vm842, %v741, 0
  %v970 = vsel %vm842, %v742, 0
  %v973 = vsel %vm842, %v743, 0
  %v976 = vsel %vm842, %v744, 0
  %v979 = vsel %vm842, %v745, 0
  %v982 = vsel %vm842, %v746, 0
  %v985 = vsel %vm842, %v747, 0
  %v988 = vsel %vm842, %v748, 0
  %v991 = vsel %vm842, %v749, 0
  %v994 = vsel %vm842, %v750, 0
  %v997 = vsel %vm842, %v751, 0
  %v1000 = vsel %vm842, %v752, 0
  %v1003 = vsel %vm842, %v753, 0
  %v1006 = vsel %vm842, %v754, 0
  %v1009 = vsel %vm842, %v755, 0
  %v1012 = vsel %vm842, %v756, 0
  %v1015 = vsel %vm842, %v757, 0
  %v1018 = vsel %vm842, %v758, 0
  %v1021 = vsel %vm842, %v759, 0
  %v1024 = vsel %vm842, %v760, 0
  %v1027 = vsel %vm842, %v761, 0
  %v1030 = vsel %vm842, %v762, 0
  %v1033 = vsel %vm842, %v763, 0
  %v1036 = vsel %vm842, %v764, 0
  %v1039 = vsel %vm842, %v765, 0
  %v1042 = vsel %vm842, %v766, 0
  %v1045 = vsel %vm842, %v767, 0
  %v1048 = vsel %vm842, %v768, 0
  %v1051 = vsel %vm842, %v769, 0
  %v1054 = vsel %vm842, %v770, 0
  %v1057 = vsel %vm842, %v771, 0
  %v1060 = vsel %vm842, %v772, 0
  %v1063 = vsel %vm842, %v773, 0
  %v1066 = vsel %vm842, %v774, 0
  %v1069 = vsel %vm842, %v775, 0
  %v1072 = vsel %vm842, %v776, 0
  %v1075 = vsel %vm842, %v777, 0
  %v1078 = vsel %vm842, %v778, 0
  %v1081 = vsel %vm842, %v779, 0
  %v1084 = vsel %vm842, %v780, 0
  %v1087 = vsel %vm842, %v781, 0
  %v1090 = vsel %vm842, %v782, 0
  %v1093 = vsel %vm842, %v783, 0
  %v1096 = vsel %vm842, %v784, 0
  %v1099 = vsel %vm842, %v785, 0
  %v1102 = vsel %vm842, %v786, 0
  %v1105 = vsel %vm842, %v787, 0
  %v1108 = vsel %vm842, %v788, 0
  %v1111 = vsel %vm842, %v789, 0
  %v1114 = vsel %vm842, %v790, 0
  %v1117 = vsel %vm842, %v791, 0
  %v1120 = vsel %vm842, %v792, 0
  %v1123 = vsel %vm842, %v793, 0
  %v1126 = vsel %vm842, %v794, 0
  %v1129 = vsel %vm842, %v795, 0
  %v1132 = vsel %vm842, %v796, 0
  %v1135 = vsel %vm842, %v797, 0
  %v1138 = vsel %vm842, %v798, 0
  %v1141 = vsel %vm842, %v799, 0
  %v1144 = vsel %vm842, %v800, 0
  %v1147 = vsel %vm842, %v801, 0
  %v1150 = vsel %vm842, %v802, 0
  %v1153 = vsel %vm842, %v803, 0
  %v1156 = vsel %vm842, %v804, 0
  %v1159 = vsel %vm842, %v805, 0
  %v1162 = vsel %vm842, %v806, 0
  %v1165 = vsel %vm842, %v807, 0
  %v1168 = vsel %vm842, %v808, 0
  %v1171 = vsel %vm842, %v809, 0
  %v1174 = vsel %vm842, %v810, 0
  %v1177 = vsel %vm842, %v811, 0
  %v1180 = vsel %vm842, %v812, 0
  %vm1182 = vcmask 1044480
  %vm1183 = vcmask 1045504
  %v1184 = vsel %vm1182, 4294967295, 65535
  %v1185 = vsel %vm1183, %v1184, 0
  %v1187 = vand.u32 %v837, %v1185
  %1189 = vmatprep.subr.bf16.mxu0 0
  %1190 = vmatpush1.bf16.msra.mxu0 0
  %1191 = vmatprep.subr.bf16.mxu0 0
  %1192 = vmatpush1.bf16.msra.mxu0 0
  %1193 = vmatprep.subr.bf16.mxu0 0
  %1194 = vmatpush1.bf16.msra.mxu0 0
  %1195 = vmatprep.subr.bf16.mxu0 0
  %1196 = vmatpush1.bf16.msra.mxu0 %v1187
  %1197 = vmatprep.subr.bf16.mxu0 0
  %1198 = vmatpush1.bf16.msra.mxu0 %v836
  %1199 = vmatprep.subr.bf16.mxu0 0
  %1200 = vmatpush1.bf16.msra.mxu0 %v835
  %1201 = vmatprep.subr.bf16.mxu0 0
  %1202 = vmatpush1.bf16.msra.mxu0 %v834
  %1203 = vmatprep.subr.bf16.mxu0 0
  %1204 = vmatpush1.bf16.msra.mxu0 %v833
  %1205 = vmatprep.subr.bf16.mxu0 0
  %1206 = vmatpush2.bf16.msra.mxu0 0
  %1207 = vmatprep.subr.bf16.mxu0 0
  %1208 = vmatpush2.bf16.msra.mxu0 0
  %1209 = vmatprep.subr.bf16.mxu0 0
  %1210 = vmatpush2.bf16.msra.mxu0 0
  %1211 = vmatprep.subr.bf16.mxu0 0
  %1212 = vmatpush2.bf16.msra.mxu0 0
  %1213 = vmatprep.subr.bf16.mxu0 0
  %1214 = vmatpush2.bf16.msra.mxu0 0
  %1215 = vmatprep.subr.bf16.mxu0 0
  %1216 = vmatpush2.bf16.msra.mxu0 0
  %1217 = vmatprep.subr.bf16.mxu0 0
  %1218 = vmatpush2.bf16.msra.mxu0 0
  %1219 = vmatprep.subr.bf16.mxu0 0
  %1220 = vmatpush2.bf16.msra.mxu0 0
  %1221 = vmatprep.mubr.bf16.mxu0 0
  %1222 = vmatmul.mubr.bf16.gmra.mxu0 %v844
  %v1223 = vpop.f32.mrf.mxu0
  %v1224 = vadd.f32 0.0, %v1223
  %v1225 = vpop.f32.mrf.mxu0
  %v1226 = vpop.f32.mrf.mxu0
  %v1227 = vadd.f32 0.0, %v1226
  %v1228 = vpop.f32.mrf.mxu0
  %1229 = vmatprep.mubr.bf16.mxu0 0
  %1230 = vmatmul.mubr.bf16.gmra.mxu0 %v847
  %v1231 = vpop.f32.mrf.mxu0
  %v1232 = vadd.f32 0.0, %v1231
  %v1233 = vpop.f32.mrf.mxu0
  %v1234 = vpop.f32.mrf.mxu0
  %v1235 = vadd.f32 0.0, %v1234
  %v1236 = vpop.f32.mrf.mxu0
  %1237 = vmatprep.mubr.bf16.mxu0 0
  %1238 = vmatmul.mubr.bf16.gmra.mxu0 %v850
  %v1239 = vpop.f32.mrf.mxu0
  %v1240 = vadd.f32 0.0, %v1239
  %v1241 = vpop.f32.mrf.mxu0
  %v1242 = vpop.f32.mrf.mxu0
  %v1243 = vadd.f32 0.0, %v1242
  %v1244 = vpop.f32.mrf.mxu0
  %1245 = vmatprep.mubr.bf16.mxu0 0
  %1246 = vmatmul.mubr.bf16.gmra.mxu0 %v853
  %v1247 = vpop.f32.mrf.mxu0
  %v1248 = vadd.f32 0.0, %v1247
  %v1249 = vpop.f32.mrf.mxu0
  %v1250 = vpop.f32.mrf.mxu0
  %v1251 = vadd.f32 0.0, %v1250
  %v1252 = vpop.f32.mrf.mxu0
  %1253 = vmatprep.mubr.bf16.mxu0 0
  %1254 = vmatmul.mubr.bf16.gmra.mxu0 %v856
  %v1255 = vpop.f32.mrf.mxu0
  %v1256 = vadd.f32 0.0, %v1255
  %v1257 = vpop.f32.mrf.mxu0
  %v1258 = vpop.f32.mrf.mxu0
  %v1259 = vadd.f32 0.0, %v1258
  %v1260 = vpop.f32.mrf.mxu0
  %1261 = vmatprep.mubr.bf16.mxu0 0
  %1262 = vmatmul.mubr.bf16.gmra.mxu0 %v859
  %v1263 = vpop.f32.mrf.mxu0
  %v1264 = vadd.f32 0.0, %v1263
  %v1265 = vpop.f32.mrf.mxu0
  %v1266 = vpop.f32.mrf.mxu0
  %v1267 = vadd.f32 0.0, %v1266
  %v1268 = vpop.f32.mrf.mxu0
  %1269 = vmatprep.mubr.bf16.mxu0 0
  %1270 = vmatmul.mubr.bf16.gmra.mxu0 %v862
  %v1271 = vpop.f32.mrf.mxu0
  %v1272 = vadd.f32 0.0, %v1271
  %v1273 = vpop.f32.mrf.mxu0
  %v1274 = vpop.f32.mrf.mxu0
  %v1275 = vadd.f32 0.0, %v1274
  %v1276 = vpop.f32.mrf.mxu0
  %1277 = vmatprep.mubr.bf16.mxu0 0
  %1278 = vmatmul.mubr.bf16.gmra.mxu0 %v865
  %v1279 = vpop.f32.mrf.mxu0
  %v1280 = vadd.f32 0.0, %v1279
  %v1281 = vpop.f32.mrf.mxu0
  %v1282 = vpop.f32.mrf.mxu0
  %v1283 = vadd.f32 0.0, %v1282
  %v1284 = vpop.f32.mrf.mxu0
  %1285 = vmatprep.mubr.bf16.mxu0 0
  %1286 = vmatmul.mubr.bf16.gmra.mxu0 %v868
  %v1287 = vpop.f32.mrf.mxu0
  %v1288 = vadd.f32 0.0, %v1287
  %v1289 = vpop.f32.mrf.mxu0
  %v1290 = vpop.f32.mrf.mxu0
  %v1291 = vadd.f32 0.0, %v1290
  %v1292 = vpop.f32.mrf.mxu0
  %1293 = vmatprep.mubr.bf16.mxu0 0
  %1294 = vmatmul.mubr.bf16.gmra.mxu0 %v871
  %v1295 = vpop.f32.mrf.mxu0
  %v1296 = vadd.f32 0.0, %v1295
  %v1297 = vpop.f32.mrf.mxu0
  %v1298 = vpop.f32.mrf.mxu0
  %v1299 = vadd.f32 0.0, %v1298
  %v1300 = vpop.f32.mrf.mxu0
  %1301 = vmatprep.mubr.bf16.mxu0 0
  %1302 = vmatmul.mubr.bf16.gmra.mxu0 %v874
  %v1303 = vpop.f32.mrf.mxu0
  %v1304 = vadd.f32 0.0, %v1303
  %v1305 = vpop.f32.mrf.mxu0
  %v1306 = vpop.f32.mrf.mxu0
  %v1307 = vadd.f32 0.0, %v1306
  %v1308 = vpop.f32.mrf.mxu0
  %1309 = vmatprep.mubr.bf16.mxu0 0
  %1310 = vmatmul.mubr.bf16.gmra.mxu0 %v877
  %v1311 = vpop.f32.mrf.mxu0
  %v1312 = vadd.f32 0.0, %v1311
  %v1313 = vpop.f32.mrf.mxu0
  %v1314 = vpop.f32.mrf.mxu0
  %v1315 = vadd.f32 0.0, %v1314
  %v1316 = vpop.f32.mrf.mxu0
  %1317 = vmatprep.mubr.bf16.mxu0 0
  %1318 = vmatmul.mubr.bf16.gmra.mxu0 %v880
  %v1319 = vpop.f32.mrf.mxu0
  %v1320 = vadd.f32 0.0, %v1319
  %v1321 = vpop.f32.mrf.mxu0
  %v1322 = vpop.f32.mrf.mxu0
  %v1323 = vadd.f32 0.0, %v1322
  %v1324 = vpop.f32.mrf.mxu0
  %1325 = vmatprep.mubr.bf16.mxu0 0
  %1326 = vmatmul.mubr.bf16.gmra.mxu0 %v883
  %v1327 = vpop.f32.mrf.mxu0
  %v1328 = vadd.f32 0.0, %v1327
  %v1329 = vpop.f32.mrf.mxu0
  %v1330 = vpop.f32.mrf.mxu0
  %v1331 = vadd.f32 0.0, %v1330
  %v1332 = vpop.f32.mrf.mxu0
  %1333 = vmatprep.mubr.bf16.mxu0 0
  %1334 = vmatmul.mubr.bf16.gmra.mxu0 %v886
  %v1335 = vpop.f32.mrf.mxu0
  %v1336 = vadd.f32 0.0, %v1335
  %v1337 = vpop.f32.mrf.mxu0
  %v1338 = vpop.f32.mrf.mxu0
  %v1339 = vadd.f32 0.0, %v1338
  %v1340 = vpop.f32.mrf.mxu0
  %1341 = vmatprep.mubr.bf16.mxu0 0
  %1342 = vmatmul.mubr.bf16.gmra.mxu0 %v889
  %v1343 = vpop.f32.mrf.mxu0
  %v1344 = vadd.f32 0.0, %v1343
  %v1345 = vpop.f32.mrf.mxu0
  %v1346 = vpop.f32.mrf.mxu0
  %v1347 = vadd.f32 0.0, %v1346
  %v1348 = vpop.f32.mrf.mxu0
  %1349 = vmatprep.mubr.bf16.mxu0 0
  %1350 = vmatmul.mubr.bf16.gmra.mxu0 %v892
  %v1351 = vpop.f32.mrf.mxu0
  %v1352 = vadd.f32 0.0, %v1351
  %v1353 = vpop.f32.mrf.mxu0
  %v1354 = vpop.f32.mrf.mxu0
  %v1355 = vadd.f32 0.0, %v1354
  %v1356 = vpop.f32.mrf.mxu0
  %1357 = vmatprep.mubr.bf16.mxu0 0
  %1358 = vmatmul.mubr.bf16.gmra.mxu0 %v895
  %v1359 = vpop.f32.mrf.mxu0
  %v1360 = vadd.f32 0.0, %v1359
  %v1361 = vpop.f32.mrf.mxu0
  %v1362 = vpop.f32.mrf.mxu0
  %v1363 = vadd.f32 0.0, %v1362
  %v1364 = vpop.f32.mrf.mxu0
  %1365 = vmatprep.mubr.bf16.mxu0 0
  %1366 = vmatmul.mubr.bf16.gmra.mxu0 %v898
  %v1367 = vpop.f32.mrf.mxu0
  %v1368 = vadd.f32 0.0, %v1367
  %v1369 = vpop.f32.mrf.mxu0
  %v1370 = vpop.f32.mrf.mxu0
  %v1371 = vadd.f32 0.0, %v1370
  %v1372 = vpop.f32.mrf.mxu0
  %1373 = vmatprep.mubr.bf16.mxu0 0
  %1374 = vmatmul.mubr.bf16.gmra.mxu0 %v901
  %v1375 = vpop.f32.mrf.mxu0
  %v1376 = vadd.f32 0.0, %v1375
  %v1377 = vpop.f32.mrf.mxu0
  %v1378 = vpop.f32.mrf.mxu0
  %v1379 = vadd.f32 0.0, %v1378
  %v1380 = vpop.f32.mrf.mxu0
  %1381 = vmatprep.mubr.bf16.mxu0 0
  %1382 = vmatmul.mubr.bf16.gmra.mxu0 %v904
  %v1383 = vpop.f32.mrf.mxu0
  %v1384 = vadd.f32 0.0, %v1383
  %v1385 = vpop.f32.mrf.mxu0
  %v1386 = vpop.f32.mrf.mxu0
  %v1387 = vadd.f32 0.0, %v1386
  %v1388 = vpop.f32.mrf.mxu0
  %1389 = vmatprep.mubr.bf16.mxu0 0
  %1390 = vmatmul.mubr.bf16.gmra.mxu0 %v907
  %v1391 = vpop.f32.mrf.mxu0
  %v1392 = vadd.f32 0.0, %v1391
  %v1393 = vpop.f32.mrf.mxu0
  %v1394 = vpop.f32.mrf.mxu0
  %v1395 = vadd.f32 0.0, %v1394
  %v1396 = vpop.f32.mrf.mxu0
  %1397 = vmatprep.mubr.bf16.mxu0 0
  %1398 = vmatmul.mubr.bf16.gmra.mxu0 %v910
  %v1399 = vpop.f32.mrf.mxu0
  %v1400 = vadd.f32 0.0, %v1399
  %v1401 = vpop.f32.mrf.mxu0
  %v1402 = vpop.f32.mrf.mxu0
  %v1403 = vadd.f32 0.0, %v1402
  %v1404 = vpop.f32.mrf.mxu0
  %1405 = vmatprep.mubr.bf16.mxu0 0
  %1406 = vmatmul.mubr.bf16.gmra.mxu0 %v913
  %v1407 = vpop.f32.mrf.mxu0
  %v1408 = vadd.f32 0.0, %v1407
  %v1409 = vpop.f32.mrf.mxu0
  %v1410 = vpop.f32.mrf.mxu0
  %v1411 = vadd.f32 0.0, %v1410
  %v1412 = vpop.f32.mrf.mxu0
  %1413 = vmatprep.mubr.bf16.mxu0 0
  %1414 = vmatmul.mubr.bf16.gmra.mxu0 %v916
  %v1415 = vpop.f32.mrf.mxu0
  %v1416 = vadd.f32 0.0, %v1415
  %v1417 = vpop.f32.mrf.mxu0
  %v1418 = vpop.f32.mrf.mxu0
  %v1419 = vadd.f32 0.0, %v1418
  %v1420 = vpop.f32.mrf.mxu0
  %1421 = vmatprep.mubr.bf16.mxu0 0
  %1422 = vmatmul.mubr.bf16.gmra.mxu0 %v919
  %v1423 = vpop.f32.mrf.mxu0
  %v1424 = vadd.f32 0.0, %v1423
  %v1425 = vpop.f32.mrf.mxu0
  %v1426 = vpop.f32.mrf.mxu0
  %v1427 = vadd.f32 0.0, %v1426
  %v1428 = vpop.f32.mrf.mxu0
  %1429 = vmatprep.mubr.bf16.mxu0 0
  %1430 = vmatmul.mubr.bf16.gmra.mxu0 %v922
  %v1431 = vpop.f32.mrf.mxu0
  %v1432 = vadd.f32 0.0, %v1431
  %v1433 = vpop.f32.mrf.mxu0
  %v1434 = vpop.f32.mrf.mxu0
  %v1435 = vadd.f32 0.0, %v1434
  %v1436 = vpop.f32.mrf.mxu0
  %1437 = vmatprep.mubr.bf16.mxu0 0
  %1438 = vmatmul.mubr.bf16.gmra.mxu0 %v925
  %v1439 = vpop.f32.mrf.mxu0
  %v1440 = vadd.f32 0.0, %v1439
  %v1441 = vpop.f32.mrf.mxu0
  %v1442 = vpop.f32.mrf.mxu0
  %v1443 = vadd.f32 0.0, %v1442
  %v1444 = vpop.f32.mrf.mxu0
  %1445 = vmatprep.mubr.bf16.mxu0 0
  %1446 = vmatmul.mubr.bf16.gmra.mxu0 %v928
  %v1447 = vpop.f32.mrf.mxu0
  %v1448 = vadd.f32 0.0, %v1447
  %v1449 = vpop.f32.mrf.mxu0
  %v1450 = vpop.f32.mrf.mxu0
  %v1451 = vadd.f32 0.0, %v1450
  %v1452 = vpop.f32.mrf.mxu0
  %1453 = vmatprep.mubr.bf16.mxu0 0
  %1454 = vmatmul.mubr.bf16.gmra.mxu0 %v931
  %v1455 = vpop.f32.mrf.mxu0
  %v1456 = vadd.f32 0.0, %v1455
  %v1457 = vpop.f32.mrf.mxu0
  %v1458 = vpop.f32.mrf.mxu0
  %v1459 = vadd.f32 0.0, %v1458
  %v1460 = vpop.f32.mrf.mxu0
  %1461 = vmatprep.mubr.bf16.mxu0 0
  %1462 = vmatmul.mubr.bf16.gmra.mxu0 %v934
  %v1463 = vpop.f32.mrf.mxu0
  %v1464 = vadd.f32 0.0, %v1463
  %v1465 = vpop.f32.mrf.mxu0
  %v1466 = vpop.f32.mrf.mxu0
  %v1467 = vadd.f32 0.0, %v1466
  %v1468 = vpop.f32.mrf.mxu0
  %1469 = vmatprep.mubr.bf16.mxu0 0
  %1470 = vmatmul.mubr.bf16.gmra.mxu0 %v937
  %v1471 = vpop.f32.mrf.mxu0
  %v1472 = vadd.f32 0.0, %v1471
  %v1473 = vpop.f32.mrf.mxu0
  %v1474 = vpop.f32.mrf.mxu0
  %v1475 = vadd.f32 0.0, %v1474
  %v1476 = vpop.f32.mrf.mxu0
  %1477 = vmatprep.mubr.bf16.mxu0 0
  %1478 = vmatmul.mubr.bf16.gmra.mxu0 %v940
  %v1479 = vpop.f32.mrf.mxu0
  %v1480 = vadd.f32 0.0, %v1479
  %v1481 = vpop.f32.mrf.mxu0
  %v1482 = vpop.f32.mrf.mxu0
  %v1483 = vadd.f32 0.0, %v1482
  %v1484 = vpop.f32.mrf.mxu0
  %1485 = vmatprep.mubr.bf16.mxu0 0
  %1486 = vmatmul.mubr.bf16.gmra.mxu0 %v943
  %v1487 = vpop.f32.mrf.mxu0
  %v1488 = vadd.f32 0.0, %v1487
  %v1489 = vpop.f32.mrf.mxu0
  %v1490 = vpop.f32.mrf.mxu0
  %v1491 = vadd.f32 0.0, %v1490
  %v1492 = vpop.f32.mrf.mxu0
  %1493 = vmatprep.mubr.bf16.mxu0 0
  %1494 = vmatmul.mubr.bf16.gmra.mxu0 %v946
  %v1495 = vpop.f32.mrf.mxu0
  %v1496 = vadd.f32 0.0, %v1495
  %v1497 = vpop.f32.mrf.mxu0
  %v1498 = vpop.f32.mrf.mxu0
  %v1499 = vadd.f32 0.0, %v1498
  %v1500 = vpop.f32.mrf.mxu0
  %1501 = vmatprep.mubr.bf16.mxu0 0
  %1502 = vmatmul.mubr.bf16.gmra.mxu0 %v949
  %v1503 = vpop.f32.mrf.mxu0
  %v1504 = vadd.f32 0.0, %v1503
  %v1505 = vpop.f32.mrf.mxu0
  %v1506 = vpop.f32.mrf.mxu0
  %v1507 = vadd.f32 0.0, %v1506
  %v1508 = vpop.f32.mrf.mxu0
  %1509 = vmatprep.mubr.bf16.mxu0 0
  %1510 = vmatmul.mubr.bf16.gmra.mxu0 %v952
  %v1511 = vpop.f32.mrf.mxu0
  %v1512 = vadd.f32 0.0, %v1511
  %v1513 = vpop.f32.mrf.mxu0
  %v1514 = vpop.f32.mrf.mxu0
  %v1515 = vadd.f32 0.0, %v1514
  %v1516 = vpop.f32.mrf.mxu0
  %1517 = vmatprep.mubr.bf16.mxu0 0
  %1518 = vmatmul.mubr.bf16.gmra.mxu0 %v955
  %v1519 = vpop.f32.mrf.mxu0
  %v1520 = vadd.f32 0.0, %v1519
  %v1521 = vpop.f32.mrf.mxu0
  %v1522 = vpop.f32.mrf.mxu0
  %v1523 = vadd.f32 0.0, %v1522
  %v1524 = vpop.f32.mrf.mxu0
  %1525 = vmatprep.mubr.bf16.mxu0 0
  %1526 = vmatmul.mubr.bf16.gmra.mxu0 %v958
  %v1527 = vpop.f32.mrf.mxu0
  %v1528 = vadd.f32 0.0, %v1527
  %v1529 = vpop.f32.mrf.mxu0
  %v1530 = vpop.f32.mrf.mxu0
  %v1531 = vadd.f32 0.0, %v1530
  %v1532 = vpop.f32.mrf.mxu0
  %1533 = vmatprep.mubr.bf16.mxu0 0
  %1534 = vmatmul.mubr.bf16.gmra.mxu0 %v961
  %v1535 = vpop.f32.mrf.mxu0
  %v1536 = vadd.f32 0.0, %v1535
  %v1537 = vpop.f32.mrf.mxu0
  %v1538 = vpop.f32.mrf.mxu0
  %v1539 = vadd.f32 0.0, %v1538
  %v1540 = vpop.f32.mrf.mxu0
  %1541 = vmatprep.mubr.bf16.mxu0 0
  %1542 = vmatmul.mubr.bf16.gmra.mxu0 %v964
  %v1543 = vpop.f32.mrf.mxu0
  %v1544 = vadd.f32 0.0, %v1543
  %v1545 = vpop.f32.mrf.mxu0
  %v1546 = vpop.f32.mrf.mxu0
  %v1547 = vadd.f32 0.0, %v1546
  %v1548 = vpop.f32.mrf.mxu0
  %1549 = vmatprep.mubr.bf16.mxu0 0
  %1550 = vmatmul.mubr.bf16.gmra.mxu0 %v967
  %v1551 = vpop.f32.mrf.mxu0
  %v1552 = vadd.f32 0.0, %v1551
  %v1553 = vpop.f32.mrf.mxu0
  %v1554 = vpop.f32.mrf.mxu0
  %v1555 = vadd.f32 0.0, %v1554
  %v1556 = vpop.f32.mrf.mxu0
  %1557 = vmatprep.mubr.bf16.mxu0 0
  %1558 = vmatmul.mubr.bf16.gmra.mxu0 %v970
  %v1559 = vpop.f32.mrf.mxu0
  %v1560 = vadd.f32 0.0, %v1559
  %v1561 = vpop.f32.mrf.mxu0
  %v1562 = vpop.f32.mrf.mxu0
  %v1563 = vadd.f32 0.0, %v1562
  %v1564 = vpop.f32.mrf.mxu0
  %1565 = vmatprep.mubr.bf16.mxu0 0
  %1566 = vmatmul.mubr.bf16.gmra.mxu0 %v973
  %v1567 = vpop.f32.mrf.mxu0
  %v1568 = vadd.f32 0.0, %v1567
  %v1569 = vpop.f32.mrf.mxu0
  %v1570 = vpop.f32.mrf.mxu0
  %v1571 = vadd.f32 0.0, %v1570
  %v1572 = vpop.f32.mrf.mxu0
  %1573 = vmatprep.mubr.bf16.mxu0 0
  %1574 = vmatmul.mubr.bf16.gmra.mxu0 %v976
  %v1575 = vpop.f32.mrf.mxu0
  %v1576 = vadd.f32 0.0, %v1575
  %v1577 = vpop.f32.mrf.mxu0
  %v1578 = vpop.f32.mrf.mxu0
  %v1579 = vadd.f32 0.0, %v1578
  %v1580 = vpop.f32.mrf.mxu0
  %1581 = vmatprep.mubr.bf16.mxu0 0
  %1582 = vmatmul.mubr.bf16.gmra.mxu0 %v979
  %v1583 = vpop.f32.mrf.mxu0
  %v1584 = vadd.f32 0.0, %v1583
  %v1585 = vpop.f32.mrf.mxu0
  %v1586 = vpop.f32.mrf.mxu0
  %v1587 = vadd.f32 0.0, %v1586
  %v1588 = vpop.f32.mrf.mxu0
  %1589 = vmatprep.mubr.bf16.mxu0 0
  %1590 = vmatmul.mubr.bf16.gmra.mxu0 %v982
  %v1591 = vpop.f32.mrf.mxu0
  %v1592 = vadd.f32 0.0, %v1591
  %v1593 = vpop.f32.mrf.mxu0
  %v1594 = vpop.f32.mrf.mxu0
  %v1595 = vadd.f32 0.0, %v1594
  %v1596 = vpop.f32.mrf.mxu0
  %1597 = vmatprep.mubr.bf16.mxu0 0
  %1598 = vmatmul.mubr.bf16.gmra.mxu0 %v985
  %v1599 = vpop.f32.mrf.mxu0
  %v1600 = vadd.f32 0.0, %v1599
  %v1601 = vpop.f32.mrf.mxu0
  %v1602 = vpop.f32.mrf.mxu0
  %v1603 = vadd.f32 0.0, %v1602
  %v1604 = vpop.f32.mrf.mxu0
  %1605 = vmatprep.mubr.bf16.mxu0 0
  %1606 = vmatmul.mubr.bf16.gmra.mxu0 %v988
  %v1607 = vpop.f32.mrf.mxu0
  %v1608 = vadd.f32 0.0, %v1607
  %v1609 = vpop.f32.mrf.mxu0
  %v1610 = vpop.f32.mrf.mxu0
  %v1611 = vadd.f32 0.0, %v1610
  %v1612 = vpop.f32.mrf.mxu0
  %1613 = vmatprep.mubr.bf16.mxu0 0
  %1614 = vmatmul.mubr.bf16.gmra.mxu0 %v991
  %v1615 = vpop.f32.mrf.mxu0
  %v1616 = vadd.f32 0.0, %v1615
  %v1617 = vpop.f32.mrf.mxu0
  %v1618 = vpop.f32.mrf.mxu0
  %v1619 = vadd.f32 0.0, %v1618
  %v1620 = vpop.f32.mrf.mxu0
  %1621 = vmatprep.mubr.bf16.mxu0 0
  %1622 = vmatmul.mubr.bf16.gmra.mxu0 %v994
  %v1623 = vpop.f32.mrf.mxu0
  %v1624 = vadd.f32 0.0, %v1623
  %v1625 = vpop.f32.mrf.mxu0
  %v1626 = vpop.f32.mrf.mxu0
  %v1627 = vadd.f32 0.0, %v1626
  %v1628 = vpop.f32.mrf.mxu0
  %1629 = vmatprep.mubr.bf16.mxu0 0
  %1630 = vmatmul.mubr.bf16.gmra.mxu0 %v997
  %v1631 = vpop.f32.mrf.mxu0
  %v1632 = vadd.f32 0.0, %v1631
  %v1633 = vpop.f32.mrf.mxu0
  %v1634 = vpop.f32.mrf.mxu0
  %v1635 = vadd.f32 0.0, %v1634
  %v1636 = vpop.f32.mrf.mxu0
  %1637 = vmatprep.mubr.bf16.mxu0 0
  %1638 = vmatmul.mubr.bf16.gmra.mxu0 %v1000
  %v1639 = vpop.f32.mrf.mxu0
  %v1640 = vadd.f32 0.0, %v1639
  %v1641 = vpop.f32.mrf.mxu0
  %v1642 = vpop.f32.mrf.mxu0
  %v1643 = vadd.f32 0.0, %v1642
  %v1644 = vpop.f32.mrf.mxu0
  %1645 = vmatprep.mubr.bf16.mxu0 0
  %1646 = vmatmul.mubr.bf16.gmra.mxu0 %v1003
  %v1647 = vpop.f32.mrf.mxu0
  %v1648 = vadd.f32 0.0, %v1647
  %v1649 = vpop.f32.mrf.mxu0
  %v1650 = vpop.f32.mrf.mxu0
  %v1651 = vadd.f32 0.0, %v1650
  %v1652 = vpop.f32.mrf.mxu0
  %1653 = vmatprep.mubr.bf16.mxu0 0
  %1654 = vmatmul.mubr.bf16.gmra.mxu0 %v1006
  %v1655 = vpop.f32.mrf.mxu0
  %v1656 = vadd.f32 0.0, %v1655
  %v1657 = vpop.f32.mrf.mxu0
  %v1658 = vpop.f32.mrf.mxu0
  %v1659 = vadd.f32 0.0, %v1658
  %v1660 = vpop.f32.mrf.mxu0
  %1661 = vmatprep.mubr.bf16.mxu0 0
  %1662 = vmatmul.mubr.bf16.gmra.mxu0 %v1009
  %v1663 = vpop.f32.mrf.mxu0
  %v1664 = vadd.f32 0.0, %v1663
  %v1665 = vpop.f32.mrf.mxu0
  %v1666 = vpop.f32.mrf.mxu0
  %v1667 = vadd.f32 0.0, %v1666
  %v1668 = vpop.f32.mrf.mxu0
  %1669 = vmatprep.mubr.bf16.mxu0 0
  %1670 = vmatmul.mubr.bf16.gmra.mxu0 %v1012
  %v1671 = vpop.f32.mrf.mxu0
  %v1672 = vadd.f32 0.0, %v1671
  %v1673 = vpop.f32.mrf.mxu0
  %v1674 = vpop.f32.mrf.mxu0
  %v1675 = vadd.f32 0.0, %v1674
  %v1676 = vpop.f32.mrf.mxu0
  %1677 = vmatprep.mubr.bf16.mxu0 0
  %1678 = vmatmul.mubr.bf16.gmra.mxu0 %v1015
  %v1679 = vpop.f32.mrf.mxu0
  %v1680 = vadd.f32 0.0, %v1679
  %v1681 = vpop.f32.mrf.mxu0
  %v1682 = vpop.f32.mrf.mxu0
  %v1683 = vadd.f32 0.0, %v1682
  %v1684 = vpop.f32.mrf.mxu0
  %1685 = vmatprep.mubr.bf16.mxu0 0
  %1686 = vmatmul.mubr.bf16.gmra.mxu0 %v1018
  %v1687 = vpop.f32.mrf.mxu0
  %v1688 = vadd.f32 0.0, %v1687
  %v1689 = vpop.f32.mrf.mxu0
  %v1690 = vpop.f32.mrf.mxu0
  %v1691 = vadd.f32 0.0, %v1690
  %v1692 = vpop.f32.mrf.mxu0
  %1693 = vmatprep.mubr.bf16.mxu0 0
  %1694 = vmatmul.mubr.bf16.gmra.mxu0 %v1021
  %v1695 = vpop.f32.mrf.mxu0
  %v1696 = vadd.f32 0.0, %v1695
  %v1697 = vpop.f32.mrf.mxu0
  %v1698 = vpop.f32.mrf.mxu0
  %v1699 = vadd.f32 0.0, %v1698
  %v1700 = vpop.f32.mrf.mxu0
  %1701 = vmatprep.mubr.bf16.mxu0 0
  %1702 = vmatmul.mubr.bf16.gmra.mxu0 %v1024
  %v1703 = vpop.f32.mrf.mxu0
  %v1704 = vadd.f32 0.0, %v1703
  %v1705 = vpop.f32.mrf.mxu0
  %v1706 = vpop.f32.mrf.mxu0
  %v1707 = vadd.f32 0.0, %v1706
  %v1708 = vpop.f32.mrf.mxu0
  %1709 = vmatprep.mubr.bf16.mxu0 0
  %1710 = vmatmul.mubr.bf16.gmra.mxu0 %v1027
  %v1711 = vpop.f32.mrf.mxu0
  %v1712 = vadd.f32 0.0, %v1711
  %v1713 = vpop.f32.mrf.mxu0
  %v1714 = vpop.f32.mrf.mxu0
  %v1715 = vadd.f32 0.0, %v1714
  %v1716 = vpop.f32.mrf.mxu0
  %1717 = vmatprep.mubr.bf16.mxu0 0
  %1718 = vmatmul.mubr.bf16.gmra.mxu0 %v1030
  %v1719 = vpop.f32.mrf.mxu0
  %v1720 = vadd.f32 0.0, %v1719
  %v1721 = vpop.f32.mrf.mxu0
  %v1722 = vpop.f32.mrf.mxu0
  %v1723 = vadd.f32 0.0, %v1722
  %v1724 = vpop.f32.mrf.mxu0
  %1725 = vmatprep.mubr.bf16.mxu0 0
  %1726 = vmatmul.mubr.bf16.gmra.mxu0 %v1033
  %v1727 = vpop.f32.mrf.mxu0
  %v1728 = vadd.f32 0.0, %v1727
  %v1729 = vpop.f32.mrf.mxu0
  %v1730 = vpop.f32.mrf.mxu0
  %v1731 = vadd.f32 0.0, %v1730
  %v1732 = vpop.f32.mrf.mxu0
  %1733 = vmatprep.mubr.bf16.mxu0 0
  %1734 = vmatmul.mubr.bf16.gmra.mxu0 %v1036
  %v1735 = vpop.f32.mrf.mxu0
  %v1736 = vadd.f32 0.0, %v1735
  %v1737 = vpop.f32.mrf.mxu0
  %v1738 = vpop.f32.mrf.mxu0
  %v1739 = vadd.f32 0.0, %v1738
  %v1740 = vpop.f32.mrf.mxu0
  %1741 = vmatprep.mubr.bf16.mxu0 0
  %1742 = vmatmul.mubr.bf16.gmra.mxu0 %v1039
  %v1743 = vpop.f32.mrf.mxu0
  %v1744 = vadd.f32 0.0, %v1743
  %v1745 = vpop.f32.mrf.mxu0
  %v1746 = vpop.f32.mrf.mxu0
  %v1747 = vadd.f32 0.0, %v1746
  %v1748 = vpop.f32.mrf.mxu0
  %1749 = vmatprep.mubr.bf16.mxu0 0
  %1750 = vmatmul.mubr.bf16.gmra.mxu0 %v1042
  %v1751 = vpop.f32.mrf.mxu0
  %v1752 = vadd.f32 0.0, %v1751
  %v1753 = vpop.f32.mrf.mxu0
  %v1754 = vpop.f32.mrf.mxu0
  %v1755 = vadd.f32 0.0, %v1754
  %v1756 = vpop.f32.mrf.mxu0
  %1757 = vmatprep.mubr.bf16.mxu0 0
  %1758 = vmatmul.mubr.bf16.gmra.mxu0 %v1045
  %v1759 = vpop.f32.mrf.mxu0
  %v1760 = vadd.f32 0.0, %v1759
  %v1761 = vpop.f32.mrf.mxu0
  %v1762 = vpop.f32.mrf.mxu0
  %v1763 = vadd.f32 0.0, %v1762
  %v1764 = vpop.f32.mrf.mxu0
  %1765 = vmatprep.mubr.bf16.mxu0 0
  %1766 = vmatmul.mubr.bf16.gmra.mxu0 %v1048
  %v1767 = vpop.f32.mrf.mxu0
  %v1768 = vadd.f32 0.0, %v1767
  %v1769 = vpop.f32.mrf.mxu0
  %v1770 = vpop.f32.mrf.mxu0
  %v1771 = vadd.f32 0.0, %v1770
  %v1772 = vpop.f32.mrf.mxu0
  %1773 = vmatprep.mubr.bf16.mxu0 0
  %1774 = vmatmul.mubr.bf16.gmra.mxu0 %v1051
  %v1775 = vpop.f32.mrf.mxu0
  %v1776 = vadd.f32 0.0, %v1775
  %v1777 = vpop.f32.mrf.mxu0
  %v1778 = vpop.f32.mrf.mxu0
  %v1779 = vadd.f32 0.0, %v1778
  %v1780 = vpop.f32.mrf.mxu0
  %1781 = vmatprep.mubr.bf16.mxu0 0
  %1782 = vmatmul.mubr.bf16.gmra.mxu0 %v1054
  %v1783 = vpop.f32.mrf.mxu0
  %v1784 = vadd.f32 0.0, %v1783
  %v1785 = vpop.f32.mrf.mxu0
  %v1786 = vpop.f32.mrf.mxu0
  %v1787 = vadd.f32 0.0, %v1786
  %v1788 = vpop.f32.mrf.mxu0
  %1789 = vmatprep.mubr.bf16.mxu0 0
  %1790 = vmatmul.mubr.bf16.gmra.mxu0 %v1057
  %v1791 = vpop.f32.mrf.mxu0
  %v1792 = vadd.f32 0.0, %v1791
  %v1793 = vpop.f32.mrf.mxu0
  %v1794 = vpop.f32.mrf.mxu0
  %v1795 = vadd.f32 0.0, %v1794
  %v1796 = vpop.f32.mrf.mxu0
  %1797 = vmatprep.mubr.bf16.mxu0 0
  %1798 = vmatmul.mubr.bf16.gmra.mxu0 %v1060
  %v1799 = vpop.f32.mrf.mxu0
  %v1800 = vadd.f32 0.0, %v1799
  %v1801 = vpop.f32.mrf.mxu0
  %v1802 = vpop.f32.mrf.mxu0
  %v1803 = vadd.f32 0.0, %v1802
  %v1804 = vpop.f32.mrf.mxu0
  %1805 = vmatprep.mubr.bf16.mxu0 0
  %1806 = vmatmul.mubr.bf16.gmra.mxu0 %v1063
  %v1807 = vpop.f32.mrf.mxu0
  %v1808 = vadd.f32 0.0, %v1807
  %v1809 = vpop.f32.mrf.mxu0
  %v1810 = vpop.f32.mrf.mxu0
  %v1811 = vadd.f32 0.0, %v1810
  %v1812 = vpop.f32.mrf.mxu0
  %1813 = vmatprep.mubr.bf16.mxu0 0
  %1814 = vmatmul.mubr.bf16.gmra.mxu0 %v1066
  %v1815 = vpop.f32.mrf.mxu0
  %v1816 = vadd.f32 0.0, %v1815
  %v1817 = vpop.f32.mrf.mxu0
  %v1818 = vpop.f32.mrf.mxu0
  %v1819 = vadd.f32 0.0, %v1818
  %v1820 = vpop.f32.mrf.mxu0
  %1821 = vmatprep.mubr.bf16.mxu0 0
  %1822 = vmatmul.mubr.bf16.gmra.mxu0 %v1069
  %v1823 = vpop.f32.mrf.mxu0
  %v1824 = vadd.f32 0.0, %v1823
  %v1825 = vpop.f32.mrf.mxu0
  %v1826 = vpop.f32.mrf.mxu0
  %v1827 = vadd.f32 0.0, %v1826
  %v1828 = vpop.f32.mrf.mxu0
  %1829 = vmatprep.mubr.bf16.mxu0 0
  %1830 = vmatmul.mubr.bf16.gmra.mxu0 %v1072
  %v1831 = vpop.f32.mrf.mxu0
  %v1832 = vadd.f32 0.0, %v1831
  %v1833 = vpop.f32.mrf.mxu0
  %v1834 = vpop.f32.mrf.mxu0
  %v1835 = vadd.f32 0.0, %v1834
  %v1836 = vpop.f32.mrf.mxu0
  %1837 = vmatprep.mubr.bf16.mxu0 0
  %1838 = vmatmul.mubr.bf16.gmra.mxu0 %v1075
  %v1839 = vpop.f32.mrf.mxu0
  %v1840 = vadd.f32 0.0, %v1839
  %v1841 = vpop.f32.mrf.mxu0
  %v1842 = vpop.f32.mrf.mxu0
  %v1843 = vadd.f32 0.0, %v1842
  %v1844 = vpop.f32.mrf.mxu0
  %1845 = vmatprep.mubr.bf16.mxu0 0
  %1846 = vmatmul.mubr.bf16.gmra.mxu0 %v1078
  %v1847 = vpop.f32.mrf.mxu0
  %v1848 = vadd.f32 0.0, %v1847
  %v1849 = vpop.f32.mrf.mxu0
  %v1850 = vpop.f32.mrf.mxu0
  %v1851 = vadd.f32 0.0, %v1850
  %v1852 = vpop.f32.mrf.mxu0
  %1853 = vmatprep.mubr.bf16.mxu0 0
  %1854 = vmatmul.mubr.bf16.gmra.mxu0 %v1081
  %v1855 = vpop.f32.mrf.mxu0
  %v1856 = vadd.f32 0.0, %v1855
  %v1857 = vpop.f32.mrf.mxu0
  %v1858 = vpop.f32.mrf.mxu0
  %v1859 = vadd.f32 0.0, %v1858
  %v1860 = vpop.f32.mrf.mxu0
  %1861 = vmatprep.mubr.bf16.mxu0 0
  %1862 = vmatmul.mubr.bf16.gmra.mxu0 %v1084
  %v1863 = vpop.f32.mrf.mxu0
  %v1864 = vadd.f32 0.0, %v1863
  %v1865 = vpop.f32.mrf.mxu0
  %v1866 = vpop.f32.mrf.mxu0
  %v1867 = vadd.f32 0.0, %v1866
  %v1868 = vpop.f32.mrf.mxu0
  %1869 = vmatprep.mubr.bf16.mxu0 0
  %1870 = vmatmul.mubr.bf16.gmra.mxu0 %v1087
  %v1871 = vpop.f32.mrf.mxu0
  %v1872 = vadd.f32 0.0, %v1871
  %v1873 = vpop.f32.mrf.mxu0
  %v1874 = vpop.f32.mrf.mxu0
  %v1875 = vadd.f32 0.0, %v1874
  %v1876 = vpop.f32.mrf.mxu0
  %1877 = vmatprep.mubr.bf16.mxu0 0
  %1878 = vmatmul.mubr.bf16.gmra.mxu0 %v1090
  %v1879 = vpop.f32.mrf.mxu0
  %v1880 = vadd.f32 0.0, %v1879
  %v1881 = vpop.f32.mrf.mxu0
  %v1882 = vpop.f32.mrf.mxu0
  %v1883 = vadd.f32 0.0, %v1882
  %v1884 = vpop.f32.mrf.mxu0
  %1885 = vmatprep.mubr.bf16.mxu0 0
  %1886 = vmatmul.mubr.bf16.gmra.mxu0 %v1093
  %v1887 = vpop.f32.mrf.mxu0
  %v1888 = vadd.f32 0.0, %v1887
  %v1889 = vpop.f32.mrf.mxu0
  %v1890 = vpop.f32.mrf.mxu0
  %v1891 = vadd.f32 0.0, %v1890
  %v1892 = vpop.f32.mrf.mxu0
  %1893 = vmatprep.mubr.bf16.mxu0 0
  %1894 = vmatmul.mubr.bf16.gmra.mxu0 %v1096
  %v1895 = vpop.f32.mrf.mxu0
  %v1896 = vadd.f32 0.0, %v1895
  %v1897 = vpop.f32.mrf.mxu0
  %v1898 = vpop.f32.mrf.mxu0
  %v1899 = vadd.f32 0.0, %v1898
  %v1900 = vpop.f32.mrf.mxu0
  %1901 = vmatprep.mubr.bf16.mxu0 0
  %1902 = vmatmul.mubr.bf16.gmra.mxu0 %v1099
  %v1903 = vpop.f32.mrf.mxu0
  %v1904 = vadd.f32 0.0, %v1903
  %v1905 = vpop.f32.mrf.mxu0
  %v1906 = vpop.f32.mrf.mxu0
  %v1907 = vadd.f32 0.0, %v1906
  %v1908 = vpop.f32.mrf.mxu0
  %1909 = vmatprep.mubr.bf16.mxu0 0
  %1910 = vmatmul.mubr.bf16.gmra.mxu0 %v1102
  %v1911 = vpop.f32.mrf.mxu0
  %v1912 = vadd.f32 0.0, %v1911
  %v1913 = vpop.f32.mrf.mxu0
  %v1914 = vpop.f32.mrf.mxu0
  %v1915 = vadd.f32 0.0, %v1914
  %v1916 = vpop.f32.mrf.mxu0
  %1917 = vmatprep.mubr.bf16.mxu0 0
  %1918 = vmatmul.mubr.bf16.gmra.mxu0 %v1105
  %v1919 = vpop.f32.mrf.mxu0
  %v1920 = vadd.f32 0.0, %v1919
  %v1921 = vpop.f32.mrf.mxu0
  %v1922 = vpop.f32.mrf.mxu0
  %v1923 = vadd.f32 0.0, %v1922
  %v1924 = vpop.f32.mrf.mxu0
  %1925 = vmatprep.mubr.bf16.mxu0 0
  %1926 = vmatmul.mubr.bf16.gmra.mxu0 %v1108
  %v1927 = vpop.f32.mrf.mxu0
  %v1928 = vadd.f32 0.0, %v1927
  %v1929 = vpop.f32.mrf.mxu0
  %v1930 = vpop.f32.mrf.mxu0
  %v1931 = vadd.f32 0.0, %v1930
  %v1932 = vpop.f32.mrf.mxu0
  %1933 = vmatprep.mubr.bf16.mxu0 0
  %1934 = vmatmul.mubr.bf16.gmra.mxu0 %v1111
  %v1935 = vpop.f32.mrf.mxu0
  %v1936 = vadd.f32 0.0, %v1935
  %v1937 = vpop.f32.mrf.mxu0
  %v1938 = vpop.f32.mrf.mxu0
  %v1939 = vadd.f32 0.0, %v1938
  %v1940 = vpop.f32.mrf.mxu0
  %1941 = vmatprep.mubr.bf16.mxu0 0
  %1942 = vmatmul.mubr.bf16.gmra.mxu0 %v1114
  %v1943 = vpop.f32.mrf.mxu0
  %v1944 = vadd.f32 0.0, %v1943
  %v1945 = vpop.f32.mrf.mxu0
  %v1946 = vpop.f32.mrf.mxu0
  %v1947 = vadd.f32 0.0, %v1946
  %v1948 = vpop.f32.mrf.mxu0
  %1949 = vmatprep.mubr.bf16.mxu0 0
  %1950 = vmatmul.mubr.bf16.gmra.mxu0 %v1117
  %v1951 = vpop.f32.mrf.mxu0
  %v1952 = vadd.f32 0.0, %v1951
  %v1953 = vpop.f32.mrf.mxu0
  %v1954 = vpop.f32.mrf.mxu0
  %v1955 = vadd.f32 0.0, %v1954
  %v1956 = vpop.f32.mrf.mxu0
  %1957 = vmatprep.mubr.bf16.mxu0 0
  %1958 = vmatmul.mubr.bf16.gmra.mxu0 %v1120
  %v1959 = vpop.f32.mrf.mxu0
  %v1960 = vadd.f32 0.0, %v1959
  %v1961 = vpop.f32.mrf.mxu0
  %v1962 = vpop.f32.mrf.mxu0
  %v1963 = vadd.f32 0.0, %v1962
  %v1964 = vpop.f32.mrf.mxu0
  %1965 = vmatprep.mubr.bf16.mxu0 0
  %1966 = vmatmul.mubr.bf16.gmra.mxu0 %v1123
  %v1967 = vpop.f32.mrf.mxu0
  %v1968 = vadd.f32 0.0, %v1967
  %v1969 = vpop.f32.mrf.mxu0
  %v1970 = vpop.f32.mrf.mxu0
  %v1971 = vadd.f32 0.0, %v1970
  %v1972 = vpop.f32.mrf.mxu0
  %1973 = vmatprep.mubr.bf16.mxu0 0
  %1974 = vmatmul.mubr.bf16.gmra.mxu0 %v1126
  %v1975 = vpop.f32.mrf.mxu0
  %v1976 = vadd.f32 0.0, %v1975
  %v1977 = vpop.f32.mrf.mxu0
  %v1978 = vpop.f32.mrf.mxu0
  %v1979 = vadd.f32 0.0, %v1978
  %v1980 = vpop.f32.mrf.mxu0
  %1981 = vmatprep.mubr.bf16.mxu0 0
  %1982 = vmatmul.mubr.bf16.gmra.mxu0 %v1129
  %v1983 = vpop.f32.mrf.mxu0
  %v1984 = vadd.f32 0.0, %v1983
  %v1985 = vpop.f32.mrf.mxu0
  %v1986 = vpop.f32.mrf.mxu0
  %v1987 = vadd.f32 0.0, %v1986
  %v1988 = vpop.f32.mrf.mxu0
  %1989 = vmatprep.mubr.bf16.mxu0 0
  %1990 = vmatmul.mubr.bf16.gmra.mxu0 %v1132
  %v1991 = vpop.f32.mrf.mxu0
  %v1992 = vadd.f32 0.0, %v1991
  %v1993 = vpop.f32.mrf.mxu0
  %v1994 = vpop.f32.mrf.mxu0
  %v1995 = vadd.f32 0.0, %v1994
  %v1996 = vpop.f32.mrf.mxu0
  %1997 = vmatprep.mubr.bf16.mxu0 0
  %1998 = vmatmul.mubr.bf16.gmra.mxu0 %v1135
  %v1999 = vpop.f32.mrf.mxu0
  %v2000 = vadd.f32 0.0, %v1999
  %v2001 = vpop.f32.mrf.mxu0
  %v2002 = vpop.f32.mrf.mxu0
  %v2003 = vadd.f32 0.0, %v2002
  %v2004 = vpop.f32.mrf.mxu0
  %2005 = vmatprep.mubr.bf16.mxu0 0
  %2006 = vmatmul.mubr.bf16.gmra.mxu0 %v1138
  %v2007 = vpop.f32.mrf.mxu0
  %v2008 = vadd.f32 0.0, %v2007
  %v2009 = vpop.f32.mrf.mxu0
  %v2010 = vpop.f32.mrf.mxu0
  %v2011 = vadd.f32 0.0, %v2010
  %v2012 = vpop.f32.mrf.mxu0
  %2013 = vmatprep.mubr.bf16.mxu0 0
  %2014 = vmatmul.mubr.bf16.gmra.mxu0 %v1141
  %v2015 = vpop.f32.mrf.mxu0
  %v2016 = vadd.f32 0.0, %v2015
  %v2017 = vpop.f32.mrf.mxu0
  %v2018 = vpop.f32.mrf.mxu0
  %v2019 = vadd.f32 0.0, %v2018
  %v2020 = vpop.f32.mrf.mxu0
  %2021 = vmatprep.mubr.bf16.mxu0 0
  %2022 = vmatmul.mubr.bf16.gmra.mxu0 %v1144
  %v2023 = vpop.f32.mrf.mxu0
  %v2024 = vadd.f32 0.0, %v2023
  %v2025 = vpop.f32.mrf.mxu0
  %v2026 = vpop.f32.mrf.mxu0
  %v2027 = vadd.f32 0.0, %v2026
  %v2028 = vpop.f32.mrf.mxu0
  %2029 = vmatprep.mubr.bf16.mxu0 0
  %2030 = vmatmul.mubr.bf16.gmra.mxu0 %v1147
  %v2031 = vpop.f32.mrf.mxu0
  %v2032 = vadd.f32 0.0, %v2031
  %v2033 = vpop.f32.mrf.mxu0
  %v2034 = vpop.f32.mrf.mxu0
  %v2035 = vadd.f32 0.0, %v2034
  %v2036 = vpop.f32.mrf.mxu0
  %2037 = vmatprep.mubr.bf16.mxu0 0
  %2038 = vmatmul.mubr.bf16.gmra.mxu0 %v1150
  %v2039 = vpop.f32.mrf.mxu0
  %v2040 = vadd.f32 0.0, %v2039
  %v2041 = vpop.f32.mrf.mxu0
  %v2042 = vpop.f32.mrf.mxu0
  %v2043 = vadd.f32 0.0, %v2042
  %v2044 = vpop.f32.mrf.mxu0
  %2045 = vmatprep.mubr.bf16.mxu0 0
  %2046 = vmatmul.mubr.bf16.gmra.mxu0 %v1153
  %v2047 = vpop.f32.mrf.mxu0
  %v2048 = vadd.f32 0.0, %v2047
  %v2049 = vpop.f32.mrf.mxu0
  %v2050 = vpop.f32.mrf.mxu0
  %v2051 = vadd.f32 0.0, %v2050
  %v2052 = vpop.f32.mrf.mxu0
  %2053 = vmatprep.mubr.bf16.mxu0 0
  %2054 = vmatmul.mubr.bf16.gmra.mxu0 %v1156
  %v2055 = vpop.f32.mrf.mxu0
  %v2056 = vadd.f32 0.0, %v2055
  %v2057 = vpop.f32.mrf.mxu0
  %v2058 = vpop.f32.mrf.mxu0
  %v2059 = vadd.f32 0.0, %v2058
  %v2060 = vpop.f32.mrf.mxu0
  %2061 = vmatprep.mubr.bf16.mxu0 0
  %2062 = vmatmul.mubr.bf16.gmra.mxu0 %v1159
  %v2063 = vpop.f32.mrf.mxu0
  %v2064 = vadd.f32 0.0, %v2063
  %v2065 = vpop.f32.mrf.mxu0
  %v2066 = vpop.f32.mrf.mxu0
  %v2067 = vadd.f32 0.0, %v2066
  %v2068 = vpop.f32.mrf.mxu0
  %2069 = vmatprep.mubr.bf16.mxu0 0
  %2070 = vmatmul.mubr.bf16.gmra.mxu0 %v1162
  %v2071 = vpop.f32.mrf.mxu0
  %v2072 = vadd.f32 0.0, %v2071
  %v2073 = vpop.f32.mrf.mxu0
  %v2074 = vpop.f32.mrf.mxu0
  %v2075 = vadd.f32 0.0, %v2074
  %v2076 = vpop.f32.mrf.mxu0
  %2077 = vmatprep.mubr.bf16.mxu0 0
  %2078 = vmatmul.mubr.bf16.gmra.mxu0 %v1165
  %v2079 = vpop.f32.mrf.mxu0
  %v2080 = vadd.f32 0.0, %v2079
  %v2081 = vpop.f32.mrf.mxu0
  %v2082 = vpop.f32.mrf.mxu0
  %v2083 = vadd.f32 0.0, %v2082
  %v2084 = vpop.f32.mrf.mxu0
  %2085 = vmatprep.mubr.bf16.mxu0 0
  %2086 = vmatmul.mubr.bf16.gmra.mxu0 %v1168
  %v2087 = vpop.f32.mrf.mxu0
  %v2088 = vadd.f32 0.0, %v2087
  %v2089 = vpop.f32.mrf.mxu0
  %v2090 = vpop.f32.mrf.mxu0
  %v2091 = vadd.f32 0.0, %v2090
  %v2092 = vpop.f32.mrf.mxu0
  %2093 = vmatprep.mubr.bf16.mxu0 0
  %2094 = vmatmul.mubr.bf16.gmra.mxu0 %v1171
  %v2095 = vpop.f32.mrf.mxu0
  %v2096 = vadd.f32 0.0, %v2095
  %v2097 = vpop.f32.mrf.mxu0
  %v2098 = vpop.f32.mrf.mxu0
  %v2099 = vadd.f32 0.0, %v2098
  %v2100 = vpop.f32.mrf.mxu0
  %2101 = vmatprep.mubr.bf16.mxu0 0
  %2102 = vmatmul.mubr.bf16.gmra.mxu0 %v1174
  %v2103 = vpop.f32.mrf.mxu0
  %v2104 = vadd.f32 0.0, %v2103
  %v2105 = vpop.f32.mrf.mxu0
  %v2106 = vpop.f32.mrf.mxu0
  %v2107 = vadd.f32 0.0, %v2106
  %v2108 = vpop.f32.mrf.mxu0
  %2109 = vmatprep.mubr.bf16.mxu0 0
  %2110 = vmatmul.mubr.bf16.gmra.mxu0 %v1177
  %v2111 = vpop.f32.mrf.mxu0
  %v2112 = vadd.f32 0.0, %v2111
  %v2113 = vpop.f32.mrf.mxu0
  %v2114 = vpop.f32.mrf.mxu0
  %v2115 = vadd.f32 0.0, %v2114
  %v2116 = vpop.f32.mrf.mxu0
  %2117 = vmatprep.mubr.bf16.mxu0 0
  %2118 = vmatmul.mubr.bf16.gmra.mxu0 %v1180
  %v2119 = vpop.f32.mrf.mxu0
  %v2120 = vadd.f32 0.0, %v2119
  %v2121 = vpop.f32.mrf.mxu0
  %v2122 = vpop.f32.mrf.mxu0
  %v2123 = vadd.f32 0.0, %v2122
  %v2124 = vpop.f32.mrf.mxu0
  %2125 = vdwg.mxu0
  %v2126 = vadd.f32 %v1224, %v1227
  %v2127 = vadd.f32 %v2126, %v1232
  %v2128 = vadd.f32 %v2127, %v1235
  %v2129 = vadd.f32 %v2128, %v1240
  %v2130 = vadd.f32 %v2129, %v1243
  %v2131 = vadd.f32 %v2130, %v1248
  %v2132 = vadd.f32 %v2131, %v1251
  %v2133 = vadd.f32 %v2132, %v1256
  %v2134 = vadd.f32 %v2133, %v1259
  %v2135 = vadd.f32 %v2134, %v1264
  %v2136 = vadd.f32 %v2135, %v1267
  %v2137 = vadd.f32 %v2136, %v1272
  %v2138 = vadd.f32 %v2137, %v1275
  %v2139 = vadd.f32 %v2138, %v1280
  %v2140 = vadd.f32 %v2139, %v1283
  %v2141 = vadd.f32 %v2140, %v1288
  %v2142 = vadd.f32 %v2141, %v1291
  %v2143 = vadd.f32 %v2142, %v1296
  %v2144 = vadd.f32 %v2143, %v1299
  %v2145 = vadd.f32 %v2144, %v1304
  %v2146 = vadd.f32 %v2145, %v1307
  %v2147 = vadd.f32 %v2146, %v1312
  %v2148 = vadd.f32 %v2147, %v1315
  %v2149 = vadd.f32 %v2148, %v1320
  %v2150 = vadd.f32 %v2149, %v1323
  %v2151 = vadd.f32 %v2150, %v1328
  %v2152 = vadd.f32 %v2151, %v1331
  %v2153 = vadd.f32 %v2152, %v1336
  %v2154 = vadd.f32 %v2153, %v1339
  %v2155 = vadd.f32 %v2154, %v1344
  %v2156 = vadd.f32 %v2155, %v1347
  %v2157 = vadd.f32 %v2156, %v1352
  %v2158 = vadd.f32 %v2157, %v1355
  %v2159 = vadd.f32 %v2158, %v1360
  %v2160 = vadd.f32 %v2159, %v1363
  %v2161 = vadd.f32 %v2160, %v1368
  %v2162 = vadd.f32 %v2161, %v1371
  %v2163 = vadd.f32 %v2162, %v1376
  %v2164 = vadd.f32 %v2163, %v1379
  %v2165 = vadd.f32 %v2164, %v1384
  %v2166 = vadd.f32 %v2165, %v1387
  %v2167 = vadd.f32 %v2166, %v1392
  %v2168 = vadd.f32 %v2167, %v1395
  %v2169 = vadd.f32 %v2168, %v1400
  %v2170 = vadd.f32 %v2169, %v1403
  %v2171 = vadd.f32 %v2170, %v1408
  %v2172 = vadd.f32 %v2171, %v1411
  %v2173 = vadd.f32 %v2172, %v1416
  %v2174 = vadd.f32 %v2173, %v1419
  %v2175 = vadd.f32 %v2174, %v1424
  %v2176 = vadd.f32 %v2175, %v1427
  %v2177 = vadd.f32 %v2176, %v1432
  %v2178 = vadd.f32 %v2177, %v1435
  %v2179 = vadd.f32 %v2178, %v1440
  %v2180 = vadd.f32 %v2179, %v1443
  %v2181 = vadd.f32 %v2180, %v1448
  %v2182 = vadd.f32 %v2181, %v1451
  %v2183 = vadd.f32 %v2182, %v1456
  %v2184 = vadd.f32 %v2183, %v1459
  %v2185 = vadd.f32 %v2184, %v1464
  %v2186 = vadd.f32 %v2185, %v1467
  %v2187 = vadd.f32 %v2186, %v1472
  %v2188 = vadd.f32 %v2187, %v1475
  %v2189 = vadd.f32 %v2188, %v1480
  %v2190 = vadd.f32 %v2189, %v1483
  %v2191 = vadd.f32 %v2190, %v1488
  %v2192 = vadd.f32 %v2191, %v1491
  %v2193 = vadd.f32 %v2192, %v1496
  %v2194 = vadd.f32 %v2193, %v1499
  %v2195 = vadd.f32 %v2194, %v1504
  %v2196 = vadd.f32 %v2195, %v1507
  %v2197 = vadd.f32 %v2196, %v1512
  %v2198 = vadd.f32 %v2197, %v1515
  %v2199 = vadd.f32 %v2198, %v1520
  %v2200 = vadd.f32 %v2199, %v1523
  %v2201 = vadd.f32 %v2200, %v1528
  %v2202 = vadd.f32 %v2201, %v1531
  %v2203 = vadd.f32 %v2202, %v1536
  %v2204 = vadd.f32 %v2203, %v1539
  %v2205 = vadd.f32 %v2204, %v1544
  %v2206 = vadd.f32 %v2205, %v1547
  %v2207 = vadd.f32 %v2206, %v1552
  %v2208 = vadd.f32 %v2207, %v1555
  %v2209 = vadd.f32 %v2208, %v1560
  %v2210 = vadd.f32 %v2209, %v1563
  %v2211 = vadd.f32 %v2210, %v1568
  %v2212 = vadd.f32 %v2211, %v1571
  %v2213 = vadd.f32 %v2212, %v1576
  %v2214 = vadd.f32 %v2213, %v1579
  %v2215 = vadd.f32 %v2214, %v1584
  %v2216 = vadd.f32 %v2215, %v1587
  %v2217 = vadd.f32 %v2216, %v1592
  %v2218 = vadd.f32 %v2217, %v1595
  %v2219 = vadd.f32 %v2218, %v1600
  %v2220 = vadd.f32 %v2219, %v1603
  %v2221 = vadd.f32 %v2220, %v1608
  %v2222 = vadd.f32 %v2221, %v1611
  %v2223 = vadd.f32 %v2222, %v1616
  %v2224 = vadd.f32 %v2223, %v1619
  %v2225 = vadd.f32 %v2224, %v1624
  %v2226 = vadd.f32 %v2225, %v1627
  %v2227 = vadd.f32 %v2226, %v1632
  %v2228 = vadd.f32 %v2227, %v1635
  %v2229 = vadd.f32 %v2228, %v1640
  %v2230 = vadd.f32 %v2229, %v1643
  %v2231 = vadd.f32 %v2230, %v1648
  %v2232 = vadd.f32 %v2231, %v1651
  %v2233 = vadd.f32 %v2232, %v1656
  %v2234 = vadd.f32 %v2233, %v1659
  %v2235 = vadd.f32 %v2234, %v1664
  %v2236 = vadd.f32 %v2235, %v1667
  %v2237 = vadd.f32 %v2236, %v1672
  %v2238 = vadd.f32 %v2237, %v1675
  %v2239 = vadd.f32 %v2238, %v1680
  %v2240 = vadd.f32 %v2239, %v1683
  %v2241 = vadd.f32 %v2240, %v1688
  %v2242 = vadd.f32 %v2241, %v1691
  %v2243 = vadd.f32 %v2242, %v1696
  %v2244 = vadd.f32 %v2243, %v1699
  %v2245 = vadd.f32 %v2244, %v1704
  %v2246 = vadd.f32 %v2245, %v1707
  %v2247 = vadd.f32 %v2246, %v1712
  %v2248 = vadd.f32 %v2247, %v1715
  %v2249 = vadd.f32 %v2248, %v1720
  %v2250 = vadd.f32 %v2249, %v1723
  %v2251 = vadd.f32 %v2250, %v1728
  %v2252 = vadd.f32 %v2251, %v1731
  %v2253 = vadd.f32 %v2252, %v1736
  %v2254 = vadd.f32 %v2253, %v1739
  %v2255 = vadd.f32 %v2254, %v1744
  %v2256 = vadd.f32 %v2255, %v1747
  %v2257 = vadd.f32 %v2256, %v1752
  %v2258 = vadd.f32 %v2257, %v1755
  %v2259 = vadd.f32 %v2258, %v1760
  %v2260 = vadd.f32 %v2259, %v1763
  %v2261 = vadd.f32 %v2260, %v1768
  %v2262 = vadd.f32 %v2261, %v1771
  %v2263 = vadd.f32 %v2262, %v1776
  %v2264 = vadd.f32 %v2263, %v1779
  %v2265 = vadd.f32 %v2264, %v1784
  %v2266 = vadd.f32 %v2265, %v1787
  %v2267 = vadd.f32 %v2266, %v1792
  %v2268 = vadd.f32 %v2267, %v1795
  %v2269 = vadd.f32 %v2268, %v1800
  %v2270 = vadd.f32 %v2269, %v1803
  %v2271 = vadd.f32 %v2270, %v1808
  %v2272 = vadd.f32 %v2271, %v1811
  %v2273 = vadd.f32 %v2272, %v1816
  %v2274 = vadd.f32 %v2273, %v1819
  %v2275 = vadd.f32 %v2274, %v1824
  %v2276 = vadd.f32 %v2275, %v1827
  %v2277 = vadd.f32 %v2276, %v1832
  %v2278 = vadd.f32 %v2277, %v1835
  %v2279 = vadd.f32 %v2278, %v1840
  %v2280 = vadd.f32 %v2279, %v1843
  %v2281 = vadd.f32 %v2280, %v1848
  %v2282 = vadd.f32 %v2281, %v1851
  %v2283 = vadd.f32 %v2282, %v1856
  %v2284 = vadd.f32 %v2283, %v1859
  %v2285 = vadd.f32 %v2284, %v1864
  %v2286 = vadd.f32 %v2285, %v1867
  %v2287 = vadd.f32 %v2286, %v1872
  %v2288 = vadd.f32 %v2287, %v1875
  %v2289 = vadd.f32 %v2288, %v1880
  %v2290 = vadd.f32 %v2289, %v1883
  %v2291 = vadd.f32 %v2290, %v1888
  %v2292 = vadd.f32 %v2291, %v1891
  %v2293 = vadd.f32 %v2292, %v1896
  %v2294 = vadd.f32 %v2293, %v1899
  %v2295 = vadd.f32 %v2294, %v1904
  %v2296 = vadd.f32 %v2295, %v1907
  %v2297 = vadd.f32 %v2296, %v1912
  %v2298 = vadd.f32 %v2297, %v1915
  %v2299 = vadd.f32 %v2298, %v1920
  %v2300 = vadd.f32 %v2299, %v1923
  %v2301 = vadd.f32 %v2300, %v1928
  %v2302 = vadd.f32 %v2301, %v1931
  %v2303 = vadd.f32 %v2302, %v1936
  %v2304 = vadd.f32 %v2303, %v1939
  %v2305 = vadd.f32 %v2304, %v1944
  %v2306 = vadd.f32 %v2305, %v1947
  %v2307 = vadd.f32 %v2306, %v1952
  %v2308 = vadd.f32 %v2307, %v1955
  %v2309 = vadd.f32 %v2308, %v1960
  %v2310 = vadd.f32 %v2309, %v1963
  %v2311 = vadd.f32 %v2310, %v1968
  %v2312 = vadd.f32 %v2311, %v1971
  %v2313 = vadd.f32 %v2312, %v1976
  %v2314 = vadd.f32 %v2313, %v1979
  %v2315 = vadd.f32 %v2314, %v1984
  %v2316 = vadd.f32 %v2315, %v1987
  %v2317 = vadd.f32 %v2316, %v1992
  %v2318 = vadd.f32 %v2317, %v1995
  %v2319 = vadd.f32 %v2318, %v2000
  %v2320 = vadd.f32 %v2319, %v2003
  %v2321 = vadd.f32 %v2320, %v2008
  %v2322 = vadd.f32 %v2321, %v2011
  %v2323 = vadd.f32 %v2322, %v2016
  %v2324 = vadd.f32 %v2323, %v2019
  %v2325 = vadd.f32 %v2324, %v2024
  %v2326 = vadd.f32 %v2325, %v2027
  %v2327 = vadd.f32 %v2326, %v2032
  %v2328 = vadd.f32 %v2327, %v2035
  %v2329 = vadd.f32 %v2328, %v2040
  %v2330 = vadd.f32 %v2329, %v2043
  %v2331 = vadd.f32 %v2330, %v2048
  %v2332 = vadd.f32 %v2331, %v2051
  %v2333 = vadd.f32 %v2332, %v2056
  %v2334 = vadd.f32 %v2333, %v2059
  %v2335 = vadd.f32 %v2334, %v2064
  %v2336 = vadd.f32 %v2335, %v2067
  %v2337 = vadd.f32 %v2336, %v2072
  %v2338 = vadd.f32 %v2337, %v2075
  %v2339 = vadd.f32 %v2338, %v2080
  %v2340 = vadd.f32 %v2339, %v2083
  %v2341 = vadd.f32 %v2340, %v2088
  %v2342 = vadd.f32 %v2341, %v2091
  %v2343 = vadd.f32 %v2342, %v2096
  %v2344 = vadd.f32 %v2343, %v2099
  %v2345 = vadd.f32 %v2344, %v2104
  %v2346 = vadd.f32 %v2345, %v2107
  %v2347 = vadd.f32 %v2346, %v2112
  %v2348 = vadd.f32 %v2347, %v2115
  %v2349 = vadd.f32 %v2348, %v2120
  %v2350 = vadd.f32 %v2349, %v2123
  %v2351 = vrot.slane %v2350, 4
  %v2352 = vadd.f32 %v2350, %v2351
  %v2353 = vrot.slane %v2352, 2
  %v2354 = vadd.f32 %v2352, %v2353
  %v2355 = vrot.slane %v2354, 1
  %v2356 = vadd.f32 %v2354, %v2355
  %v2357 = vmul.f32 %v2356, 0.00055555557
  %v2358 = vmul.f32 %v1224, %v1224
  %v2359 = vmul.f32 %v1227, %v1227
  %v2360 = vmul.f32 %v1232, %v1232
  %v2361 = vmul.f32 %v1235, %v1235
  %v2362 = vmul.f32 %v1240, %v1240
  %v2363 = vmul.f32 %v1243, %v1243
  %v2364 = vmul.f32 %v1248, %v1248
  %v2365 = vmul.f32 %v1251, %v1251
  %v2366 = vmul.f32 %v1256, %v1256
  %v2367 = vmul.f32 %v1259, %v1259
  %v2368 = vmul.f32 %v1264, %v1264
  %v2369 = vmul.f32 %v1267, %v1267
  %v2370 = vmul.f32 %v1272, %v1272
  %v2371 = vmul.f32 %v1275, %v1275
  %v2372 = vmul.f32 %v1280, %v1280
  %v2373 = vmul.f32 %v1283, %v1283
  %v2374 = vmul.f32 %v1288, %v1288
  %v2375 = vmul.f32 %v1291, %v1291
  %v2376 = vmul.f32 %v1296, %v1296
  %v2377 = vmul.f32 %v1299, %v1299
  %v2378 = vmul.f32 %v1304, %v1304
  %v2379 = vmul.f32 %v1307, %v1307
  %v2380 = vmul.f32 %v1312, %v1312
  %v2381 = vmul.f32 %v1315, %v1315
  %v2382 = vmul.f32 %v1320, %v1320
  %v2383 = vmul.f32 %v1323, %v1323
  %v2384 = vmul.f32 %v1328, %v1328
  %v2385 = vmul.f32 %v1331, %v1331
  %v2386 = vmul.f32 %v1336, %v1336
  %v2387 = vmul.f32 %v1339, %v1339
  %v2388 = vmul.f32 %v1344, %v1344
  %v2389 = vmul.f32 %v1347, %v1347
  %v2390 = vmul.f32 %v1352, %v1352
  %v2391 = vmul.f32 %v1355, %v1355
  %v2392 = vmul.f32 %v1360, %v1360
  %v2393 = vmul.f32 %v1363, %v1363
  %v2394 = vmul.f32 %v1368, %v1368
  %v2395 = vmul.f32 %v1371, %v1371
  %v2396 = vmul.f32 %v1376, %v1376
  %v2397 = vmul.f32 %v1379, %v1379
  %v2398 = vmul.f32 %v1384, %v1384
  %v2399 = vmul.f32 %v1387, %v1387
  %v2400 = vmul.f32 %v1392, %v1392
  %v2401 = vmul.f32 %v1395, %v1395
  %v2402 = vmul.f32 %v1400, %v1400
  %v2403 = vmul.f32 %v1403, %v1403
  %v2404 = vmul.f32 %v1408, %v1408
  %v2405 = vmul.f32 %v1411, %v1411
  %v2406 = vmul.f32 %v1416, %v1416
  %v2407 = vmul.f32 %v1419, %v1419
  %v2408 = vmul.f32 %v1424, %v1424
  %v2409 = vmul.f32 %v1427, %v1427
  %v2410 = vmul.f32 %v1432, %v1432
  %v2411 = vmul.f32 %v1435, %v1435
  %v2412 = vmul.f32 %v1440, %v1440
  %v2413 = vmul.f32 %v1443, %v1443
  %v2414 = vmul.f32 %v1448, %v1448
  %v2415 = vmul.f32 %v1451, %v1451
  %v2416 = vmul.f32 %v1456, %v1456
  %v2417 = vmul.f32 %v1459, %v1459
  %v2418 = vmul.f32 %v1464, %v1464
  %v2419 = vmul.f32 %v1467, %v1467
  %v2420 = vmul.f32 %v1472, %v1472
  %v2421 = vmul.f32 %v1475, %v1475
  %v2422 = vmul.f32 %v1480, %v1480
  %v2423 = vmul.f32 %v1483, %v1483
  %v2424 = vmul.f32 %v1488, %v1488
  %v2425 = vmul.f32 %v1491, %v1491
  %v2426 = vmul.f32 %v1496, %v1496
  %v2427 = vmul.f32 %v1499, %v1499
  %v2428 = vmul.f32 %v1504, %v1504
  %v2429 = vmul.f32 %v1507, %v1507
  %v2430 = vmul.f32 %v1512, %v1512
  %v2431 = vmul.f32 %v1515, %v1515
  %v2432 = vmul.f32 %v1520, %v1520
  %v2433 = vmul.f32 %v1523, %v1523
  %v2434 = vmul.f32 %v1528, %v1528
  %v2435 = vmul.f32 %v1531, %v1531
  %v2436 = vmul.f32 %v1536, %v1536
  %v2437 = vmul.f32 %v1539, %v1539
  %v2438 = vmul.f32 %v1544, %v1544
  %v2439 = vmul.f32 %v1547, %v1547
  %v2440 = vmul.f32 %v1552, %v1552
  %v2441 = vmul.f32 %v1555, %v1555
  %v2442 = vmul.f32 %v1560, %v1560
  %v2443 = vmul.f32 %v1563, %v1563
  %v2444 = vmul.f32 %v1568, %v1568
  %v2445 = vmul.f32 %v1571, %v1571
  %v2446 = vmul.f32 %v1576, %v1576
  %v2447 = vmul.f32 %v1579, %v1579
  %v2448 = vmul.f32 %v1584, %v1584
  %v2449 = vmul.f32 %v1587, %v1587
  %v2450 = vmul.f32 %v1592, %v1592
  %v2451 = vmul.f32 %v1595, %v1595
  %v2452 = vmul.f32 %v1600, %v1600
  %v2453 = vmul.f32 %v1603, %v1603
  %v2454 = vmul.f32 %v1608, %v1608
  %v2455 = vmul.f32 %v1611, %v1611
  %v2456 = vmul.f32 %v1616, %v1616
  %v2457 = vmul.f32 %v1619, %v1619
  %v2458 = vmul.f32 %v1624, %v1624
  %v2459 = vmul.f32 %v1627, %v1627
  %v2460 = vmul.f32 %v1632, %v1632
  %v2461 = vmul.f32 %v1635, %v1635
  %v2462 = vmul.f32 %v1640, %v1640
  %v2463 = vmul.f32 %v1643, %v1643
  %v2464 = vmul.f32 %v1648, %v1648
  %v2465 = vmul.f32 %v1651, %v1651
  %v2466 = vmul.f32 %v1656, %v1656
  %v2467 = vmul.f32 %v1659, %v1659
  %v2468 = vmul.f32 %v1664, %v1664
  %v2469 = vmul.f32 %v1667, %v1667
  %v2470 = vmul.f32 %v1672, %v1672
  %v2471 = vmul.f32 %v1675, %v1675
  %v2472 = vmul.f32 %v1680, %v1680
  %v2473 = vmul.f32 %v1683, %v1683
  %v2474 = vmul.f32 %v1688, %v1688
  %v2475 = vmul.f32 %v1691, %v1691
  %v2476 = vmul.f32 %v1696, %v1696
  %v2477 = vmul.f32 %v1699, %v1699
  %v2478 = vmul.f32 %v1704, %v1704
  %v2479 = vmul.f32 %v1707, %v1707
  %v2480 = vmul.f32 %v1712, %v1712
  %v2481 = vmul.f32 %v1715, %v1715
  %v2482 = vmul.f32 %v1720, %v1720
  %v2483 = vmul.f32 %v1723, %v1723
  %v2484 = vmul.f32 %v1728, %v1728
  %v2485 = vmul.f32 %v1731, %v1731
  %v2486 = vmul.f32 %v1736, %v1736
  %v2487 = vmul.f32 %v1739, %v1739
  %v2488 = vmul.f32 %v1744, %v1744
  %v2489 = vmul.f32 %v1747, %v1747
  %v2490 = vmul.f32 %v1752, %v1752
  %v2491 = vmul.f32 %v1755, %v1755
  %v2492 = vmul.f32 %v1760, %v1760
  %v2493 = vmul.f32 %v1763, %v1763
  %v2494 = vmul.f32 %v1768, %v1768
  %v2495 = vmul.f32 %v1771, %v1771
  %v2496 = vmul.f32 %v1776, %v1776
  %v2497 = vmul.f32 %v1779, %v1779
  %v2498 = vmul.f32 %v1784, %v1784
  %v2499 = vmul.f32 %v1787, %v1787
  %v2500 = vmul.f32 %v1792, %v1792
  %v2501 = vmul.f32 %v1795, %v1795
  %v2502 = vmul.f32 %v1800, %v1800
  %v2503 = vmul.f32 %v1803, %v1803
  %v2504 = vmul.f32 %v1808, %v1808
  %v2505 = vmul.f32 %v1811, %v1811
  %v2506 = vmul.f32 %v1816, %v1816
  %v2507 = vmul.f32 %v1819, %v1819
  %v2508 = vmul.f32 %v1824, %v1824
  %v2509 = vmul.f32 %v1827, %v1827
  %v2510 = vmul.f32 %v1832, %v1832
  %v2511 = vmul.f32 %v1835, %v1835
  %v2512 = vmul.f32 %v1840, %v1840
  %v2513 = vmul.f32 %v1843, %v1843
  %v2514 = vmul.f32 %v1848, %v1848
  %v2515 = vmul.f32 %v1851, %v1851
  %v2516 = vmul.f32 %v1856, %v1856
  %v2517 = vmul.f32 %v1859, %v1859
  %v2518 = vmul.f32 %v1864, %v1864
  %v2519 = vmul.f32 %v1867, %v1867
  %v2520 = vmul.f32 %v1872, %v1872
  %v2521 = vmul.f32 %v1875, %v1875
  %v2522 = vmul.f32 %v1880, %v1880
  %v2523 = vmul.f32 %v1883, %v1883
  %v2524 = vmul.f32 %v1888, %v1888
  %v2525 = vmul.f32 %v1891, %v1891
  %v2526 = vmul.f32 %v1896, %v1896
  %v2527 = vmul.f32 %v1899, %v1899
  %v2528 = vmul.f32 %v1904, %v1904
  %v2529 = vmul.f32 %v1907, %v1907
  %v2530 = vmul.f32 %v1912, %v1912
  %v2531 = vmul.f32 %v1915, %v1915
  %v2532 = vmul.f32 %v1920, %v1920
  %v2533 = vmul.f32 %v1923, %v1923
  %v2534 = vmul.f32 %v1928, %v1928
  %v2535 = vmul.f32 %v1931, %v1931
  %v2536 = vmul.f32 %v1936, %v1936
  %v2537 = vmul.f32 %v1939, %v1939
  %v2538 = vmul.f32 %v1944, %v1944
  %v2539 = vmul.f32 %v1947, %v1947
  %v2540 = vmul.f32 %v1952, %v1952
  %v2541 = vmul.f32 %v1955, %v1955
  %v2542 = vmul.f32 %v1960, %v1960
  %v2543 = vmul.f32 %v1963, %v1963
  %v2544 = vmul.f32 %v1968, %v1968
  %v2545 = vmul.f32 %v1971, %v1971
  %v2546 = vmul.f32 %v1976, %v1976
  %v2547 = vmul.f32 %v1979, %v1979
  %v2548 = vmul.f32 %v1984, %v1984
  %v2549 = vmul.f32 %v1987, %v1987
  %v2550 = vmul.f32 %v1992, %v1992
  %v2551 = vmul.f32 %v1995, %v1995
  %v2552 = vmul.f32 %v2000, %v2000
  %v2553 = vmul.f32 %v2003, %v2003
  %v2554 = vmul.f32 %v2008, %v2008
  %v2555 = vmul.f32 %v2011, %v2011
  %v2556 = vmul.f32 %v2016, %v2016
  %v2557 = vmul.f32 %v2019, %v2019
  %v2558 = vmul.f32 %v2024, %v2024
  %v2559 = vmul.f32 %v2027, %v2027
  %v2560 = vmul.f32 %v2032, %v2032
  %v2561 = vmul.f32 %v2035, %v2035
  %v2562 = vmul.f32 %v2040, %v2040
  %v2563 = vmul.f32 %v2043, %v2043
  %v2564 = vmul.f32 %v2048, %v2048
  %v2565 = vmul.f32 %v2051, %v2051
  %v2566 = vmul.f32 %v2056, %v2056
  %v2567 = vmul.f32 %v2059, %v2059
  %v2568 = vmul.f32 %v2064, %v2064
  %v2569 = vmul.f32 %v2067, %v2067
  %v2570 = vmul.f32 %v2072, %v2072
  %v2571 = vmul.f32 %v2075, %v2075
  %v2572 = vmul.f32 %v2080, %v2080
  %v2573 = vmul.f32 %v2083, %v2083
  %v2574 = vmul.f32 %v2088, %v2088
  %v2575 = vmul.f32 %v2091, %v2091
  %v2576 = vmul.f32 %v2096, %v2096
  %v2577 = vmul.f32 %v2099, %v2099
  %v2578 = vmul.f32 %v2104, %v2104
  %v2579 = vmul.f32 %v2107, %v2107
  %v2580 = vmul.f32 %v2112, %v2112
  %v2581 = vmul.f32 %v2115, %v2115
  %v2582 = vmul.f32 %v2120, %v2120
  %v2583 = vmul.f32 %v2123, %v2123
  %v2584 = vadd.f32 %v2358, %v2359
  %v2585 = vadd.f32 %v2584, %v2360
  %v2586 = vadd.f32 %v2585, %v2361
  %v2587 = vadd.f32 %v2586, %v2362
  %v2588 = vadd.f32 %v2587, %v2363
  %v2589 = vadd.f32 %v2588, %v2364
  %v2590 = vadd.f32 %v2589, %v2365
  %v2591 = vadd.f32 %v2590, %v2366
  %v2592 = vadd.f32 %v2591, %v2367
  %v2593 = vadd.f32 %v2592, %v2368
  %v2594 = vadd.f32 %v2593, %v2369
  %v2595 = vadd.f32 %v2594, %v2370
  %v2596 = vadd.f32 %v2595, %v2371
  %v2597 = vadd.f32 %v2596, %v2372
  %v2598 = vadd.f32 %v2597, %v2373
  %v2599 = vadd.f32 %v2598, %v2374
  %v2600 = vadd.f32 %v2599, %v2375
  %v2601 = vadd.f32 %v2600, %v2376
  %v2602 = vadd.f32 %v2601, %v2377
  %v2603 = vadd.f32 %v2602, %v2378
  %v2604 = vadd.f32 %v2603, %v2379
  %v2605 = vadd.f32 %v2604, %v2380
  %v2606 = vadd.f32 %v2605, %v2381
  %v2607 = vadd.f32 %v2606, %v2382
  %v2608 = vadd.f32 %v2607, %v2383
  %v2609 = vadd.f32 %v2608, %v2384
  %v2610 = vadd.f32 %v2609, %v2385
  %v2611 = vadd.f32 %v2610, %v2386
  %v2612 = vadd.f32 %v2611, %v2387
  %v2613 = vadd.f32 %v2612, %v2388
  %v2614 = vadd.f32 %v2613, %v2389
  %v2615 = vadd.f32 %v2614, %v2390
  %v2616 = vadd.f32 %v2615, %v2391
  %v2617 = vadd.f32 %v2616, %v2392
  %v2618 = vadd.f32 %v2617, %v2393
  %v2619 = vadd.f32 %v2618, %v2394
  %v2620 = vadd.f32 %v2619, %v2395
  %v2621 = vadd.f32 %v2620, %v2396
  %v2622 = vadd.f32 %v2621, %v2397
  %v2623 = vadd.f32 %v2622, %v2398
  %v2624 = vadd.f32 %v2623, %v2399
  %v2625 = vadd.f32 %v2624, %v2400
  %v2626 = vadd.f32 %v2625, %v2401
  %v2627 = vadd.f32 %v2626, %v2402
  %v2628 = vadd.f32 %v2627, %v2403
  %v2629 = vadd.f32 %v2628, %v2404
  %v2630 = vadd.f32 %v2629, %v2405
  %v2631 = vadd.f32 %v2630, %v2406
  %v2632 = vadd.f32 %v2631, %v2407
  %v2633 = vadd.f32 %v2632, %v2408
  %v2634 = vadd.f32 %v2633, %v2409
  %v2635 = vadd.f32 %v2634, %v2410
  %v2636 = vadd.f32 %v2635, %v2411
  %v2637 = vadd.f32 %v2636, %v2412
  %v2638 = vadd.f32 %v2637, %v2413
  %v2639 = vadd.f32 %v2638, %v2414
  %v2640 = vadd.f32 %v2639, %v2415
  %v2641 = vadd.f32 %v2640, %v2416
  %v2642 = vadd.f32 %v2641, %v2417
  %v2643 = vadd.f32 %v2642, %v2418
  %v2644 = vadd.f32 %v2643, %v2419
  %v2645 = vadd.f32 %v2644, %v2420
  %v2646 = vadd.f32 %v2645, %v2421
  %v2647 = vadd.f32 %v2646, %v2422
  %v2648 = vadd.f32 %v2647, %v2423
  %v2649 = vadd.f32 %v2648, %v2424
  %v2650 = vadd.f32 %v2649, %v2425
  %v2651 = vadd.f32 %v2650, %v2426
  %v2652 = vadd.f32 %v2651, %v2427
  %v2653 = vadd.f32 %v2652, %v2428
  %v2654 = vadd.f32 %v2653, %v2429
  %v2655 = vadd.f32 %v2654, %v2430
  %v2656 = vadd.f32 %v2655, %v2431
  %v2657 = vadd.f32 %v2656, %v2432
  %v2658 = vadd.f32 %v2657, %v2433
  %v2659 = vadd.f32 %v2658, %v2434
  %v2660 = vadd.f32 %v2659, %v2435
  %v2661 = vadd.f32 %v2660, %v2436
  %v2662 = vadd.f32 %v2661, %v2437
  %v2663 = vadd.f32 %v2662, %v2438
  %v2664 = vadd.f32 %v2663, %v2439
  %v2665 = vadd.f32 %v2664, %v2440
  %v2666 = vadd.f32 %v2665, %v2441
  %v2667 = vadd.f32 %v2666, %v2442
  %v2668 = vadd.f32 %v2667, %v2443
  %v2669 = vadd.f32 %v2668, %v2444
  %v2670 = vadd.f32 %v2669, %v2445
  %v2671 = vadd.f32 %v2670, %v2446
  %v2672 = vadd.f32 %v2671, %v2447
  %v2673 = vadd.f32 %v2672, %v2448
  %v2674 = vadd.f32 %v2673, %v2449
  %v2675 = vadd.f32 %v2674, %v2450
  %v2676 = vadd.f32 %v2675, %v2451
  %v2677 = vadd.f32 %v2676, %v2452
  %v2678 = vadd.f32 %v2677, %v2453
  %v2679 = vadd.f32 %v2678, %v2454
  %v2680 = vadd.f32 %v2679, %v2455
  %v2681 = vadd.f32 %v2680, %v2456
  %v2682 = vadd.f32 %v2681, %v2457
  %v2683 = vadd.f32 %v2682, %v2458
  %v2684 = vadd.f32 %v2683, %v2459
  %v2685 = vadd.f32 %v2684, %v2460
  %v2686 = vadd.f32 %v2685, %v2461
  %v2687 = vadd.f32 %v2686, %v2462
  %v2688 = vadd.f32 %v2687, %v2463
  %v2689 = vadd.f32 %v2688, %v2464
  %v2690 = vadd.f32 %v2689, %v2465
  %v2691 = vadd.f32 %v2690, %v2466
  %v2692 = vadd.f32 %v2691, %v2467
  %v2693 = vadd.f32 %v2692, %v2468
  %v2694 = vadd.f32 %v2693, %v2469
  %v2695 = vadd.f32 %v2694, %v2470
  %v2696 = vadd.f32 %v2695, %v2471
  %v2697 = vadd.f32 %v2696, %v2472
  %v2698 = vadd.f32 %v2697, %v2473
  %v2699 = vadd.f32 %v2698, %v2474
  %v2700 = vadd.f32 %v2699, %v2475
  %v2701 = vadd.f32 %v2700, %v2476
  %v2702 = vadd.f32 %v2701, %v2477
  %v2703 = vadd.f32 %v2702, %v2478
  %v2704 = vadd.f32 %v2703, %v2479
  %v2705 = vadd.f32 %v2704, %v2480
  %v2706 = vadd.f32 %v2705, %v2481
  %v2707 = vadd.f32 %v2706, %v2482
  %v2708 = vadd.f32 %v2707, %v2483
  %v2709 = vadd.f32 %v2708, %v2484
  %v2710 = vadd.f32 %v2709, %v2485
  %v2711 = vadd.f32 %v2710, %v2486
  %v2712 = vadd.f32 %v2711, %v2487
  %v2713 = vadd.f32 %v2712, %v2488
  %v2714 = vadd.f32 %v2713, %v2489
  %v2715 = vadd.f32 %v2714, %v2490
  %v2716 = vadd.f32 %v2715, %v2491
  %v2717 = vadd.f32 %v2716, %v2492
  %v2718 = vadd.f32 %v2717, %v2493
  %v2719 = vadd.f32 %v2718, %v2494
  %v2720 = vadd.f32 %v2719, %v2495
  %v2721 = vadd.f32 %v2720, %v2496
  %v2722 = vadd.f32 %v2721, %v2497
  %v2723 = vadd.f32 %v2722, %v2498
  %v2724 = vadd.f32 %v2723, %v2499
  %v2725 = vadd.f32 %v2724, %v2500
  %v2726 = vadd.f32 %v2725, %v2501
  %v2727 = vadd.f32 %v2726, %v2502
  %v2728 = vadd.f32 %v2727, %v2503
  %v2729 = vadd.f32 %v2728, %v2504
  %v2730 = vadd.f32 %v2729, %v2505
  %v2731 = vadd.f32 %v2730, %v2506
  %v2732 = vadd.f32 %v2731, %v2507
  %v2733 = vadd.f32 %v2732, %v2508
  %v2734 = vadd.f32 %v2733, %v2509
  %v2735 = vadd.f32 %v2734, %v2510
  %v2736 = vadd.f32 %v2735, %v2511
  %v2737 = vadd.f32 %v2736, %v2512
  %v2738 = vadd.f32 %v2737, %v2513
  %v2739 = vadd.f32 %v2738, %v2514
  %v2740 = vadd.f32 %v2739, %v2515
  %v2741 = vadd.f32 %v2740, %v2516
  %v2742 = vadd.f32 %v2741, %v2517
  %v2743 = vadd.f32 %v2742, %v2518
  %v2744 = vadd.f32 %v2743, %v2519
  %v2745 = vadd.f32 %v2744, %v2520
  %v2746 = vadd.f32 %v2745, %v2521
  %v2747 = vadd.f32 %v2746, %v2522
  %v2748 = vadd.f32 %v2747, %v2523
  %v2749 = vadd.f32 %v2748, %v2524
  %v2750 = vadd.f32 %v2749, %v2525
  %v2751 = vadd.f32 %v2750, %v2526
  %v2752 = vadd.f32 %v2751, %v2527
  %v2753 = vadd.f32 %v2752, %v2528
  %v2754 = vadd.f32 %v2753, %v2529
  %v2755 = vadd.f32 %v2754, %v2530
  %v2756 = vadd.f32 %v2755, %v2531
  %v2757 = vadd.f32 %v2756, %v2532
  %v2758 = vadd.f32 %v2757, %v2533
  %v2759 = vadd.f32 %v2758, %v2534
  %v2760 = vadd.f32 %v2759, %v2535
  %v2761 = vadd.f32 %v2760, %v2536
  %v2762 = vadd.f32 %v2761, %v2537
  %v2763 = vadd.f32 %v2762, %v2538
  %v2764 = vadd.f32 %v2763, %v2539
  %v2765 = vadd.f32 %v2764, %v2540
  %v2766 = vadd.f32 %v2765, %v2541
  %v2767 = vadd.f32 %v2766, %v2542
  %v2768 = vadd.f32 %v2767, %v2543
  %v2769 = vadd.f32 %v2768, %v2544
  %v2770 = vadd.f32 %v2769, %v2545
  %v2771 = vadd.f32 %v2770, %v2546
  %v2772 = vadd.f32 %v2771, %v2547
  %v2773 = vadd.f32 %v2772, %v2548
  %v2774 = vadd.f32 %v2773, %v2549
  %v2775 = vadd.f32 %v2774, %v2550
  %v2776 = vadd.f32 %v2775, %v2551
  %v2777 = vadd.f32 %v2776, %v2552
  %v2778 = vadd.f32 %v2777, %v2553
  %v2779 = vadd.f32 %v2778, %v2554
  %v2780 = vadd.f32 %v2779, %v2555
  %v2781 = vadd.f32 %v2780, %v2556
  %v2782 = vadd.f32 %v2781, %v2557
  %v2783 = vadd.f32 %v2782, %v2558
  %v2784 = vadd.f32 %v2783, %v2559
  %v2785 = vadd.f32 %v2784, %v2560
  %v2786 = vadd.f32 %v2785, %v2561
  %v2787 = vadd.f32 %v2786, %v2562
  %v2788 = vadd.f32 %v2787, %v2563
  %v2789 = vadd.f32 %v2788, %v2564
  %v2790 = vadd.f32 %v2789, %v2565
  %v2791 = vadd.f32 %v2790, %v2566
  %v2792 = vadd.f32 %v2791, %v2567
  %v2793 = vadd.f32 %v2792, %v2568
  %v2794 = vadd.f32 %v2793, %v2569
  %v2795 = vadd.f32 %v2794, %v2570
  %v2796 = vadd.f32 %v2795, %v2571
  %v2797 = vadd.f32 %v2796, %v2572
  %v2798 = vadd.f32 %v2797, %v2573
  %v2799 = vadd.f32 %v2798, %v2574
  %v2800 = vadd.f32 %v2799, %v2575
  %v2801 = vadd.f32 %v2800, %v2576
  %v2802 = vadd.f32 %v2801, %v2577
  %v2803 = vadd.f32 %v2802, %v2578
  %v2804 = vadd.f32 %v2803, %v2579
  %v2805 = vadd.f32 %v2804, %v2580
  %v2806 = vadd.f32 %v2805, %v2581
  %v2807 = vadd.f32 %v2806, %v2582
  %v2808 = vadd.f32 %v2807, %v2583
  %v2809 = vrot.slane %v2808, 4
  %v2810 = vadd.f32 %v2808, %v2809
  %v2811 = vrot.slane %v2810, 2
  %v2812 = vadd.f32 %v2810, %v2811
  %v2813 = vrot.slane %v2812, 1
  %v2814 = vadd.f32 %v2812, %v2813
  %v2815 = vmul.f32 %v2814, 0.00055555557
  %v2816 = vmul.f32 %v2357, %v2357
  %v2817 = vsub.f32 %v2815, %v2816
  %v2818 = vmax.f32 %v2817, 0.0
  %v2819 = vadd.f32 %v2818, 1e-05
  %v2820 = vrsqrt.pop %v2819
  %v2821 = vsub.f32 0.0, %v2357
  %v2822 = vmul.f32 %v2821, %v2820
  %v2823 = vmul.f32 %v1224, %v2820
  %v2824 = vmul.f32 %v1227, %v2820
  %v2825 = vmul.f32 %v1232, %v2820
  %v2826 = vmul.f32 %v1235, %v2820
  %v2827 = vmul.f32 %v1240, %v2820
  %v2828 = vmul.f32 %v1243, %v2820
  %v2829 = vmul.f32 %v1248, %v2820
  %v2830 = vmul.f32 %v1251, %v2820
  %v2831 = vmul.f32 %v1256, %v2820
  %v2832 = vmul.f32 %v1259, %v2820
  %v2833 = vmul.f32 %v1264, %v2820
  %v2834 = vmul.f32 %v1267, %v2820
  %v2835 = vmul.f32 %v1272, %v2820
  %v2836 = vmul.f32 %v1275, %v2820
  %v2837 = vmul.f32 %v1280, %v2820
  %v2838 = vmul.f32 %v1283, %v2820
  %v2839 = vmul.f32 %v1288, %v2820
  %v2840 = vmul.f32 %v1291, %v2820
  %v2841 = vmul.f32 %v1296, %v2820
  %v2842 = vmul.f32 %v1299, %v2820
  %v2843 = vmul.f32 %v1304, %v2820
  %v2844 = vmul.f32 %v1307, %v2820
  %v2845 = vmul.f32 %v1312, %v2820
  %v2846 = vmul.f32 %v1315, %v2820
  %v2847 = vmul.f32 %v1320, %v2820
  %v2848 = vmul.f32 %v1323, %v2820
  %v2849 = vmul.f32 %v1328, %v2820
  %v2850 = vmul.f32 %v1331, %v2820
  %v2851 = vmul.f32 %v1336, %v2820
  %v2852 = vmul.f32 %v1339, %v2820
  %v2853 = vmul.f32 %v1344, %v2820
  %v2854 = vmul.f32 %v1347, %v2820
  %v2855 = vmul.f32 %v1352, %v2820
  %v2856 = vmul.f32 %v1355, %v2820
  %v2857 = vmul.f32 %v1360, %v2820
  %v2858 = vmul.f32 %v1363, %v2820
  %v2859 = vmul.f32 %v1368, %v2820
  %v2860 = vmul.f32 %v1371, %v2820
  %v2861 = vmul.f32 %v1376, %v2820
  %v2862 = vmul.f32 %v1379, %v2820
  %v2863 = vmul.f32 %v1384, %v2820
  %v2864 = vmul.f32 %v1387, %v2820
  %v2865 = vmul.f32 %v1392, %v2820
  %v2866 = vmul.f32 %v1395, %v2820
  %v2867 = vmul.f32 %v1400, %v2820
  %v2868 = vmul.f32 %v1403, %v2820
  %v2869 = vmul.f32 %v1408, %v2820
  %v2870 = vmul.f32 %v1411, %v2820
  %v2871 = vmul.f32 %v1416, %v2820
  %v2872 = vmul.f32 %v1419, %v2820
  %v2873 = vmul.f32 %v1424, %v2820
  %v2874 = vmul.f32 %v1427, %v2820
  %v2875 = vmul.f32 %v1432, %v2820
  %v2876 = vmul.f32 %v1435, %v2820
  %v2877 = vmul.f32 %v1440, %v2820
  %v2878 = vmul.f32 %v1443, %v2820
  %v2879 = vmul.f32 %v1448, %v2820
  %v2880 = vmul.f32 %v1451, %v2820
  %v2881 = vmul.f32 %v1456, %v2820
  %v2882 = vmul.f32 %v1459, %v2820
  %v2883 = vmul.f32 %v1464, %v2820
  %v2884 = vmul.f32 %v1467, %v2820
  %v2885 = vmul.f32 %v1472, %v2820
  %v2886 = vmul.f32 %v1475, %v2820
  %v2887 = vmul.f32 %v1480, %v2820
  %v2888 = vmul.f32 %v1483, %v2820
  %v2889 = vmul.f32 %v1488, %v2820
  %v2890 = vmul.f32 %v1491, %v2820
  %v2891 = vmul.f32 %v1496, %v2820
  %v2892 = vmul.f32 %v1499, %v2820
  %v2893 = vmul.f32 %v1504, %v2820
  %v2894 = vmul.f32 %v1507, %v2820
  %v2895 = vmul.f32 %v1512, %v2820
  %v2896 = vmul.f32 %v1515, %v2820
  %v2897 = vmul.f32 %v1520, %v2820
  %v2898 = vmul.f32 %v1523, %v2820
  %v2899 = vmul.f32 %v1528, %v2820
  %v2900 = vmul.f32 %v1531, %v2820
  %v2901 = vmul.f32 %v1536, %v2820
  %v2902 = vmul.f32 %v1539, %v2820
  %v2903 = vmul.f32 %v1544, %v2820
  %v2904 = vmul.f32 %v1547, %v2820
  %v2905 = vmul.f32 %v1552, %v2820
  %v2906 = vmul.f32 %v1555, %v2820
  %v2907 = vmul.f32 %v1560, %v2820
  %v2908 = vmul.f32 %v1563, %v2820
  %v2909 = vmul.f32 %v1568, %v2820
  %v2910 = vmul.f32 %v1571, %v2820
  %v2911 = vmul.f32 %v1576, %v2820
  %v2912 = vmul.f32 %v1579, %v2820
  %v2913 = vmul.f32 %v1584, %v2820
  %v2914 = vmul.f32 %v1587, %v2820
  %v2915 = vmul.f32 %v1592, %v2820
  %v2916 = vmul.f32 %v1595, %v2820
  %v2917 = vmul.f32 %v1600, %v2820
  %v2918 = vmul.f32 %v1603, %v2820
  %v2919 = vmul.f32 %v1608, %v2820
  %v2920 = vmul.f32 %v1611, %v2820
  %v2921 = vmul.f32 %v1616, %v2820
  %v2922 = vmul.f32 %v1619, %v2820
  %v2923 = vmul.f32 %v1624, %v2820
  %v2924 = vmul.f32 %v1627, %v2820
  %v2925 = vmul.f32 %v1632, %v2820
  %v2926 = vmul.f32 %v1635, %v2820
  %v2927 = vmul.f32 %v1640, %v2820
  %v2928 = vmul.f32 %v1643, %v2820
  %v2929 = vmul.f32 %v1648, %v2820
  %v2930 = vmul.f32 %v1651, %v2820
  %v2931 = vmul.f32 %v1656, %v2820
  %v2932 = vmul.f32 %v1659, %v2820
  %v2933 = vmul.f32 %v1664, %v2820
  %v2934 = vmul.f32 %v1667, %v2820
  %v2935 = vmul.f32 %v1672, %v2820
  %v2936 = vmul.f32 %v1675, %v2820
  %v2937 = vmul.f32 %v1680, %v2820
  %v2938 = vmul.f32 %v1683, %v2820
  %v2939 = vmul.f32 %v1688, %v2820
  %v2940 = vmul.f32 %v1691, %v2820
  %v2941 = vmul.f32 %v1696, %v2820
  %v2942 = vmul.f32 %v1699, %v2820
  %v2943 = vmul.f32 %v1704, %v2820
  %v2944 = vmul.f32 %v1707, %v2820
  %v2945 = vmul.f32 %v1712, %v2820
  %v2946 = vmul.f32 %v1715, %v2820
  %v2947 = vmul.f32 %v1720, %v2820
  %v2948 = vmul.f32 %v1723, %v2820
  %v2949 = vmul.f32 %v1728, %v2820
  %v2950 = vmul.f32 %v1731, %v2820
  %v2951 = vmul.f32 %v1736, %v2820
  %v2952 = vmul.f32 %v1739, %v2820
  %v2953 = vmul.f32 %v1744, %v2820
  %v2954 = vmul.f32 %v1747, %v2820
  %v2955 = vmul.f32 %v1752, %v2820
  %v2956 = vmul.f32 %v1755, %v2820
  %v2957 = vmul.f32 %v1760, %v2820
  %v2958 = vmul.f32 %v1763, %v2820
  %v2959 = vmul.f32 %v1768, %v2820
  %v2960 = vmul.f32 %v1771, %v2820
  %v2961 = vmul.f32 %v1776, %v2820
  %v2962 = vmul.f32 %v1779, %v2820
  %v2963 = vmul.f32 %v1784, %v2820
  %v2964 = vmul.f32 %v1787, %v2820
  %v2965 = vmul.f32 %v1792, %v2820
  %v2966 = vmul.f32 %v1795, %v2820
  %v2967 = vmul.f32 %v1800, %v2820
  %v2968 = vmul.f32 %v1803, %v2820
  %v2969 = vmul.f32 %v1808, %v2820
  %v2970 = vmul.f32 %v1811, %v2820
  %v2971 = vmul.f32 %v1816, %v2820
  %v2972 = vmul.f32 %v1819, %v2820
  %v2973 = vmul.f32 %v1824, %v2820
  %v2974 = vmul.f32 %v1827, %v2820
  %v2975 = vmul.f32 %v1832, %v2820
  %v2976 = vmul.f32 %v1835, %v2820
  %v2977 = vmul.f32 %v1840, %v2820
  %v2978 = vmul.f32 %v1843, %v2820
  %v2979 = vmul.f32 %v1848, %v2820
  %v2980 = vmul.f32 %v1851, %v2820
  %v2981 = vmul.f32 %v1856, %v2820
  %v2982 = vmul.f32 %v1859, %v2820
  %v2983 = vmul.f32 %v1864, %v2820
  %v2984 = vmul.f32 %v1867, %v2820
  %v2985 = vmul.f32 %v1872, %v2820
  %v2986 = vmul.f32 %v1875, %v2820
  %v2987 = vmul.f32 %v1880, %v2820
  %v2988 = vmul.f32 %v1883, %v2820
  %v2989 = vmul.f32 %v1888, %v2820
  %v2990 = vmul.f32 %v1891, %v2820
  %v2991 = vmul.f32 %v1896, %v2820
  %v2992 = vmul.f32 %v1899, %v2820
  %v2993 = vmul.f32 %v1904, %v2820
  %v2994 = vmul.f32 %v1907, %v2820
  %v2995 = vmul.f32 %v1912, %v2820
  %v2996 = vmul.f32 %v1915, %v2820
  %v2997 = vmul.f32 %v1920, %v2820
  %v2998 = vmul.f32 %v1923, %v2820
  %v2999 = vmul.f32 %v1928, %v2820
  %v3000 = vmul.f32 %v1931, %v2820
  %v3001 = vmul.f32 %v1936, %v2820
  %v3002 = vmul.f32 %v1939, %v2820
  %v3003 = vmul.f32 %v1944, %v2820
  %v3004 = vmul.f32 %v1947, %v2820
  %v3005 = vmul.f32 %v1952, %v2820
  %v3006 = vmul.f32 %v1955, %v2820
  %v3007 = vmul.f32 %v1960, %v2820
  %v3008 = vmul.f32 %v1963, %v2820
  %v3009 = vmul.f32 %v1968, %v2820
  %v3010 = vmul.f32 %v1971, %v2820
  %v3011 = vmul.f32 %v1976, %v2820
  %v3012 = vmul.f32 %v1979, %v2820
  %v3013 = vmul.f32 %v1984, %v2820
  %v3014 = vmul.f32 %v1987, %v2820
  %v3015 = vmul.f32 %v1992, %v2820
  %v3016 = vmul.f32 %v1995, %v2820
  %v3017 = vmul.f32 %v2000, %v2820
  %v3018 = vmul.f32 %v2003, %v2820
  %v3019 = vmul.f32 %v2008, %v2820
  %v3020 = vmul.f32 %v2011, %v2820
  %v3021 = vmul.f32 %v2016, %v2820
  %v3022 = vmul.f32 %v2019, %v2820
  %v3023 = vmul.f32 %v2024, %v2820
  %v3024 = vmul.f32 %v2027, %v2820
  %v3025 = vmul.f32 %v2032, %v2820
  %v3026 = vmul.f32 %v2035, %v2820
  %v3027 = vmul.f32 %v2040, %v2820
  %v3028 = vmul.f32 %v2043, %v2820
  %v3029 = vmul.f32 %v2048, %v2820
  %v3030 = vmul.f32 %v2051, %v2820
  %v3031 = vmul.f32 %v2056, %v2820
  %v3032 = vmul.f32 %v2059, %v2820
  %v3033 = vmul.f32 %v2064, %v2820
  %v3034 = vmul.f32 %v2067, %v2820
  %v3035 = vmul.f32 %v2072, %v2820
  %v3036 = vmul.f32 %v2075, %v2820
  %v3037 = vmul.f32 %v2080, %v2820
  %v3038 = vmul.f32 %v2083, %v2820
  %v3039 = vmul.f32 %v2088, %v2820
  %v3040 = vmul.f32 %v2091, %v2820
  %v3041 = vmul.f32 %v2096, %v2820
  %v3042 = vmul.f32 %v2099, %v2820
  %v3043 = vmul.f32 %v2104, %v2820
  %v3044 = vmul.f32 %v2107, %v2820
  %v3045 = vmul.f32 %v2112, %v2820
  %v3046 = vmul.f32 %v2115, %v2820
  %v3047 = vmul.f32 %v2120, %v2820
  %v3048 = vmul.f32 %v2123, %v2820
  %v3049 = vadd.f32 %v2823, %v2822
  %v3050 = vadd.f32 %v2824, %v2822
  %v3051 = vadd.f32 %v2825, %v2822
  %v3052 = vadd.f32 %v2826, %v2822
  %v3053 = vadd.f32 %v2827, %v2822
  %v3054 = vadd.f32 %v2828, %v2822
  %v3055 = vadd.f32 %v2829, %v2822
  %v3056 = vadd.f32 %v2830, %v2822
  %v3057 = vadd.f32 %v2831, %v2822
  %v3058 = vadd.f32 %v2832, %v2822
  %v3059 = vadd.f32 %v2833, %v2822
  %v3060 = vadd.f32 %v2834, %v2822
  %v3061 = vadd.f32 %v2835, %v2822
  %v3062 = vadd.f32 %v2836, %v2822
  %v3063 = vadd.f32 %v2837, %v2822
  %v3064 = vadd.f32 %v2838, %v2822
  %v3065 = vadd.f32 %v2839, %v2822
  %v3066 = vadd.f32 %v2840, %v2822
  %v3067 = vadd.f32 %v2841, %v2822
  %v3068 = vadd.f32 %v2842, %v2822
  %v3069 = vadd.f32 %v2843, %v2822
  %v3070 = vadd.f32 %v2844, %v2822
  %v3071 = vadd.f32 %v2845, %v2822
  %v3072 = vadd.f32 %v2846, %v2822
  %v3073 = vadd.f32 %v2847, %v2822
  %v3074 = vadd.f32 %v2848, %v2822
  %v3075 = vadd.f32 %v2849, %v2822
  %v3076 = vadd.f32 %v2850, %v2822
  %v3077 = vadd.f32 %v2851, %v2822
  %v3078 = vadd.f32 %v2852, %v2822
  %v3079 = vadd.f32 %v2853, %v2822
  %v3080 = vadd.f32 %v2854, %v2822
  %v3081 = vadd.f32 %v2855, %v2822
  %v3082 = vadd.f32 %v2856, %v2822
  %v3083 = vadd.f32 %v2857, %v2822
  %v3084 = vadd.f32 %v2858, %v2822
  %v3085 = vadd.f32 %v2859, %v2822
  %v3086 = vadd.f32 %v2860, %v2822
  %v3087 = vadd.f32 %v2861, %v2822
  %v3088 = vadd.f32 %v2862, %v2822
  %v3089 = vadd.f32 %v2863, %v2822
  %v3090 = vadd.f32 %v2864, %v2822
  %v3091 = vadd.f32 %v2865, %v2822
  %v3092 = vadd.f32 %v2866, %v2822
  %v3093 = vadd.f32 %v2867, %v2822
  %v3094 = vadd.f32 %v2868, %v2822
  %v3095 = vadd.f32 %v2869, %v2822
  %v3096 = vadd.f32 %v2870, %v2822
  %v3097 = vadd.f32 %v2871, %v2822
  %v3098 = vadd.f32 %v2872, %v2822
  %v3099 = vadd.f32 %v2873, %v2822
  %v3100 = vadd.f32 %v2874, %v2822
  %v3101 = vadd.f32 %v2875, %v2822
  %v3102 = vadd.f32 %v2876, %v2822
  %v3103 = vadd.f32 %v2877, %v2822
  %v3104 = vadd.f32 %v2878, %v2822
  %v3105 = vadd.f32 %v2879, %v2822
  %v3106 = vadd.f32 %v2880, %v2822
  %v3107 = vadd.f32 %v2881, %v2822
  %v3108 = vadd.f32 %v2882, %v2822
  %v3109 = vadd.f32 %v2883, %v2822
  %v3110 = vadd.f32 %v2884, %v2822
  %v3111 = vadd.f32 %v2885, %v2822
  %v3112 = vadd.f32 %v2886, %v2822
  %v3113 = vadd.f32 %v2887, %v2822
  %v3114 = vadd.f32 %v2888, %v2822
  %v3115 = vadd.f32 %v2889, %v2822
  %v3116 = vadd.f32 %v2890, %v2822
  %v3117 = vadd.f32 %v2891, %v2822
  %v3118 = vadd.f32 %v2892, %v2822
  %v3119 = vadd.f32 %v2893, %v2822
  %v3120 = vadd.f32 %v2894, %v2822
  %v3121 = vadd.f32 %v2895, %v2822
  %v3122 = vadd.f32 %v2896, %v2822
  %v3123 = vadd.f32 %v2897, %v2822
  %v3124 = vadd.f32 %v2898, %v2822
  %v3125 = vadd.f32 %v2899, %v2822
  %v3126 = vadd.f32 %v2900, %v2822
  %v3127 = vadd.f32 %v2901, %v2822
  %v3128 = vadd.f32 %v2902, %v2822
  %v3129 = vadd.f32 %v2903, %v2822
  %v3130 = vadd.f32 %v2904, %v2822
  %v3131 = vadd.f32 %v2905, %v2822
  %v3132 = vadd.f32 %v2906, %v2822
  %v3133 = vadd.f32 %v2907, %v2822
  %v3134 = vadd.f32 %v2908, %v2822
  %v3135 = vadd.f32 %v2909, %v2822
  %v3136 = vadd.f32 %v2910, %v2822
  %v3137 = vadd.f32 %v2911, %v2822
  %v3138 = vadd.f32 %v2912, %v2822
  %v3139 = vadd.f32 %v2913, %v2822
  %v3140 = vadd.f32 %v2914, %v2822
  %v3141 = vadd.f32 %v2915, %v2822
  %v3142 = vadd.f32 %v2916, %v2822
  %v3143 = vadd.f32 %v2917, %v2822
  %v3144 = vadd.f32 %v2918, %v2822
  %v3145 = vadd.f32 %v2919, %v2822
  %v3146 = vadd.f32 %v2920, %v2822
  %v3147 = vadd.f32 %v2921, %v2822
  %v3148 = vadd.f32 %v2922, %v2822
  %v3149 = vadd.f32 %v2923, %v2822
  %v3150 = vadd.f32 %v2924, %v2822
  %v3151 = vadd.f32 %v2925, %v2822
  %v3152 = vadd.f32 %v2926, %v2822
  %v3153 = vadd.f32 %v2927, %v2822
  %v3154 = vadd.f32 %v2928, %v2822
  %v3155 = vadd.f32 %v2929, %v2822
  %v3156 = vadd.f32 %v2930, %v2822
  %v3157 = vadd.f32 %v2931, %v2822
  %v3158 = vadd.f32 %v2932, %v2822
  %v3159 = vadd.f32 %v2933, %v2822
  %v3160 = vadd.f32 %v2934, %v2822
  %v3161 = vadd.f32 %v2935, %v2822
  %v3162 = vadd.f32 %v2936, %v2822
  %v3163 = vadd.f32 %v2937, %v2822
  %v3164 = vadd.f32 %v2938, %v2822
  %v3165 = vadd.f32 %v2939, %v2822
  %v3166 = vadd.f32 %v2940, %v2822
  %v3167 = vadd.f32 %v2941, %v2822
  %v3168 = vadd.f32 %v2942, %v2822
  %v3169 = vadd.f32 %v2943, %v2822
  %v3170 = vadd.f32 %v2944, %v2822
  %v3171 = vadd.f32 %v2945, %v2822
  %v3172 = vadd.f32 %v2946, %v2822
  %v3173 = vadd.f32 %v2947, %v2822
  %v3174 = vadd.f32 %v2948, %v2822
  %v3175 = vadd.f32 %v2949, %v2822
  %v3176 = vadd.f32 %v2950, %v2822
  %v3177 = vadd.f32 %v2951, %v2822
  %v3178 = vadd.f32 %v2952, %v2822
  %v3179 = vadd.f32 %v2953, %v2822
  %v3180 = vadd.f32 %v2954, %v2822
  %v3181 = vadd.f32 %v2955, %v2822
  %v3182 = vadd.f32 %v2956, %v2822
  %v3183 = vadd.f32 %v2957, %v2822
  %v3184 = vadd.f32 %v2958, %v2822
  %v3185 = vadd.f32 %v2959, %v2822
  %v3186 = vadd.f32 %v2960, %v2822
  %v3187 = vadd.f32 %v2961, %v2822
  %v3188 = vadd.f32 %v2962, %v2822
  %v3189 = vadd.f32 %v2963, %v2822
  %v3190 = vadd.f32 %v2964, %v2822
  %v3191 = vadd.f32 %v2965, %v2822
  %v3192 = vadd.f32 %v2966, %v2822
  %v3193 = vadd.f32 %v2967, %v2822
  %v3194 = vadd.f32 %v2968, %v2822
  %v3195 = vadd.f32 %v2969, %v2822
  %v3196 = vadd.f32 %v2970, %v2822
  %v3197 = vadd.f32 %v2971, %v2822
  %v3198 = vadd.f32 %v2972, %v2822
  %v3199 = vadd.f32 %v2973, %v2822
  %v3200 = vadd.f32 %v2974, %v2822
  %v3201 = vadd.f32 %v2975, %v2822
  %v3202 = vadd.f32 %v2976, %v2822
  %v3203 = vadd.f32 %v2977, %v2822
  %v3204 = vadd.f32 %v2978, %v2822
  %v3205 = vadd.f32 %v2979, %v2822
  %v3206 = vadd.f32 %v2980, %v2822
  %v3207 = vadd.f32 %v2981, %v2822
  %v3208 = vadd.f32 %v2982, %v2822
  %v3209 = vadd.f32 %v2983, %v2822
  %v3210 = vadd.f32 %v2984, %v2822
  %v3211 = vadd.f32 %v2985, %v2822
  %v3212 = vadd.f32 %v2986, %v2822
  %v3213 = vadd.f32 %v2987, %v2822
  %v3214 = vadd.f32 %v2988, %v2822
  %v3215 = vadd.f32 %v2989, %v2822
  %v3216 = vadd.f32 %v2990, %v2822
  %v3217 = vadd.f32 %v2991, %v2822
  %v3218 = vadd.f32 %v2992, %v2822
  %v3219 = vadd.f32 %v2993, %v2822
  %v3220 = vadd.f32 %v2994, %v2822
  %v3221 = vadd.f32 %v2995, %v2822
  %v3222 = vadd.f32 %v2996, %v2822
  %v3223 = vadd.f32 %v2997, %v2822
  %v3224 = vadd.f32 %v2998, %v2822
  %v3225 = vadd.f32 %v2999, %v2822
  %v3226 = vadd.f32 %v3000, %v2822
  %v3227 = vadd.f32 %v3001, %v2822
  %v3228 = vadd.f32 %v3002, %v2822
  %v3229 = vadd.f32 %v3003, %v2822
  %v3230 = vadd.f32 %v3004, %v2822
  %v3231 = vadd.f32 %v3005, %v2822
  %v3232 = vadd.f32 %v3006, %v2822
  %v3233 = vadd.f32 %v3007, %v2822
  %v3234 = vadd.f32 %v3008, %v2822
  %v3235 = vadd.f32 %v3009, %v2822
  %v3236 = vadd.f32 %v3010, %v2822
  %v3237 = vadd.f32 %v3011, %v2822
  %v3238 = vadd.f32 %v3012, %v2822
  %v3239 = vadd.f32 %v3013, %v2822
  %v3240 = vadd.f32 %v3014, %v2822
  %v3241 = vadd.f32 %v3015, %v2822
  %v3242 = vadd.f32 %v3016, %v2822
  %v3243 = vadd.f32 %v3017, %v2822
  %v3244 = vadd.f32 %v3018, %v2822
  %v3245 = vadd.f32 %v3019, %v2822
  %v3246 = vadd.f32 %v3020, %v2822
  %v3247 = vadd.f32 %v3021, %v2822
  %v3248 = vadd.f32 %v3022, %v2822
  %v3249 = vadd.f32 %v3023, %v2822
  %v3250 = vadd.f32 %v3024, %v2822
  %v3251 = vadd.f32 %v3025, %v2822
  %v3252 = vadd.f32 %v3026, %v2822
  %v3253 = vadd.f32 %v3027, %v2822
  %v3254 = vadd.f32 %v3028, %v2822
  %v3255 = vadd.f32 %v3029, %v2822
  %v3256 = vadd.f32 %v3030, %v2822
  %v3257 = vadd.f32 %v3031, %v2822
  %v3258 = vadd.f32 %v3032, %v2822
  %v3259 = vadd.f32 %v3033, %v2822
  %v3260 = vadd.f32 %v3034, %v2822
  %v3261 = vadd.f32 %v3035, %v2822
  %v3262 = vadd.f32 %v3036, %v2822
  %v3263 = vadd.f32 %v3037, %v2822
  %v3264 = vadd.f32 %v3038, %v2822
  %v3265 = vadd.f32 %v3039, %v2822
  %v3266 = vadd.f32 %v3040, %v2822
  %v3267 = vadd.f32 %v3041, %v2822
  %v3268 = vadd.f32 %v3042, %v2822
  %v3269 = vadd.f32 %v3043, %v2822
  %v3270 = vadd.f32 %v3044, %v2822
  %v3271 = vadd.f32 %v3045, %v2822
  %v3272 = vadd.f32 %v3046, %v2822
  %v3273 = vadd.f32 %v3047, %v2822
  %v3274 = vadd.f32 %v3048, %v2822
  %v3275 = vmax.f32 %v3049, 0.0
  %v3276 = vmax.f32 %v3050, 0.0
  %v3277 = vmax.f32 %v3051, 0.0
  %v3278 = vmax.f32 %v3052, 0.0
  %v3279 = vmax.f32 %v3053, 0.0
  %v3280 = vmax.f32 %v3054, 0.0
  %v3281 = vmax.f32 %v3055, 0.0
  %v3282 = vmax.f32 %v3056, 0.0
  %v3283 = vmax.f32 %v3057, 0.0
  %v3284 = vmax.f32 %v3058, 0.0
  %v3285 = vmax.f32 %v3059, 0.0
  %v3286 = vmax.f32 %v3060, 0.0
  %v3287 = vmax.f32 %v3061, 0.0
  %v3288 = vmax.f32 %v3062, 0.0
  %v3289 = vmax.f32 %v3063, 0.0
  %v3290 = vmax.f32 %v3064, 0.0
  %v3291 = vmax.f32 %v3065, 0.0
  %v3292 = vmax.f32 %v3066, 0.0
  %v3293 = vmax.f32 %v3067, 0.0
  %v3294 = vmax.f32 %v3068, 0.0
  %v3295 = vmax.f32 %v3069, 0.0
  %v3296 = vmax.f32 %v3070, 0.0
  %v3297 = vmax.f32 %v3071, 0.0
  %v3298 = vmax.f32 %v3072, 0.0
  %v3299 = vmax.f32 %v3073, 0.0
  %v3300 = vmax.f32 %v3074, 0.0
  %v3301 = vmax.f32 %v3075, 0.0
  %v3302 = vmax.f32 %v3076, 0.0
  %v3303 = vmax.f32 %v3077, 0.0
  %v3304 = vmax.f32 %v3078, 0.0
  %v3305 = vmax.f32 %v3079, 0.0
  %v3306 = vmax.f32 %v3080, 0.0
  %v3307 = vmax.f32 %v3081, 0.0
  %v3308 = vmax.f32 %v3082, 0.0
  %v3309 = vmax.f32 %v3083, 0.0
  %v3310 = vmax.f32 %v3084, 0.0
  %v3311 = vmax.f32 %v3085, 0.0
  %v3312 = vmax.f32 %v3086, 0.0
  %v3313 = vmax.f32 %v3087, 0.0
  %v3314 = vmax.f32 %v3088, 0.0
  %v3315 = vmax.f32 %v3089, 0.0
  %v3316 = vmax.f32 %v3090, 0.0
  %v3317 = vmax.f32 %v3091, 0.0
  %v3318 = vmax.f32 %v3092, 0.0
  %v3319 = vmax.f32 %v3093, 0.0
  %v3320 = vmax.f32 %v3094, 0.0
  %v3321 = vmax.f32 %v3095, 0.0
  %v3322 = vmax.f32 %v3096, 0.0
  %v3323 = vmax.f32 %v3097, 0.0
  %v3324 = vmax.f32 %v3098, 0.0
  %v3325 = vmax.f32 %v3099, 0.0
  %v3326 = vmax.f32 %v3100, 0.0
  %v3327 = vmax.f32 %v3101, 0.0
  %v3328 = vmax.f32 %v3102, 0.0
  %v3329 = vmax.f32 %v3103, 0.0
  %v3330 = vmax.f32 %v3104, 0.0
  %v3331 = vmax.f32 %v3105, 0.0
  %v3332 = vmax.f32 %v3106, 0.0
  %v3333 = vmax.f32 %v3107, 0.0
  %v3334 = vmax.f32 %v3108, 0.0
  %v3335 = vmax.f32 %v3109, 0.0
  %v3336 = vmax.f32 %v3110, 0.0
  %v3337 = vmax.f32 %v3111, 0.0
  %v3338 = vmax.f32 %v3112, 0.0
  %v3339 = vmax.f32 %v3113, 0.0
  %v3340 = vmax.f32 %v3114, 0.0
  %v3341 = vmax.f32 %v3115, 0.0
  %v3342 = vmax.f32 %v3116, 0.0
  %v3343 = vmax.f32 %v3117, 0.0
  %v3344 = vmax.f32 %v3118, 0.0
  %v3345 = vmax.f32 %v3119, 0.0
  %v3346 = vmax.f32 %v3120, 0.0
  %v3347 = vmax.f32 %v3121, 0.0
  %v3348 = vmax.f32 %v3122, 0.0
  %v3349 = vmax.f32 %v3123, 0.0
  %v3350 = vmax.f32 %v3124, 0.0
  %v3351 = vmax.f32 %v3125, 0.0
  %v3352 = vmax.f32 %v3126, 0.0
  %v3353 = vmax.f32 %v3127, 0.0
  %v3354 = vmax.f32 %v3128, 0.0
  %v3355 = vmax.f32 %v3129, 0.0
  %v3356 = vmax.f32 %v3130, 0.0
  %v3357 = vmax.f32 %v3131, 0.0
  %v3358 = vmax.f32 %v3132, 0.0
  %v3359 = vmax.f32 %v3133, 0.0
  %v3360 = vmax.f32 %v3134, 0.0
  %v3361 = vmax.f32 %v3135, 0.0
  %v3362 = vmax.f32 %v3136, 0.0
  %v3363 = vmax.f32 %v3137, 0.0
  %v3364 = vmax.f32 %v3138, 0.0
  %v3365 = vmax.f32 %v3139, 0.0
  %v3366 = vmax.f32 %v3140, 0.0
  %v3367 = vmax.f32 %v3141, 0.0
  %v3368 = vmax.f32 %v3142, 0.0
  %v3369 = vmax.f32 %v3143, 0.0
  %v3370 = vmax.f32 %v3144, 0.0
  %v3371 = vmax.f32 %v3145, 0.0
  %v3372 = vmax.f32 %v3146, 0.0
  %v3373 = vmax.f32 %v3147, 0.0
  %v3374 = vmax.f32 %v3148, 0.0
  %v3375 = vmax.f32 %v3149, 0.0
  %v3376 = vmax.f32 %v3150, 0.0
  %v3377 = vmax.f32 %v3151, 0.0
  %v3378 = vmax.f32 %v3152, 0.0
  %v3379 = vmax.f32 %v3153, 0.0
  %v3380 = vmax.f32 %v3154, 0.0
  %v3381 = vmax.f32 %v3155, 0.0
  %v3382 = vmax.f32 %v3156, 0.0
  %v3383 = vmax.f32 %v3157, 0.0
  %v3384 = vmax.f32 %v3158, 0.0
  %v3385 = vmax.f32 %v3159, 0.0
  %v3386 = vmax.f32 %v3160, 0.0
  %v3387 = vmax.f32 %v3161, 0.0
  %v3388 = vmax.f32 %v3162, 0.0
  %v3389 = vmax.f32 %v3163, 0.0
  %v3390 = vmax.f32 %v3164, 0.0
  %v3391 = vmax.f32 %v3165, 0.0
  %v3392 = vmax.f32 %v3166, 0.0
  %v3393 = vmax.f32 %v3167, 0.0
  %v3394 = vmax.f32 %v3168, 0.0
  %v3395 = vmax.f32 %v3169, 0.0
  %v3396 = vmax.f32 %v3170, 0.0
  %v3397 = vmax.f32 %v3171, 0.0
  %v3398 = vmax.f32 %v3172, 0.0
  %v3399 = vmax.f32 %v3173, 0.0
  %v3400 = vmax.f32 %v3174, 0.0
  %v3401 = vmax.f32 %v3175, 0.0
  %v3402 = vmax.f32 %v3176, 0.0
  %v3403 = vmax.f32 %v3177, 0.0
  %v3404 = vmax.f32 %v3178, 0.0
  %v3405 = vmax.f32 %v3179, 0.0
  %v3406 = vmax.f32 %v3180, 0.0
  %v3407 = vmax.f32 %v3181, 0.0
  %v3408 = vmax.f32 %v3182, 0.0
  %v3409 = vmax.f32 %v3183, 0.0
  %v3410 = vmax.f32 %v3184, 0.0
  %v3411 = vmax.f32 %v3185, 0.0
  %v3412 = vmax.f32 %v3186, 0.0
  %v3413 = vmax.f32 %v3187, 0.0
  %v3414 = vmax.f32 %v3188, 0.0
  %v3415 = vmax.f32 %v3189, 0.0
  %v3416 = vmax.f32 %v3190, 0.0
  %v3417 = vmax.f32 %v3191, 0.0
  %v3418 = vmax.f32 %v3192, 0.0
  %v3419 = vmax.f32 %v3193, 0.0
  %v3420 = vmax.f32 %v3194, 0.0
  %v3421 = vmax.f32 %v3195, 0.0
  %v3422 = vmax.f32 %v3196, 0.0
  %v3423 = vmax.f32 %v3197, 0.0
  %v3424 = vmax.f32 %v3198, 0.0
  %v3425 = vmax.f32 %v3199, 0.0
  %v3426 = vmax.f32 %v3200, 0.0
  %v3427 = vmax.f32 %v3201, 0.0
  %v3428 = vmax.f32 %v3202, 0.0
  %v3429 = vmax.f32 %v3203, 0.0
  %v3430 = vmax.f32 %v3204, 0.0
  %v3431 = vmax.f32 %v3205, 0.0
  %v3432 = vmax.f32 %v3206, 0.0
  %v3433 = vmax.f32 %v3207, 0.0
  %v3434 = vmax.f32 %v3208, 0.0
  %v3435 = vmax.f32 %v3209, 0.0
  %v3436 = vmax.f32 %v3210, 0.0
  %v3437 = vmax.f32 %v3211, 0.0
  %v3438 = vmax.f32 %v3212, 0.0
  %v3439 = vmax.f32 %v3213, 0.0
  %v3440 = vmax.f32 %v3214, 0.0
  %v3441 = vmax.f32 %v3215, 0.0
  %v3442 = vmax.f32 %v3216, 0.0
  %v3443 = vmax.f32 %v3217, 0.0
  %v3444 = vmax.f32 %v3218, 0.0
  %v3445 = vmax.f32 %v3219, 0.0
  %v3446 = vmax.f32 %v3220, 0.0
  %v3447 = vmax.f32 %v3221, 0.0
  %v3448 = vmax.f32 %v3222, 0.0
  %v3449 = vmax.f32 %v3223, 0.0
  %v3450 = vmax.f32 %v3224, 0.0
  %v3451 = vmax.f32 %v3225, 0.0
  %v3452 = vmax.f32 %v3226, 0.0
  %v3453 = vmax.f32 %v3227, 0.0
  %v3454 = vmax.f32 %v3228, 0.0
  %v3455 = vmax.f32 %v3229, 0.0
  %v3456 = vmax.f32 %v3230, 0.0
  %v3457 = vmax.f32 %v3231, 0.0
  %v3458 = vmax.f32 %v3232, 0.0
  %v3459 = vmax.f32 %v3233, 0.0
  %v3460 = vmax.f32 %v3234, 0.0
  %v3461 = vmax.f32 %v3235, 0.0
  %v3462 = vmax.f32 %v3236, 0.0
  %v3463 = vmax.f32 %v3237, 0.0
  %v3464 = vmax.f32 %v3238, 0.0
  %v3465 = vmax.f32 %v3239, 0.0
  %v3466 = vmax.f32 %v3240, 0.0
  %v3467 = vmax.f32 %v3241, 0.0
  %v3468 = vmax.f32 %v3242, 0.0
  %v3469 = vmax.f32 %v3243, 0.0
  %v3470 = vmax.f32 %v3244, 0.0
  %v3471 = vmax.f32 %v3245, 0.0
  %v3472 = vmax.f32 %v3246, 0.0
  %v3473 = vmax.f32 %v3247, 0.0
  %v3474 = vmax.f32 %v3248, 0.0
  %v3475 = vmax.f32 %v3249, 0.0
  %v3476 = vmax.f32 %v3250, 0.0
  %v3477 = vmax.f32 %v3251, 0.0
  %v3478 = vmax.f32 %v3252, 0.0
  %v3479 = vmax.f32 %v3253, 0.0
  %v3480 = vmax.f32 %v3254, 0.0
  %v3481 = vmax.f32 %v3255, 0.0
  %v3482 = vmax.f32 %v3256, 0.0
  %v3483 = vmax.f32 %v3257, 0.0
  %v3484 = vmax.f32 %v3258, 0.0
  %v3485 = vmax.f32 %v3259, 0.0
  %v3486 = vmax.f32 %v3260, 0.0
  %v3487 = vmax.f32 %v3261, 0.0
  %v3488 = vmax.f32 %v3262, 0.0
  %v3489 = vmax.f32 %v3263, 0.0
  %v3490 = vmax.f32 %v3264, 0.0
  %v3491 = vmax.f32 %v3265, 0.0
  %v3492 = vmax.f32 %v3266, 0.0
  %v3493 = vmax.f32 %v3267, 0.0
  %v3494 = vmax.f32 %v3268, 0.0
  %v3495 = vmax.f32 %v3269, 0.0
  %v3496 = vmax.f32 %v3270, 0.0
  %v3497 = vmax.f32 %v3271, 0.0
  %v3498 = vmax.f32 %v3272, 0.0
  %v3499 = vmax.f32 %v3273, 0.0
  %v3500 = vmax.f32 %v3274, 0.0
  %v3501 = vpack.c.bf16 %v3276, %v3275
  %v3502 = vpack.c.bf16 %v3278, %v3277
  %v3503 = vpack.c.bf16 %v3280, %v3279
  %v3504 = vpack.c.bf16 %v3282, %v3281
  %v3505 = vpack.c.bf16 %v3284, %v3283
  %v3506 = vpack.c.bf16 %v3286, %v3285
  %v3507 = vpack.c.bf16 %v3288, %v3287
  %v3508 = vpack.c.bf16 %v3290, %v3289
  %v3509 = vpack.c.bf16 %v3292, %v3291
  %v3510 = vpack.c.bf16 %v3294, %v3293
  %v3511 = vpack.c.bf16 %v3296, %v3295
  %v3512 = vpack.c.bf16 %v3298, %v3297
  %v3513 = vpack.c.bf16 %v3300, %v3299
  %v3514 = vpack.c.bf16 %v3302, %v3301
  %v3515 = vpack.c.bf16 %v3304, %v3303
  %v3516 = vpack.c.bf16 %v3306, %v3305
  %v3517 = vpack.c.bf16 %v3308, %v3307
  %v3518 = vpack.c.bf16 %v3310, %v3309
  %v3519 = vpack.c.bf16 %v3312, %v3311
  %v3520 = vpack.c.bf16 %v3314, %v3313
  %v3521 = vpack.c.bf16 %v3316, %v3315
  %v3522 = vpack.c.bf16 %v3318, %v3317
  %v3523 = vpack.c.bf16 %v3320, %v3319
  %v3524 = vpack.c.bf16 %v3322, %v3321
  %v3525 = vpack.c.bf16 %v3324, %v3323
  %v3526 = vpack.c.bf16 %v3326, %v3325
  %v3527 = vpack.c.bf16 %v3328, %v3327
  %v3528 = vpack.c.bf16 %v3330, %v3329
  %v3529 = vpack.c.bf16 %v3332, %v3331
  %v3530 = vpack.c.bf16 %v3334, %v3333
  %v3531 = vpack.c.bf16 %v3336, %v3335
  %v3532 = vpack.c.bf16 %v3338, %v3337
  %v3533 = vpack.c.bf16 %v3340, %v3339
  %v3534 = vpack.c.bf16 %v3342, %v3341
  %v3535 = vpack.c.bf16 %v3344, %v3343
  %v3536 = vpack.c.bf16 %v3346, %v3345
  %v3537 = vpack.c.bf16 %v3348, %v3347
  %v3538 = vpack.c.bf16 %v3350, %v3349
  %v3539 = vpack.c.bf16 %v3352, %v3351
  %v3540 = vpack.c.bf16 %v3354, %v3353
  %v3541 = vpack.c.bf16 %v3356, %v3355
  %v3542 = vpack.c.bf16 %v3358, %v3357
  %v3543 = vpack.c.bf16 %v3360, %v3359
  %v3544 = vpack.c.bf16 %v3362, %v3361
  %v3545 = vpack.c.bf16 %v3364, %v3363
  %v3546 = vpack.c.bf16 %v3366, %v3365
  %v3547 = vpack.c.bf16 %v3368, %v3367
  %v3548 = vpack.c.bf16 %v3370, %v3369
  %v3549 = vpack.c.bf16 %v3372, %v3371
  %v3550 = vpack.c.bf16 %v3374, %v3373
  %v3551 = vpack.c.bf16 %v3376, %v3375
  %v3552 = vpack.c.bf16 %v3378, %v3377
  %v3553 = vpack.c.bf16 %v3380, %v3379
  %v3554 = vpack.c.bf16 %v3382, %v3381
  %v3555 = vpack.c.bf16 %v3384, %v3383
  %v3556 = vpack.c.bf16 %v3386, %v3385
  %v3557 = vpack.c.bf16 %v3388, %v3387
  %v3558 = vpack.c.bf16 %v3390, %v3389
  %v3559 = vpack.c.bf16 %v3392, %v3391
  %v3560 = vpack.c.bf16 %v3394, %v3393
  %v3561 = vpack.c.bf16 %v3396, %v3395
  %v3562 = vpack.c.bf16 %v3398, %v3397
  %v3563 = vpack.c.bf16 %v3400, %v3399
  %v3564 = vpack.c.bf16 %v3402, %v3401
  %v3565 = vpack.c.bf16 %v3404, %v3403
  %v3566 = vpack.c.bf16 %v3406, %v3405
  %v3567 = vpack.c.bf16 %v3408, %v3407
  %v3568 = vpack.c.bf16 %v3410, %v3409
  %v3569 = vpack.c.bf16 %v3412, %v3411
  %v3570 = vpack.c.bf16 %v3414, %v3413
  %v3571 = vpack.c.bf16 %v3416, %v3415
  %v3572 = vpack.c.bf16 %v3418, %v3417
  %v3573 = vpack.c.bf16 %v3420, %v3419
  %v3574 = vpack.c.bf16 %v3422, %v3421
  %v3575 = vpack.c.bf16 %v3424, %v3423
  %v3576 = vpack.c.bf16 %v3426, %v3425
  %v3577 = vpack.c.bf16 %v3428, %v3427
  %v3578 = vpack.c.bf16 %v3430, %v3429
  %v3579 = vpack.c.bf16 %v3432, %v3431
  %v3580 = vpack.c.bf16 %v3434, %v3433
  %v3581 = vpack.c.bf16 %v3436, %v3435
  %v3582 = vpack.c.bf16 %v3438, %v3437
  %v3583 = vpack.c.bf16 %v3440, %v3439
  %v3584 = vpack.c.bf16 %v3442, %v3441
  %v3585 = vpack.c.bf16 %v3444, %v3443
  %v3586 = vpack.c.bf16 %v3446, %v3445
  %v3587 = vpack.c.bf16 %v3448, %v3447
  %v3588 = vpack.c.bf16 %v3450, %v3449
  %v3589 = vpack.c.bf16 %v3452, %v3451
  %v3590 = vpack.c.bf16 %v3454, %v3453
  %v3591 = vpack.c.bf16 %v3456, %v3455
  %v3592 = vpack.c.bf16 %v3458, %v3457
  %v3593 = vpack.c.bf16 %v3460, %v3459
  %v3594 = vpack.c.bf16 %v3462, %v3461
  %v3595 = vpack.c.bf16 %v3464, %v3463
  %v3596 = vpack.c.bf16 %v3466, %v3465
  %v3597 = vpack.c.bf16 %v3468, %v3467
  %v3598 = vpack.c.bf16 %v3470, %v3469
  %v3599 = vpack.c.bf16 %v3472, %v3471
  %v3600 = vpack.c.bf16 %v3474, %v3473
  %v3601 = vpack.c.bf16 %v3476, %v3475
  %v3602 = vpack.c.bf16 %v3478, %v3477
  %v3603 = vpack.c.bf16 %v3480, %v3479
  %v3604 = vpack.c.bf16 %v3482, %v3481
  %v3605 = vpack.c.bf16 %v3484, %v3483
  %v3606 = vpack.c.bf16 %v3486, %v3485
  %v3607 = vpack.c.bf16 %v3488, %v3487
  %v3608 = vpack.c.bf16 %v3490, %v3489
  %v3609 = vpack.c.bf16 %v3492, %v3491
  %v3610 = vpack.c.bf16 %v3494, %v3493
  %v3611 = vpack.c.bf16 %v3496, %v3495
  %v3612 = vpack.c.bf16 %v3498, %v3497
  %v3613 = vpack.c.bf16 %v3500, %v3499
  %v3727 = vunpack.c.l.b16 %v3501
  %v3728 = vunpack.c.h.b16 %v3501
  %v3729 = vunpack.c.l.b16 %v3502
  %v3730 = vunpack.c.h.b16 %v3502
  %v3731 = vunpack.c.l.b16 %v3503
  %v3732 = vunpack.c.h.b16 %v3503
  %v3733 = vunpack.c.l.b16 %v3504
  %v3734 = vunpack.c.h.b16 %v3504
  %v3735 = vunpack.c.l.b16 %v3505
  %v3736 = vunpack.c.h.b16 %v3505
  %v3737 = vunpack.c.l.b16 %v3506
  %v3738 = vunpack.c.h.b16 %v3506
  %v3739 = vunpack.c.l.b16 %v3507
  %v3740 = vunpack.c.h.b16 %v3507
  %v3741 = vunpack.c.l.b16 %v3508
  %v3742 = vunpack.c.h.b16 %v3508
  %v3743 = vunpack.c.l.b16 %v3509
  %v3744 = vunpack.c.h.b16 %v3509
  %v3745 = vunpack.c.l.b16 %v3510
  %v3746 = vunpack.c.h.b16 %v3510
  %v3747 = vunpack.c.l.b16 %v3511
  %v3748 = vunpack.c.h.b16 %v3511
  %v3749 = vunpack.c.l.b16 %v3512
  %v3750 = vunpack.c.h.b16 %v3512
  %v3751 = vunpack.c.l.b16 %v3513
  %v3752 = vunpack.c.h.b16 %v3513
  %v3753 = vunpack.c.l.b16 %v3514
  %v3754 = vunpack.c.h.b16 %v3514
  %v3755 = vunpack.c.l.b16 %v3515
  %v3756 = vunpack.c.h.b16 %v3515
  %v3757 = vunpack.c.l.b16 %v3516
  %v3758 = vunpack.c.h.b16 %v3516
  %v3759 = vunpack.c.l.b16 %v3517
  %v3760 = vunpack.c.h.b16 %v3517
  %v3761 = vunpack.c.l.b16 %v3518
  %v3762 = vunpack.c.h.b16 %v3518
  %v3763 = vunpack.c.l.b16 %v3519
  %v3764 = vunpack.c.h.b16 %v3519
  %v3765 = vunpack.c.l.b16 %v3520
  %v3766 = vunpack.c.h.b16 %v3520
  %v3767 = vunpack.c.l.b16 %v3521
  %v3768 = vunpack.c.h.b16 %v3521
  %v3769 = vunpack.c.l.b16 %v3522
  %v3770 = vunpack.c.h.b16 %v3522
  %v3771 = vunpack.c.l.b16 %v3523
  %v3772 = vunpack.c.h.b16 %v3523
  %v3773 = vunpack.c.l.b16 %v3524
  %v3774 = vunpack.c.h.b16 %v3524
  %v3775 = vunpack.c.l.b16 %v3525
  %v3776 = vunpack.c.h.b16 %v3525
  %v3777 = vunpack.c.l.b16 %v3526
  %v3778 = vunpack.c.h.b16 %v3526
  %v3779 = vunpack.c.l.b16 %v3527
  %v3780 = vunpack.c.h.b16 %v3527
  %v3781 = vunpack.c.l.b16 %v3528
  %v3782 = vunpack.c.h.b16 %v3528
  %v3783 = vunpack.c.l.b16 %v3529
  %v3784 = vunpack.c.h.b16 %v3529
  %v3785 = vunpack.c.l.b16 %v3530
  %v3786 = vunpack.c.h.b16 %v3530
  %v3787 = vunpack.c.l.b16 %v3531
  %v3788 = vunpack.c.h.b16 %v3531
  %v3789 = vunpack.c.l.b16 %v3532
  %v3790 = vunpack.c.h.b16 %v3532
  %v3791 = vunpack.c.l.b16 %v3533
  %v3792 = vunpack.c.h.b16 %v3533
  %v3793 = vunpack.c.l.b16 %v3534
  %v3794 = vunpack.c.h.b16 %v3534
  %v3795 = vunpack.c.l.b16 %v3535
  %v3796 = vunpack.c.h.b16 %v3535
  %v3797 = vunpack.c.l.b16 %v3536
  %v3798 = vunpack.c.h.b16 %v3536
  %v3799 = vunpack.c.l.b16 %v3537
  %v3800 = vunpack.c.h.b16 %v3537
  %v3801 = vunpack.c.l.b16 %v3538
  %v3802 = vunpack.c.h.b16 %v3538
  %v3803 = vunpack.c.l.b16 %v3539
  %v3804 = vunpack.c.h.b16 %v3539
  %v3805 = vunpack.c.l.b16 %v3540
  %v3806 = vunpack.c.h.b16 %v3540
  %v3807 = vunpack.c.l.b16 %v3541
  %v3808 = vunpack.c.h.b16 %v3541
  %v3809 = vunpack.c.l.b16 %v3542
  %v3810 = vunpack.c.h.b16 %v3542
  %v3811 = vunpack.c.l.b16 %v3543
  %v3812 = vunpack.c.h.b16 %v3543
  %v3813 = vunpack.c.l.b16 %v3544
  %v3814 = vunpack.c.h.b16 %v3544
  %v3815 = vunpack.c.l.b16 %v3545
  %v3816 = vunpack.c.h.b16 %v3545
  %v3817 = vunpack.c.l.b16 %v3546
  %v3818 = vunpack.c.h.b16 %v3546
  %v3819 = vunpack.c.l.b16 %v3547
  %v3820 = vunpack.c.h.b16 %v3547
  %v3821 = vunpack.c.l.b16 %v3548
  %v3822 = vunpack.c.h.b16 %v3548
  %v3823 = vunpack.c.l.b16 %v3549
  %v3824 = vunpack.c.h.b16 %v3549
  %v3825 = vunpack.c.l.b16 %v3550
  %v3826 = vunpack.c.h.b16 %v3550
  %v3827 = vunpack.c.l.b16 %v3551
  %v3828 = vunpack.c.h.b16 %v3551
  %v3829 = vunpack.c.l.b16 %v3552
  %v3830 = vunpack.c.h.b16 %v3552
  %v3831 = vunpack.c.l.b16 %v3553
  %v3832 = vunpack.c.h.b16 %v3553
  %v3833 = vunpack.c.l.b16 %v3554
  %v3834 = vunpack.c.h.b16 %v3554
  %v3835 = vunpack.c.l.b16 %v3555
  %v3836 = vunpack.c.h.b16 %v3555
  %v3837 = vunpack.c.l.b16 %v3556
  %v3838 = vunpack.c.h.b16 %v3556
  %v3839 = vunpack.c.l.b16 %v3557
  %v3840 = vunpack.c.h.b16 %v3557
  %v3841 = vunpack.c.l.b16 %v3558
  %v3842 = vunpack.c.h.b16 %v3558
  %v3843 = vunpack.c.l.b16 %v3559
  %v3844 = vunpack.c.h.b16 %v3559
  %v3845 = vunpack.c.l.b16 %v3560
  %v3846 = vunpack.c.h.b16 %v3560
  %v3847 = vunpack.c.l.b16 %v3561
  %v3848 = vunpack.c.h.b16 %v3561
  %v3849 = vunpack.c.l.b16 %v3562
  %v3850 = vunpack.c.h.b16 %v3562
  %v3851 = vunpack.c.l.b16 %v3563
  %v3852 = vunpack.c.h.b16 %v3563
  %v3853 = vunpack.c.l.b16 %v3564
  %v3854 = vunpack.c.h.b16 %v3564
  %v3855 = vunpack.c.l.b16 %v3565
  %v3856 = vunpack.c.h.b16 %v3565
  %v3857 = vunpack.c.l.b16 %v3566
  %v3858 = vunpack.c.h.b16 %v3566
  %v3859 = vunpack.c.l.b16 %v3567
  %v3860 = vunpack.c.h.b16 %v3567
  %v3861 = vunpack.c.l.b16 %v3568
  %v3862 = vunpack.c.h.b16 %v3568
  %v3863 = vunpack.c.l.b16 %v3569
  %v3864 = vunpack.c.h.b16 %v3569
  %v3865 = vunpack.c.l.b16 %v3570
  %v3866 = vunpack.c.h.b16 %v3570
  %v3867 = vunpack.c.l.b16 %v3571
  %v3868 = vunpack.c.h.b16 %v3571
  %v3869 = vunpack.c.l.b16 %v3572
  %v3870 = vunpack.c.h.b16 %v3572
  %v3871 = vunpack.c.l.b16 %v3573
  %v3872 = vunpack.c.h.b16 %v3573
  %v3873 = vunpack.c.l.b16 %v3574
  %v3874 = vunpack.c.h.b16 %v3574
  %v3875 = vunpack.c.l.b16 %v3575
  %v3876 = vunpack.c.h.b16 %v3575
  %v3877 = vunpack.c.l.b16 %v3576
  %v3878 = vunpack.c.h.b16 %v3576
  %v3879 = vunpack.c.l.b16 %v3577
  %v3880 = vunpack.c.h.b16 %v3577
  %v3881 = vunpack.c.l.b16 %v3578
  %v3882 = vunpack.c.h.b16 %v3578
  %v3883 = vunpack.c.l.b16 %v3579
  %v3884 = vunpack.c.h.b16 %v3579
  %v3885 = vunpack.c.l.b16 %v3580
  %v3886 = vunpack.c.h.b16 %v3580
  %v3887 = vunpack.c.l.b16 %v3581
  %v3888 = vunpack.c.h.b16 %v3581
  %v3889 = vunpack.c.l.b16 %v3582
  %v3890 = vunpack.c.h.b16 %v3582
  %v3891 = vunpack.c.l.b16 %v3583
  %v3892 = vunpack.c.h.b16 %v3583
  %v3893 = vunpack.c.l.b16 %v3584
  %v3894 = vunpack.c.h.b16 %v3584
  %v3895 = vunpack.c.l.b16 %v3585
  %v3896 = vunpack.c.h.b16 %v3585
  %v3897 = vunpack.c.l.b16 %v3586
  %v3898 = vunpack.c.h.b16 %v3586
  %v3899 = vunpack.c.l.b16 %v3587
  %v3900 = vunpack.c.h.b16 %v3587
  %v3901 = vunpack.c.l.b16 %v3588
  %v3902 = vunpack.c.h.b16 %v3588
  %v3903 = vunpack.c.l.b16 %v3589
  %v3904 = vunpack.c.h.b16 %v3589
  %v3905 = vunpack.c.l.b16 %v3590
  %v3906 = vunpack.c.h.b16 %v3590
  %v3907 = vunpack.c.l.b16 %v3591
  %v3908 = vunpack.c.h.b16 %v3591
  %v3909 = vunpack.c.l.b16 %v3592
  %v3910 = vunpack.c.h.b16 %v3592
  %v3911 = vunpack.c.l.b16 %v3593
  %v3912 = vunpack.c.h.b16 %v3593
  %v3913 = vunpack.c.l.b16 %v3594
  %v3914 = vunpack.c.h.b16 %v3594
  %v3915 = vunpack.c.l.b16 %v3595
  %v3916 = vunpack.c.h.b16 %v3595
  %v3917 = vunpack.c.l.b16 %v3596
  %v3918 = vunpack.c.h.b16 %v3596
  %v3919 = vunpack.c.l.b16 %v3597
  %v3920 = vunpack.c.h.b16 %v3597
  %v3921 = vunpack.c.l.b16 %v3598
  %v3922 = vunpack.c.h.b16 %v3598
  %v3923 = vunpack.c.l.b16 %v3599
  %v3924 = vunpack.c.h.b16 %v3599
  %v3925 = vunpack.c.l.b16 %v3600
  %v3926 = vunpack.c.h.b16 %v3600
  %v3927 = vunpack.c.l.b16 %v3601
  %v3928 = vunpack.c.h.b16 %v3601
  %v3929 = vunpack.c.l.b16 %v3602
  %v3930 = vunpack.c.h.b16 %v3602
  %v3931 = vunpack.c.l.b16 %v3603
  %v3932 = vunpack.c.h.b16 %v3603
  %v3933 = vunpack.c.l.b16 %v3604
  %v3934 = vunpack.c.h.b16 %v3604
  %v3935 = vunpack.c.l.b16 %v3605
  %v3936 = vunpack.c.h.b16 %v3605
  %v3937 = vunpack.c.l.b16 %v3606
  %v3938 = vunpack.c.h.b16 %v3606
  %v3939 = vunpack.c.l.b16 %v3607
  %v3940 = vunpack.c.h.b16 %v3607
  %v3941 = vunpack.c.l.b16 %v3608
  %v3942 = vunpack.c.h.b16 %v3608
  %v3943 = vunpack.c.l.b16 %v3609
  %v3944 = vunpack.c.h.b16 %v3609
  %v3945 = vunpack.c.l.b16 %v3610
  %v3946 = vunpack.c.h.b16 %v3610
  %v3947 = vunpack.c.l.b16 %v3611
  %v3948 = vunpack.c.h.b16 %v3611
  %v3949 = vunpack.c.l.b16 %v3612
  %v3950 = vunpack.c.h.b16 %v3612
  %v3951 = vunpack.c.l.b16 %v3613
  %v3952 = vunpack.c.h.b16 %v3613
  %v3953 = vpack.c.b16 %v3727, %v3727
  %v3954 = vpack.c.b16 %v3728, %v3728
  %v3955 = vpack.c.b16 %v3729, %v3729
  %v3956 = vpack.c.b16 %v3730, %v3730
  %v3957 = vpack.c.b16 %v3731, %v3731
  %v3958 = vpack.c.b16 %v3732, %v3732
  %v3959 = vpack.c.b16 %v3733, %v3733
  %v3960 = vpack.c.b16 %v3734, %v3734
  %v3961 = vpack.c.b16 %v3735, %v3735
  %v3962 = vpack.c.b16 %v3736, %v3736
  %v3963 = vpack.c.b16 %v3737, %v3737
  %v3964 = vpack.c.b16 %v3738, %v3738
  %v3965 = vpack.c.b16 %v3739, %v3739
  %v3966 = vpack.c.b16 %v3740, %v3740
  %v3967 = vpack.c.b16 %v3741, %v3741
  %v3968 = vpack.c.b16 %v3742, %v3742
  %v3969 = vpack.c.b16 %v3743, %v3743
  %v3970 = vpack.c.b16 %v3744, %v3744
  %v3971 = vpack.c.b16 %v3745, %v3745
  %v3972 = vpack.c.b16 %v3746, %v3746
  %v3973 = vpack.c.b16 %v3747, %v3747
  %v3974 = vpack.c.b16 %v3748, %v3748
  %v3975 = vpack.c.b16 %v3749, %v3749
  %v3976 = vpack.c.b16 %v3750, %v3750
  %v3977 = vpack.c.b16 %v3751, %v3751
  %v3978 = vpack.c.b16 %v3752, %v3752
  %v3979 = vpack.c.b16 %v3753, %v3753
  %v3980 = vpack.c.b16 %v3754, %v3754
  %v3981 = vpack.c.b16 %v3755, %v3755
  %v3982 = vpack.c.b16 %v3756, %v3756
  %v3983 = vpack.c.b16 %v3757, %v3757
  %v3984 = vpack.c.b16 %v3758, %v3758
  %v3985 = vpack.c.b16 %v3759, %v3759
  %v3986 = vpack.c.b16 %v3760, %v3760
  %v3987 = vpack.c.b16 %v3761, %v3761
  %v3988 = vpack.c.b16 %v3762, %v3762
  %v3989 = vpack.c.b16 %v3763, %v3763
  %v3990 = vpack.c.b16 %v3764, %v3764
  %v3991 = vpack.c.b16 %v3765, %v3765
  %v3992 = vpack.c.b16 %v3766, %v3766
  %v3993 = vpack.c.b16 %v3767, %v3767
  %v3994 = vpack.c.b16 %v3768, %v3768
  %v3995 = vpack.c.b16 %v3769, %v3769
  %v3996 = vpack.c.b16 %v3770, %v3770
  %v3997 = vpack.c.b16 %v3771, %v3771
  %v3998 = vpack.c.b16 %v3772, %v3772
  %v3999 = vpack.c.b16 %v3773, %v3773
  %v4000 = vpack.c.b16 %v3774, %v3774
  %v4001 = vpack.c.b16 %v3775, %v3775
  %v4002 = vpack.c.b16 %v3776, %v3776
  %v4003 = vpack.c.b16 %v3777, %v3777
  %v4004 = vpack.c.b16 %v3778, %v3778
  %v4005 = vpack.c.b16 %v3779, %v3779
  %v4006 = vpack.c.b16 %v3780, %v3780
  %v4007 = vpack.c.b16 %v3781, %v3781
  %v4008 = vpack.c.b16 %v3782, %v3782
  %v4009 = vpack.c.b16 %v3783, %v3783
  %v4010 = vpack.c.b16 %v3784, %v3784
  %v4011 = vpack.c.b16 %v3785, %v3785
  %v4012 = vpack.c.b16 %v3786, %v3786
  %v4013 = vpack.c.b16 %v3787, %v3787
  %v4014 = vpack.c.b16 %v3788, %v3788
  %v4015 = vpack.c.b16 %v3789, %v3789
  %v4016 = vpack.c.b16 %v3790, %v3790
  %v4017 = vpack.c.b16 %v3791, %v3791
  %v4018 = vpack.c.b16 %v3792, %v3792
  %v4019 = vpack.c.b16 %v3793, %v3793
  %v4020 = vpack.c.b16 %v3794, %v3794
  %v4021 = vpack.c.b16 %v3795, %v3795
  %v4022 = vpack.c.b16 %v3796, %v3796
  %v4023 = vpack.c.b16 %v3797, %v3797
  %v4024 = vpack.c.b16 %v3798, %v3798
  %v4025 = vpack.c.b16 %v3799, %v3799
  %v4026 = vpack.c.b16 %v3800, %v3800
  %v4027 = vpack.c.b16 %v3801, %v3801
  %v4028 = vpack.c.b16 %v3802, %v3802
  %v4029 = vpack.c.b16 %v3803, %v3803
  %v4030 = vpack.c.b16 %v3804, %v3804
  %v4031 = vpack.c.b16 %v3805, %v3805
  %v4032 = vpack.c.b16 %v3806, %v3806
  %v4033 = vpack.c.b16 %v3807, %v3807
  %v4034 = vpack.c.b16 %v3808, %v3808
  %v4035 = vpack.c.b16 %v3809, %v3809
  %v4036 = vpack.c.b16 %v3810, %v3810
  %v4037 = vpack.c.b16 %v3811, %v3811
  %v4038 = vpack.c.b16 %v3812, %v3812
  %v4039 = vpack.c.b16 %v3813, %v3813
  %v4040 = vpack.c.b16 %v3814, %v3814
  %v4041 = vpack.c.b16 %v3815, %v3815
  %v4042 = vpack.c.b16 %v3816, %v3816
  %v4043 = vpack.c.b16 %v3817, %v3817
  %v4044 = vpack.c.b16 %v3818, %v3818
  %v4045 = vpack.c.b16 %v3819, %v3819
  %v4046 = vpack.c.b16 %v3820, %v3820
  %v4047 = vpack.c.b16 %v3821, %v3821
  %v4048 = vpack.c.b16 %v3822, %v3822
  %v4049 = vpack.c.b16 %v3823, %v3823
  %v4050 = vpack.c.b16 %v3824, %v3824
  %v4051 = vpack.c.b16 %v3825, %v3825
  %v4052 = vpack.c.b16 %v3826, %v3826
  %v4053 = vpack.c.b16 %v3827, %v3827
  %v4054 = vpack.c.b16 %v3828, %v3828
  %v4055 = vpack.c.b16 %v3829, %v3829
  %v4056 = vpack.c.b16 %v3830, %v3830
  %v4057 = vpack.c.b16 %v3831, %v3831
  %v4058 = vpack.c.b16 %v3832, %v3832
  %v4059 = vpack.c.b16 %v3833, %v3833
  %v4060 = vpack.c.b16 %v3834, %v3834
  %v4061 = vpack.c.b16 %v3835, %v3835
  %v4062 = vpack.c.b16 %v3836, %v3836
  %v4063 = vpack.c.b16 %v3837, %v3837
  %v4064 = vpack.c.b16 %v3838, %v3838
  %v4065 = vpack.c.b16 %v3839, %v3839
  %v4066 = vpack.c.b16 %v3840, %v3840
  %v4067 = vpack.c.b16 %v3841, %v3841
  %v4068 = vpack.c.b16 %v3842, %v3842
  %v4069 = vpack.c.b16 %v3843, %v3843
  %v4070 = vpack.c.b16 %v3844, %v3844
  %v4071 = vpack.c.b16 %v3845, %v3845
  %v4072 = vpack.c.b16 %v3846, %v3846
  %v4073 = vpack.c.b16 %v3847, %v3847
  %v4074 = vpack.c.b16 %v3848, %v3848
  %v4075 = vpack.c.b16 %v3849, %v3849
  %v4076 = vpack.c.b16 %v3850, %v3850
  %v4077 = vpack.c.b16 %v3851, %v3851
  %v4078 = vpack.c.b16 %v3852, %v3852
  %v4079 = vpack.c.b16 %v3853, %v3853
  %v4080 = vpack.c.b16 %v3854, %v3854
  %v4081 = vpack.c.b16 %v3855, %v3855
  %v4082 = vpack.c.b16 %v3856, %v3856
  %v4083 = vpack.c.b16 %v3857, %v3857
  %v4084 = vpack.c.b16 %v3858, %v3858
  %v4085 = vpack.c.b16 %v3859, %v3859
  %v4086 = vpack.c.b16 %v3860, %v3860
  %v4087 = vpack.c.b16 %v3861, %v3861
  %v4088 = vpack.c.b16 %v3862, %v3862
  %v4089 = vpack.c.b16 %v3863, %v3863
  %v4090 = vpack.c.b16 %v3864, %v3864
  %v4091 = vpack.c.b16 %v3865, %v3865
  %v4092 = vpack.c.b16 %v3866, %v3866
  %v4093 = vpack.c.b16 %v3867, %v3867
  %v4094 = vpack.c.b16 %v3868, %v3868
  %v4095 = vpack.c.b16 %v3869, %v3869
  %v4096 = vpack.c.b16 %v3870, %v3870
  %v4097 = vpack.c.b16 %v3871, %v3871
  %v4098 = vpack.c.b16 %v3872, %v3872
  %v4099 = vpack.c.b16 %v3873, %v3873
  %v4100 = vpack.c.b16 %v3874, %v3874
  %v4101 = vpack.c.b16 %v3875, %v3875
  %v4102 = vpack.c.b16 %v3876, %v3876
  %v4103 = vpack.c.b16 %v3877, %v3877
  %v4104 = vpack.c.b16 %v3878, %v3878
  %v4105 = vpack.c.b16 %v3879, %v3879
  %v4106 = vpack.c.b16 %v3880, %v3880
  %v4107 = vpack.c.b16 %v3881, %v3881
  %v4108 = vpack.c.b16 %v3882, %v3882
  %v4109 = vpack.c.b16 %v3883, %v3883
  %v4110 = vpack.c.b16 %v3884, %v3884
  %v4111 = vpack.c.b16 %v3885, %v3885
  %v4112 = vpack.c.b16 %v3886, %v3886
  %v4113 = vpack.c.b16 %v3887, %v3887
  %v4114 = vpack.c.b16 %v3888, %v3888
  %v4115 = vpack.c.b16 %v3889, %v3889
  %v4116 = vpack.c.b16 %v3890, %v3890
  %v4117 = vpack.c.b16 %v3891, %v3891
  %v4118 = vpack.c.b16 %v3892, %v3892
  %v4119 = vpack.c.b16 %v3893, %v3893
  %v4120 = vpack.c.b16 %v3894, %v3894
  %v4121 = vpack.c.b16 %v3895, %v3895
  %v4122 = vpack.c.b16 %v3896, %v3896
  %v4123 = vpack.c.b16 %v3897, %v3897
  %v4124 = vpack.c.b16 %v3898, %v3898
  %v4125 = vpack.c.b16 %v3899, %v3899
  %v4126 = vpack.c.b16 %v3900, %v3900
  %v4127 = vpack.c.b16 %v3901, %v3901
  %v4128 = vpack.c.b16 %v3902, %v3902
  %v4129 = vpack.c.b16 %v3903, %v3903
  %v4130 = vpack.c.b16 %v3904, %v3904
  %v4131 = vpack.c.b16 %v3905, %v3905
  %v4132 = vpack.c.b16 %v3906, %v3906
  %v4133 = vpack.c.b16 %v3907, %v3907
  %v4134 = vpack.c.b16 %v3908, %v3908
  %v4135 = vpack.c.b16 %v3909, %v3909
  %v4136 = vpack.c.b16 %v3910, %v3910
  %v4137 = vpack.c.b16 %v3911, %v3911
  %v4138 = vpack.c.b16 %v3912, %v3912
  %v4139 = vpack.c.b16 %v3913, %v3913
  %v4140 = vpack.c.b16 %v3914, %v3914
  %v4141 = vpack.c.b16 %v3915, %v3915
  %v4142 = vpack.c.b16 %v3916, %v3916
  %v4143 = vpack.c.b16 %v3917, %v3917
  %v4144 = vpack.c.b16 %v3918, %v3918
  %v4145 = vpack.c.b16 %v3919, %v3919
  %v4146 = vpack.c.b16 %v3920, %v3920
  %v4147 = vpack.c.b16 %v3921, %v3921
  %v4148 = vpack.c.b16 %v3922, %v3922
  %v4149 = vpack.c.b16 %v3923, %v3923
  %v4150 = vpack.c.b16 %v3924, %v3924
  %v4151 = vpack.c.b16 %v3925, %v3925
  %v4152 = vpack.c.b16 %v3926, %v3926
  %v4153 = vpack.c.b16 %v3927, %v3927
  %v4154 = vpack.c.b16 %v3928, %v3928
  %v4155 = vpack.c.b16 %v3929, %v3929
  %v4156 = vpack.c.b16 %v3930, %v3930
  %v4157 = vpack.c.b16 %v3931, %v3931
  %v4158 = vpack.c.b16 %v3932, %v3932
  %v4159 = vpack.c.b16 %v3933, %v3933
  %v4160 = vpack.c.b16 %v3934, %v3934
  %v4161 = vpack.c.b16 %v3935, %v3935
  %v4162 = vpack.c.b16 %v3936, %v3936
  %v4163 = vpack.c.b16 %v3937, %v3937
  %v4164 = vpack.c.b16 %v3938, %v3938
  %v4165 = vpack.c.b16 %v3939, %v3939
  %v4166 = vpack.c.b16 %v3940, %v3940
  %v4167 = vpack.c.b16 %v3941, %v3941
  %v4168 = vpack.c.b16 %v3942, %v3942
  %v4169 = vpack.c.b16 %v3943, %v3943
  %v4170 = vpack.c.b16 %v3944, %v3944
  %v4171 = vpack.c.b16 %v3945, %v3945
  %v4172 = vpack.c.b16 %v3946, %v3946
  %v4173 = vpack.c.b16 %v3947, %v3947
  %v4174 = vpack.c.b16 %v3948, %v3948
  %v4175 = vpack.c.b16 %v3949, %v3949
  %v4176 = vpack.c.b16 %v3950, %v3950
  %v4177 = vpack.c.b16 %v3951, %v3951
  %v4178 = vpack.c.b16 %v3952, %v3952
  %4405 = vst [vmem:[%s2] sm:$0xf] %v3953
  %4406 = vst [vmem:[%s2 + $0x4] sm:$0xf] %v3954
  %4407 = vst [vmem:[%s2 + $0x8] sm:$0xf] %v3955
  %4408 = vst [vmem:[%s2 + $0xc] sm:$0xf] %v3956
  %4409 = vst [vmem:[%s2 + $0x10] sm:$0xf] %v3957
  %4410 = vst [vmem:[%s2 + $0x14] sm:$0xf] %v3958
  %4411 = vst [vmem:[%s2 + $0x18] sm:$0xf] %v3959
  %4412 = vst [vmem:[%s2 + $0x1c] sm:$0xf] %v3960
  %4413 = vst [vmem:[%s2 + $0x20] sm:$0xf] %v3961
  %4414 = vst [vmem:[%s2 + $0x24] sm:$0xf] %v3962
  %4415 = vst [vmem:[%s2 + $0x28] sm:$0xf] %v3963
  %4416 = vst [vmem:[%s2 + $0x2c] sm:$0xf] %v3964
  %4417 = vst [vmem:[%s2 + $0x30] sm:$0xf] %v3965
  %4418 = vst [vmem:[%s2 + $0x34] sm:$0xf] %v3966
  %4419 = vst [vmem:[%s2 + $0x38] sm:$0xf] %v3967
  %4420 = vst [vmem:[%s2 + $0x3c] sm:$0xf] %v3968
  %4421 = vst [vmem:[%s2 + $0x40] sm:$0xf] %v3969
  %4422 = vst [vmem:[%s2 + $0x44] sm:$0xf] %v3970
  %4423 = vst [vmem:[%s2 + $0x48] sm:$0xf] %v3971
  %4424 = vst [vmem:[%s2 + $0x4c] sm:$0xf] %v3972
  %4425 = vst [vmem:[%s2 + $0x50] sm:$0xf] %v3973
  %4426 = vst [vmem:[%s2 + $0x54] sm:$0xf] %v3974
  %4427 = vst [vmem:[%s2 + $0x58] sm:$0xf] %v3975
  %4428 = vst [vmem:[%s2 + $0x5c] sm:$0xf] %v3976
  %4429 = vst [vmem:[%s2 + $0x60] sm:$0xf] %v3977
  %4430 = vst [vmem:[%s2 + $0x64] sm:$0xf] %v3978
  %4431 = vst [vmem:[%s2 + $0x68] sm:$0xf] %v3979
  %4432 = vst [vmem:[%s2 + $0x6c] sm:$0xf] %v3980
  %4433 = vst [vmem:[%s2 + $0x70] sm:$0xf] %v3981
  %4434 = vst [vmem:[%s2 + $0x74] sm:$0xf] %v3982
  %4435 = vst [vmem:[%s2 + $0x78] sm:$0xf] %v3983
  %4436 = vst [vmem:[%s2 + $0x7c] sm:$0xf] %v3984
  %4437 = vst [vmem:[%s2 + $0x80] sm:$0xf] %v3985
  %4438 = vst [vmem:[%s2 + $0x84] sm:$0xf] %v3986
  %4439 = vst [vmem:[%s2 + $0x88] sm:$0xf] %v3987
  %4440 = vst [vmem:[%s2 + $0x8c] sm:$0xf] %v3988
  %4441 = vst [vmem:[%s2 + $0x90] sm:$0xf] %v3989
  %4442 = vst [vmem:[%s2 + $0x94] sm:$0xf] %v3990
  %4443 = vst [vmem:[%s2 + $0x98] sm:$0xf] %v3991
  %4444 = vst [vmem:[%s2 + $0x9c] sm:$0xf] %v3992
  %4445 = vst [vmem:[%s2 + $0xa0] sm:$0xf] %v3993
  %4446 = vst [vmem:[%s2 + $0xa4] sm:$0xf] %v3994
  %4447 = vst [vmem:[%s2 + $0xa8] sm:$0xf] %v3995
  %4448 = vst [vmem:[%s2 + $0xac] sm:$0xf] %v3996
  %4449 = vst [vmem:[%s2 + $0xb0] sm:$0xf] %v3997
  %4450 = vst [vmem:[%s2 + $0xb4] sm:$0xf] %v3998
  %4451 = vst [vmem:[%s2 + $0xb8] sm:$0xf] %v3999
  %4452 = vst [vmem:[%s2 + $0xbc] sm:$0xf] %v4000
  %4453 = vst [vmem:[%s2 + $0xc0] sm:$0xf] %v4001
  %4454 = vst [vmem:[%s2 + $0xc4] sm:$0xf] %v4002
  %4455 = vst [vmem:[%s2 + $0xc8] sm:$0xf] %v4003
  %4456 = vst [vmem:[%s2 + $0xcc] sm:$0xf] %v4004
  %4457 = vst [vmem:[%s2 + $0xd0] sm:$0xf] %v4005
  %4458 = vst [vmem:[%s2 + $0xd4] sm:$0xf] %v4006
  %4459 = vst [vmem:[%s2 + $0xd8] sm:$0xf] %v4007
  %4460 = vst [vmem:[%s2 + $0xdc] sm:$0xf] %v4008
  %4461 = vst [vmem:[%s2 + $0xe0] sm:$0xf] %v4009
  %4462 = vst [vmem:[%s2 + $0xe4] sm:$0xf] %v4010
  %4463 = vst [vmem:[%s2 + $0xe8] sm:$0xf] %v4011
  %4464 = vst [vmem:[%s2 + $0xec] sm:$0xf] %v4012
  %4465 = vst [vmem:[%s2 + $0xf0] sm:$0xf] %v4013
  %4466 = vst [vmem:[%s2 + $0xf4] sm:$0xf] %v4014
  %4467 = vst [vmem:[%s2 + $0xf8] sm:$0xf] %v4015
  %4468 = vst [vmem:[%s2 + $0xfc] sm:$0xf] %v4016
  %4469 = vst [vmem:[%s2 + $0x100] sm:$0xf] %v4017
  %4470 = vst [vmem:[%s2 + $0x104] sm:$0xf] %v4018
  %4471 = vst [vmem:[%s2 + $0x108] sm:$0xf] %v4019
  %4472 = vst [vmem:[%s2 + $0x10c] sm:$0xf] %v4020
  %4473 = vst [vmem:[%s2 + $0x110] sm:$0xf] %v4021
  %4474 = vst [vmem:[%s2 + $0x114] sm:$0xf] %v4022
  %4475 = vst [vmem:[%s2 + $0x118] sm:$0xf] %v4023
  %4476 = vst [vmem:[%s2 + $0x11c] sm:$0xf] %v4024
  %4477 = vst [vmem:[%s2 + $0x120] sm:$0xf] %v4025
  %4478 = vst [vmem:[%s2 + $0x124] sm:$0xf] %v4026
  %4479 = vst [vmem:[%s2 + $0x128] sm:$0xf] %v4027
  %4480 = vst [vmem:[%s2 + $0x12c] sm:$0xf] %v4028
  %4481 = vst [vmem:[%s2 + $0x130] sm:$0xf] %v4029
  %4482 = vst [vmem:[%s2 + $0x134] sm:$0xf] %v4030
  %4483 = vst [vmem:[%s2 + $0x138] sm:$0xf] %v4031
  %4484 = vst [vmem:[%s2 + $0x13c] sm:$0xf] %v4032
  %4485 = vst [vmem:[%s2 + $0x140] sm:$0xf] %v4033
  %4486 = vst [vmem:[%s2 + $0x144] sm:$0xf] %v4034
  %4487 = vst [vmem:[%s2 + $0x148] sm:$0xf] %v4035
  %4488 = vst [vmem:[%s2 + $0x14c] sm:$0xf] %v4036
  %4489 = vst [vmem:[%s2 + $0x150] sm:$0xf] %v4037
  %4490 = vst [vmem:[%s2 + $0x154] sm:$0xf] %v4038
  %4491 = vst [vmem:[%s2 + $0x158] sm:$0xf] %v4039
  %4492 = vst [vmem:[%s2 + $0x15c] sm:$0xf] %v4040
  %4493 = vst [vmem:[%s2 + $0x160] sm:$0xf] %v4041
  %4494 = vst [vmem:[%s2 + $0x164] sm:$0xf] %v4042
  %4495 = vst [vmem:[%s2 + $0x168] sm:$0xf] %v4043
  %4496 = vst [vmem:[%s2 + $0x16c] sm:$0xf] %v4044
  %4497 = vst [vmem:[%s2 + $0x170] sm:$0xf] %v4045
  %4498 = vst [vmem:[%s2 + $0x174] sm:$0xf] %v4046
  %4499 = vst [vmem:[%s2 + $0x178] sm:$0xf] %v4047
  %4500 = vst [vmem:[%s2 + $0x17c] sm:$0xf] %v4048
  %4501 = vst [vmem:[%s2 + $0x180] sm:$0xf] %v4049
  %4502 = vst [vmem:[%s2 + $0x184] sm:$0xf] %v4050
  %4503 = vst [vmem:[%s2 + $0x188] sm:$0xf] %v4051
  %4504 = vst [vmem:[%s2 + $0x18c] sm:$0xf] %v4052
  %4505 = vst [vmem:[%s2 + $0x190] sm:$0xf] %v4053
  %4506 = vst [vmem:[%s2 + $0x194] sm:$0xf] %v4054
  %4507 = vst [vmem:[%s2 + $0x198] sm:$0xf] %v4055
  %4508 = vst [vmem:[%s2 + $0x19c] sm:$0xf] %v4056
  %4509 = vst [vmem:[%s2 + $0x1a0] sm:$0xf] %v4057
  %4510 = vst [vmem:[%s2 + $0x1a4] sm:$0xf] %v4058
  %4511 = vst [vmem:[%s2 + $0x1a8] sm:$0xf] %v4059
  %4512 = vst [vmem:[%s2 + $0x1ac] sm:$0xf] %v4060
  %4513 = vst [vmem:[%s2 + $0x1b0] sm:$0xf] %v4061
  %4514 = vst [vmem:[%s2 + $0x1b4] sm:$0xf] %v4062
  %4515 = vst [vmem:[%s2 + $0x1b8] sm:$0xf] %v4063
  %4516 = vst [vmem:[%s2 + $0x1bc] sm:$0xf] %v4064
  %4517 = vst [vmem:[%s2 + $0x1c0] sm:$0xf] %v4065
  %4518 = vst [vmem:[%s2 + $0x1c4] sm:$0xf] %v4066
  %4519 = vst [vmem:[%s2 + $0x1c8] sm:$0xf] %v4067
  %4520 = vst [vmem:[%s2 + $0x1cc] sm:$0xf] %v4068
  %4521 = vst [vmem:[%s2 + $0x1d0] sm:$0xf] %v4069
  %4522 = vst [vmem:[%s2 + $0x1d4] sm:$0xf] %v4070
  %4523 = vst [vmem:[%s2 + $0x1d8] sm:$0xf] %v4071
  %4524 = vst [vmem:[%s2 + $0x1dc] sm:$0xf] %v4072
  %4525 = vst [vmem:[%s2 + $0x1e0] sm:$0xf] %v4073
  %4526 = vst [vmem:[%s2 + $0x1e4] sm:$0xf] %v4074
  %4527 = vst [vmem:[%s2 + $0x1e8] sm:$0xf] %v4075
  %4528 = vst [vmem:[%s2 + $0x1ec] sm:$0xf] %v4076
  %4529 = vst [vmem:[%s2 + $0x1f0] sm:$0xf] %v4077
  %4530 = vst [vmem:[%s2 + $0x1f4] sm:$0xf] %v4078
  %4531 = vst [vmem:[%s2 + $0x1f8] sm:$0xf] %v4079
  %4532 = vst [vmem:[%s2 + $0x1fc] sm:$0xf] %v4080
  %4533 = vst [vmem:[%s2 + $0x200] sm:$0xf] %v4081
  %4534 = vst [vmem:[%s2 + $0x204] sm:$0xf] %v4082
  %4535 = vst [vmem:[%s2 + $0x208] sm:$0xf] %v4083
  %4536 = vst [vmem:[%s2 + $0x20c] sm:$0xf] %v4084
  %4537 = vst [vmem:[%s2 + $0x210] sm:$0xf] %v4085
  %4538 = vst [vmem:[%s2 + $0x214] sm:$0xf] %v4086
  %4539 = vst [vmem:[%s2 + $0x218] sm:$0xf] %v4087
  %4540 = vst [vmem:[%s2 + $0x21c] sm:$0xf] %v4088
  %4541 = vst [vmem:[%s2 + $0x220] sm:$0xf] %v4089
  %4542 = vst [vmem:[%s2 + $0x224] sm:$0xf] %v4090
  %4543 = vst [vmem:[%s2 + $0x228] sm:$0xf] %v4091
  %4544 = vst [vmem:[%s2 + $0x22c] sm:$0xf] %v4092
  %4545 = vst [vmem:[%s2 + $0x230] sm:$0xf] %v4093
  %4546 = vst [vmem:[%s2 + $0x234] sm:$0xf] %v4094
  %4547 = vst [vmem:[%s2 + $0x238] sm:$0xf] %v4095
  %4548 = vst [vmem:[%s2 + $0x23c] sm:$0xf] %v4096
  %4549 = vst [vmem:[%s2 + $0x240] sm:$0xf] %v4097
  %4550 = vst [vmem:[%s2 + $0x244] sm:$0xf] %v4098
  %4551 = vst [vmem:[%s2 + $0x248] sm:$0xf] %v4099
  %4552 = vst [vmem:[%s2 + $0x24c] sm:$0xf] %v4100
  %4553 = vst [vmem:[%s2 + $0x250] sm:$0xf] %v4101
  %4554 = vst [vmem:[%s2 + $0x254] sm:$0xf] %v4102
  %4555 = vst [vmem:[%s2 + $0x258] sm:$0xf] %v4103
  %4556 = vst [vmem:[%s2 + $0x25c] sm:$0xf] %v4104
  %4557 = vst [vmem:[%s2 + $0x260] sm:$0xf] %v4105
  %4558 = vst [vmem:[%s2 + $0x264] sm:$0xf] %v4106
  %4559 = vst [vmem:[%s2 + $0x268] sm:$0xf] %v4107
  %4560 = vst [vmem:[%s2 + $0x26c] sm:$0xf] %v4108
  %4561 = vst [vmem:[%s2 + $0x270] sm:$0xf] %v4109
  %4562 = vst [vmem:[%s2 + $0x274] sm:$0xf] %v4110
  %4563 = vst [vmem:[%s2 + $0x278] sm:$0xf] %v4111
  %4564 = vst [vmem:[%s2 + $0x27c] sm:$0xf] %v4112
  %4565 = vst [vmem:[%s2 + $0x280] sm:$0xf] %v4113
  %4566 = vst [vmem:[%s2 + $0x284] sm:$0xf] %v4114
  %4567 = vst [vmem:[%s2 + $0x288] sm:$0xf] %v4115
  %4568 = vst [vmem:[%s2 + $0x28c] sm:$0xf] %v4116
  %4569 = vst [vmem:[%s2 + $0x290] sm:$0xf] %v4117
  %4570 = vst [vmem:[%s2 + $0x294] sm:$0xf] %v4118
  %4571 = vst [vmem:[%s2 + $0x298] sm:$0xf] %v4119
  %4572 = vst [vmem:[%s2 + $0x29c] sm:$0xf] %v4120
  %4573 = vst [vmem:[%s2 + $0x2a0] sm:$0xf] %v4121
  %4574 = vst [vmem:[%s2 + $0x2a4] sm:$0xf] %v4122
  %4575 = vst [vmem:[%s2 + $0x2a8] sm:$0xf] %v4123
  %4576 = vst [vmem:[%s2 + $0x2ac] sm:$0xf] %v4124
  %4577 = vst [vmem:[%s2 + $0x2b0] sm:$0xf] %v4125
  %4578 = vst [vmem:[%s2 + $0x2b4] sm:$0xf] %v4126
  %4579 = vst [vmem:[%s2 + $0x2b8] sm:$0xf] %v4127
  %4580 = vst [vmem:[%s2 + $0x2bc] sm:$0xf] %v4128
  %4581 = vst [vmem:[%s2 + $0x2c0] sm:$0xf] %v4129
  %4582 = vst [vmem:[%s2 + $0x2c4] sm:$0xf] %v4130
  %4583 = vst [vmem:[%s2 + $0x2c8] sm:$0xf] %v4131
  %4584 = vst [vmem:[%s2 + $0x2cc] sm:$0xf] %v4132
  %4585 = vst [vmem:[%s2 + $0x2d0] sm:$0xf] %v4133
  %4586 = vst [vmem:[%s2 + $0x2d4] sm:$0xf] %v4134
  %4587 = vst [vmem:[%s2 + $0x2d8] sm:$0xf] %v4135
  %4588 = vst [vmem:[%s2 + $0x2dc] sm:$0xf] %v4136
  %4589 = vst [vmem:[%s2 + $0x2e0] sm:$0xf] %v4137
  %4590 = vst [vmem:[%s2 + $0x2e4] sm:$0xf] %v4138
  %4591 = vst [vmem:[%s2 + $0x2e8] sm:$0xf] %v4139
  %4592 = vst [vmem:[%s2 + $0x2ec] sm:$0xf] %v4140
  %4593 = vst [vmem:[%s2 + $0x2f0] sm:$0xf] %v4141
  %4594 = vst [vmem:[%s2 + $0x2f4] sm:$0xf] %v4142
  %4595 = vst [vmem:[%s2 + $0x2f8] sm:$0xf] %v4143
  %4596 = vst [vmem:[%s2 + $0x2fc] sm:$0xf] %v4144
  %4597 = vst [vmem:[%s2 + $0x300] sm:$0xf] %v4145
  %4598 = vst [vmem:[%s2 + $0x304] sm:$0xf] %v4146
  %4599 = vst [vmem:[%s2 + $0x308] sm:$0xf] %v4147
  %4600 = vst [vmem:[%s2 + $0x30c] sm:$0xf] %v4148
  %4601 = vst [vmem:[%s2 + $0x310] sm:$0xf] %v4149
  %4602 = vst [vmem:[%s2 + $0x314] sm:$0xf] %v4150
  %4603 = vst [vmem:[%s2 + $0x318] sm:$0xf] %v4151
  %4604 = vst [vmem:[%s2 + $0x31c] sm:$0xf] %v4152
  %4605 = vst [vmem:[%s2 + $0x320] sm:$0xf] %v4153
  %4606 = vst [vmem:[%s2 + $0x324] sm:$0xf] %v4154
  %4607 = vst [vmem:[%s2 + $0x328] sm:$0xf] %v4155
  %4608 = vst [vmem:[%s2 + $0x32c] sm:$0xf] %v4156
  %4609 = vst [vmem:[%s2 + $0x330] sm:$0xf] %v4157
  %4610 = vst [vmem:[%s2 + $0x334] sm:$0xf] %v4158
  %4611 = vst [vmem:[%s2 + $0x338] sm:$0xf] %v4159
  %4612 = vst [vmem:[%s2 + $0x33c] sm:$0xf] %v4160
  %4613 = vst [vmem:[%s2 + $0x340] sm:$0xf] %v4161
  %4614 = vst [vmem:[%s2 + $0x344] sm:$0xf] %v4162
  %4615 = vst [vmem:[%s2 + $0x348] sm:$0xf] %v4163
  %4616 = vst [vmem:[%s2 + $0x34c] sm:$0xf] %v4164
  %4617 = vst [vmem:[%s2 + $0x350] sm:$0xf] %v4165
  %4618 = vst [vmem:[%s2 + $0x354] sm:$0xf] %v4166
  %4619 = vst [vmem:[%s2 + $0x358] sm:$0xf] %v4167
  %4620 = vst [vmem:[%s2 + $0x35c] sm:$0xf] %v4168
  %4621 = vst [vmem:[%s2 + $0x360] sm:$0xf] %v4169
  %4622 = vst [vmem:[%s2 + $0x364] sm:$0xf] %v4170
  %4623 = vst [vmem:[%s2 + $0x368] sm:$0xf] %v4171
  %4624 = vst [vmem:[%s2 + $0x36c] sm:$0xf] %v4172
  %4625 = vst [vmem:[%s2 + $0x370] sm:$0xf] %v4173
  %4626 = vst [vmem:[%s2 + $0x374] sm:$0xf] %v4174
  %4627 = vst [vmem:[%s2 + $0x378] sm:$0xf] %v4175
  %4628 = vst [vmem:[%s2 + $0x37c] sm:$0xf] %v4176
  %4629 = vst [vmem:[%s2 + $0x380] sm:$0xf] %v4177
  %4630 = vst [vmem:[%s2 + $0x384] sm:$0xf] %v4178
  // Predicated region
  $region10: #{cnn5max_forward.5} parent=0 // pred_check
    _
  $region11: #{cnn5max_forward.5} parent=0 // pred_check_branch
    %4632 = sbr.rel (0) target = $region13
  $region12: #{cnn5max_forward.5} parent=0 // pred_region
    _
  $region13: #{cnn5max_forward.5} parent=0 // pred_fallthru
    _
  // Predicated region
  $region14: #{cnn5max_forward.5} parent=0 // pred_check
    _
  $region15: #{cnn5max_forward.5} parent=0 // pred_check_branch
    %4634 = sbr.rel (0) target = $region17
  $region16: #{cnn5max_forward.5} parent=0 // pred_region
    _
  $region17: #{cnn5max_forward.5} parent=0 // pred_fallthru
    _

// kernel: cnn5max_forward.6
$region0: #{cnn5max_forward.6}
  #allocation0 [shape = 'u32[]', space=smem, size = 0x4, offset = 0x4, fixed_abs, tag = 'smem constant byte address 0x4 - core index']
  #allocation1 [shape = 'u32[144,128]{1,0:T(1,128)}', space=vmem, size = 0x12000, scoped, tag = 'internal scratch']
  %s0 = inlined_call_operand.vmem [shape: bf16[352,600], index: 0, kind: input, shape index: {}]
  %s1 = inlined_call_operand.vmem [shape: bf16[600,128], index: 1, kind: input, shape index: {}]
  %s2 = inlined_call_operand.vmem [shape: bf16[352,128], index: 2, kind: output, shape index: {}]
  %s3 = sld [smem:[#allocation0]]
  $region18: #{cnn5max_forward.6} parent=0
    _
  %s5 = ssub.s32 1, %s3
  %s6 = scalar_select 0, %s5, %s3
  // Predicated region
  $region2: #{cnn5max_forward.6} parent=0 // pred_check
    _
  $region3: #{cnn5max_forward.6} parent=0 // pred_check_branch
    %8 = sbr.rel (0) target = $region5
  $region4: #{cnn5max_forward.6} parent=0 // pred_region
    _
  $region5: #{cnn5max_forward.6} parent=0 // pred_fallthru
    _
  // Predicated region
  $region6: #{cnn5max_forward.6} parent=0 // pred_check
    _
  $region7: #{cnn5max_forward.6} parent=0 // pred_check_branch
    %10 = sbr.rel (0) target = $region9
  $region8: #{cnn5max_forward.6} parent=0 // pred_region
    _
  $region9: #{cnn5max_forward.6} parent=0 // pred_fallthru
    _
  %v12 = vld [vmem:[%s0] sm:$0xff]
  %v13 = vld [vmem:[%s0 + $0x8] sm:$0xff]
  %v14 = vld [vmem:[%s0 + $0x10] sm:$0xf]
  %v15 = vld [vmem:[%s0 + $0x14] sm:$0xff]
  %v16 = vld [vmem:[%s0 + $0x1c] sm:$0xff]
  %v17 = vld [vmem:[%s0 + $0x24] sm:$0xf]
  %v18 = vld [vmem:[%s0 + $0x28] sm:$0xff]
  %v19 = vld [vmem:[%s0 + $0x30] sm:$0xff]
  %v20 = vld [vmem:[%s0 + $0x38] sm:$0xf]
  %v21 = vld [vmem:[%s0 + $0x3c] sm:$0xff]
  %v22 = vld [vmem:[%s0 + $0x44] sm:$0xff]
  %v23 = vld [vmem:[%s0 + $0x4c] sm:$0xf]
  %v24 = vld [vmem:[%s0 + $0x50] sm:$0xff]
  %v25 = vld [vmem:[%s0 + $0x58] sm:$0xff]
  %v26 = vld [vmem:[%s0 + $0x60] sm:$0xf]
  %v27 = vld [vmem:[%s0 + $0x64] sm:$0xff]
  %v28 = vld [vmem:[%s0 + $0x6c] sm:$0xff]
  %v29 = vld [vmem:[%s0 + $0x74] sm:$0xf]
  %v30 = vld [vmem:[%s0 + $0x78] sm:$0xff]
  %v31 = vld [vmem:[%s0 + $0x80] sm:$0xff]
  %v32 = vld [vmem:[%s0 + $0x88] sm:$0xf]
  %v33 = vld [vmem:[%s0 + $0x8c] sm:$0xff]
  %v34 = vld [vmem:[%s0 + $0x94] sm:$0xff]
  %v35 = vld [vmem:[%s0 + $0x9c] sm:$0xf]
  %v36 = vld [vmem:[%s0 + $0xa0] sm:$0xff]
  %v37 = vld [vmem:[%s0 + $0xa8] sm:$0xff]
  %v38 = vld [vmem:[%s0 + $0xb0] sm:$0xf]
  %v39 = vld [vmem:[%s0 + $0xb4] sm:$0xff]
  %v40 = vld [vmem:[%s0 + $0xbc] sm:$0xff]
  %v41 = vld [vmem:[%s0 + $0xc4] sm:$0xf]
  %v42 = vld [vmem:[%s0 + $0xc8] sm:$0xff]
  %v43 = vld [vmem:[%s0 + $0xd0] sm:$0xff]
  %v44 = vld [vmem:[%s0 + $0xd8] sm:$0xf]
  %v45 = vld [vmem:[%s0 + $0xdc] sm:$0xff]
  %v46 = vld [vmem:[%s0 + $0xe4] sm:$0xff]
  %v47 = vld [vmem:[%s0 + $0xec] sm:$0xf]
  %v48 = vld [vmem:[%s0 + $0xf0] sm:$0xff]
  %v49 = vld [vmem:[%s0 + $0xf8] sm:$0xff]
  %v50 = vld [vmem:[%s0 + $0x100] sm:$0xf]
  %v51 = vld [vmem:[%s0 + $0x104] sm:$0xff]
  %v52 = vld [vmem:[%s0 + $0x10c] sm:$0xff]
  %v53 = vld [vmem:[%s0 + $0x114] sm:$0xf]
  %v54 = vld [vmem:[%s0 + $0x118] sm:$0xff]
  %v55 = vld [vmem:[%s0 + $0x120] sm:$0xff]
  %v56 = vld [vmem:[%s0 + $0x128] sm:$0xf]
  %v57 = vld [vmem:[%s0 + $0x12c] sm:$0xff]
  %v58 = vld [vmem:[%s0 + $0x134] sm:$0xff]
  %v59 = vld [vmem:[%s0 + $0x13c] sm:$0xf]
  %v60 = vld [vmem:[%s0 + $0x140] sm:$0xff]
  %v61 = vld [vmem:[%s0 + $0x148] sm:$0xff]
  %v62 = vld [vmem:[%s0 + $0x150] sm:$0xf]
  %v63 = vld [vmem:[%s0 + $0x154] sm:$0xff]
  %v64 = vld [vmem:[%s0 + $0x15c] sm:$0xff]
  %v65 = vld [vmem:[%s0 + $0x164] sm:$0xf]
  %v66 = vld [vmem:[%s0 + $0x168] sm:$0xff]
  %v67 = vld [vmem:[%s0 + $0x170] sm:$0xff]
  %v68 = vld [vmem:[%s0 + $0x178] sm:$0xf]
  %v69 = vld [vmem:[%s0 + $0x17c] sm:$0xff]
  %v70 = vld [vmem:[%s0 + $0x184] sm:$0xff]
  %v71 = vld [vmem:[%s0 + $0x18c] sm:$0xf]
  %v72 = vld [vmem:[%s0 + $0x190] sm:$0xff]
  %v73 = vld [vmem:[%s0 + $0x198] sm:$0xff]
  %v74 = vld [vmem:[%s0 + $0x1a0] sm:$0xf]
  %v75 = vld [vmem:[%s0 + $0x1a4] sm:$0xff]
  %v76 = vld [vmem:[%s0 + $0x1ac] sm:$0xff]
  %v77 = vld [vmem:[%s0 + $0x1b4] sm:$0xf]
  %v78 = vld [vmem:[%s0 + $0x1b8] sm:$0xff]
  %v79 = vld [vmem:[%s0 + $0x1c0] sm:$0xff]
  %v80 = vld [vmem:[%s0 + $0x1c8] sm:$0xf]
  %v81 = vld [vmem:[%s0 + $0x1cc] sm:$0xff]
  %v82 = vld [vmem:[%s0 + $0x1d4] sm:$0xff]
  %v83 = vld [vmem:[%s0 + $0x1dc] sm:$0xf]
  %v84 = vld [vmem:[%s0 + $0x1e0] sm:$0xff]
  %v85 = vld [vmem:[%s0 + $0x1e8] sm:$0xff]
  %v86 = vld [vmem:[%s0 + $0x1f0] sm:$0xf]
  %v87 = vld [vmem:[%s0 + $0x1f4] sm:$0xff]
  %v88 = vld [vmem:[%s0 + $0x1fc] sm:$0xff]
  %v89 = vld [vmem:[%s0 + $0x204] sm:$0xf]
  %v90 = vld [vmem:[%s0 + $0x208] sm:$0xff]
  %v91 = vld [vmem:[%s0 + $0x210] sm:$0xff]
  %v92 = vld [vmem:[%s0 + $0x218] sm:$0xf]
  %v93 = vld [vmem:[%s0 + $0x21c] sm:$0xff]
  %v94 = vld [vmem:[%s0 + $0x224] sm:$0xff]
  %v95 = vld [vmem:[%s0 + $0x22c] sm:$0xf]
  %v96 = vld [vmem:[%s0 + $0x230] sm:$0xff]
  %v97 = vld [vmem:[%s0 + $0x238] sm:$0xff]
  %v98 = vld [vmem:[%s0 + $0x240] sm:$0xf]
  %v99 = vld [vmem:[%s0 + $0x244] sm:$0xff]
  %v100 = vld [vmem:[%s0 + $0x24c] sm:$0xff]
  %v101 = vld [vmem:[%s0 + $0x254] sm:$0xf]
  %v102 = vld [vmem:[%s0 + $0x258] sm:$0xff]
  %v103 = vld [vmem:[%s0 + $0x260] sm:$0xff]
  %v104 = vld [vmem:[%s0 + $0x268] sm:$0xf]
  %v105 = vld [vmem:[%s0 + $0x26c] sm:$0xff]
  %v106 = vld [vmem:[%s0 + $0x274] sm:$0xff]
  %v107 = vld [vmem:[%s0 + $0x27c] sm:$0xf]
  %v108 = vld [vmem:[%s0 + $0x280] sm:$0xff]
  %v109 = vld [vmem:[%s0 + $0x288] sm:$0xff]
  %v110 = vld [vmem:[%s0 + $0x290] sm:$0xf]
  %v111 = vld [vmem:[%s0 + $0x294] sm:$0xff]
  %v112 = vld [vmem:[%s0 + $0x29c] sm:$0xff]
  %v113 = vld [vmem:[%s0 + $0x2a4] sm:$0xf]
  %v114 = vld [vmem:[%s0 + $0x2a8] sm:$0xff]
  %v115 = vld [vmem:[%s0 + $0x2b0] sm:$0xff]
  %v116 = vld [vmem:[%s0 + $0x2b8] sm:$0xf]
  %v117 = vld [vmem:[%s0 + $0x2bc] sm:$0xff]
  %v118 = vld [vmem:[%s0 + $0x2c4] sm:$0xff]
  %v119 = vld [vmem:[%s0 + $0x2cc] sm:$0xf]
  %v120 = vld [vmem:[%s0 + $0x2d0] sm:$0xff]
  %v121 = vld [vmem:[%s0 + $0x2d8] sm:$0xff]
  %v122 = vld [vmem:[%s0 + $0x2e0] sm:$0xf]
  %v123 = vld [vmem:[%s0 + $0x2e4] sm:$0xff]
  %v124 = vld [vmem:[%s0 + $0x2ec] sm:$0xff]
  %v125 = vld [vmem:[%s0 + $0x2f4] sm:$0xf]
  %v126 = vld [vmem:[%s0 + $0x2f8] sm:$0xff]
  %v127 = vld [vmem:[%s0 + $0x300] sm:$0xff]
  %v128 = vld [vmem:[%s0 + $0x308] sm:$0xf]
  %v129 = vld [vmem:[%s0 + $0x30c] sm:$0xff]
  %v130 = vld [vmem:[%s0 + $0x314] sm:$0xff]
  %v131 = vld [vmem:[%s0 + $0x31c] sm:$0xf]
  %v132 = vld [vmem:[%s0 + $0x320] sm:$0xff]
  %v133 = vld [vmem:[%s0 + $0x328] sm:$0xff]
  %v134 = vld [vmem:[%s0 + $0x330] sm:$0xf]
  %v135 = vld [vmem:[%s0 + $0x334] sm:$0xff]
  %v136 = vld [vmem:[%s0 + $0x33c] sm:$0xff]
  %v137 = vld [vmem:[%s0 + $0x344] sm:$0xf]
  %v138 = vld [vmem:[%s0 + $0x348] sm:$0xff]
  %v139 = vld [vmem:[%s0 + $0x350] sm:$0xff]
  %v140 = vld [vmem:[%s0 + $0x358] sm:$0xf]
  %v141 = vld [vmem:[%s0 + $0x35c] sm:$0xff]
  %v142 = vld [vmem:[%s0 + $0x364] sm:$0xff]
  %v143 = vld [vmem:[%s0 + $0x36c] sm:$0xf]
  %v144 = vld [vmem:[%s1] sm:$0xf]
  %v145 = vld [vmem:[%s1 + $0x4] sm:$0xf]
  %v146 = vld [vmem:[%s1 + $0x8] sm:$0xf]
  %v147 = vld [vmem:[%s1 + $0xc] sm:$0xf]
  %v148 = vld [vmem:[%s1 + $0x10] sm:$0xf]
  %v149 = vld [vmem:[%s1 + $0x14] sm:$0xf]
  %v150 = vld [vmem:[%s1 + $0x18] sm:$0xf]
  %v151 = vld [vmem:[%s1 + $0x1c] sm:$0xf]
  %v152 = vld [vmem:[%s1 + $0x20] sm:$0xf]
  %v153 = vld [vmem:[%s1 + $0x24] sm:$0xf]
  %v154 = vld [vmem:[%s1 + $0x28] sm:$0xf]
  %v155 = vld [vmem:[%s1 + $0x2c] sm:$0xf]
  %v156 = vld [vmem:[%s1 + $0x30] sm:$0xf]
  %v157 = vld [vmem:[%s1 + $0x34] sm:$0xf]
  %v158 = vld [vmem:[%s1 + $0x38] sm:$0xf]
  %v159 = vld [vmem:[%s1 + $0x3c] sm:$0xf]
  %v160 = vld [vmem:[%s1 + $0x40] sm:$0xf]
  %v161 = vld [vmem:[%s1 + $0x44] sm:$0xf]
  %v162 = vld [vmem:[%s1 + $0x48] sm:$0xf]
  %v163 = vld [vmem:[%s1 + $0x4c] sm:$0xf]
  %v164 = vld [vmem:[%s1 + $0x50] sm:$0xf]
  %v165 = vld [vmem:[%s1 + $0x54] sm:$0xf]
  %v166 = vld [vmem:[%s1 + $0x58] sm:$0xf]
  %v167 = vld [vmem:[%s1 + $0x5c] sm:$0xf]
  %v168 = vld [vmem:[%s1 + $0x60] sm:$0xf]
  %v169 = vld [vmem:[%s1 + $0x64] sm:$0xf]
  %v170 = vld [vmem:[%s1 + $0x68] sm:$0xf]
  %v171 = vld [vmem:[%s1 + $0x6c] sm:$0xf]
  %v172 = vld [vmem:[%s1 + $0x70] sm:$0xf]
  %v173 = vld [vmem:[%s1 + $0x74] sm:$0xf]
  %v174 = vld [vmem:[%s1 + $0x78] sm:$0xf]
  %v175 = vld [vmem:[%s1 + $0x7c] sm:$0xf]
  %v176 = vld [vmem:[%s1 + $0x80] sm:$0xf]
  %v177 = vld [vmem:[%s1 + $0x84] sm:$0xf]
  %v178 = vld [vmem:[%s1 + $0x88] sm:$0xf]
  %v179 = vld [vmem:[%s1 + $0x8c] sm:$0xf]
  %v180 = vld [vmem:[%s1 + $0x90] sm:$0xf]
  %v181 = vld [vmem:[%s1 + $0x94] sm:$0xf]
  %v182 = vld [vmem:[%s1 + $0x98] sm:$0xf]
  %v183 = vld [vmem:[%s1 + $0x9c] sm:$0xf]
  %v184 = vld [vmem:[%s1 + $0xa0] sm:$0xf]
  %v185 = vld [vmem:[%s1 + $0xa4] sm:$0xf]
  %v186 = vld [vmem:[%s1 + $0xa8] sm:$0xf]
  %v187 = vld [vmem:[%s1 + $0xac] sm:$0xf]
  %v188 = vld [vmem:[%s1 + $0xb0] sm:$0xf]
  %v189 = vld [vmem:[%s1 + $0xb4] sm:$0xf]
  %v190 = vld [vmem:[%s1 + $0xb8] sm:$0xf]
  %v191 = vld [vmem:[%s1 + $0xbc] sm:$0xf]
  %v192 = vld [vmem:[%s1 + $0xc0] sm:$0xf]
  %v193 = vld [vmem:[%s1 + $0xc4] sm:$0xf]
  %v194 = vld [vmem:[%s1 + $0xc8] sm:$0xf]
  %v195 = vld [vmem:[%s1 + $0xcc] sm:$0xf]
  %v196 = vld [vmem:[%s1 + $0xd0] sm:$0xf]
  %v197 = vld [vmem:[%s1 + $0xd4] sm:$0xf]
  %v198 = vld [vmem:[%s1 + $0xd8] sm:$0xf]
  %v199 = vld [vmem:[%s1 + $0xdc] sm:$0xf]
  %v200 = vld [vmem:[%s1 + $0xe0] sm:$0xf]
  %v201 = vld [vmem:[%s1 + $0xe4] sm:$0xf]
  %v202 = vld [vmem:[%s1 + $0xe8] sm:$0xf]
  %v203 = vld [vmem:[%s1 + $0xec] sm:$0xf]
  %v204 = vld [vmem:[%s1 + $0xf0] sm:$0xf]
  %v205 = vld [vmem:[%s1 + $0xf4] sm:$0xf]
  %v206 = vld [vmem:[%s1 + $0xf8] sm:$0xf]
  %v207 = vld [vmem:[%s1 + $0xfc] sm:$0xf]
  %v208 = vld [vmem:[%s1 + $0x100] sm:$0xf]
  %v209 = vld [vmem:[%s1 + $0x104] sm:$0xf]
  %v210 = vld [vmem:[%s1 + $0x108] sm:$0xf]
  %v211 = vld [vmem:[%s1 + $0x10c] sm:$0xf]
  %v212 = vld [vmem:[%s1 + $0x110] sm:$0xf]
  %v213 = vld [vmem:[%s1 + $0x114] sm:$0xf]
  %v214 = vld [vmem:[%s1 + $0x118] sm:$0xf]
  %v215 = vld [vmem:[%s1 + $0x11c] sm:$0xf]
  %v216 = vld [vmem:[%s1 + $0x120] sm:$0xf]
  %v217 = vld [vmem:[%s1 + $0x124] sm:$0xf]
  %v218 = vld [vmem:[%s1 + $0x128] sm:$0xf]
  %v351 = vunpack.c.l.b16 %v12
  %v352 = vunpack.c.h.b16 %v12
  %v353 = vunpack.c.l.b16 %v13
  %v354 = vunpack.c.h.b16 %v13
  %v355 = vunpack.c.l.b16 %v14
  %v356 = vunpack.c.l.b16 %v15
  %v357 = vunpack.c.h.b16 %v15
  %v358 = vunpack.c.l.b16 %v16
  %v359 = vunpack.c.h.b16 %v16
  %v360 = vunpack.c.l.b16 %v17
  %v361 = vunpack.c.l.b16 %v18
  %v362 = vunpack.c.h.b16 %v18
  %v363 = vunpack.c.l.b16 %v19
  %v364 = vunpack.c.h.b16 %v19
  %v365 = vunpack.c.l.b16 %v20
  %v366 = vunpack.c.l.b16 %v21
  %v367 = vunpack.c.h.b16 %v21
  %v368 = vunpack.c.l.b16 %v22
  %v369 = vunpack.c.h.b16 %v22
  %v370 = vunpack.c.l.b16 %v23
  %v371 = vunpack.c.l.b16 %v24
  %v372 = vunpack.c.h.b16 %v24
  %v373 = vunpack.c.l.b16 %v25
  %v374 = vunpack.c.h.b16 %v25
  %v375 = vunpack.c.l.b16 %v26
  %v376 = vunpack.c.l.b16 %v27
  %v377 = vunpack.c.h.b16 %v27
  %v378 = vunpack.c.l.b16 %v28
  %v379 = vunpack.c.h.b16 %v28
  %v380 = vunpack.c.l.b16 %v29
  %v381 = vunpack.c.l.b16 %v30
  %v382 = vunpack.c.h.b16 %v30
  %v383 = vunpack.c.l.b16 %v31
  %v384 = vunpack.c.h.b16 %v31
  %v385 = vunpack.c.l.b16 %v32
  %v386 = vunpack.c.l.b16 %v33
  %v387 = vunpack.c.h.b16 %v33
  %v388 = vunpack.c.l.b16 %v34
  %v389 = vunpack.c.h.b16 %v34
  %v390 = vunpack.c.l.b16 %v35
  %v391 = vunpack.c.l.b16 %v36
  %v392 = vunpack.c.h.b16 %v36
  %v393 = vunpack.c.l.b16 %v37
  %v394 = vunpack.c.h.b16 %v37
  %v395 = vunpack.c.l.b16 %v38
  %v396 = vunpack.c.l.b16 %v39
  %v397 = vunpack.c.h.b16 %v39
  %v398 = vunpack.c.l.b16 %v40
  %v399 = vunpack.c.h.b16 %v40
  %v400 = vunpack.c.l.b16 %v41
  %v401 = vunpack.c.l.b16 %v42
  %v402 = vunpack.c.h.b16 %v42
  %v403 = vunpack.c.l.b16 %v43
  %v404 = vunpack.c.h.b16 %v43
  %v405 = vunpack.c.l.b16 %v44
  %v406 = vunpack.c.l.b16 %v45
  %v407 = vunpack.c.h.b16 %v45
  %v408 = vunpack.c.l.b16 %v46
  %v409 = vunpack.c.h.b16 %v46
  %v410 = vunpack.c.l.b16 %v47
  %v411 = vunpack.c.l.b16 %v48
  %v412 = vunpack.c.h.b16 %v48
  %v413 = vunpack.c.l.b16 %v49
  %v414 = vunpack.c.h.b16 %v49
  %v415 = vunpack.c.l.b16 %v50
  %v416 = vunpack.c.l.b16 %v51
  %v417 = vunpack.c.h.b16 %v51
  %v418 = vunpack.c.l.b16 %v52
  %v419 = vunpack.c.h.b16 %v52
  %v420 = vunpack.c.l.b16 %v53
  %v421 = vunpack.c.l.b16 %v54
  %v422 = vunpack.c.h.b16 %v54
  %v423 = vunpack.c.l.b16 %v55
  %v424 = vunpack.c.h.b16 %v55
  %v425 = vunpack.c.l.b16 %v56
  %v426 = vunpack.c.l.b16 %v57
  %v427 = vunpack.c.h.b16 %v57
  %v428 = vunpack.c.l.b16 %v58
  %v429 = vunpack.c.h.b16 %v58
  %v430 = vunpack.c.l.b16 %v59
  %v431 = vunpack.c.l.b16 %v60
  %v432 = vunpack.c.h.b16 %v60
  %v433 = vunpack.c.l.b16 %v61
  %v434 = vunpack.c.h.b16 %v61
  %v435 = vunpack.c.l.b16 %v62
  %v436 = vunpack.c.l.b16 %v63
  %v437 = vunpack.c.h.b16 %v63
  %v438 = vunpack.c.l.b16 %v64
  %v439 = vunpack.c.h.b16 %v64
  %v440 = vunpack.c.l.b16 %v65
  %v441 = vunpack.c.l.b16 %v66
  %v442 = vunpack.c.h.b16 %v66
  %v443 = vunpack.c.l.b16 %v67
  %v444 = vunpack.c.h.b16 %v67
  %v445 = vunpack.c.l.b16 %v68
  %v446 = vunpack.c.l.b16 %v69
  %v447 = vunpack.c.h.b16 %v69
  %v448 = vunpack.c.l.b16 %v70
  %v449 = vunpack.c.h.b16 %v70
  %v450 = vunpack.c.l.b16 %v71
  %v451 = vunpack.c.l.b16 %v72
  %v452 = vunpack.c.h.b16 %v72
  %v453 = vunpack.c.l.b16 %v73
  %v454 = vunpack.c.h.b16 %v73
  %v455 = vunpack.c.l.b16 %v74
  %v456 = vunpack.c.l.b16 %v75
  %v457 = vunpack.c.h.b16 %v75
  %v458 = vunpack.c.l.b16 %v76
  %v459 = vunpack.c.h.b16 %v76
  %v460 = vunpack.c.l.b16 %v77
  %v461 = vunpack.c.l.b16 %v78
  %v462 = vunpack.c.h.b16 %v78
  %v463 = vunpack.c.l.b16 %v79
  %v464 = vunpack.c.h.b16 %v79
  %v465 = vunpack.c.l.b16 %v80
  %v466 = vunpack.c.l.b16 %v81
  %v467 = vunpack.c.h.b16 %v81
  %v468 = vunpack.c.l.b16 %v82
  %v469 = vunpack.c.h.b16 %v82
  %v470 = vunpack.c.l.b16 %v83
  %v471 = vunpack.c.l.b16 %v84
  %v472 = vunpack.c.h.b16 %v84
  %v473 = vunpack.c.l.b16 %v85
  %v474 = vunpack.c.h.b16 %v85
  %v475 = vunpack.c.l.b16 %v86
  %v476 = vunpack.c.l.b16 %v87
  %v477 = vunpack.c.h.b16 %v87
  %v478 = vunpack.c.l.b16 %v88
  %v479 = vunpack.c.h.b16 %v88
  %v480 = vunpack.c.l.b16 %v89
  %v481 = vunpack.c.l.b16 %v90
  %v482 = vunpack.c.h.b16 %v90
  %v483 = vunpack.c.l.b16 %v91
  %v484 = vunpack.c.h.b16 %v91
  %v485 = vunpack.c.l.b16 %v92
  %v486 = vunpack.c.l.b16 %v93
  %v487 = vunpack.c.h.b16 %v93
  %v488 = vunpack.c.l.b16 %v94
  %v489 = vunpack.c.h.b16 %v94
  %v490 = vunpack.c.l.b16 %v95
  %v491 = vunpack.c.l.b16 %v96
  %v492 = vunpack.c.h.b16 %v96
  %v493 = vunpack.c.l.b16 %v97
  %v494 = vunpack.c.h.b16 %v97
  %v495 = vunpack.c.l.b16 %v98
  %v496 = vunpack.c.l.b16 %v99
  %v497 = vunpack.c.h.b16 %v99
  %v498 = vunpack.c.l.b16 %v100
  %v499 = vunpack.c.h.b16 %v100
  %v500 = vunpack.c.l.b16 %v101
  %v501 = vunpack.c.l.b16 %v102
  %v502 = vunpack.c.h.b16 %v102
  %v503 = vunpack.c.l.b16 %v103
  %v504 = vunpack.c.h.b16 %v103
  %v505 = vunpack.c.l.b16 %v104
  %v506 = vunpack.c.l.b16 %v105
  %v507 = vunpack.c.h.b16 %v105
  %v508 = vunpack.c.l.b16 %v106
  %v509 = vunpack.c.h.b16 %v106
  %v510 = vunpack.c.l.b16 %v107
  %v511 = vunpack.c.l.b16 %v108
  %v512 = vunpack.c.h.b16 %v108
  %v513 = vunpack.c.l.b16 %v109
  %v514 = vunpack.c.h.b16 %v109
  %v515 = vunpack.c.l.b16 %v110
  %v516 = vunpack.c.l.b16 %v111
  %v517 = vunpack.c.h.b16 %v111
  %v518 = vunpack.c.l.b16 %v112
  %v519 = vunpack.c.h.b16 %v112
  %v520 = vunpack.c.l.b16 %v113
  %v521 = vunpack.c.l.b16 %v114
  %v522 = vunpack.c.h.b16 %v114
  %v523 = vunpack.c.l.b16 %v115
  %v524 = vunpack.c.h.b16 %v115
  %v525 = vunpack.c.l.b16 %v116
  %v526 = vunpack.c.l.b16 %v117
  %v527 = vunpack.c.h.b16 %v117
  %v528 = vunpack.c.l.b16 %v118
  %v529 = vunpack.c.h.b16 %v118
  %v530 = vunpack.c.l.b16 %v119
  %v531 = vunpack.c.l.b16 %v120
  %v532 = vunpack.c.h.b16 %v120
  %v533 = vunpack.c.l.b16 %v121
  %v534 = vunpack.c.h.b16 %v121
  %v535 = vunpack.c.l.b16 %v122
  %v536 = vunpack.c.l.b16 %v123
  %v537 = vunpack.c.h.b16 %v123
  %v538 = vunpack.c.l.b16 %v124
  %v539 = vunpack.c.h.b16 %v124
  %v540 = vunpack.c.l.b16 %v125
  %v541 = vunpack.c.l.b16 %v126
  %v542 = vunpack.c.h.b16 %v126
  %v543 = vunpack.c.l.b16 %v127
  %v544 = vunpack.c.h.b16 %v127
  %v545 = vunpack.c.l.b16 %v128
  %v546 = vunpack.c.l.b16 %v129
  %v547 = vunpack.c.h.b16 %v129
  %v548 = vunpack.c.l.b16 %v130
  %v549 = vunpack.c.h.b16 %v130
  %v550 = vunpack.c.l.b16 %v131
  %v551 = vunpack.c.l.b16 %v132
  %v552 = vunpack.c.h.b16 %v132
  %v553 = vunpack.c.l.b16 %v133
  %v554 = vunpack.c.h.b16 %v133
  %v555 = vunpack.c.l.b16 %v134
  %v556 = vunpack.c.l.b16 %v135
  %v557 = vunpack.c.h.b16 %v135
  %v558 = vunpack.c.l.b16 %v136
  %v559 = vunpack.c.h.b16 %v136
  %v560 = vunpack.c.l.b16 %v137
  %v561 = vunpack.c.l.b16 %v138
  %v562 = vunpack.c.h.b16 %v138
  %v563 = vunpack.c.l.b16 %v139
  %v564 = vunpack.c.h.b16 %v139
  %v565 = vunpack.c.l.b16 %v140
  %v566 = vunpack.c.l.b16 %v141
  %v567 = vunpack.c.h.b16 %v141
  %v568 = vunpack.c.l.b16 %v142
  %v569 = vunpack.c.h.b16 %v142
  %v570 = vunpack.c.l.b16 %v143
  %v571 = vpack.c.b16 %v356, %v351
  %v572 = vpack.c.b16 %v357, %v352
  %v573 = vpack.c.b16 %v358, %v353
  %v574 = vpack.c.b16 %v359, %v354
  %v575 = vpack.c.b16 %v360, %v355
  %v576 = vpack.c.b16 %v366, %v361
  %v577 = vpack.c.b16 %v367, %v362
  %v578 = vpack.c.b16 %v368, %v363
  %v579 = vpack.c.b16 %v369, %v364
  %v580 = vpack.c.b16 %v370, %v365
  %v581 = vpack.c.b16 %v376, %v371
  %v582 = vpack.c.b16 %v377, %v372
  %v583 = vpack.c.b16 %v378, %v373
  %v584 = vpack.c.b16 %v379, %v374
  %v585 = vpack.c.b16 %v380, %v375
  %v586 = vpack.c.b16 %v386, %v381
  %v587 = vpack.c.b16 %v387, %v382
  %v588 = vpack.c.b16 %v388, %v383
  %v589 = vpack.c.b16 %v389, %v384
  %v590 = vpack.c.b16 %v390, %v385
  %v591 = vpack.c.b16 %v396, %v391
  %v592 = vpack.c.b16 %v397, %v392
  %v593 = vpack.c.b16 %v398, %v393
  %v594 = vpack.c.b16 %v399, %v394
  %v595 = vpack.c.b16 %v400, %v395
  %v596 = vpack.c.b16 %v406, %v401
  %v597 = vpack.c.b16 %v407, %v402
  %v598 = vpack.c.b16 %v408, %v403
  %v599 = vpack.c.b16 %v409, %v404
  %v600 = vpack.c.b16 %v410, %v405
  %v601 = vpack.c.b16 %v416, %v411
  %v602 = vpack.c.b16 %v417, %v412
  %v603 = vpack.c.b16 %v418, %v413
  %v604 = vpack.c.b16 %v419, %v414
  %v605 = vpack.c.b16 %v420, %v415
  %v606 = vpack.c.b16 %v426, %v421
  %v607 = vpack.c.b16 %v427, %v422
  %v608 = vpack.c.b16 %v428, %v423
  %v609 = vpack.c.b16 %v429, %v424
  %v610 = vpack.c.b16 %v430, %v425
  %v611 = vpack.c.b16 %v436, %v431
  %v612 = vpack.c.b16 %v437, %v432
  %v613 = vpack.c.b16 %v438, %v433
  %v614 = vpack.c.b16 %v439, %v434
  %v615 = vpack.c.b16 %v440, %v435
  %v616 = vpack.c.b16 %v446, %v441
  %v617 = vpack.c.b16 %v447, %v442
  %v618 = vpack.c.b16 %v448, %v443
  %v619 = vpack.c.b16 %v449, %v444
  %v620 = vpack.c.b16 %v450, %v445
  %v621 = vpack.c.b16 %v456, %v451
  %v622 = vpack.c.b16 %v457, %v452
  %v623 = vpack.c.b16 %v458, %v453
  %v624 = vpack.c.b16 %v459, %v454
  %v625 = vpack.c.b16 %v460, %v455
  %v626 = vpack.c.b16 %v466, %v461
  %v627 = vpack.c.b16 %v467, %v462
  %v628 = vpack.c.b16 %v468, %v463
  %v629 = vpack.c.b16 %v469, %v464
  %v630 = vpack.c.b16 %v470, %v465
  %v631 = vpack.c.b16 %v476, %v471
  %v632 = vpack.c.b16 %v477, %v472
  %v633 = vpack.c.b16 %v478, %v473
  %v634 = vpack.c.b16 %v479, %v474
  %v635 = vpack.c.b16 %v480, %v475
  %v636 = vpack.c.b16 %v486, %v481
  %v637 = vpack.c.b16 %v487, %v482
  %v638 = vpack.c.b16 %v488, %v483
  %v639 = vpack.c.b16 %v489, %v484
  %v640 = vpack.c.b16 %v490, %v485
  %v641 = vpack.c.b16 %v496, %v491
  %v642 = vpack.c.b16 %v497, %v492
  %v643 = vpack.c.b16 %v498, %v493
  %v644 = vpack.c.b16 %v499, %v494
  %v645 = vpack.c.b16 %v500, %v495
  %v646 = vpack.c.b16 %v506, %v501
  %v647 = vpack.c.b16 %v507, %v502
  %v648 = vpack.c.b16 %v508, %v503
  %v649 = vpack.c.b16 %v509, %v504
  %v650 = vpack.c.b16 %v510, %v505
  %v651 = vpack.c.b16 %v516, %v511
  %v652 = vpack.c.b16 %v517, %v512
  %v653 = vpack.c.b16 %v518, %v513
  %v654 = vpack.c.b16 %v519, %v514
  %v655 = vpack.c.b16 %v520, %v515
  %v656 = vpack.c.b16 %v526, %v521
  %v657 = vpack.c.b16 %v527, %v522
  %v658 = vpack.c.b16 %v528, %v523
  %v659 = vpack.c.b16 %v529, %v524
  %v660 = vpack.c.b16 %v530, %v525
  %v661 = vpack.c.b16 %v536, %v531
  %v662 = vpack.c.b16 %v537, %v532
  %v663 = vpack.c.b16 %v538, %v533
  %v664 = vpack.c.b16 %v539, %v534
  %v665 = vpack.c.b16 %v540, %v535
  %v666 = vpack.c.b16 %v546, %v541
  %v667 = vpack.c.b16 %v547, %v542
  %v668 = vpack.c.b16 %v548, %v543
  %v669 = vpack.c.b16 %v549, %v544
  %v670 = vpack.c.b16 %v550, %v545
  %v671 = vpack.c.b16 %v556, %v551
  %v672 = vpack.c.b16 %v557, %v552
  %v673 = vpack.c.b16 %v558, %v553
  %v674 = vpack.c.b16 %v559, %v554
  %v675 = vpack.c.b16 %v560, %v555
  %v676 = vpack.c.b16 %v566, %v561
  %v677 = vpack.c.b16 %v567, %v562
  %v678 = vpack.c.b16 %v568, %v563
  %v679 = vpack.c.b16 %v569, %v564
  %v680 = vpack.c.b16 %v570, %v565
  %v844 = vunpack.c.l.b16 %v144
  %v845 = vunpack.c.l.b16 %v145
  %v846 = vunpack.c.l.b16 %v146
  %v847 = vunpack.c.l.b16 %v147
  %v848 = vunpack.c.l.b16 %v148
  %v849 = vunpack.c.l.b16 %v149
  %v850 = vunpack.c.l.b16 %v150
  %v851 = vunpack.c.l.b16 %v151
  %v852 = vunpack.c.l.b16 %v152
  %v853 = vunpack.c.l.b16 %v153
  %v854 = vunpack.c.l.b16 %v154
  %v855 = vunpack.c.l.b16 %v155
  %v856 = vunpack.c.l.b16 %v156
  %v857 = vunpack.c.l.b16 %v157
  %v858 = vunpack.c.l.b16 %v158
  %v859 = vunpack.c.l.b16 %v159
  %v860 = vunpack.c.l.b16 %v160
  %v861 = vunpack.c.l.b16 %v161
  %v862 = vunpack.c.l.b16 %v162
  %v863 = vunpack.c.l.b16 %v163
  %v864 = vunpack.c.l.b16 %v164
  %v865 = vunpack.c.l.b16 %v165
  %v866 = vunpack.c.l.b16 %v166
  %v867 = vunpack.c.l.b16 %v167
  %v868 = vunpack.c.l.b16 %v168
  %v869 = vunpack.c.l.b16 %v169
  %v870 = vunpack.c.l.b16 %v170
  %v871 = vunpack.c.l.b16 %v171
  %v872 = vunpack.c.l.b16 %v172
  %v873 = vunpack.c.l.b16 %v173
  %v874 = vunpack.c.l.b16 %v174
  %v875 = vunpack.c.l.b16 %v175
  %v876 = vunpack.c.l.b16 %v176
  %v877 = vunpack.c.l.b16 %v177
  %v878 = vunpack.c.l.b16 %v178
  %v879 = vunpack.c.l.b16 %v179
  %v880 = vunpack.c.l.b16 %v180
  %v881 = vunpack.c.l.b16 %v181
  %v882 = vunpack.c.l.b16 %v182
  %v883 = vunpack.c.l.b16 %v183
  %v884 = vunpack.c.l.b16 %v184
  %v885 = vunpack.c.l.b16 %v185
  %v886 = vunpack.c.l.b16 %v186
  %v887 = vunpack.c.l.b16 %v187
  %v888 = vunpack.c.l.b16 %v188
  %v889 = vunpack.c.l.b16 %v189
  %v890 = vunpack.c.l.b16 %v190
  %v891 = vunpack.c.l.b16 %v191
  %v892 = vunpack.c.l.b16 %v192
  %v893 = vunpack.c.l.b16 %v193
  %v894 = vunpack.c.l.b16 %v194
  %v895 = vunpack.c.l.b16 %v195
  %v896 = vunpack.c.l.b16 %v196
  %v897 = vunpack.c.l.b16 %v197
  %v898 = vunpack.c.l.b16 %v198
  %v899 = vunpack.c.l.b16 %v199
  %v900 = vunpack.c.l.b16 %v200
  %v901 = vunpack.c.l.b16 %v201
  %v902 = vunpack.c.l.b16 %v202
  %v903 = vunpack.c.l.b16 %v203
  %v904 = vunpack.c.l.b16 %v204
  %v905 = vunpack.c.l.b16 %v205
  %v906 = vunpack.c.l.b16 %v206
  %v907 = vunpack.c.l.b16 %v207
  %v908 = vunpack.c.l.b16 %v208
  %v909 = vunpack.c.l.b16 %v209
  %v910 = vunpack.c.l.b16 %v210
  %v911 = vunpack.c.l.b16 %v211
  %v912 = vunpack.c.l.b16 %v212
  %v913 = vunpack.c.l.b16 %v213
  %v914 = vunpack.c.l.b16 %v214
  %v915 = vunpack.c.l.b16 %v215
  %v916 = vunpack.c.l.b16 %v216
  %v917 = vunpack.c.l.b16 %v217
  %v918 = vunpack.c.l.b16 %v218
  %v919 = vpack.c.b16 %v845, %v844
  %v920 = vpack.c.b16 %v847, %v846
  %v921 = vpack.c.b16 %v849, %v848
  %v922 = vpack.c.b16 %v851, %v850
  %v923 = vpack.c.b16 %v853, %v852
  %v924 = vpack.c.b16 %v855, %v854
  %v925 = vpack.c.b16 %v857, %v856
  %v926 = vpack.c.b16 %v859, %v858
  %v927 = vpack.c.b16 %v861, %v860
  %v928 = vpack.c.b16 %v863, %v862
  %v929 = vpack.c.b16 %v865, %v864
  %v930 = vpack.c.b16 %v867, %v866
  %v931 = vpack.c.b16 %v869, %v868
  %v932 = vpack.c.b16 %v871, %v870
  %v933 = vpack.c.b16 %v873, %v872
  %v934 = vpack.c.b16 %v875, %v874
  %v935 = vpack.c.b16 %v877, %v876
  %v936 = vpack.c.b16 %v879, %v878
  %v937 = vpack.c.b16 %v881, %v880
  %v938 = vpack.c.b16 %v883, %v882
  %v939 = vpack.c.b16 %v885, %v884
  %v940 = vpack.c.b16 %v887, %v886
  %v941 = vpack.c.b16 %v889, %v888
  %v942 = vpack.c.b16 %v891, %v890
  %v943 = vpack.c.b16 %v893, %v892
  %v944 = vpack.c.b16 %v895, %v894
  %v945 = vpack.c.b16 %v897, %v896
  %v946 = vpack.c.b16 %v899, %v898
  %v947 = vpack.c.b16 %v901, %v900
  %v948 = vpack.c.b16 %v903, %v902
  %v949 = vpack.c.b16 %v905, %v904
  %v950 = vpack.c.b16 %v907, %v906
  %v951 = vpack.c.b16 %v909, %v908
  %v952 = vpack.c.b16 %v911, %v910
  %v953 = vpack.c.b16 %v913, %v912
  %v954 = vpack.c.b16 %v915, %v914
  %v955 = vpack.c.b16 %v917, %v916
  %v956 = vpack.c.b16 %v918, %v918
  %vm994 = vcmask 719872
  %v996 = vsel %vm994, %v575, 0
  %v999 = vsel %vm994, %v580, 0
  %v1002 = vsel %vm994, %v585, 0
  %v1005 = vsel %vm994, %v590, 0
  %v1008 = vsel %vm994, %v595, 0
  %v1011 = vsel %vm994, %v600, 0
  %v1014 = vsel %vm994, %v605, 0
  %v1017 = vsel %vm994, %v610, 0
  %v1020 = vsel %vm994, %v615, 0
  %v1023 = vsel %vm994, %v620, 0
  %v1026 = vsel %vm994, %v625, 0
  %v1029 = vsel %vm994, %v630, 0
  %v1032 = vsel %vm994, %v635, 0
  %v1035 = vsel %vm994, %v640, 0
  %v1038 = vsel %vm994, %v645, 0
  %v1041 = vsel %vm994, %v650, 0
  %v1044 = vsel %vm994, %v655, 0
  %v1047 = vsel %vm994, %v660, 0
  %v1050 = vsel %vm994, %v665, 0
  %v1053 = vsel %vm994, %v670, 0
  %v1056 = vsel %vm994, %v675, 0
  %v1059 = vsel %vm994, %v680, 0
  %vm1061 = vcmask 1043456
  %v1063 = vsel %vm1061, %v956, 0
  %1065 = vmatprep.subr.bf16.mxu0 0
  %1066 = vmatpush1.bf16.msra.mxu0 %v926
  %1067 = vmatprep.subr.bf16.mxu0 0
  %1068 = vmatpush1.bf16.msra.mxu0 %v925
  %1069 = vmatprep.subr.bf16.mxu0 0
  %1070 = vmatpush1.bf16.msra.mxu0 %v924
  %1071 = vmatprep.subr.bf16.mxu0 0
  %1072 = vmatpush1.bf16.msra.mxu0 %v923
  %1073 = vmatprep.subr.bf16.mxu0 0
  %1074 = vmatpush1.bf16.msra.mxu0 %v922
  %1075 = vmatprep.subr.bf16.mxu0 0
  %1076 = vmatpush1.bf16.msra.mxu0 %v921
  %1077 = vmatprep.subr.bf16.mxu0 0
  %1078 = vmatpush1.bf16.msra.mxu0 %v920
  %1079 = vmatprep.subr.bf16.mxu0 0
  %1080 = vmatpush1.bf16.msra.mxu0 %v919
  %1081 = vmatprep.subr.bf16.mxu0 0
  %1082 = vmatpush2.bf16.msra.mxu0 %v934
  %1083 = vmatprep.subr.bf16.mxu0 0
  %1084 = vmatpush2.bf16.msra.mxu0 %v933
  %1085 = vmatprep.subr.bf16.mxu0 0
  %1086 = vmatpush2.bf16.msra.mxu0 %v932
  %1087 = vmatprep.subr.bf16.mxu0 0
  %1088 = vmatpush2.bf16.msra.mxu0 %v931
  %1089 = vmatprep.subr.bf16.mxu0 0
  %1090 = vmatpush2.bf16.msra.mxu0 %v930
  %1091 = vmatprep.subr.bf16.mxu0 0
  %1092 = vmatpush2.bf16.msra.mxu0 %v929
  %1093 = vmatprep.subr.bf16.mxu0 0
  %1094 = vmatpush2.bf16.msra.mxu0 %v928
  %1095 = vmatprep.subr.bf16.mxu0 0
  %1096 = vmatpush2.bf16.msra.mxu0 %v927
  %1097 = vmatprep.mubr.bf16.mxu0 %v572
  %1098 = vmatmul.mubr.bf16.gmra.mxu0 %v571
  %v1099 = vpop.f32.mrf.mxu0
  %v1100 = vadd.f32 0.0, %v1099
  %v1101 = vpop.f32.mrf.mxu0
  %v1102 = vpop.f32.mrf.mxu0
  %v1103 = vadd.f32 0.0, %v1102
  %v1104 = vpop.f32.mrf.mxu0
  %1105 = vmatprep.mubr.bf16.mxu0 %v577
  %1106 = vmatmul.mubr.bf16.gmra.mxu0 %v576
  %v1107 = vpop.f32.mrf.mxu0
  %v1108 = vadd.f32 0.0, %v1107
  %v1109 = vpop.f32.mrf.mxu0
  %v1110 = vpop.f32.mrf.mxu0
  %v1111 = vadd.f32 0.0, %v1110
  %v1112 = vpop.f32.mrf.mxu0
  %1113 = vmatprep.mubr.bf16.mxu0 %v582
  %1114 = vmatmul.mubr.bf16.gmra.mxu0 %v581
  %v1115 = vpop.f32.mrf.mxu0
  %v1116 = vadd.f32 0.0, %v1115
  %v1117 = vpop.f32.mrf.mxu0
  %v1118 = vpop.f32.mrf.mxu0
  %v1119 = vadd.f32 0.0, %v1118
  %v1120 = vpop.f32.mrf.mxu0
  %1121 = vmatprep.mubr.bf16.mxu0 %v587
  %1122 = vmatmul.mubr.bf16.gmra.mxu0 %v586
  %v1123 = vpop.f32.mrf.mxu0
  %v1124 = vadd.f32 0.0, %v1123
  %v1125 = vpop.f32.mrf.mxu0
  %v1126 = vpop.f32.mrf.mxu0
  %v1127 = vadd.f32 0.0, %v1126
  %v1128 = vpop.f32.mrf.mxu0
  %1129 = vmatprep.mubr.bf16.mxu0 %v592
  %1130 = vmatmul.mubr.bf16.gmra.mxu0 %v591
  %v1131 = vpop.f32.mrf.mxu0
  %v1132 = vadd.f32 0.0, %v1131
  %v1133 = vpop.f32.mrf.mxu0
  %v1134 = vpop.f32.mrf.mxu0
  %v1135 = vadd.f32 0.0, %v1134
  %v1136 = vpop.f32.mrf.mxu0
  %1137 = vmatprep.mubr.bf16.mxu0 %v597
  %1138 = vmatmul.mubr.bf16.gmra.mxu0 %v596
  %v1139 = vpop.f32.mrf.mxu0
  %v1140 = vadd.f32 0.0, %v1139
  %v1141 = vpop.f32.mrf.mxu0
  %v1142 = vpop.f32.mrf.mxu0
  %v1143 = vadd.f32 0.0, %v1142
  %v1144 = vpop.f32.mrf.mxu0
  %1145 = vmatprep.mubr.bf16.mxu0 %v602
  %1146 = vmatmul.mubr.bf16.gmra.mxu0 %v601
  %v1147 = vpop.f32.mrf.mxu0
  %v1148 = vadd.f32 0.0, %v1147
  %v1149 = vpop.f32.mrf.mxu0
  %v1150 = vpop.f32.mrf.mxu0
  %v1151 = vadd.f32 0.0, %v1150
  %v1152 = vpop.f32.mrf.mxu0
  %1153 = vmatprep.mubr.bf16.mxu0 %v607
  %1154 = vmatmul.mubr.bf16.gmra.mxu0 %v606
  %v1155 = vpop.f32.mrf.mxu0
  %v1156 = vadd.f32 0.0, %v1155
  %v1157 = vpop.f32.mrf.mxu0
  %v1158 = vpop.f32.mrf.mxu0
  %v1159 = vadd.f32 0.0, %v1158
  %v1160 = vpop.f32.mrf.mxu0
  %1161 = vmatprep.mubr.bf16.mxu0 %v612
  %1162 = vmatmul.mubr.bf16.gmra.mxu0 %v611
  %v1163 = vpop.f32.mrf.mxu0
  %v1164 = vadd.f32 0.0, %v1163
  %v1165 = vpop.f32.mrf.mxu0
  %v1166 = vpop.f32.mrf.mxu0
  %v1167 = vadd.f32 0.0, %v1166
  %v1168 = vpop.f32.mrf.mxu0
  %1169 = vmatprep.mubr.bf16.mxu0 %v617
  %1170 = vmatmul.mubr.bf16.gmra.mxu0 %v616
  %v1171 = vpop.f32.mrf.mxu0
  %v1172 = vadd.f32 0.0, %v1171
  %v1173 = vpop.f32.mrf.mxu0
  %v1174 = vpop.f32.mrf.mxu0
  %v1175 = vadd.f32 0.0, %v1174
  %v1176 = vpop.f32.mrf.mxu0
  %1177 = vmatprep.mubr.bf16.mxu0 %v622
  %1178 = vmatmul.mubr.bf16.gmra.mxu0 %v621
  %v1179 = vpop.f32.mrf.mxu0
  %v1180 = vadd.f32 0.0, %v1179
  %v1181 = vpop.f32.mrf.mxu0
  %v1182 = vpop.f32.mrf.mxu0
  %v1183 = vadd.f32 0.0, %v1182
  %v1184 = vpop.f32.mrf.mxu0
  %1185 = vmatprep.mubr.bf16.mxu0 %v627
  %1186 = vmatmul.mubr.bf16.gmra.mxu0 %v626
  %v1187 = vpop.f32.mrf.mxu0
  %v1188 = vadd.f32 0.0, %v1187
  %v1189 = vpop.f32.mrf.mxu0
  %v1190 = vpop.f32.mrf.mxu0
  %v1191 = vadd.f32 0.0, %v1190
  %v1192 = vpop.f32.mrf.mxu0
  %1193 = vmatprep.mubr.bf16.mxu0 %v632
  %1194 = vmatmul.mubr.bf16.gmra.mxu0 %v631
  %v1195 = vpop.f32.mrf.mxu0
  %v1196 = vadd.f32 0.0, %v1195
  %v1197 = vpop.f32.mrf.mxu0
  %v1198 = vpop.f32.mrf.mxu0
  %v1199 = vadd.f32 0.0, %v1198
  %v1200 = vpop.f32.mrf.mxu0
  %1201 = vmatprep.mubr.bf16.mxu0 %v637
  %1202 = vmatmul.mubr.bf16.gmra.mxu0 %v636
  %v1203 = vpop.f32.mrf.mxu0
  %v1204 = vadd.f32 0.0, %v1203
  %v1205 = vpop.f32.mrf.mxu0
  %v1206 = vpop.f32.mrf.mxu0
  %v1207 = vadd.f32 0.0, %v1206
  %v1208 = vpop.f32.mrf.mxu0
  %1209 = vmatprep.mubr.bf16.mxu0 %v642
  %1210 = vmatmul.mubr.bf16.gmra.mxu0 %v641
  %v1211 = vpop.f32.mrf.mxu0
  %v1212 = vadd.f32 0.0, %v1211
  %v1213 = vpop.f32.mrf.mxu0
  %v1214 = vpop.f32.mrf.mxu0
  %v1215 = vadd.f32 0.0, %v1214
  %v1216 = vpop.f32.mrf.mxu0
  %1217 = vmatprep.mubr.bf16.mxu0 %v647
  %1218 = vmatmul.mubr.bf16.gmra.mxu0 %v646
  %v1219 = vpop.f32.mrf.mxu0
  %v1220 = vadd.f32 0.0, %v1219
  %v1221 = vpop.f32.mrf.mxu0
  %v1222 = vpop.f32.mrf.mxu0
  %v1223 = vadd.f32 0.0, %v1222
  %v1224 = vpop.f32.mrf.mxu0
  %1225 = vmatprep.mubr.bf16.mxu0 %v652
  %1226 = vmatmul.mubr.bf16.gmra.mxu0 %v651
  %v1227 = vpop.f32.mrf.mxu0
  %v1228 = vadd.f32 0.0, %v1227
  %v1229 = vpop.f32.mrf.mxu0
  %v1230 = vpop.f32.mrf.mxu0
  %v1231 = vadd.f32 0.0, %v1230
  %v1232 = vpop.f32.mrf.mxu0
  %1233 = vmatprep.mubr.bf16.mxu0 %v657
  %1234 = vmatmul.mubr.bf16.gmra.mxu0 %v656
  %v1235 = vpop.f32.mrf.mxu0
  %v1236 = vadd.f32 0.0, %v1235
  %v1237 = vpop.f32.mrf.mxu0
  %v1238 = vpop.f32.mrf.mxu0
  %v1239 = vadd.f32 0.0, %v1238
  %v1240 = vpop.f32.mrf.mxu0
  %1241 = vmatprep.mubr.bf16.mxu0 %v662
  %1242 = vmatmul.mubr.bf16.gmra.mxu0 %v661
  %v1243 = vpop.f32.mrf.mxu0
  %v1244 = vadd.f32 0.0, %v1243
  %v1245 = vpop.f32.mrf.mxu0
  %v1246 = vpop.f32.mrf.mxu0
  %v1247 = vadd.f32 0.0, %v1246
  %v1248 = vpop.f32.mrf.mxu0
  %1249 = vmatprep.mubr.bf16.mxu0 %v667
  %1250 = vmatmul.mubr.bf16.gmra.mxu0 %v666
  %v1251 = vpop.f32.mrf.mxu0
  %v1252 = vadd.f32 0.0, %v1251
  %v1253 = vpop.f32.mrf.mxu0
  %v1254 = vpop.f32.mrf.mxu0
  %v1255 = vadd.f32 0.0, %v1254
  %v1256 = vpop.f32.mrf.mxu0
  %1257 = vmatprep.mubr.bf16.mxu0 %v672
  %1258 = vmatmul.mubr.bf16.gmra.mxu0 %v671
  %v1259 = vpop.f32.mrf.mxu0
  %v1260 = vadd.f32 0.0, %v1259
  %v1261 = vpop.f32.mrf.mxu0
  %v1262 = vpop.f32.mrf.mxu0
  %v1263 = vadd.f32 0.0, %v1262
  %v1264 = vpop.f32.mrf.mxu0
  %1265 = vmatprep.mubr.bf16.mxu0 %v677
  %1266 = vmatmul.mubr.bf16.gmra.mxu0 %v676
  %v1267 = vpop.f32.mrf.mxu0
  %v1268 = vadd.f32 0.0, %v1267
  %v1269 = vpop.f32.mrf.mxu0
  %v1270 = vpop.f32.mrf.mxu0
  %v1271 = vadd.f32 0.0, %v1270
  %v1272 = vpop.f32.mrf.mxu0
  %1273 = vdwg.mxu0
  %1274 = vmatprep.subr.bf16.mxu0 0
  %1275 = vmatpush1.bf16.msra.mxu0 %v942
  %1276 = vmatprep.subr.bf16.mxu0 0
  %1277 = vmatpush1.bf16.msra.mxu0 %v941
  %1278 = vmatprep.subr.bf16.mxu0 0
  %1279 = vmatpush1.bf16.msra.mxu0 %v940
  %1280 = vmatprep.subr.bf16.mxu0 0
  %1281 = vmatpush1.bf16.msra.mxu0 %v939
  %1282 = vmatprep.subr.bf16.mxu0 0
  %1283 = vmatpush1.bf16.msra.mxu0 %v938
  %1284 = vmatprep.subr.bf16.mxu0 0
  %1285 = vmatpush1.bf16.msra.mxu0 %v937
  %1286 = vmatprep.subr.bf16.mxu0 0
  %1287 = vmatpush1.bf16.msra.mxu0 %v936
  %1288 = vmatprep.subr.bf16.mxu0 0
  %1289 = vmatpush1.bf16.msra.mxu0 %v935
  %1290 = vmatprep.subr.bf16.mxu0 0
  %1291 = vmatpush2.bf16.msra.mxu0 %v950
  %1292 = vmatprep.subr.bf16.mxu0 0
  %1293 = vmatpush2.bf16.msra.mxu0 %v949
  %1294 = vmatprep.subr.bf16.mxu0 0
  %1295 = vmatpush2.bf16.msra.mxu0 %v948
  %1296 = vmatprep.subr.bf16.mxu0 0
  %1297 = vmatpush2.bf16.msra.mxu0 %v947
  %1298 = vmatprep.subr.bf16.mxu0 0
  %1299 = vmatpush2.bf16.msra.mxu0 %v946
  %1300 = vmatprep.subr.bf16.mxu0 0
  %1301 = vmatpush2.bf16.msra.mxu0 %v945
  %1302 = vmatprep.subr.bf16.mxu0 0
  %1303 = vmatpush2.bf16.msra.mxu0 %v944
  %1304 = vmatprep.subr.bf16.mxu0 0
  %1305 = vmatpush2.bf16.msra.mxu0 %v943
  %1306 = vmatprep.mubr.bf16.mxu0 %v574
  %1307 = vmatmul.mubr.bf16.gmra.mxu0 %v573
  %v1308 = vpop.f32.mrf.mxu0
  %v1309 = vadd.f32 %v1100, %v1308
  %v1310 = vpop.f32.mrf.mxu0
  %v1311 = vpop.f32.mrf.mxu0
  %v1312 = vadd.f32 %v1103, %v1311
  %v1313 = vpop.f32.mrf.mxu0
  %1314 = vmatprep.mubr.bf16.mxu0 %v579
  %1315 = vmatmul.mubr.bf16.gmra.mxu0 %v578
  %v1316 = vpop.f32.mrf.mxu0
  %v1317 = vadd.f32 %v1108, %v1316
  %v1318 = vpop.f32.mrf.mxu0
  %v1319 = vpop.f32.mrf.mxu0
  %v1320 = vadd.f32 %v1111, %v1319
  %v1321 = vpop.f32.mrf.mxu0
  %1322 = vmatprep.mubr.bf16.mxu0 %v584
  %1323 = vmatmul.mubr.bf16.gmra.mxu0 %v583
  %v1324 = vpop.f32.mrf.mxu0
  %v1325 = vadd.f32 %v1116, %v1324
  %v1326 = vpop.f32.mrf.mxu0
  %v1327 = vpop.f32.mrf.mxu0
  %v1328 = vadd.f32 %v1119, %v1327
  %v1329 = vpop.f32.mrf.mxu0
  %1330 = vmatprep.mubr.bf16.mxu0 %v589
  %1331 = vmatmul.mubr.bf16.gmra.mxu0 %v588
  %v1332 = vpop.f32.mrf.mxu0
  %v1333 = vadd.f32 %v1124, %v1332
  %v1334 = vpop.f32.mrf.mxu0
  %v1335 = vpop.f32.mrf.mxu0
  %v1336 = vadd.f32 %v1127, %v1335
  %v1337 = vpop.f32.mrf.mxu0
  %1338 = vmatprep.mubr.bf16.mxu0 %v594
  %1339 = vmatmul.mubr.bf16.gmra.mxu0 %v593
  %v1340 = vpop.f32.mrf.mxu0
  %v1341 = vadd.f32 %v1132, %v1340
  %v1342 = vpop.f32.mrf.mxu0
  %v1343 = vpop.f32.mrf.mxu0
  %v1344 = vadd.f32 %v1135, %v1343
  %v1345 = vpop.f32.mrf.mxu0
  %1346 = vmatprep.mubr.bf16.mxu0 %v599
  %1347 = vmatmul.mubr.bf16.gmra.mxu0 %v598
  %v1348 = vpop.f32.mrf.mxu0
  %v1349 = vadd.f32 %v1140, %v1348
  %v1350 = vpop.f32.mrf.mxu0
  %v1351 = vpop.f32.mrf.mxu0
  %v1352 = vadd.f32 %v1143, %v1351
  %v1353 = vpop.f32.mrf.mxu0
  %1354 = vmatprep.mubr.bf16.mxu0 %v604
  %1355 = vmatmul.mubr.bf16.gmra.mxu0 %v603
  %v1356 = vpop.f32.mrf.mxu0
  %v1357 = vadd.f32 %v1148, %v1356
  %v1358 = vpop.f32.mrf.mxu0
  %v1359 = vpop.f32.mrf.mxu0
  %v1360 = vadd.f32 %v1151, %v1359
  %v1361 = vpop.f32.mrf.mxu0
  %1362 = vmatprep.mubr.bf16.mxu0 %v609
  %1363 = vmatmul.mubr.bf16.gmra.mxu0 %v608
  %v1364 = vpop.f32.mrf.mxu0
  %v1365 = vadd.f32 %v1156, %v1364
  %v1366 = vpop.f32.mrf.mxu0
  %v1367 = vpop.f32.mrf.mxu0
  %v1368 = vadd.f32 %v1159, %v1367
  %v1369 = vpop.f32.mrf.mxu0
  %1370 = vmatprep.mubr.bf16.mxu0 %v614
  %1371 = vmatmul.mubr.bf16.gmra.mxu0 %v613
  %v1372 = vpop.f32.mrf.mxu0
  %v1373 = vadd.f32 %v1164, %v1372
  %v1374 = vpop.f32.mrf.mxu0
  %v1375 = vpop.f32.mrf.mxu0
  %v1376 = vadd.f32 %v1167, %v1375
  %v1377 = vpop.f32.mrf.mxu0
  %1378 = vmatprep.mubr.bf16.mxu0 %v619
  %1379 = vmatmul.mubr.bf16.gmra.mxu0 %v618
  %v1380 = vpop.f32.mrf.mxu0
  %v1381 = vadd.f32 %v1172, %v1380
  %v1382 = vpop.f32.mrf.mxu0
  %v1383 = vpop.f32.mrf.mxu0
  %v1384 = vadd.f32 %v1175, %v1383
  %v1385 = vpop.f32.mrf.mxu0
  %1386 = vmatprep.mubr.bf16.mxu0 %v624
  %1387 = vmatmul.mubr.bf16.gmra.mxu0 %v623
  %v1388 = vpop.f32.mrf.mxu0
  %v1389 = vadd.f32 %v1180, %v1388
  %v1390 = vpop.f32.mrf.mxu0
  %v1391 = vpop.f32.mrf.mxu0
  %v1392 = vadd.f32 %v1183, %v1391
  %v1393 = vpop.f32.mrf.mxu0
  %1394 = vmatprep.mubr.bf16.mxu0 %v629
  %1395 = vmatmul.mubr.bf16.gmra.mxu0 %v628
  %v1396 = vpop.f32.mrf.mxu0
  %v1397 = vadd.f32 %v1188, %v1396
  %v1398 = vpop.f32.mrf.mxu0
  %v1399 = vpop.f32.mrf.mxu0
  %v1400 = vadd.f32 %v1191, %v1399
  %v1401 = vpop.f32.mrf.mxu0
  %1402 = vmatprep.mubr.bf16.mxu0 %v634
  %1403 = vmatmul.mubr.bf16.gmra.mxu0 %v633
  %v1404 = vpop.f32.mrf.mxu0
  %v1405 = vadd.f32 %v1196, %v1404
  %v1406 = vpop.f32.mrf.mxu0
  %v1407 = vpop.f32.mrf.mxu0
  %v1408 = vadd.f32 %v1199, %v1407
  %v1409 = vpop.f32.mrf.mxu0
  %1410 = vmatprep.mubr.bf16.mxu0 %v639
  %1411 = vmatmul.mubr.bf16.gmra.mxu0 %v638
  %v1412 = vpop.f32.mrf.mxu0
  %v1413 = vadd.f32 %v1204, %v1412
  %v1414 = vpop.f32.mrf.mxu0
  %v1415 = vpop.f32.mrf.mxu0
  %v1416 = vadd.f32 %v1207, %v1415
  %v1417 = vpop.f32.mrf.mxu0
  %1418 = vmatprep.mubr.bf16.mxu0 %v644
  %1419 = vmatmul.mubr.bf16.gmra.mxu0 %v643
  %v1420 = vpop.f32.mrf.mxu0
  %v1421 = vadd.f32 %v1212, %v1420
  %v1422 = vpop.f32.mrf.mxu0
  %v1423 = vpop.f32.mrf.mxu0
  %v1424 = vadd.f32 %v1215, %v1423
  %v1425 = vpop.f32.mrf.mxu0
  %1426 = vmatprep.mubr.bf16.mxu0 %v649
  %1427 = vmatmul.mubr.bf16.gmra.mxu0 %v648
  %v1428 = vpop.f32.mrf.mxu0
  %v1429 = vadd.f32 %v1220, %v1428
  %v1430 = vpop.f32.mrf.mxu0
  %v1431 = vpop.f32.mrf.mxu0
  %v1432 = vadd.f32 %v1223, %v1431
  %v1433 = vpop.f32.mrf.mxu0
  %1434 = vmatprep.mubr.bf16.mxu0 %v654
  %1435 = vmatmul.mubr.bf16.gmra.mxu0 %v653
  %v1436 = vpop.f32.mrf.mxu0
  %v1437 = vadd.f32 %v1228, %v1436
  %v1438 = vpop.f32.mrf.mxu0
  %v1439 = vpop.f32.mrf.mxu0
  %v1440 = vadd.f32 %v1231, %v1439
  %v1441 = vpop.f32.mrf.mxu0
  %1442 = vmatprep.mubr.bf16.mxu0 %v659
  %1443 = vmatmul.mubr.bf16.gmra.mxu0 %v658
  %v1444 = vpop.f32.mrf.mxu0
  %v1445 = vadd.f32 %v1236, %v1444
  %v1446 = vpop.f32.mrf.mxu0
  %v1447 = vpop.f32.mrf.mxu0
  %v1448 = vadd.f32 %v1239, %v1447
  %v1449 = vpop.f32.mrf.mxu0
  %1450 = vmatprep.mubr.bf16.mxu0 %v664
  %1451 = vmatmul.mubr.bf16.gmra.mxu0 %v663
  %v1452 = vpop.f32.mrf.mxu0
  %v1453 = vadd.f32 %v1244, %v1452
  %v1454 = vpop.f32.mrf.mxu0
  %v1455 = vpop.f32.mrf.mxu0
  %v1456 = vadd.f32 %v1247, %v1455
  %v1457 = vpop.f32.mrf.mxu0
  %1458 = vmatprep.mubr.bf16.mxu0 %v669
  %1459 = vmatmul.mubr.bf16.gmra.mxu0 %v668
  %v1460 = vpop.f32.mrf.mxu0
  %v1461 = vadd.f32 %v1252, %v1460
  %v1462 = vpop.f32.mrf.mxu0
  %v1463 = vpop.f32.mrf.mxu0
  %v1464 = vadd.f32 %v1255, %v1463
  %v1465 = vpop.f32.mrf.mxu0
  %1466 = vmatprep.mubr.bf16.mxu0 %v674
  %1467 = vmatmul.mubr.bf16.gmra.mxu0 %v673
  %v1468 = vpop.f32.mrf.mxu0
  %v1469 = vadd.f32 %v1260, %v1468
  %v1470 = vpop.f32.mrf.mxu0
  %v1471 = vpop.f32.mrf.mxu0
  %v1472 = vadd.f32 %v1263, %v1471
  %v1473 = vpop.f32.mrf.mxu0
  %1474 = vmatprep.mubr.bf16.mxu0 %v679
  %1475 = vmatmul.mubr.bf16.gmra.mxu0 %v678
  %v1476 = vpop.f32.mrf.mxu0
  %v1477 = vadd.f32 %v1268, %v1476
  %v1478 = vpop.f32.mrf.mxu0
  %v1479 = vpop.f32.mrf.mxu0
  %v1480 = vadd.f32 %v1271, %v1479
  %v1481 = vpop.f32.mrf.mxu0
  %1482 = vdwg.mxu0
  %1483 = vmatprep.subr.bf16.mxu0 0
  %1484 = vmatpush1.bf16.msra.mxu0 0
  %1485 = vmatprep.subr.bf16.mxu0 0
  %1486 = vmatpush1.bf16.msra.mxu0 0
  %1487 = vmatprep.subr.bf16.mxu0 0
  %1488 = vmatpush1.bf16.msra.mxu0 %v1063
  %1489 = vmatprep.subr.bf16.mxu0 0
  %1490 = vmatpush1.bf16.msra.mxu0 %v955
  %1491 = vmatprep.subr.bf16.mxu0 0
  %1492 = vmatpush1.bf16.msra.mxu0 %v954
  %1493 = vmatprep.subr.bf16.mxu0 0
  %1494 = vmatpush1.bf16.msra.mxu0 %v953
  %1495 = vmatprep.subr.bf16.mxu0 0
  %1496 = vmatpush1.bf16.msra.mxu0 %v952
  %1497 = vmatprep.subr.bf16.mxu0 0
  %1498 = vmatpush1.bf16.msra.mxu0 %v951
  %1499 = vmatprep.subr.bf16.mxu0 0
  %1500 = vmatpush2.bf16.msra.mxu0 0
  %1501 = vmatprep.subr.bf16.mxu0 0
  %1502 = vmatpush2.bf16.msra.mxu0 0
  %1503 = vmatprep.subr.bf16.mxu0 0
  %1504 = vmatpush2.bf16.msra.mxu0 0
  %1505 = vmatprep.subr.bf16.mxu0 0
  %1506 = vmatpush2.bf16.msra.mxu0 0
  %1507 = vmatprep.subr.bf16.mxu0 0
  %1508 = vmatpush2.bf16.msra.mxu0 0
  %1509 = vmatprep.subr.bf16.mxu0 0
  %1510 = vmatpush2.bf16.msra.mxu0 0
  %1511 = vmatprep.subr.bf16.mxu0 0
  %1512 = vmatpush2.bf16.msra.mxu0 0
  %1513 = vmatprep.subr.bf16.mxu0 0
  %1514 = vmatpush2.bf16.msra.mxu0 0
  %1515 = vmatprep.mubr.bf16.mxu0 0
  %1516 = vmatmul.mubr.bf16.gmra.mxu0 %v996
  %v1517 = vpop.f32.mrf.mxu0
  %v1518 = vadd.f32 %v1309, %v1517
  %v1519 = vpop.f32.mrf.mxu0
  %v1520 = vpop.f32.mrf.mxu0
  %v1521 = vadd.f32 %v1312, %v1520
  %v1522 = vpop.f32.mrf.mxu0
  %1523 = vmatprep.mubr.bf16.mxu0 0
  %1524 = vmatmul.mubr.bf16.gmra.mxu0 %v999
  %v1525 = vpop.f32.mrf.mxu0
  %v1526 = vadd.f32 %v1317, %v1525
  %v1527 = vpop.f32.mrf.mxu0
  %v1528 = vpop.f32.mrf.mxu0
  %v1529 = vadd.f32 %v1320, %v1528
  %v1530 = vpop.f32.mrf.mxu0
  %1531 = vmatprep.mubr.bf16.mxu0 0
  %1532 = vmatmul.mubr.bf16.gmra.mxu0 %v1002
  %v1533 = vpop.f32.mrf.mxu0
  %v1534 = vadd.f32 %v1325, %v1533
  %v1535 = vpop.f32.mrf.mxu0
  %v1536 = vpop.f32.mrf.mxu0
  %v1537 = vadd.f32 %v1328, %v1536
  %v1538 = vpop.f32.mrf.mxu0
  %1539 = vmatprep.mubr.bf16.mxu0 0
  %1540 = vmatmul.mubr.bf16.gmra.mxu0 %v1005
  %v1541 = vpop.f32.mrf.mxu0
  %v1542 = vadd.f32 %v1333, %v1541
  %v1543 = vpop.f32.mrf.mxu0
  %v1544 = vpop.f32.mrf.mxu0
  %v1545 = vadd.f32 %v1336, %v1544
  %v1546 = vpop.f32.mrf.mxu0
  %1547 = vmatprep.mubr.bf16.mxu0 0
  %1548 = vmatmul.mubr.bf16.gmra.mxu0 %v1008
  %v1549 = vpop.f32.mrf.mxu0
  %v1550 = vadd.f32 %v1341, %v1549
  %v1551 = vpop.f32.mrf.mxu0
  %v1552 = vpop.f32.mrf.mxu0
  %v1553 = vadd.f32 %v1344, %v1552
  %v1554 = vpop.f32.mrf.mxu0
  %1555 = vmatprep.mubr.bf16.mxu0 0
  %1556 = vmatmul.mubr.bf16.gmra.mxu0 %v1011
  %v1557 = vpop.f32.mrf.mxu0
  %v1558 = vadd.f32 %v1349, %v1557
  %v1559 = vpop.f32.mrf.mxu0
  %v1560 = vpop.f32.mrf.mxu0
  %v1561 = vadd.f32 %v1352, %v1560
  %v1562 = vpop.f32.mrf.mxu0
  %1563 = vmatprep.mubr.bf16.mxu0 0
  %1564 = vmatmul.mubr.bf16.gmra.mxu0 %v1014
  %v1565 = vpop.f32.mrf.mxu0
  %v1566 = vadd.f32 %v1357, %v1565
  %v1567 = vpop.f32.mrf.mxu0
  %v1568 = vpop.f32.mrf.mxu0
  %v1569 = vadd.f32 %v1360, %v1568
  %v1570 = vpop.f32.mrf.mxu0
  %1571 = vmatprep.mubr.bf16.mxu0 0
  %1572 = vmatmul.mubr.bf16.gmra.mxu0 %v1017
  %v1573 = vpop.f32.mrf.mxu0
  %v1574 = vadd.f32 %v1365, %v1573
  %v1575 = vpop.f32.mrf.mxu0
  %v1576 = vpop.f32.mrf.mxu0
  %v1577 = vadd.f32 %v1368, %v1576
  %v1578 = vpop.f32.mrf.mxu0
  %1579 = vmatprep.mubr.bf16.mxu0 0
  %1580 = vmatmul.mubr.bf16.gmra.mxu0 %v1020
  %v1581 = vpop.f32.mrf.mxu0
  %v1582 = vadd.f32 %v1373, %v1581
  %v1583 = vpop.f32.mrf.mxu0
  %v1584 = vpop.f32.mrf.mxu0
  %v1585 = vadd.f32 %v1376, %v1584
  %v1586 = vpop.f32.mrf.mxu0
  %1587 = vmatprep.mubr.bf16.mxu0 0
  %1588 = vmatmul.mubr.bf16.gmra.mxu0 %v1023
  %v1589 = vpop.f32.mrf.mxu0
  %v1590 = vadd.f32 %v1381, %v1589
  %v1591 = vpop.f32.mrf.mxu0
  %v1592 = vpop.f32.mrf.mxu0
  %v1593 = vadd.f32 %v1384, %v1592
  %v1594 = vpop.f32.mrf.mxu0
  %1595 = vmatprep.mubr.bf16.mxu0 0
  %1596 = vmatmul.mubr.bf16.gmra.mxu0 %v1026
  %v1597 = vpop.f32.mrf.mxu0
  %v1598 = vadd.f32 %v1389, %v1597
  %v1599 = vpop.f32.mrf.mxu0
  %v1600 = vpop.f32.mrf.mxu0
  %v1601 = vadd.f32 %v1392, %v1600
  %v1602 = vpop.f32.mrf.mxu0
  %1603 = vmatprep.mubr.bf16.mxu0 0
  %1604 = vmatmul.mubr.bf16.gmra.mxu0 %v1029
  %v1605 = vpop.f32.mrf.mxu0
  %v1606 = vadd.f32 %v1397, %v1605
  %v1607 = vpop.f32.mrf.mxu0
  %v1608 = vpop.f32.mrf.mxu0
  %v1609 = vadd.f32 %v1400, %v1608
  %v1610 = vpop.f32.mrf.mxu0
  %1611 = vmatprep.mubr.bf16.mxu0 0
  %1612 = vmatmul.mubr.bf16.gmra.mxu0 %v1032
  %v1613 = vpop.f32.mrf.mxu0
  %v1614 = vadd.f32 %v1405, %v1613
  %v1615 = vpop.f32.mrf.mxu0
  %v1616 = vpop.f32.mrf.mxu0
  %v1617 = vadd.f32 %v1408, %v1616
  %v1618 = vpop.f32.mrf.mxu0
  %1619 = vmatprep.mubr.bf16.mxu0 0
  %1620 = vmatmul.mubr.bf16.gmra.mxu0 %v1035
  %v1621 = vpop.f32.mrf.mxu0
  %v1622 = vadd.f32 %v1413, %v1621
  %v1623 = vpop.f32.mrf.mxu0
  %v1624 = vpop.f32.mrf.mxu0
  %v1625 = vadd.f32 %v1416, %v1624
  %v1626 = vpop.f32.mrf.mxu0
  %1627 = vmatprep.mubr.bf16.mxu0 0
  %1628 = vmatmul.mubr.bf16.gmra.mxu0 %v1038
  %v1629 = vpop.f32.mrf.mxu0
  %v1630 = vadd.f32 %v1421, %v1629
  %v1631 = vpop.f32.mrf.mxu0
  %v1632 = vpop.f32.mrf.mxu0
  %v1633 = vadd.f32 %v1424, %v1632
  %v1634 = vpop.f32.mrf.mxu0
  %1635 = vmatprep.mubr.bf16.mxu0 0
  %1636 = vmatmul.mubr.bf16.gmra.mxu0 %v1041
  %v1637 = vpop.f32.mrf.mxu0
  %v1638 = vadd.f32 %v1429, %v1637
  %v1639 = vpop.f32.mrf.mxu0
  %v1640 = vpop.f32.mrf.mxu0
  %v1641 = vadd.f32 %v1432, %v1640
  %v1642 = vpop.f32.mrf.mxu0
  %1643 = vmatprep.mubr.bf16.mxu0 0
  %1644 = vmatmul.mubr.bf16.gmra.mxu0 %v1044
  %v1645 = vpop.f32.mrf.mxu0
  %v1646 = vadd.f32 %v1437, %v1645
  %v1647 = vpop.f32.mrf.mxu0
  %v1648 = vpop.f32.mrf.mxu0
  %v1649 = vadd.f32 %v1440, %v1648
  %v1650 = vpop.f32.mrf.mxu0
  %1651 = vmatprep.mubr.bf16.mxu0 0
  %1652 = vmatmul.mubr.bf16.gmra.mxu0 %v1047
  %v1653 = vpop.f32.mrf.mxu0
  %v1654 = vadd.f32 %v1445, %v1653
  %v1655 = vpop.f32.mrf.mxu0
  %v1656 = vpop.f32.mrf.mxu0
  %v1657 = vadd.f32 %v1448, %v1656
  %v1658 = vpop.f32.mrf.mxu0
  %1659 = vmatprep.mubr.bf16.mxu0 0
  %1660 = vmatmul.mubr.bf16.gmra.mxu0 %v1050
  %v1661 = vpop.f32.mrf.mxu0
  %v1662 = vadd.f32 %v1453, %v1661
  %v1663 = vpop.f32.mrf.mxu0
  %v1664 = vpop.f32.mrf.mxu0
  %v1665 = vadd.f32 %v1456, %v1664
  %v1666 = vpop.f32.mrf.mxu0
  %1667 = vmatprep.mubr.bf16.mxu0 0
  %1668 = vmatmul.mubr.bf16.gmra.mxu0 %v1053
  %v1669 = vpop.f32.mrf.mxu0
  %v1670 = vadd.f32 %v1461, %v1669
  %v1671 = vpop.f32.mrf.mxu0
  %v1672 = vpop.f32.mrf.mxu0
  %v1673 = vadd.f32 %v1464, %v1672
  %v1674 = vpop.f32.mrf.mxu0
  %1675 = vmatprep.mubr.bf16.mxu0 0
  %1676 = vmatmul.mubr.bf16.gmra.mxu0 %v1056
  %v1677 = vpop.f32.mrf.mxu0
  %v1678 = vadd.f32 %v1469, %v1677
  %v1679 = vpop.f32.mrf.mxu0
  %v1680 = vpop.f32.mrf.mxu0
  %v1681 = vadd.f32 %v1472, %v1680
  %v1682 = vpop.f32.mrf.mxu0
  %1683 = vmatprep.mubr.bf16.mxu0 0
  %1684 = vmatmul.mubr.bf16.gmra.mxu0 %v1059
  %v1685 = vpop.f32.mrf.mxu0
  %v1686 = vadd.f32 %v1477, %v1685
  %v1687 = vpop.f32.mrf.mxu0
  %v1688 = vpop.f32.mrf.mxu0
  %v1689 = vadd.f32 %v1480, %v1688
  %v1690 = vpop.f32.mrf.mxu0
  %1691 = vdwg.mxu0
  %v1692 = vadd.f32 %v1518, %v1521
  %v1693 = vadd.f32 %v1692, %v1526
  %v1694 = vadd.f32 %v1693, %v1529
  %v1695 = vadd.f32 %v1694, %v1534
  %v1696 = vadd.f32 %v1695, %v1537
  %v1697 = vadd.f32 %v1696, %v1542
  %v1698 = vadd.f32 %v1697, %v1545
  %v1699 = vadd.f32 %v1698, %v1550
  %v1700 = vadd.f32 %v1699, %v1553
  %v1701 = vadd.f32 %v1700, %v1558
  %v1702 = vadd.f32 %v1701, %v1561
  %v1703 = vadd.f32 %v1702, %v1566
  %v1704 = vadd.f32 %v1703, %v1569
  %v1705 = vadd.f32 %v1704, %v1574
  %v1706 = vadd.f32 %v1705, %v1577
  %v1707 = vadd.f32 %v1706, %v1582
  %v1708 = vadd.f32 %v1707, %v1585
  %v1709 = vadd.f32 %v1708, %v1590
  %v1710 = vadd.f32 %v1709, %v1593
  %v1711 = vadd.f32 %v1710, %v1598
  %v1712 = vadd.f32 %v1711, %v1601
  %v1713 = vadd.f32 %v1712, %v1606
  %v1714 = vadd.f32 %v1713, %v1609
  %v1715 = vadd.f32 %v1714, %v1614
  %v1716 = vadd.f32 %v1715, %v1617
  %v1717 = vadd.f32 %v1716, %v1622
  %v1718 = vadd.f32 %v1717, %v1625
  %v1719 = vadd.f32 %v1718, %v1630
  %v1720 = vadd.f32 %v1719, %v1633
  %v1721 = vadd.f32 %v1720, %v1638
  %v1722 = vadd.f32 %v1721, %v1641
  %v1723 = vadd.f32 %v1722, %v1646
  %v1724 = vadd.f32 %v1723, %v1649
  %v1725 = vadd.f32 %v1724, %v1654
  %v1726 = vadd.f32 %v1725, %v1657
  %v1727 = vadd.f32 %v1726, %v1662
  %v1728 = vadd.f32 %v1727, %v1665
  %v1729 = vadd.f32 %v1728, %v1670
  %v1730 = vadd.f32 %v1729, %v1673
  %v1731 = vadd.f32 %v1730, %v1678
  %v1732 = vadd.f32 %v1731, %v1681
  %v1733 = vadd.f32 %v1732, %v1686
  %v1734 = vadd.f32 %v1733, %v1689
  %v1735 = vrot.slane %v1734, 4
  %v1736 = vadd.f32 %v1734, %v1735
  %v1737 = vrot.slane %v1736, 2
  %v1738 = vadd.f32 %v1736, %v1737
  %v1739 = vrot.slane %v1738, 1
  %v1740 = vadd.f32 %v1738, %v1739
  %v1741 = vmul.f32 %v1740, 0.00295858
  %v1742 = vmul.f32 %v1518, %v1518
  %v1743 = vmul.f32 %v1521, %v1521
  %v1744 = vmul.f32 %v1526, %v1526
  %v1745 = vmul.f32 %v1529, %v1529
  %v1746 = vmul.f32 %v1534, %v1534
  %v1747 = vmul.f32 %v1537, %v1537
  %v1748 = vmul.f32 %v1542, %v1542
  %v1749 = vmul.f32 %v1545, %v1545
  %v1750 = vmul.f32 %v1550, %v1550
  %v1751 = vmul.f32 %v1553, %v1553
  %v1752 = vmul.f32 %v1558, %v1558
  %v1753 = vmul.f32 %v1561, %v1561
  %v1754 = vmul.f32 %v1566, %v1566
  %v1755 = vmul.f32 %v1569, %v1569
  %v1756 = vmul.f32 %v1574, %v1574
  %v1757 = vmul.f32 %v1577, %v1577
  %v1758 = vmul.f32 %v1582, %v1582
  %v1759 = vmul.f32 %v1585, %v1585
  %v1760 = vmul.f32 %v1590, %v1590
  %v1761 = vmul.f32 %v1593, %v1593
  %v1762 = vmul.f32 %v1598, %v1598
  %v1763 = vmul.f32 %v1601, %v1601
  %v1764 = vmul.f32 %v1606, %v1606
  %v1765 = vmul.f32 %v1609, %v1609
  %v1766 = vmul.f32 %v1614, %v1614
  %v1767 = vmul.f32 %v1617, %v1617
  %v1768 = vmul.f32 %v1622, %v1622
  %v1769 = vmul.f32 %v1625, %v1625
  %v1770 = vmul.f32 %v1630, %v1630
  %v1771 = vmul.f32 %v1633, %v1633
  %v1772 = vmul.f32 %v1638, %v1638
  %v1773 = vmul.f32 %v1641, %v1641
  %v1774 = vmul.f32 %v1646, %v1646
  %v1775 = vmul.f32 %v1649, %v1649
  %v1776 = vmul.f32 %v1654, %v1654
  %v1777 = vmul.f32 %v1657, %v1657
  %v1778 = vmul.f32 %v1662, %v1662
  %v1779 = vmul.f32 %v1665, %v1665
  %v1780 = vmul.f32 %v1670, %v1670
  %v1781 = vmul.f32 %v1673, %v1673
  %v1782 = vmul.f32 %v1678, %v1678
  %v1783 = vmul.f32 %v1681, %v1681
  %v1784 = vmul.f32 %v1686, %v1686
  %v1785 = vmul.f32 %v1689, %v1689
  %v1786 = vadd.f32 %v1742, %v1743
  %v1787 = vadd.f32 %v1786, %v1744
  %v1788 = vadd.f32 %v1787, %v1745
  %v1789 = vadd.f32 %v1788, %v1746
  %v1790 = vadd.f32 %v1789, %v1747
  %v1791 = vadd.f32 %v1790, %v1748
  %v1792 = vadd.f32 %v1791, %v1749
  %v1793 = vadd.f32 %v1792, %v1750
  %v1794 = vadd.f32 %v1793, %v1751
  %v1795 = vadd.f32 %v1794, %v1752
  %v1796 = vadd.f32 %v1795, %v1753
  %v1797 = vadd.f32 %v1796, %v1754
  %v1798 = vadd.f32 %v1797, %v1755
  %v1799 = vadd.f32 %v1798, %v1756
  %v1800 = vadd.f32 %v1799, %v1757
  %v1801 = vadd.f32 %v1800, %v1758
  %v1802 = vadd.f32 %v1801, %v1759
  %v1803 = vadd.f32 %v1802, %v1760
  %v1804 = vadd.f32 %v1803, %v1761
  %v1805 = vadd.f32 %v1804, %v1762
  %v1806 = vadd.f32 %v1805, %v1763
  %v1807 = vadd.f32 %v1806, %v1764
  %v1808 = vadd.f32 %v1807, %v1765
  %v1809 = vadd.f32 %v1808, %v1766
  %v1810 = vadd.f32 %v1809, %v1767
  %v1811 = vadd.f32 %v1810, %v1768
  %v1812 = vadd.f32 %v1811, %v1769
  %v1813 = vadd.f32 %v1812, %v1770
  %v1814 = vadd.f32 %v1813, %v1771
  %v1815 = vadd.f32 %v1814, %v1772
  %v1816 = vadd.f32 %v1815, %v1773
  %v1817 = vadd.f32 %v1816, %v1774
  %v1818 = vadd.f32 %v1817, %v1775
  %v1819 = vadd.f32 %v1818, %v1776
  %v1820 = vadd.f32 %v1819, %v1777
  %v1821 = vadd.f32 %v1820, %v1778
  %v1822 = vadd.f32 %v1821, %v1779
  %v1823 = vadd.f32 %v1822, %v1780
  %v1824 = vadd.f32 %v1823, %v1781
  %v1825 = vadd.f32 %v1824, %v1782
  %v1826 = vadd.f32 %v1825, %v1783
  %v1827 = vadd.f32 %v1826, %v1784
  %v1828 = vadd.f32 %v1827, %v1785
  %v1829 = vrot.slane %v1828, 4
  %v1830 = vadd.f32 %v1828, %v1829
  %v1831 = vrot.slane %v1830, 2
  %v1832 = vadd.f32 %v1830, %v1831
  %v1833 = vrot.slane %v1832, 1
  %v1834 = vadd.f32 %v1832, %v1833
  %v1835 = vmul.f32 %v1834, 0.00295858
  %v1836 = vmul.f32 %v1741, %v1741
  %v1837 = vsub.f32 %v1835, %v1836
  %v1838 = vmax.f32 %v1837, 0.0
  %v1839 = vadd.f32 %v1838, 1e-05
  %v1840 = vrsqrt.pop %v1839
  %v1841 = vsub.f32 0.0, %v1741
  %v1842 = vmul.f32 %v1841, %v1840
  %v1843 = vmul.f32 %v1518, %v1840
  %v1844 = vmul.f32 %v1521, %v1840
  %v1845 = vmul.f32 %v1526, %v1840
  %v1846 = vmul.f32 %v1529, %v1840
  %v1847 = vmul.f32 %v1534, %v1840
  %v1848 = vmul.f32 %v1537, %v1840
  %v1849 = vmul.f32 %v1542, %v1840
  %v1850 = vmul.f32 %v1545, %v1840
  %v1851 = vmul.f32 %v1550, %v1840
  %v1852 = vmul.f32 %v1553, %v1840
  %v1853 = vmul.f32 %v1558, %v1840
  %v1854 = vmul.f32 %v1561, %v1840
  %v1855 = vmul.f32 %v1566, %v1840
  %v1856 = vmul.f32 %v1569, %v1840
  %v1857 = vmul.f32 %v1574, %v1840
  %v1858 = vmul.f32 %v1577, %v1840
  %v1859 = vmul.f32 %v1582, %v1840
  %v1860 = vmul.f32 %v1585, %v1840
  %v1861 = vmul.f32 %v1590, %v1840
  %v1862 = vmul.f32 %v1593, %v1840
  %v1863 = vmul.f32 %v1598, %v1840
  %v1864 = vmul.f32 %v1601, %v1840
  %v1865 = vmul.f32 %v1606, %v1840
  %v1866 = vmul.f32 %v1609, %v1840
  %v1867 = vmul.f32 %v1614, %v1840
  %v1868 = vmul.f32 %v1617, %v1840
  %v1869 = vmul.f32 %v1622, %v1840
  %v1870 = vmul.f32 %v1625, %v1840
  %v1871 = vmul.f32 %v1630, %v1840
  %v1872 = vmul.f32 %v1633, %v1840
  %v1873 = vmul.f32 %v1638, %v1840
  %v1874 = vmul.f32 %v1641, %v1840
  %v1875 = vmul.f32 %v1646, %v1840
  %v1876 = vmul.f32 %v1649, %v1840
  %v1877 = vmul.f32 %v1654, %v1840
  %v1878 = vmul.f32 %v1657, %v1840
  %v1879 = vmul.f32 %v1662, %v1840
  %v1880 = vmul.f32 %v1665, %v1840
  %v1881 = vmul.f32 %v1670, %v1840
  %v1882 = vmul.f32 %v1673, %v1840
  %v1883 = vmul.f32 %v1678, %v1840
  %v1884 = vmul.f32 %v1681, %v1840
  %v1885 = vmul.f32 %v1686, %v1840
  %v1886 = vmul.f32 %v1689, %v1840
  %v1887 = vadd.f32 %v1843, %v1842
  %v1888 = vadd.f32 %v1844, %v1842
  %v1889 = vadd.f32 %v1845, %v1842
  %v1890 = vadd.f32 %v1846, %v1842
  %v1891 = vadd.f32 %v1847, %v1842
  %v1892 = vadd.f32 %v1848, %v1842
  %v1893 = vadd.f32 %v1849, %v1842
  %v1894 = vadd.f32 %v1850, %v1842
  %v1895 = vadd.f32 %v1851, %v1842
  %v1896 = vadd.f32 %v1852, %v1842
  %v1897 = vadd.f32 %v1853, %v1842
  %v1898 = vadd.f32 %v1854, %v1842
  %v1899 = vadd.f32 %v1855, %v1842
  %v1900 = vadd.f32 %v1856, %v1842
  %v1901 = vadd.f32 %v1857, %v1842
  %v1902 = vadd.f32 %v1858, %v1842
  %v1903 = vadd.f32 %v1859, %v1842
  %v1904 = vadd.f32 %v1860, %v1842
  %v1905 = vadd.f32 %v1861, %v1842
  %v1906 = vadd.f32 %v1862, %v1842
  %v1907 = vadd.f32 %v1863, %v1842
  %v1908 = vadd.f32 %v1864, %v1842
  %v1909 = vadd.f32 %v1865, %v1842
  %v1910 = vadd.f32 %v1866, %v1842
  %v1911 = vadd.f32 %v1867, %v1842
  %v1912 = vadd.f32 %v1868, %v1842
  %v1913 = vadd.f32 %v1869, %v1842
  %v1914 = vadd.f32 %v1870, %v1842
  %v1915 = vadd.f32 %v1871, %v1842
  %v1916 = vadd.f32 %v1872, %v1842
  %v1917 = vadd.f32 %v1873, %v1842
  %v1918 = vadd.f32 %v1874, %v1842
  %v1919 = vadd.f32 %v1875, %v1842
  %v1920 = vadd.f32 %v1876, %v1842
  %v1921 = vadd.f32 %v1877, %v1842
  %v1922 = vadd.f32 %v1878, %v1842
  %v1923 = vadd.f32 %v1879, %v1842
  %v1924 = vadd.f32 %v1880, %v1842
  %v1925 = vadd.f32 %v1881, %v1842
  %v1926 = vadd.f32 %v1882, %v1842
  %v1927 = vadd.f32 %v1883, %v1842
  %v1928 = vadd.f32 %v1884, %v1842
  %v1929 = vadd.f32 %v1885, %v1842
  %v1930 = vadd.f32 %v1886, %v1842
  %v1931 = vmax.f32 %v1887, 0.0
  %v1932 = vmax.f32 %v1888, 0.0
  %v1933 = vmax.f32 %v1889, 0.0
  %v1934 = vmax.f32 %v1890, 0.0
  %v1935 = vmax.f32 %v1891, 0.0
  %v1936 = vmax.f32 %v1892, 0.0
  %v1937 = vmax.f32 %v1893, 0.0
  %v1938 = vmax.f32 %v1894, 0.0
  %v1939 = vmax.f32 %v1895, 0.0
  %v1940 = vmax.f32 %v1896, 0.0
  %v1941 = vmax.f32 %v1897, 0.0
  %v1942 = vmax.f32 %v1898, 0.0
  %v1943 = vmax.f32 %v1899, 0.0
  %v1944 = vmax.f32 %v1900, 0.0
  %v1945 = vmax.f32 %v1901, 0.0
  %v1946 = vmax.f32 %v1902, 0.0
  %v1947 = vmax.f32 %v1903, 0.0
  %v1948 = vmax.f32 %v1904, 0.0
  %v1949 = vmax.f32 %v1905, 0.0
  %v1950 = vmax.f32 %v1906, 0.0
  %v1951 = vmax.f32 %v1907, 0.0
  %v1952 = vmax.f32 %v1908, 0.0
  %v1953 = vmax.f32 %v1909, 0.0
  %v1954 = vmax.f32 %v1910, 0.0
  %v1955 = vmax.f32 %v1911, 0.0
  %v1956 = vmax.f32 %v1912, 0.0
  %v1957 = vmax.f32 %v1913, 0.0
  %v1958 = vmax.f32 %v1914, 0.0
  %v1959 = vmax.f32 %v1915, 0.0
  %v1960 = vmax.f32 %v1916, 0.0
  %v1961 = vmax.f32 %v1917, 0.0
  %v1962 = vmax.f32 %v1918, 0.0
  %v1963 = vmax.f32 %v1919, 0.0
  %v1964 = vmax.f32 %v1920, 0.0
  %v1965 = vmax.f32 %v1921, 0.0
  %v1966 = vmax.f32 %v1922, 0.0
  %v1967 = vmax.f32 %v1923, 0.0
  %v1968 = vmax.f32 %v1924, 0.0
  %v1969 = vmax.f32 %v1925, 0.0
  %v1970 = vmax.f32 %v1926, 0.0
  %v1971 = vmax.f32 %v1927, 0.0
  %v1972 = vmax.f32 %v1928, 0.0
  %v1973 = vmax.f32 %v1929, 0.0
  %v1974 = vmax.f32 %v1930, 0.0
  %v1975 = vpack.c.bf16 %v1932, %v1931
  %v1976 = vpack.c.bf16 %v1934, %v1933
  %v1977 = vpack.c.bf16 %v1936, %v1935
  %v1978 = vpack.c.bf16 %v1938, %v1937
  %v1979 = vpack.c.bf16 %v1940, %v1939
  %v1980 = vpack.c.bf16 %v1942, %v1941
  %v1981 = vpack.c.bf16 %v1944, %v1943
  %v1982 = vpack.c.bf16 %v1946, %v1945
  %v1983 = vpack.c.bf16 %v1948, %v1947
  %v1984 = vpack.c.bf16 %v1950, %v1949
  %v1985 = vpack.c.bf16 %v1952, %v1951
  %v1986 = vpack.c.bf16 %v1954, %v1953
  %v1987 = vpack.c.bf16 %v1956, %v1955
  %v1988 = vpack.c.bf16 %v1958, %v1957
  %v1989 = vpack.c.bf16 %v1960, %v1959
  %v1990 = vpack.c.bf16 %v1962, %v1961
  %v1991 = vpack.c.bf16 %v1964, %v1963
  %v1992 = vpack.c.bf16 %v1966, %v1965
  %v1993 = vpack.c.bf16 %v1968, %v1967
  %v1994 = vpack.c.bf16 %v1970, %v1969
  %v1995 = vpack.c.bf16 %v1972, %v1971
  %v1996 = vpack.c.bf16 %v1974, %v1973
  %v2019 = vunpack.c.l.b16 %v1975
  %v2020 = vunpack.c.h.b16 %v1975
  %v2021 = vunpack.c.l.b16 %v1976
  %v2022 = vunpack.c.h.b16 %v1976
  %v2023 = vunpack.c.l.b16 %v1977
  %v2024 = vunpack.c.h.b16 %v1977
  %v2025 = vunpack.c.l.b16 %v1978
  %v2026 = vunpack.c.h.b16 %v1978
  %v2027 = vunpack.c.l.b16 %v1979
  %v2028 = vunpack.c.h.b16 %v1979
  %v2029 = vunpack.c.l.b16 %v1980
  %v2030 = vunpack.c.h.b16 %v1980
  %v2031 = vunpack.c.l.b16 %v1981
  %v2032 = vunpack.c.h.b16 %v1981
  %v2033 = vunpack.c.l.b16 %v1982
  %v2034 = vunpack.c.h.b16 %v1982
  %v2035 = vunpack.c.l.b16 %v1983
  %v2036 = vunpack.c.h.b16 %v1983
  %v2037 = vunpack.c.l.b16 %v1984
  %v2038 = vunpack.c.h.b16 %v1984
  %v2039 = vunpack.c.l.b16 %v1985
  %v2040 = vunpack.c.h.b16 %v1985
  %v2041 = vunpack.c.l.b16 %v1986
  %v2042 = vunpack.c.h.b16 %v1986
  %v2043 = vunpack.c.l.b16 %v1987
  %v2044 = vunpack.c.h.b16 %v1987
  %v2045 = vunpack.c.l.b16 %v1988
  %v2046 = vunpack.c.h.b16 %v1988
  %v2047 = vunpack.c.l.b16 %v1989
  %v2048 = vunpack.c.h.b16 %v1989
  %v2049 = vunpack.c.l.b16 %v1990
  %v2050 = vunpack.c.h.b16 %v1990
  %v2051 = vunpack.c.l.b16 %v1991
  %v2052 = vunpack.c.h.b16 %v1991
  %v2053 = vunpack.c.l.b16 %v1992
  %v2054 = vunpack.c.h.b16 %v1992
  %v2055 = vunpack.c.l.b16 %v1993
  %v2056 = vunpack.c.h.b16 %v1993
  %v2057 = vunpack.c.l.b16 %v1994
  %v2058 = vunpack.c.h.b16 %v1994
  %v2059 = vunpack.c.l.b16 %v1995
  %v2060 = vunpack.c.h.b16 %v1995
  %v2061 = vunpack.c.l.b16 %v1996
  %v2062 = vunpack.c.h.b16 %v1996
  %v2063 = vpack.c.b16 %v2019, %v2019
  %v2064 = vpack.c.b16 %v2020, %v2020
  %v2065 = vpack.c.b16 %v2021, %v2021
  %v2066 = vpack.c.b16 %v2022, %v2022
  %v2067 = vpack.c.b16 %v2023, %v2023
  %v2068 = vpack.c.b16 %v2024, %v2024
  %v2069 = vpack.c.b16 %v2025, %v2025
  %v2070 = vpack.c.b16 %v2026, %v2026
  %v2071 = vpack.c.b16 %v2027, %v2027
  %v2072 = vpack.c.b16 %v2028, %v2028
  %v2073 = vpack.c.b16 %v2029, %v2029
  %v2074 = vpack.c.b16 %v2030, %v2030
  %v2075 = vpack.c.b16 %v2031, %v2031
  %v2076 = vpack.c.b16 %v2032, %v2032
  %v2077 = vpack.c.b16 %v2033, %v2033
  %v2078 = vpack.c.b16 %v2034, %v2034
  %v2079 = vpack.c.b16 %v2035, %v2035
  %v2080 = vpack.c.b16 %v2036, %v2036
  %v2081 = vpack.c.b16 %v2037, %v2037
  %v2082 = vpack.c.b16 %v2038, %v2038
  %v2083 = vpack.c.b16 %v2039, %v2039
  %v2084 = vpack.c.b16 %v2040, %v2040
  %v2085 = vpack.c.b16 %v2041, %v2041
  %v2086 = vpack.c.b16 %v2042, %v2042
  %v2087 = vpack.c.b16 %v2043, %v2043
  %v2088 = vpack.c.b16 %v2044, %v2044
  %v2089 = vpack.c.b16 %v2045, %v2045
  %v2090 = vpack.c.b16 %v2046, %v2046
  %v2091 = vpack.c.b16 %v2047, %v2047
  %v2092 = vpack.c.b16 %v2048, %v2048
  %v2093 = vpack.c.b16 %v2049, %v2049
  %v2094 = vpack.c.b16 %v2050, %v2050
  %v2095 = vpack.c.b16 %v2051, %v2051
  %v2096 = vpack.c.b16 %v2052, %v2052
  %v2097 = vpack.c.b16 %v2053, %v2053
  %v2098 = vpack.c.b16 %v2054, %v2054
  %v2099 = vpack.c.b16 %v2055, %v2055
  %v2100 = vpack.c.b16 %v2056, %v2056
  %v2101 = vpack.c.b16 %v2057, %v2057
  %v2102 = vpack.c.b16 %v2058, %v2058
  %v2103 = vpack.c.b16 %v2059, %v2059
  %v2104 = vpack.c.b16 %v2060, %v2060
  %v2105 = vpack.c.b16 %v2061, %v2061
  %v2106 = vpack.c.b16 %v2062, %v2062
  %2151 = vst [vmem:[%s2] sm:$0xf] %v2063
  %2152 = vst [vmem:[%s2 + $0x4] sm:$0xf] %v2064
  %2153 = vst [vmem:[%s2 + $0x8] sm:$0xf] %v2065
  %2154 = vst [vmem:[%s2 + $0xc] sm:$0xf] %v2066
  %2155 = vst [vmem:[%s2 + $0x10] sm:$0xf] %v2067
  %2156 = vst [vmem:[%s2 + $0x14] sm:$0xf] %v2068
  %2157 = vst [vmem:[%s2 + $0x18] sm:$0xf] %v2069
  %2158 = vst [vmem:[%s2 + $0x1c] sm:$0xf] %v2070
  %2159 = vst [vmem:[%s2 + $0x20] sm:$0xf] %v2071
  %2160 = vst [vmem:[%s2 + $0x24] sm:$0xf] %v2072
  %2161 = vst [vmem:[%s2 + $0x28] sm:$0xf] %v2073
  %2162 = vst [vmem:[%s2 + $0x2c] sm:$0xf] %v2074
  %2163 = vst [vmem:[%s2 + $0x30] sm:$0xf] %v2075
  %2164 = vst [vmem:[%s2 + $0x34] sm:$0xf] %v2076
  %2165 = vst [vmem:[%s2 + $0x38] sm:$0xf] %v2077
  %2166 = vst [vmem:[%s2 + $0x3c] sm:$0xf] %v2078
  %2167 = vst [vmem:[%s2 + $0x40] sm:$0xf] %v2079
  %2168 = vst [vmem:[%s2 + $0x44] sm:$0xf] %v2080
  %2169 = vst [vmem:[%s2 + $0x48] sm:$0xf] %v2081
  %2170 = vst [vmem:[%s2 + $0x4c] sm:$0xf] %v2082
  %2171 = vst [vmem:[%s2 + $0x50] sm:$0xf] %v2083
  %2172 = vst [vmem:[%s2 + $0x54] sm:$0xf] %v2084
  %2173 = vst [vmem:[%s2 + $0x58] sm:$0xf] %v2085
  %2174 = vst [vmem:[%s2 + $0x5c] sm:$0xf] %v2086
  %2175 = vst [vmem:[%s2 + $0x60] sm:$0xf] %v2087
  %2176 = vst [vmem:[%s2 + $0x64] sm:$0xf] %v2088
  %2177 = vst [vmem:[%s2 + $0x68] sm:$0xf] %v2089
  %2178 = vst [vmem:[%s2 + $0x6c] sm:$0xf] %v2090
  %2179 = vst [vmem:[%s2 + $0x70] sm:$0xf] %v2091
  %2180 = vst [vmem:[%s2 + $0x74] sm:$0xf] %v2092
  %2181 = vst [vmem:[%s2 + $0x78] sm:$0xf] %v2093
  %2182 = vst [vmem:[%s2 + $0x7c] sm:$0xf] %v2094
  %2183 = vst [vmem:[%s2 + $0x80] sm:$0xf] %v2095
  %2184 = vst [vmem:[%s2 + $0x84] sm:$0xf] %v2096
  %2185 = vst [vmem:[%s2 + $0x88] sm:$0xf] %v2097
  %2186 = vst [vmem:[%s2 + $0x8c] sm:$0xf] %v2098
  %2187 = vst [vmem:[%s2 + $0x90] sm:$0xf] %v2099
  %2188 = vst [vmem:[%s2 + $0x94] sm:$0xf] %v2100
  %2189 = vst [vmem:[%s2 + $0x98] sm:$0xf] %v2101
  %2190 = vst [vmem:[%s2 + $0x9c] sm:$0xf] %v2102
  %2191 = vst [vmem:[%s2 + $0xa0] sm:$0xf] %v2103
  %2192 = vst [vmem:[%s2 + $0xa4] sm:$0xf] %v2104
  %2193 = vst [vmem:[%s2 + $0xa8] sm:$0xf] %v2105
  %2194 = vst [vmem:[%s2 + $0xac] sm:$0xf] %v2106
  // Predicated region
  $region10: #{cnn5max_forward.6} parent=0 // pred_check
    _
  $region11: #{cnn5max_forward.6} parent=0 // pred_check_branch
    %2196 = sbr.rel (0) target = $region13
  $region12: #{cnn5max_forward.6} parent=0 // pred_region
    _
  $region13: #{cnn5max_forward.6} parent=0 // pred_fallthru
    _
  // Predicated region
  $region14: #{cnn5max_forward.6} parent=0 // pred_check
    _
  $region15: #{cnn5max_forward.6} parent=0 // pred_check_branch
    %2198 = sbr.rel (0) target = $region17
  $region16: #{cnn5max_forward.6} parent=0 // pred_region
    _
  $region17: #{cnn5max_forward.6} parent=0 // pred_fallthru
    _

// kernel: cnn5max_forward.7
$region0: #{cnn5max_forward.7}
  #allocation0 [shape = 'u32[]', space=smem, size = 0x4, offset = 0x4, fixed_abs, tag = 'smem constant byte address 0x4 - core index']
  #allocation1 [shape = 'u32[144,128]{1,0:T(1,128)}', space=vmem, size = 0x12000, scoped, tag = 'internal scratch']
  %s0 = inlined_call_operand.vmem [shape: bf16[80,324], index: 0, kind: input, shape index: {}]
  %s1 = inlined_call_operand.vmem [shape: bf16[324,128], index: 1, kind: input, shape index: {}]
  %s2 = inlined_call_operand.vmem [shape: bf16[80,128], index: 2, kind: output, shape index: {}]
  %s3 = sld [smem:[#allocation0]]
  $region18: #{cnn5max_forward.7} parent=0
    _
  %s5 = ssub.s32 1, %s3
  %s6 = scalar_select 0, %s5, %s3
  // Predicated region
  $region2: #{cnn5max_forward.7} parent=0 // pred_check
    _
  $region3: #{cnn5max_forward.7} parent=0 // pred_check_branch
    %8 = sbr.rel (0) target = $region5
  $region4: #{cnn5max_forward.7} parent=0 // pred_region
    _
  $region5: #{cnn5max_forward.7} parent=0 // pred_fallthru
    _
  // Predicated region
  $region6: #{cnn5max_forward.7} parent=0 // pred_check
    _
  $region7: #{cnn5max_forward.7} parent=0 // pred_check_branch
    %10 = sbr.rel (0) target = $region9
  $region8: #{cnn5max_forward.7} parent=0 // pred_region
    _
  $region9: #{cnn5max_forward.7} parent=0 // pred_fallthru
    _
  %v12 = vld [vmem:[%s0] sm:$0xff]
  %v13 = vld [vmem:[%s0 + $0x8] sm:$0xf]
  %v14 = vld [vmem:[%s0 + $0xc] sm:$0xff]
  %v15 = vld [vmem:[%s0 + $0x14] sm:$0xf]
  %v16 = vld [vmem:[%s0 + $0x18] sm:$0xff]
  %v17 = vld [vmem:[%s0 + $0x20] sm:$0xf]
  %v18 = vld [vmem:[%s0 + $0x24] sm:$0xff]
  %v19 = vld [vmem:[%s0 + $0x2c] sm:$0xf]
  %v20 = vld [vmem:[%s0 + $0x30] sm:$0xff]
  %v21 = vld [vmem:[%s0 + $0x38] sm:$0xf]
  %v22 = vld [vmem:[%s0 + $0x3c] sm:$0xff]
  %v23 = vld [vmem:[%s0 + $0x44] sm:$0xf]
  %v24 = vld [vmem:[%s0 + $0x48] sm:$0xff]
  %v25 = vld [vmem:[%s0 + $0x50] sm:$0xf]
  %v26 = vld [vmem:[%s0 + $0x54] sm:$0xff]
  %v27 = vld [vmem:[%s0 + $0x5c] sm:$0xf]
  %v28 = vld [vmem:[%s0 + $0x60] sm:$0xff]
  %v29 = vld [vmem:[%s0 + $0x68] sm:$0xf]
  %v30 = vld [vmem:[%s0 + $0x6c] sm:$0xff]
  %v31 = vld [vmem:[%s0 + $0x74] sm:$0xf]
  %v32 = vld [vmem:[%s1] sm:$0xf]
  %v33 = vld [vmem:[%s1 + $0x4] sm:$0xf]
  %v34 = vld [vmem:[%s1 + $0x8] sm:$0xf]
  %v35 = vld [vmem:[%s1 + $0xc] sm:$0xf]
  %v36 = vld [vmem:[%s1 + $0x10] sm:$0xf]
  %v37 = vld [vmem:[%s1 + $0x14] sm:$0xf]
  %v38 = vld [vmem:[%s1 + $0x18] sm:$0xf]
  %v39 = vld [vmem:[%s1 + $0x1c] sm:$0xf]
  %v40 = vld [vmem:[%s1 + $0x20] sm:$0xf]
  %v41 = vld [vmem:[%s1 + $0x24] sm:$0xf]
  %v42 = vld [vmem:[%s1 + $0x28] sm:$0xf]
  %v43 = vld [vmem:[%s1 + $0x2c] sm:$0xf]
  %v44 = vld [vmem:[%s1 + $0x30] sm:$0xf]
  %v45 = vld [vmem:[%s1 + $0x34] sm:$0xf]
  %v46 = vld [vmem:[%s1 + $0x38] sm:$0xf]
  %v47 = vld [vmem:[%s1 + $0x3c] sm:$0xf]
  %v48 = vld [vmem:[%s1 + $0x40] sm:$0xf]
  %v49 = vld [vmem:[%s1 + $0x44] sm:$0xf]
  %v50 = vld [vmem:[%s1 + $0x48] sm:$0xf]
  %v51 = vld [vmem:[%s1 + $0x4c] sm:$0xf]
  %v52 = vld [vmem:[%s1 + $0x50] sm:$0xf]
  %v53 = vld [vmem:[%s1 + $0x54] sm:$0xf]
  %v54 = vld [vmem:[%s1 + $0x58] sm:$0xf]
  %v55 = vld [vmem:[%s1 + $0x5c] sm:$0xf]
  %v56 = vld [vmem:[%s1 + $0x60] sm:$0xf]
  %v57 = vld [vmem:[%s1 + $0x64] sm:$0xf]
  %v58 = vld [vmem:[%s1 + $0x68] sm:$0xf]
  %v59 = vld [vmem:[%s1 + $0x6c] sm:$0xf]
  %v60 = vld [vmem:[%s1 + $0x70] sm:$0xf]
  %v61 = vld [vmem:[%s1 + $0x74] sm:$0xf]
  %v62 = vld [vmem:[%s1 + $0x78] sm:$0xf]
  %v63 = vld [vmem:[%s1 + $0x7c] sm:$0xf]
  %v64 = vld [vmem:[%s1 + $0x80] sm:$0xf]
  %v65 = vld [vmem:[%s1 + $0x84] sm:$0xf]
  %v66 = vld [vmem:[%s1 + $0x88] sm:$0xf]
  %v67 = vld [vmem:[%s1 + $0x8c] sm:$0xf]
  %v68 = vld [vmem:[%s1 + $0x90] sm:$0xf]
  %v69 = vld [vmem:[%s1 + $0x94] sm:$0xf]
  %v70 = vld [vmem:[%s1 + $0x98] sm:$0xf]
  %v71 = vld [vmem:[%s1 + $0x9c] sm:$0xf]
  %v72 = vld [vmem:[%s1 + $0xa0] sm:$0x3]
  %v93 = vunpack.c.l.b16 %v12
  %v94 = vunpack.c.h.b16 %v12
  %v95 = vunpack.c.l.b16 %v13
  %v96 = vunpack.c.l.b16 %v14
  %v97 = vunpack.c.h.b16 %v14
  %v98 = vunpack.c.l.b16 %v15
  %v99 = vunpack.c.l.b16 %v16
  %v100 = vunpack.c.h.b16 %v16
  %v101 = vunpack.c.l.b16 %v17
  %v102 = vunpack.c.l.b16 %v18
  %v103 = vunpack.c.h.b16 %v18
  %v104 = vunpack.c.l.b16 %v19
  %v105 = vunpack.c.l.b16 %v20
  %v106 = vunpack.c.h.b16 %v20
  %v107 = vunpack.c.l.b16 %v21
  %v108 = vunpack.c.l.b16 %v22
  %v109 = vunpack.c.h.b16 %v22
  %v110 = vunpack.c.l.b16 %v23
  %v111 = vunpack.c.l.b16 %v24
  %v112 = vunpack.c.h.b16 %v24
  %v113 = vunpack.c.l.b16 %v25
  %v114 = vunpack.c.l.b16 %v26
  %v115 = vunpack.c.h.b16 %v26
  %v116 = vunpack.c.l.b16 %v27
  %v117 = vunpack.c.l.b16 %v28
  %v118 = vunpack.c.h.b16 %v28
  %v119 = vunpack.c.l.b16 %v29
  %v120 = vunpack.c.l.b16 %v30
  %v121 = vunpack.c.h.b16 %v30
  %v122 = vunpack.c.l.b16 %v31
  %v123 = vpack.c.b16 %v96, %v93
  %v124 = vpack.c.b16 %v97, %v94
  %v125 = vpack.c.b16 %v98, %v95
  %v126 = vpack.c.b16 %v102, %v99
  %v127 = vpack.c.b16 %v103, %v100
  %v128 = vpack.c.b16 %v104, %v101
  %v129 = vpack.c.b16 %v108, %v105
  %v130 = vpack.c.b16 %v109, %v106
  %v131 = vpack.c.b16 %v110, %v107
  %v132 = vpack.c.b16 %v114, %v111
  %v133 = vpack.c.b16 %v115, %v112
  %v134 = vpack.c.b16 %v116, %v113
  %v135 = vpack.c.b16 %v120, %v117
  %v136 = vpack.c.b16 %v121, %v118
  %v137 = vpack.c.b16 %v122, %v119
  %v189 = vunpack.c.l.b16 %v32
  %v190 = vunpack.c.l.b16 %v33
  %v191 = vunpack.c.l.b16 %v34
  %v192 = vunpack.c.l.b16 %v35
  %v193 = vunpack.c.l.b16 %v36
  %v194 = vunpack.c.l.b16 %v37
  %v195 = vunpack.c.l.b16 %v38
  %v196 = vunpack.c.l.b16 %v39
  %v197 = vunpack.c.l.b16 %v40
  %v198 = vunpack.c.l.b16 %v41
  %v199 = vunpack.c.l.b16 %v42
  %v200 = vunpack.c.l.b16 %v43
  %v201 = vunpack.c.l.b16 %v44
  %v202 = vunpack.c.l.b16 %v45
  %v203 = vunpack.c.l.b16 %v46
  %v204 = vunpack.c.l.b16 %v47
  %v205 = vunpack.c.l.b16 %v48
  %v206 = vunpack.c.l.b16 %v49
  %v207 = vunpack.c.l.b16 %v50
  %v208 = vunpack.c.l.b16 %v51
  %v209 = vunpack.c.l.b16 %v52
  %v210 = vunpack.c.l.b16 %v53
  %v211 = vunpack.c.l.b16 %v54
  %v212 = vunpack.c.l.b16 %v55
  %v213 = vunpack.c.l.b16 %v56
  %v214 = vunpack.c.l.b16 %v57
  %v215 = vunpack.c.l.b16 %v58
  %v216 = vunpack.c.l.b16 %v59
  %v217 = vunpack.c.l.b16 %v60
  %v218 = vunpack.c.l.b16 %v61
  %v219 = vunpack.c.l.b16 %v62
  %v220 = vunpack.c.l.b16 %v63
  %v221 = vunpack.c.l.b16 %v64
  %v222 = vunpack.c.l.b16 %v65
  %v223 = vunpack.c.l.b16 %v66
  %v224 = vunpack.c.l.b16 %v67
  %v225 = vunpack.c.l.b16 %v68
  %v226 = vunpack.c.l.b16 %v69
  %v227 = vunpack.c.l.b16 %v70
  %v228 = vunpack.c.l.b16 %v71
  %v229 = vunpack.c.l.b16 %v72
  %v230 = vpack.c.b16 %v190, %v189
  %v231 = vpack.c.b16 %v192, %v191
  %v232 = vpack.c.b16 %v194, %v193
  %v233 = vpack.c.b16 %v196, %v195
  %v234 = vpack.c.b16 %v198, %v197
  %v235 = vpack.c.b16 %v200, %v199
  %v236 = vpack.c.b16 %v202, %v201
  %v237 = vpack.c.b16 %v204, %v203
  %v238 = vpack.c.b16 %v206, %v205
  %v239 = vpack.c.b16 %v208, %v207
  %v240 = vpack.c.b16 %v210, %v209
  %v241 = vpack.c.b16 %v212, %v211
  %v242 = vpack.c.b16 %v214, %v213
  %v243 = vpack.c.b16 %v216, %v215
  %v244 = vpack.c.b16 %v218, %v217
  %v245 = vpack.c.b16 %v220, %v219
  %v246 = vpack.c.b16 %v222, %v221
  %v247 = vpack.c.b16 %v224, %v223
  %v248 = vpack.c.b16 %v226, %v225
  %v249 = vpack.c.b16 %v228, %v227
  %v250 = vpack.c.b16 %v229, %v229
  %vm271 = vcmask 556032
  %v273 = vsel %vm271, %v125, 0
  %v276 = vsel %vm271, %v128, 0
  %v279 = vsel %vm271, %v131, 0
  %v282 = vsel %vm271, %v134, 0
  %v285 = vsel %vm271, %v137, 0
  %vm287 = vcmask 1041408
  %v289 = vsel %vm287, %v250, 0
  %291 = vmatprep.subr.bf16.mxu0 0
  %292 = vmatpush1.bf16.msra.mxu0 %v237
  %293 = vmatprep.subr.bf16.mxu0 0
  %294 = vmatpush1.bf16.msra.mxu0 %v236
  %295 = vmatprep.subr.bf16.mxu0 0
  %296 = vmatpush1.bf16.msra.mxu0 %v235
  %297 = vmatprep.subr.bf16.mxu0 0
  %298 = vmatpush1.bf16.msra.mxu0 %v234
  %299 = vmatprep.subr.bf16.mxu0 0
  %300 = vmatpush1.bf16.msra.mxu0 %v233
  %301 = vmatprep.subr.bf16.mxu0 0
  %302 = vmatpush1.bf16.msra.mxu0 %v232
  %303 = vmatprep.subr.bf16.mxu0 0
  %304 = vmatpush1.bf16.msra.mxu0 %v231
  %305 = vmatprep.subr.bf16.mxu0 0
  %306 = vmatpush1.bf16.msra.mxu0 %v230
  %307 = vmatprep.subr.bf16.mxu0 0
  %308 = vmatpush2.bf16.msra.mxu0 %v245
  %309 = vmatprep.subr.bf16.mxu0 0
  %310 = vmatpush2.bf16.msra.mxu0 %v244
  %311 = vmatprep.subr.bf16.mxu0 0
  %312 = vmatpush2.bf16.msra.mxu0 %v243
  %313 = vmatprep.subr.bf16.mxu0 0
  %314 = vmatpush2.bf16.msra.mxu0 %v242
  %315 = vmatprep.subr.bf16.mxu0 0
  %316 = vmatpush2.bf16.msra.mxu0 %v241
  %317 = vmatprep.subr.bf16.mxu0 0
  %318 = vmatpush2.bf16.msra.mxu0 %v240
  %319 = vmatprep.subr.bf16.mxu0 0
  %320 = vmatpush2.bf16.msra.mxu0 %v239
  %321 = vmatprep.subr.bf16.mxu0 0
  %322 = vmatpush2.bf16.msra.mxu0 %v238
  %323 = vmatprep.mubr.bf16.mxu0 %v124
  %324 = vmatmul.mubr.bf16.gmra.mxu0 %v123
  %v325 = vpop.f32.mrf.mxu0
  %v326 = vadd.f32 0.0, %v325
  %v327 = vpop.f32.mrf.mxu0
  %v328 = vpop.f32.mrf.mxu0
  %v329 = vadd.f32 0.0, %v328
  %v330 = vpop.f32.mrf.mxu0
  %331 = vmatprep.mubr.bf16.mxu0 %v127
  %332 = vmatmul.mubr.bf16.gmra.mxu0 %v126
  %v333 = vpop.f32.mrf.mxu0
  %v334 = vadd.f32 0.0, %v333
  %v335 = vpop.f32.mrf.mxu0
  %v336 = vpop.f32.mrf.mxu0
  %v337 = vadd.f32 0.0, %v336
  %v338 = vpop.f32.mrf.mxu0
  %339 = vmatprep.mubr.bf16.mxu0 %v130
  %340 = vmatmul.mubr.bf16.gmra.mxu0 %v129
  %v341 = vpop.f32.mrf.mxu0
  %v342 = vadd.f32 0.0, %v341
  %v343 = vpop.f32.mrf.mxu0
  %v344 = vpop.f32.mrf.mxu0
  %v345 = vadd.f32 0.0, %v344
  %v346 = vpop.f32.mrf.mxu0
  %347 = vmatprep.mubr.bf16.mxu0 %v133
  %348 = vmatmul.mubr.bf16.gmra.mxu0 %v132
  %v349 = vpop.f32.mrf.mxu0
  %v350 = vadd.f32 0.0, %v349
  %v351 = vpop.f32.mrf.mxu0
  %v352 = vpop.f32.mrf.mxu0
  %v353 = vadd.f32 0.0, %v352
  %v354 = vpop.f32.mrf.mxu0
  %355 = vmatprep.mubr.bf16.mxu0 %v136
  %356 = vmatmul.mubr.bf16.gmra.mxu0 %v135
  %v357 = vpop.f32.mrf.mxu0
  %v358 = vadd.f32 0.0, %v357
  %v359 = vpop.f32.mrf.mxu0
  %v360 = vpop.f32.mrf.mxu0
  %v361 = vadd.f32 0.0, %v360
  %v362 = vpop.f32.mrf.mxu0
  %363 = vdwg.mxu0
  %364 = vmatprep.subr.bf16.mxu0 0
  %365 = vmatpush1.bf16.msra.mxu0 0
  %366 = vmatprep.subr.bf16.mxu0 0
  %367 = vmatpush1.bf16.msra.mxu0 0
  %368 = vmatprep.subr.bf16.mxu0 0
  %369 = vmatpush1.bf16.msra.mxu0 0
  %370 = vmatprep.subr.bf16.mxu0 0
  %371 = vmatpush1.bf16.msra.mxu0 %v289
  %372 = vmatprep.subr.bf16.mxu0 0
  %373 = vmatpush1.bf16.msra.mxu0 %v249
  %374 = vmatprep.subr.bf16.mxu0 0
  %375 = vmatpush1.bf16.msra.mxu0 %v248
  %376 = vmatprep.subr.bf16.mxu0 0
  %377 = vmatpush1.bf16.msra.mxu0 %v247
  %378 = vmatprep.subr.bf16.mxu0 0
  %379 = vmatpush1.bf16.msra.mxu0 %v246
  %380 = vmatprep.subr.bf16.mxu0 0
  %381 = vmatpush2.bf16.msra.mxu0 0
  %382 = vmatprep.subr.bf16.mxu0 0
  %383 = vmatpush2.bf16.msra.mxu0 0
  %384 = vmatprep.subr.bf16.mxu0 0
  %385 = vmatpush2.bf16.msra.mxu0 0
  %386 = vmatprep.subr.bf16.mxu0 0
  %387 = vmatpush2.bf16.msra.mxu0 0
  %388 = vmatprep.subr.bf16.mxu0 0
  %389 = vmatpush2.bf16.msra.mxu0 0
  %390 = vmatprep.subr.bf16.mxu0 0
  %391 = vmatpush2.bf16.msra.mxu0 0
  %392 = vmatprep.subr.bf16.mxu0 0
  %393 = vmatpush2.bf16.msra.mxu0 0
  %394 = vmatprep.subr.bf16.mxu0 0
  %395 = vmatpush2.bf16.msra.mxu0 0
  %396 = vmatprep.mubr.bf16.mxu0 0
  %397 = vmatmul.mubr.bf16.gmra.mxu0 %v273
  %v398 = vpop.f32.mrf.mxu0
  %v399 = vadd.f32 %v326, %v398
  %v400 = vpop.f32.mrf.mxu0
  %v401 = vpop.f32.mrf.mxu0
  %v402 = vadd.f32 %v329, %v401
  %v403 = vpop.f32.mrf.mxu0
  %404 = vmatprep.mubr.bf16.mxu0 0
  %405 = vmatmul.mubr.bf16.gmra.mxu0 %v276
  %v406 = vpop.f32.mrf.mxu0
  %v407 = vadd.f32 %v334, %v406
  %v408 = vpop.f32.mrf.mxu0
  %v409 = vpop.f32.mrf.mxu0
  %v410 = vadd.f32 %v337, %v409
  %v411 = vpop.f32.mrf.mxu0
  %412 = vmatprep.mubr.bf16.mxu0 0
  %413 = vmatmul.mubr.bf16.gmra.mxu0 %v279
  %v414 = vpop.f32.mrf.mxu0
  %v415 = vadd.f32 %v342, %v414
  %v416 = vpop.f32.mrf.mxu0
  %v417 = vpop.f32.mrf.mxu0
  %v418 = vadd.f32 %v345, %v417
  %v419 = vpop.f32.mrf.mxu0
  %420 = vmatprep.mubr.bf16.mxu0 0
  %421 = vmatmul.mubr.bf16.gmra.mxu0 %v282
  %v422 = vpop.f32.mrf.mxu0
  %v423 = vadd.f32 %v350, %v422
  %v424 = vpop.f32.mrf.mxu0
  %v425 = vpop.f32.mrf.mxu0
  %v426 = vadd.f32 %v353, %v425
  %v427 = vpop.f32.mrf.mxu0
  %428 = vmatprep.mubr.bf16.mxu0 0
  %429 = vmatmul.mubr.bf16.gmra.mxu0 %v285
  %v430 = vpop.f32.mrf.mxu0
  %v431 = vadd.f32 %v358, %v430
  %v432 = vpop.f32.mrf.mxu0
  %v433 = vpop.f32.mrf.mxu0
  %v434 = vadd.f32 %v361, %v433
  %v435 = vpop.f32.mrf.mxu0
  %436 = vdwg.mxu0
  %v437 = vadd.f32 %v399, %v402
  %v438 = vadd.f32 %v437, %v407
  %v439 = vadd.f32 %v438, %v410
  %v440 = vadd.f32 %v439, %v415
  %v441 = vadd.f32 %v440, %v418
  %v442 = vadd.f32 %v441, %v423
  %v443 = vadd.f32 %v442, %v426
  %v444 = vadd.f32 %v443, %v431
  %v445 = vadd.f32 %v444, %v434
  %v446 = vrot.slane %v445, 4
  %v447 = vadd.f32 %v445, %v446
  %v448 = vrot.slane %v447, 2
  %v449 = vadd.f32 %v447, %v448
  %v450 = vrot.slane %v449, 1
  %v451 = vadd.f32 %v449, %v450
  %v452 = vmul.f32 %v451, 0.013888889
  %v453 = vmul.f32 %v399, %v399
  %v454 = vmul.f32 %v402, %v402
  %v455 = vmul.f32 %v407, %v407
  %v456 = vmul.f32 %v410, %v410
  %v457 = vmul.f32 %v415, %v415
  %v458 = vmul.f32 %v418, %v418
  %v459 = vmul.f32 %v423, %v423
  %v460 = vmul.f32 %v426, %v426
  %v461 = vmul.f32 %v431, %v431
  %v462 = vmul.f32 %v434, %v434
  %v463 = vadd.f32 %v453, %v454
  %v464 = vadd.f32 %v463, %v455
  %v465 = vadd.f32 %v464, %v456
  %v466 = vadd.f32 %v465, %v457
  %v467 = vadd.f32 %v466, %v458
  %v468 = vadd.f32 %v467, %v459
  %v469 = vadd.f32 %v468, %v460
  %v470 = vadd.f32 %v469, %v461
  %v471 = vadd.f32 %v470, %v462
  %v472 = vrot.slane %v471, 4
  %v473 = vadd.f32 %v471, %v472
  %v474 = vrot.slane %v473, 2
  %v475 = vadd.f32 %v473, %v474
  %v476 = vrot.slane %v475, 1
  %v477 = vadd.f32 %v475, %v476
  %v478 = vmul.f32 %v477, 0.013888889
  %v479 = vmul.f32 %v452, %v452
  %v480 = vsub.f32 %v478, %v479
  %v481 = vmax.f32 %v480, 0.0
  %v482 = vadd.f32 %v481, 1e-05
  %v483 = vrsqrt.pop %v482
  %v484 = vsub.f32 0.0, %v452
  %v485 = vmul.f32 %v484, %v483
  %v486 = vmul.f32 %v399, %v483
  %v487 = vmul.f32 %v402, %v483
  %v488 = vmul.f32 %v407, %v483
  %v489 = vmul.f32 %v410, %v483
  %v490 = vmul.f32 %v415, %v483
  %v491 = vmul.f32 %v418, %v483
  %v492 = vmul.f32 %v423, %v483
  %v493 = vmul.f32 %v426, %v483
  %v494 = vmul.f32 %v431, %v483
  %v495 = vmul.f32 %v434, %v483
  %v496 = vadd.f32 %v486, %v485
  %v497 = vadd.f32 %v487, %v485
  %v498 = vadd.f32 %v488, %v485
  %v499 = vadd.f32 %v489, %v485
  %v500 = vadd.f32 %v490, %v485
  %v501 = vadd.f32 %v491, %v485
  %v502 = vadd.f32 %v492, %v485
  %v503 = vadd.f32 %v493, %v485
  %v504 = vadd.f32 %v494, %v485
  %v505 = vadd.f32 %v495, %v485
  %v506 = vmax.f32 %v496, 0.0
  %v507 = vmax.f32 %v497, 0.0
  %v508 = vmax.f32 %v498, 0.0
  %v509 = vmax.f32 %v499, 0.0
  %v510 = vmax.f32 %v500, 0.0
  %v511 = vmax.f32 %v501, 0.0
  %v512 = vmax.f32 %v502, 0.0
  %v513 = vmax.f32 %v503, 0.0
  %v514 = vmax.f32 %v504, 0.0
  %v515 = vmax.f32 %v505, 0.0
  %v516 = vpack.c.bf16 %v507, %v506
  %v517 = vpack.c.bf16 %v509, %v508
  %v518 = vpack.c.bf16 %v511, %v510
  %v519 = vpack.c.bf16 %v513, %v512
  %v520 = vpack.c.bf16 %v515, %v514
  %v526 = vunpack.c.l.b16 %v516
  %v527 = vunpack.c.h.b16 %v516
  %v528 = vunpack.c.l.b16 %v517
  %v529 = vunpack.c.h.b16 %v517
  %v530 = vunpack.c.l.b16 %v518
  %v531 = vunpack.c.h.b16 %v518
  %v532 = vunpack.c.l.b16 %v519
  %v533 = vunpack.c.h.b16 %v519
  %v534 = vunpack.c.l.b16 %v520
  %v535 = vunpack.c.h.b16 %v520
  %v536 = vpack.c.b16 %v526, %v526
  %v537 = vpack.c.b16 %v527, %v527
  %v538 = vpack.c.b16 %v528, %v528
  %v539 = vpack.c.b16 %v529, %v529
  %v540 = vpack.c.b16 %v530, %v530
  %v541 = vpack.c.b16 %v531, %v531
  %v542 = vpack.c.b16 %v532, %v532
  %v543 = vpack.c.b16 %v533, %v533
  %v544 = vpack.c.b16 %v534, %v534
  %v545 = vpack.c.b16 %v535, %v535
  %556 = vst [vmem:[%s2] sm:$0xf] %v536
  %557 = vst [vmem:[%s2 + $0x4] sm:$0xf] %v537
  %558 = vst [vmem:[%s2 + $0x8] sm:$0xf] %v538
  %559 = vst [vmem:[%s2 + $0xc] sm:$0xf] %v539
  %560 = vst [vmem:[%s2 + $0x10] sm:$0xf] %v540
  %561 = vst [vmem:[%s2 + $0x14] sm:$0xf] %v541
  %562 = vst [vmem:[%s2 + $0x18] sm:$0xf] %v542
  %563 = vst [vmem:[%s2 + $0x1c] sm:$0xf] %v543
  %564 = vst [vmem:[%s2 + $0x20] sm:$0xf] %v544
  %565 = vst [vmem:[%s2 + $0x24] sm:$0xf] %v545
  // Predicated region
  $region10: #{cnn5max_forward.7} parent=0 // pred_check
    _
  $region11: #{cnn5max_forward.7} parent=0 // pred_check_branch
    %567 = sbr.rel (0) target = $region13
  $region12: #{cnn5max_forward.7} parent=0 // pred_region
    _
  $region13: #{cnn5max_forward.7} parent=0 // pred_fallthru
    _
  // Predicated region
  $region14: #{cnn5max_forward.7} parent=0 // pred_check
    _
  $region15: #{cnn5max_forward.7} parent=0 // pred_check_branch
    %569 = sbr.rel (0) target = $region17
  $region16: #{cnn5max_forward.7} parent=0 // pred_region
    _
  $region17: #{cnn5max_forward.7} parent=0 // pred_fallthru
    _

// kernel: cnn5max_forward.8
$region0: #{cnn5max_forward.8}
  #allocation0 [shape = 'u32[]', space=smem, size = 0x4, offset = 0x4, fixed_abs, tag = 'smem constant byte address 0x4 - core index']
  #allocation1 [shape = 'u32[144,128]{1,0:T(1,128)}', space=vmem, size = 0x12000, scoped, tag = 'internal scratch']
  %s0 = inlined_call_operand.vmem [shape: bf16[32,432], index: 0, kind: input, shape index: {}]
  %s1 = inlined_call_operand.vmem [shape: bf16[432,128], index: 1, kind: input, shape index: {}]
  %s2 = inlined_call_operand.vmem [shape: bf16[32,128], index: 2, kind: output, shape index: {}]
  %s3 = sld [smem:[#allocation0]]
  $region18: #{cnn5max_forward.8} parent=0
    _
  %s5 = ssub.s32 1, %s3
  %s6 = scalar_select 0, %s5, %s3
  // Predicated region
  $region2: #{cnn5max_forward.8} parent=0 // pred_check
    _
  $region3: #{cnn5max_forward.8} parent=0 // pred_check_branch
    %8 = sbr.rel (0) target = $region5
  $region4: #{cnn5max_forward.8} parent=0 // pred_region
    _
  $region5: #{cnn5max_forward.8} parent=0 // pred_fallthru
    _
  // Predicated region
  $region6: #{cnn5max_forward.8} parent=0 // pred_check
    _
  $region7: #{cnn5max_forward.8} parent=0 // pred_check_branch
    %10 = sbr.rel (0) target = $region9
  $region8: #{cnn5max_forward.8} parent=0 // pred_region
    _
  $region9: #{cnn5max_forward.8} parent=0 // pred_fallthru
    _
  %v12 = vld [vmem:[%s0] sm:$0xff]
  %v13 = vld [vmem:[%s0 + $0x8] sm:$0xff]
  %v14 = vld [vmem:[%s0 + $0x10] sm:$0xff]
  %v15 = vld [vmem:[%s0 + $0x18] sm:$0xff]
  %v16 = vld [vmem:[%s0 + $0x20] sm:$0xff]
  %v17 = vld [vmem:[%s0 + $0x28] sm:$0xff]
  %v18 = vld [vmem:[%s0 + $0x30] sm:$0xff]
  %v19 = vld [vmem:[%s0 + $0x38] sm:$0xff]
  %v20 = vld [vmem:[%s1] sm:$0xf]
  %v21 = vld [vmem:[%s1 + $0x4] sm:$0xf]
  %v22 = vld [vmem:[%s1 + $0x8] sm:$0xf]
  %v23 = vld [vmem:[%s1 + $0xc] sm:$0xf]
  %v24 = vld [vmem:[%s1 + $0x10] sm:$0xf]
  %v25 = vld [vmem:[%s1 + $0x14] sm:$0xf]
  %v26 = vld [vmem:[%s1 + $0x18] sm:$0xf]
  %v27 = vld [vmem:[%s1 + $0x1c] sm:$0xf]
  %v28 = vld [vmem:[%s1 + $0x20] sm:$0xf]
  %v29 = vld [vmem:[%s1 + $0x24] sm:$0xf]
  %v30 = vld [vmem:[%s1 + $0x28] sm:$0xf]
  %v31 = vld [vmem:[%s1 + $0x2c] sm:$0xf]
  %v32 = vld [vmem:[%s1 + $0x30] sm:$0xf]
  %v33 = vld [vmem:[%s1 + $0x34] sm:$0xf]
  %v34 = vld [vmem:[%s1 + $0x38] sm:$0xf]
  %v35 = vld [vmem:[%s1 + $0x3c] sm:$0xf]
  %v36 = vld [vmem:[%s1 + $0x40] sm:$0xf]
  %v37 = vld [vmem:[%s1 + $0x44] sm:$0xf]
  %v38 = vld [vmem:[%s1 + $0x48] sm:$0xf]
  %v39 = vld [vmem:[%s1 + $0x4c] sm:$0xf]
  %v40 = vld [vmem:[%s1 + $0x50] sm:$0xf]
  %v41 = vld [vmem:[%s1 + $0x54] sm:$0xf]
  %v42 = vld [vmem:[%s1 + $0x58] sm:$0xf]
  %v43 = vld [vmem:[%s1 + $0x5c] sm:$0xf]
  %v44 = vld [vmem:[%s1 + $0x60] sm:$0xf]
  %v45 = vld [vmem:[%s1 + $0x64] sm:$0xf]
  %v46 = vld [vmem:[%s1 + $0x68] sm:$0xf]
  %v47 = vld [vmem:[%s1 + $0x6c] sm:$0xf]
  %v48 = vld [vmem:[%s1 + $0x70] sm:$0xf]
  %v49 = vld [vmem:[%s1 + $0x74] sm:$0xf]
  %v50 = vld [vmem:[%s1 + $0x78] sm:$0xf]
  %v51 = vld [vmem:[%s1 + $0x7c] sm:$0xf]
  %v52 = vld [vmem:[%s1 + $0x80] sm:$0xf]
  %v53 = vld [vmem:[%s1 + $0x84] sm:$0xf]
  %v54 = vld [vmem:[%s1 + $0x88] sm:$0xf]
  %v55 = vld [vmem:[%s1 + $0x8c] sm:$0xf]
  %v56 = vld [vmem:[%s1 + $0x90] sm:$0xf]
  %v57 = vld [vmem:[%s1 + $0x94] sm:$0xf]
  %v58 = vld [vmem:[%s1 + $0x98] sm:$0xf]
  %v59 = vld [vmem:[%s1 + $0x9c] sm:$0xf]
  %v60 = vld [vmem:[%s1 + $0xa0] sm:$0xf]
  %v61 = vld [vmem:[%s1 + $0xa4] sm:$0xf]
  %v62 = vld [vmem:[%s1 + $0xa8] sm:$0xf]
  %v63 = vld [vmem:[%s1 + $0xac] sm:$0xf]
  %v64 = vld [vmem:[%s1 + $0xb0] sm:$0xf]
  %v65 = vld [vmem:[%s1 + $0xb4] sm:$0xf]
  %v66 = vld [vmem:[%s1 + $0xb8] sm:$0xf]
  %v67 = vld [vmem:[%s1 + $0xbc] sm:$0xf]
  %v68 = vld [vmem:[%s1 + $0xc0] sm:$0xf]
  %v69 = vld [vmem:[%s1 + $0xc4] sm:$0xf]
  %v70 = vld [vmem:[%s1 + $0xc8] sm:$0xf]
  %v71 = vld [vmem:[%s1 + $0xcc] sm:$0xf]
  %v72 = vld [vmem:[%s1 + $0xd0] sm:$0xf]
  %v73 = vld [vmem:[%s1 + $0xd4] sm:$0xf]
  %v82 = vunpack.c.l.b16 %v12
  %v83 = vunpack.c.h.b16 %v12
  %v84 = vunpack.c.l.b16 %v13
  %v85 = vunpack.c.h.b16 %v13
  %v86 = vunpack.c.l.b16 %v14
  %v87 = vunpack.c.h.b16 %v14
  %v88 = vunpack.c.l.b16 %v15
  %v89 = vunpack.c.h.b16 %v15
  %v90 = vunpack.c.l.b16 %v16
  %v91 = vunpack.c.h.b16 %v16
  %v92 = vunpack.c.l.b16 %v17
  %v93 = vunpack.c.h.b16 %v17
  %v94 = vunpack.c.l.b16 %v18
  %v95 = vunpack.c.h.b16 %v18
  %v96 = vunpack.c.l.b16 %v19
  %v97 = vunpack.c.h.b16 %v19
  %v98 = vpack.c.b16 %v86, %v82
  %v99 = vpack.c.b16 %v87, %v83
  %v100 = vpack.c.b16 %v88, %v84
  %v101 = vpack.c.b16 %v89, %v85
  %v102 = vpack.c.b16 %v94, %v90
  %v103 = vpack.c.b16 %v95, %v91
  %v104 = vpack.c.b16 %v96, %v92
  %v105 = vpack.c.b16 %v97, %v93
  %v166 = vunpack.c.l.b16 %v20
  %v167 = vunpack.c.l.b16 %v21
  %v168 = vunpack.c.l.b16 %v22
  %v169 = vunpack.c.l.b16 %v23
  %v170 = vunpack.c.l.b16 %v24
  %v171 = vunpack.c.l.b16 %v25
  %v172 = vunpack.c.l.b16 %v26
  %v173 = vunpack.c.l.b16 %v27
  %v174 = vunpack.c.l.b16 %v28
  %v175 = vunpack.c.l.b16 %v29
  %v176 = vunpack.c.l.b16 %v30
  %v177 = vunpack.c.l.b16 %v31
  %v178 = vunpack.c.l.b16 %v32
  %v179 = vunpack.c.l.b16 %v33
  %v180 = vunpack.c.l.b16 %v34
  %v181 = vunpack.c.l.b16 %v35
  %v182 = vunpack.c.l.b16 %v36
  %v183 = vunpack.c.l.b16 %v37
  %v184 = vunpack.c.l.b16 %v38
  %v185 = vunpack.c.l.b16 %v39
  %v186 = vunpack.c.l.b16 %v40
  %v187 = vunpack.c.l.b16 %v41
  %v188 = vunpack.c.l.b16 %v42
  %v189 = vunpack.c.l.b16 %v43
  %v190 = vunpack.c.l.b16 %v44
  %v191 = vunpack.c.l.b16 %v45
  %v192 = vunpack.c.l.b16 %v46
  %v193 = vunpack.c.l.b16 %v47
  %v194 = vunpack.c.l.b16 %v48
  %v195 = vunpack.c.l.b16 %v49
  %v196 = vunpack.c.l.b16 %v50
  %v197 = vunpack.c.l.b16 %v51
  %v198 = vunpack.c.l.b16 %v52
  %v199 = vunpack.c.l.b16 %v53
  %v200 = vunpack.c.l.b16 %v54
  %v201 = vunpack.c.l.b16 %v55
  %v202 = vunpack.c.l.b16 %v56
  %v203 = vunpack.c.l.b16 %v57
  %v204 = vunpack.c.l.b16 %v58
  %v205 = vunpack.c.l.b16 %v59
  %v206 = vunpack.c.l.b16 %v60
  %v207 = vunpack.c.l.b16 %v61
  %v208 = vunpack.c.l.b16 %v62
  %v209 = vunpack.c.l.b16 %v63
  %v210 = vunpack.c.l.b16 %v64
  %v211 = vunpack.c.l.b16 %v65
  %v212 = vunpack.c.l.b16 %v66
  %v213 = vunpack.c.l.b16 %v67
  %v214 = vunpack.c.l.b16 %v68
  %v215 = vunpack.c.l.b16 %v69
  %v216 = vunpack.c.l.b16 %v70
  %v217 = vunpack.c.l.b16 %v71
  %v218 = vunpack.c.l.b16 %v72
  %v219 = vunpack.c.l.b16 %v73
  %v220 = vpack.c.b16 %v167, %v166
  %v221 = vpack.c.b16 %v169, %v168
  %v222 = vpack.c.b16 %v171, %v170
  %v223 = vpack.c.b16 %v173, %v172
  %v224 = vpack.c.b16 %v175, %v174
  %v225 = vpack.c.b16 %v177, %v176
  %v226 = vpack.c.b16 %v179, %v178
  %v227 = vpack.c.b16 %v181, %v180
  %v228 = vpack.c.b16 %v183, %v182
  %v229 = vpack.c.b16 %v185, %v184
  %v230 = vpack.c.b16 %v187, %v186
  %v231 = vpack.c.b16 %v189, %v188
  %v232 = vpack.c.b16 %v191, %v190
  %v233 = vpack.c.b16 %v193, %v192
  %v234 = vpack.c.b16 %v195, %v194
  %v235 = vpack.c.b16 %v197, %v196
  %v236 = vpack.c.b16 %v199, %v198
  %v237 = vpack.c.b16 %v201, %v200
  %v238 = vpack.c.b16 %v203, %v202
  %v239 = vpack.c.b16 %v205, %v204
  %v240 = vpack.c.b16 %v207, %v206
  %v241 = vpack.c.b16 %v209, %v208
  %v242 = vpack.c.b16 %v211, %v210
  %v243 = vpack.c.b16 %v213, %v212
  %v244 = vpack.c.b16 %v215, %v214
  %v245 = vpack.c.b16 %v217, %v216
  %v246 = vpack.c.b16 %v219, %v218
  %vm274 = vcmask 392192
  %v276 = vsel %vm274, %v101, 0
  %v279 = vsel %vm274, %v105, 0
  %281 = vmatprep.subr.bf16.mxu0 0
  %282 = vmatpush1.bf16.msra.mxu0 %v227
  %283 = vmatprep.subr.bf16.mxu0 0
  %284 = vmatpush1.bf16.msra.mxu0 %v226
  %285 = vmatprep.subr.bf16.mxu0 0
  %286 = vmatpush1.bf16.msra.mxu0 %v225
  %287 = vmatprep.subr.bf16.mxu0 0
  %288 = vmatpush1.bf16.msra.mxu0 %v224
  %289 = vmatprep.subr.bf16.mxu0 0
  %290 = vmatpush1.bf16.msra.mxu0 %v223
  %291 = vmatprep.subr.bf16.mxu0 0
  %292 = vmatpush1.bf16.msra.mxu0 %v222
  %293 = vmatprep.subr.bf16.mxu0 0
  %294 = vmatpush1.bf16.msra.mxu0 %v221
  %295 = vmatprep.subr.bf16.mxu0 0
  %296 = vmatpush1.bf16.msra.mxu0 %v220
  %297 = vmatprep.subr.bf16.mxu0 0
  %298 = vmatpush2.bf16.msra.mxu0 %v235
  %299 = vmatprep.subr.bf16.mxu0 0
  %300 = vmatpush2.bf16.msra.mxu0 %v234
  %301 = vmatprep.subr.bf16.mxu0 0
  %302 = vmatpush2.bf16.msra.mxu0 %v233
  %303 = vmatprep.subr.bf16.mxu0 0
  %304 = vmatpush2.bf16.msra.mxu0 %v232
  %305 = vmatprep.subr.bf16.mxu0 0
  %306 = vmatpush2.bf16.msra.mxu0 %v231
  %307 = vmatprep.subr.bf16.mxu0 0
  %308 = vmatpush2.bf16.msra.mxu0 %v230
  %309 = vmatprep.subr.bf16.mxu0 0
  %310 = vmatpush2.bf16.msra.mxu0 %v229
  %311 = vmatprep.subr.bf16.mxu0 0
  %312 = vmatpush2.bf16.msra.mxu0 %v228
  %313 = vmatprep.mubr.bf16.mxu0 %v99
  %314 = vmatmul.mubr.bf16.gmra.mxu0 %v98
  %v315 = vpop.f32.mrf.mxu0
  %v316 = vadd.f32 0.0, %v315
  %v317 = vpop.f32.mrf.mxu0
  %v318 = vpop.f32.mrf.mxu0
  %v319 = vadd.f32 0.0, %v318
  %v320 = vpop.f32.mrf.mxu0
  %321 = vmatprep.mubr.bf16.mxu0 %v103
  %322 = vmatmul.mubr.bf16.gmra.mxu0 %v102
  %v323 = vpop.f32.mrf.mxu0
  %v324 = vadd.f32 0.0, %v323
  %v325 = vpop.f32.mrf.mxu0
  %v326 = vpop.f32.mrf.mxu0
  %v327 = vadd.f32 0.0, %v326
  %v328 = vpop.f32.mrf.mxu0
  %329 = vdwg.mxu0
  %330 = vmatprep.subr.bf16.mxu0 0
  %331 = vmatpush1.bf16.msra.mxu0 %v243
  %332 = vmatprep.subr.bf16.mxu0 0
  %333 = vmatpush1.bf16.msra.mxu0 %v242
  %334 = vmatprep.subr.bf16.mxu0 0
  %335 = vmatpush1.bf16.msra.mxu0 %v241
  %336 = vmatprep.subr.bf16.mxu0 0
  %337 = vmatpush1.bf16.msra.mxu0 %v240
  %338 = vmatprep.subr.bf16.mxu0 0
  %339 = vmatpush1.bf16.msra.mxu0 %v239
  %340 = vmatprep.subr.bf16.mxu0 0
  %341 = vmatpush1.bf16.msra.mxu0 %v238
  %342 = vmatprep.subr.bf16.mxu0 0
  %343 = vmatpush1.bf16.msra.mxu0 %v237
  %344 = vmatprep.subr.bf16.mxu0 0
  %345 = vmatpush1.bf16.msra.mxu0 %v236
  %346 = vmatprep.subr.bf16.mxu0 0
  %347 = vmatpush2.bf16.msra.mxu0 0
  %348 = vmatprep.subr.bf16.mxu0 0
  %349 = vmatpush2.bf16.msra.mxu0 0
  %350 = vmatprep.subr.bf16.mxu0 0
  %351 = vmatpush2.bf16.msra.mxu0 0
  %352 = vmatprep.subr.bf16.mxu0 0
  %353 = vmatpush2.bf16.msra.mxu0 0
  %354 = vmatprep.subr.bf16.mxu0 0
  %355 = vmatpush2.bf16.msra.mxu0 0
  %356 = vmatprep.subr.bf16.mxu0 0
  %357 = vmatpush2.bf16.msra.mxu0 %v246
  %358 = vmatprep.subr.bf16.mxu0 0
  %359 = vmatpush2.bf16.msra.mxu0 %v245
  %360 = vmatprep.subr.bf16.mxu0 0
  %361 = vmatpush2.bf16.msra.mxu0 %v244
  %362 = vmatprep.mubr.bf16.mxu0 %v276
  %363 = vmatmul.mubr.bf16.gmra.mxu0 %v100
  %v364 = vpop.f32.mrf.mxu0
  %v365 = vadd.f32 %v316, %v364
  %v366 = vpop.f32.mrf.mxu0
  %v367 = vpop.f32.mrf.mxu0
  %v368 = vadd.f32 %v319, %v367
  %v369 = vpop.f32.mrf.mxu0
  %370 = vmatprep.mubr.bf16.mxu0 %v279
  %371 = vmatmul.mubr.bf16.gmra.mxu0 %v104
  %v372 = vpop.f32.mrf.mxu0
  %v373 = vadd.f32 %v324, %v372
  %v374 = vpop.f32.mrf.mxu0
  %v375 = vpop.f32.mrf.mxu0
  %v376 = vadd.f32 %v327, %v375
  %v377 = vpop.f32.mrf.mxu0
  %378 = vdwg.mxu0
  %v379 = vadd.f32 %v365, %v368
  %v380 = vadd.f32 %v379, %v373
  %v381 = vadd.f32 %v380, %v376
  %v382 = vrot.slane %v381, 4
  %v383 = vadd.f32 %v381, %v382
  %v384 = vrot.slane %v383, 2
  %v385 = vadd.f32 %v383, %v384
  %v386 = vrot.slane %v385, 1
  %v387 = vadd.f32 %v385, %v386
  %v388 = vmul.f32 %v387, 0.03125
  %v389 = vmul.f32 %v365, %v365
  %v390 = vmul.f32 %v368, %v368
  %v391 = vmul.f32 %v373, %v373
  %v392 = vmul.f32 %v376, %v376
  %v393 = vadd.f32 %v389, %v390
  %v394 = vadd.f32 %v393, %v391
  %v395 = vadd.f32 %v394, %v392
  %v396 = vrot.slane %v395, 4
  %v397 = vadd.f32 %v395, %v396
  %v398 = vrot.slane %v397, 2
  %v399 = vadd.f32 %v397, %v398
  %v400 = vrot.slane %v399, 1
  %v401 = vadd.f32 %v399, %v400
  %v402 = vmul.f32 %v401, 0.03125
  %v403 = vmul.f32 %v388, %v388
  %v404 = vsub.f32 %v402, %v403
  %v405 = vmax.f32 %v404, 0.0
  %v406 = vadd.f32 %v405, 1e-05
  %v407 = vrsqrt.pop %v406
  %v408 = vsub.f32 0.0, %v388
  %v409 = vmul.f32 %v408, %v407
  %v410 = vmul.f32 %v365, %v407
  %v411 = vmul.f32 %v368, %v407
  %v412 = vmul.f32 %v373, %v407
  %v413 = vmul.f32 %v376, %v407
  %v414 = vadd.f32 %v410, %v409
  %v415 = vadd.f32 %v411, %v409
  %v416 = vadd.f32 %v412, %v409
  %v417 = vadd.f32 %v413, %v409
  %v418 = vmax.f32 %v414, 0.0
  %v419 = vmax.f32 %v415, 0.0
  %v420 = vmax.f32 %v416, 0.0
  %v421 = vmax.f32 %v417, 0.0
  %v422 = vpack.c.bf16 %v419, %v418
  %v423 = vpack.c.bf16 %v421, %v420
  %v426 = vunpack.c.l.b16 %v422
  %v427 = vunpack.c.h.b16 %v422
  %v428 = vunpack.c.l.b16 %v423
  %v429 = vunpack.c.h.b16 %v423
  %v430 = vpack.c.b16 %v426, %v426
  %v431 = vpack.c.b16 %v427, %v427
  %v432 = vpack.c.b16 %v428, %v428
  %v433 = vpack.c.b16 %v429, %v429
  %438 = vst [vmem:[%s2] sm:$0xf] %v430
  %439 = vst [vmem:[%s2 + $0x4] sm:$0xf] %v431
  %440 = vst [vmem:[%s2 + $0x8] sm:$0xf] %v432
  %441 = vst [vmem:[%s2 + $0xc] sm:$0xf] %v433
  // Predicated region
  $region10: #{cnn5max_forward.8} parent=0 // pred_check
    _
  $region11: #{cnn5max_forward.8} parent=0 // pred_check_branch
    %443 = sbr.rel (0) target = $region13
  $region12: #{cnn5max_forward.8} parent=0 // pred_region
    _
  $region13: #{cnn5max_forward.8} parent=0 // pred_fallthru
    _
  // Predicated region
  $region14: #{cnn5max_forward.8} parent=0 // pred_check
    _
  $region15: #{cnn5max_forward.8} parent=0 // pred_check_branch
    %445 = sbr.rel (0) target = $region17
  $region16: #{cnn5max_forward.8} parent=0 // pred_region
    _
  $region17: #{cnn5max_forward.8} parent=0 // pred_fallthru
    _

// kernel: cnn5max_forward.9
$region0: #{cnn5max_forward.9}
  #allocation0 [shape = 'u32[]', space=smem, size = 0x4, offset = 0x4, fixed_abs, tag = 'smem constant byte address 0x4 - core index']
  #allocation1 [shape = 'u32[144,128]{1,0:T(1,128)}', space=vmem, size = 0x12000, scoped, tag = 'internal scratch']
  %s0 = inlined_call_operand.vmem [shape: bf16[16,576], index: 0, kind: input, shape index: {}]
  %s1 = inlined_call_operand.vmem [shape: bf16[576,128], index: 1, kind: input, shape index: {}]
  %s2 = inlined_call_operand.vmem [shape: bf16[16,128], index: 2, kind: output, shape index: {}]
  %s3 = sld [smem:[#allocation0]]
  $region18: #{cnn5max_forward.9} parent=0
    _
  %s5 = ssub.s32 1, %s3
  %s6 = scalar_select 0, %s5, %s3
  // Predicated region
  $region2: #{cnn5max_forward.9} parent=0 // pred_check
    _
  $region3: #{cnn5max_forward.9} parent=0 // pred_check_branch
    %8 = sbr.rel (0) target = $region5
  $region4: #{cnn5max_forward.9} parent=0 // pred_region
    _
  $region5: #{cnn5max_forward.9} parent=0 // pred_fallthru
    _
  // Predicated region
  $region6: #{cnn5max_forward.9} parent=0 // pred_check
    _
  $region7: #{cnn5max_forward.9} parent=0 // pred_check_branch
    %10 = sbr.rel (0) target = $region9
  $region8: #{cnn5max_forward.9} parent=0 // pred_region
    _
  $region9: #{cnn5max_forward.9} parent=0 // pred_fallthru
    _
  %v12 = vld [vmem:[%s0] sm:$0xff]
  %v13 = vld [vmem:[%s0 + $0x8] sm:$0xff]
  %v14 = vld [vmem:[%s0 + $0x10] sm:$0xf]
  %v15 = vld [vmem:[%s0 + $0x14] sm:$0xff]
  %v16 = vld [vmem:[%s0 + $0x1c] sm:$0xff]
  %v17 = vld [vmem:[%s0 + $0x24] sm:$0xf]
  %v18 = vld [vmem:[%s1] sm:$0xf]
  %v19 = vld [vmem:[%s1 + $0x4] sm:$0xf]
  %v20 = vld [vmem:[%s1 + $0x8] sm:$0xf]
  %v21 = vld [vmem:[%s1 + $0xc] sm:$0xf]
  %v22 = vld [vmem:[%s1 + $0x10] sm:$0xf]
  %v23 = vld [vmem:[%s1 + $0x14] sm:$0xf]
  %v24 = vld [vmem:[%s1 + $0x18] sm:$0xf]
  %v25 = vld [vmem:[%s1 + $0x1c] sm:$0xf]
  %v26 = vld [vmem:[%s1 + $0x20] sm:$0xf]
  %v27 = vld [vmem:[%s1 + $0x24] sm:$0xf]
  %v28 = vld [vmem:[%s1 + $0x28] sm:$0xf]
  %v29 = vld [vmem:[%s1 + $0x2c] sm:$0xf]
  %v30 = vld [vmem:[%s1 + $0x30] sm:$0xf]
  %v31 = vld [vmem:[%s1 + $0x34] sm:$0xf]
  %v32 = vld [vmem:[%s1 + $0x38] sm:$0xf]
  %v33 = vld [vmem:[%s1 + $0x3c] sm:$0xf]
  %v34 = vld [vmem:[%s1 + $0x40] sm:$0xf]
  %v35 = vld [vmem:[%s1 + $0x44] sm:$0xf]
  %v36 = vld [vmem:[%s1 + $0x48] sm:$0xf]
  %v37 = vld [vmem:[%s1 + $0x4c] sm:$0xf]
  %v38 = vld [vmem:[%s1 + $0x50] sm:$0xf]
  %v39 = vld [vmem:[%s1 + $0x54] sm:$0xf]
  %v40 = vld [vmem:[%s1 + $0x58] sm:$0xf]
  %v41 = vld [vmem:[%s1 + $0x5c] sm:$0xf]
  %v42 = vld [vmem:[%s1 + $0x60] sm:$0xf]
  %v43 = vld [vmem:[%s1 + $0x64] sm:$0xf]
  %v44 = vld [vmem:[%s1 + $0x68] sm:$0xf]
  %v45 = vld [vmem:[%s1 + $0x6c] sm:$0xf]
  %v46 = vld [vmem:[%s1 + $0x70] sm:$0xf]
  %v47 = vld [vmem:[%s1 + $0x74] sm:$0xf]
  %v48 = vld [vmem:[%s1 + $0x78] sm:$0xf]
  %v49 = vld [vmem:[%s1 + $0x7c] sm:$0xf]
  %v50 = vld [vmem:[%s1 + $0x80] sm:$0xf]
  %v51 = vld [vmem:[%s1 + $0x84] sm:$0xf]
  %v52 = vld [vmem:[%s1 + $0x88] sm:$0xf]
  %v53 = vld [vmem:[%s1 + $0x8c] sm:$0xf]
  %v54 = vld [vmem:[%s1 + $0x90] sm:$0xf]
  %v55 = vld [vmem:[%s1 + $0x94] sm:$0xf]
  %v56 = vld [vmem:[%s1 + $0x98] sm:$0xf]
  %v57 = vld [vmem:[%s1 + $0x9c] sm:$0xf]
  %v58 = vld [vmem:[%s1 + $0xa0] sm:$0xf]
  %v59 = vld [vmem:[%s1 + $0xa4] sm:$0xf]
  %v60 = vld [vmem:[%s1 + $0xa8] sm:$0xf]
  %v61 = vld [vmem:[%s1 + $0xac] sm:$0xf]
  %v62 = vld [vmem:[%s1 + $0xb0] sm:$0xf]
  %v63 = vld [vmem:[%s1 + $0xb4] sm:$0xf]
  %v64 = vld [vmem:[%s1 + $0xb8] sm:$0xf]
  %v65 = vld [vmem:[%s1 + $0xbc] sm:$0xf]
  %v66 = vld [vmem:[%s1 + $0xc0] sm:$0xf]
  %v67 = vld [vmem:[%s1 + $0xc4] sm:$0xf]
  %v68 = vld [vmem:[%s1 + $0xc8] sm:$0xf]
  %v69 = vld [vmem:[%s1 + $0xcc] sm:$0xf]
  %v70 = vld [vmem:[%s1 + $0xd0] sm:$0xf]
  %v71 = vld [vmem:[%s1 + $0xd4] sm:$0xf]
  %v72 = vld [vmem:[%s1 + $0xd8] sm:$0xf]
  %v73 = vld [vmem:[%s1 + $0xdc] sm:$0xf]
  %v74 = vld [vmem:[%s1 + $0xe0] sm:$0xf]
  %v75 = vld [vmem:[%s1 + $0xe4] sm:$0xf]
  %v76 = vld [vmem:[%s1 + $0xe8] sm:$0xf]
  %v77 = vld [vmem:[%s1 + $0xec] sm:$0xf]
  %v78 = vld [vmem:[%s1 + $0xf0] sm:$0xf]
  %v79 = vld [vmem:[%s1 + $0xf4] sm:$0xf]
  %v80 = vld [vmem:[%s1 + $0xf8] sm:$0xf]
  %v81 = vld [vmem:[%s1 + $0xfc] sm:$0xf]
  %v82 = vld [vmem:[%s1 + $0x100] sm:$0xf]
  %v83 = vld [vmem:[%s1 + $0x104] sm:$0xf]
  %v84 = vld [vmem:[%s1 + $0x108] sm:$0xf]
  %v85 = vld [vmem:[%s1 + $0x10c] sm:$0xf]
  %v86 = vld [vmem:[%s1 + $0x110] sm:$0xf]
  %v87 = vld [vmem:[%s1 + $0x114] sm:$0xf]
  %v88 = vld [vmem:[%s1 + $0x118] sm:$0xf]
  %v89 = vld [vmem:[%s1 + $0x11c] sm:$0xf]
  %v96 = vunpack.c.l.b16 %v12
  %v97 = vunpack.c.h.b16 %v12
  %v98 = vunpack.c.l.b16 %v13
  %v99 = vunpack.c.h.b16 %v13
  %v100 = vunpack.c.l.b16 %v14
  %v101 = vunpack.c.l.b16 %v15
  %v102 = vunpack.c.h.b16 %v15
  %v103 = vunpack.c.l.b16 %v16
  %v104 = vunpack.c.h.b16 %v16
  %v105 = vunpack.c.l.b16 %v17
  %v106 = vpack.c.b16 %v101, %v96
  %v107 = vpack.c.b16 %v102, %v97
  %v108 = vpack.c.b16 %v103, %v98
  %v109 = vpack.c.b16 %v104, %v99
  %v110 = vpack.c.b16 %v105, %v100
  %v187 = vunpack.c.l.b16 %v18
  %v188 = vunpack.c.l.b16 %v19
  %v189 = vunpack.c.l.b16 %v20
  %v190 = vunpack.c.l.b16 %v21
  %v191 = vunpack.c.l.b16 %v22
  %v192 = vunpack.c.l.b16 %v23
  %v193 = vunpack.c.l.b16 %v24
  %v194 = vunpack.c.l.b16 %v25
  %v195 = vunpack.c.l.b16 %v26
  %v196 = vunpack.c.l.b16 %v27
  %v197 = vunpack.c.l.b16 %v28
  %v198 = vunpack.c.l.b16 %v29
  %v199 = vunpack.c.l.b16 %v30
  %v200 = vunpack.c.l.b16 %v31
  %v201 = vunpack.c.l.b16 %v32
  %v202 = vunpack.c.l.b16 %v33
  %v203 = vunpack.c.l.b16 %v34
  %v204 = vunpack.c.l.b16 %v35
  %v205 = vunpack.c.l.b16 %v36
  %v206 = vunpack.c.l.b16 %v37
  %v207 = vunpack.c.l.b16 %v38
  %v208 = vunpack.c.l.b16 %v39
  %v209 = vunpack.c.l.b16 %v40
  %v210 = vunpack.c.l.b16 %v41
  %v211 = vunpack.c.l.b16 %v42
  %v212 = vunpack.c.l.b16 %v43
  %v213 = vunpack.c.l.b16 %v44
  %v214 = vunpack.c.l.b16 %v45
  %v215 = vunpack.c.l.b16 %v46
  %v216 = vunpack.c.l.b16 %v47
  %v217 = vunpack.c.l.b16 %v48
  %v218 = vunpack.c.l.b16 %v49
  %v219 = vunpack.c.l.b16 %v50
  %v220 = vunpack.c.l.b16 %v51
  %v221 = vunpack.c.l.b16 %v52
  %v222 = vunpack.c.l.b16 %v53
  %v223 = vunpack.c.l.b16 %v54
  %v224 = vunpack.c.l.b16 %v55
  %v225 = vunpack.c.l.b16 %v56
  %v226 = vunpack.c.l.b16 %v57
  %v227 = vunpack.c.l.b16 %v58
  %v228 = vunpack.c.l.b16 %v59
  %v229 = vunpack.c.l.b16 %v60
  %v230 = vunpack.c.l.b16 %v61
  %v231 = vunpack.c.l.b16 %v62
  %v232 = vunpack.c.l.b16 %v63
  %v233 = vunpack.c.l.b16 %v64
  %v234 = vunpack.c.l.b16 %v65
  %v235 = vunpack.c.l.b16 %v66
  %v236 = vunpack.c.l.b16 %v67
  %v237 = vunpack.c.l.b16 %v68
  %v238 = vunpack.c.l.b16 %v69
  %v239 = vunpack.c.l.b16 %v70
  %v240 = vunpack.c.l.b16 %v71
  %v241 = vunpack.c.l.b16 %v72
  %v242 = vunpack.c.l.b16 %v73
  %v243 = vunpack.c.l.b16 %v74
  %v244 = vunpack.c.l.b16 %v75
  %v245 = vunpack.c.l.b16 %v76
  %v246 = vunpack.c.l.b16 %v77
  %v247 = vunpack.c.l.b16 %v78
  %v248 = vunpack.c.l.b16 %v79
  %v249 = vunpack.c.l.b16 %v80
  %v250 = vunpack.c.l.b16 %v81
  %v251 = vunpack.c.l.b16 %v82
  %v252 = vunpack.c.l.b16 %v83
  %v253 = vunpack.c.l.b16 %v84
  %v254 = vunpack.c.l.b16 %v85
  %v255 = vunpack.c.l.b16 %v86
  %v256 = vunpack.c.l.b16 %v87
  %v257 = vunpack.c.l.b16 %v88
  %v258 = vunpack.c.l.b16 %v89
  %v259 = vpack.c.b16 %v188, %v187
  %v260 = vpack.c.b16 %v190, %v189
  %v261 = vpack.c.b16 %v192, %v191
  %v262 = vpack.c.b16 %v194, %v193
  %v263 = vpack.c.b16 %v196, %v195
  %v264 = vpack.c.b16 %v198, %v197
  %v265 = vpack.c.b16 %v200, %v199
  %v266 = vpack.c.b16 %v202, %v201
  %v267 = vpack.c.b16 %v204, %v203
  %v268 = vpack.c.b16 %v206, %v205
  %v269 = vpack.c.b16 %v208, %v207
  %v270 = vpack.c.b16 %v210, %v209
  %v271 = vpack.c.b16 %v212, %v211
  %v272 = vpack.c.b16 %v214, %v213
  %v273 = vpack.c.b16 %v216, %v215
  %v274 = vpack.c.b16 %v218, %v217
  %v275 = vpack.c.b16 %v220, %v219
  %v276 = vpack.c.b16 %v222, %v221
  %v277 = vpack.c.b16 %v224, %v223
  %v278 = vpack.c.b16 %v226, %v225
  %v279 = vpack.c.b16 %v228, %v227
  %v280 = vpack.c.b16 %v230, %v229
  %v281 = vpack.c.b16 %v232, %v231
  %v282 = vpack.c.b16 %v234, %v233
  %v283 = vpack.c.b16 %v236, %v235
  %v284 = vpack.c.b16 %v238, %v237
  %v285 = vpack.c.b16 %v240, %v239
  %v286 = vpack.c.b16 %v242, %v241
  %v287 = vpack.c.b16 %v244, %v243
  %v288 = vpack.c.b16 %v246, %v245
  %v289 = vpack.c.b16 %v248, %v247
  %v290 = vpack.c.b16 %v250, %v249
  %v291 = vpack.c.b16 %v252, %v251
  %v292 = vpack.c.b16 %v254, %v253
  %v293 = vpack.c.b16 %v256, %v255
  %v294 = vpack.c.b16 %v258, %v257
  %vm331 = vcmask 523264
  %v333 = vsel %vm331, %v110, 0
  %335 = vmatprep.subr.bf16.mxu0 0
  %336 = vmatpush1.bf16.msra.mxu0 %v266
  %337 = vmatprep.subr.bf16.mxu0 0
  %338 = vmatpush1.bf16.msra.mxu0 %v265
  %339 = vmatprep.subr.bf16.mxu0 0
  %340 = vmatpush1.bf16.msra.mxu0 %v264
  %341 = vmatprep.subr.bf16.mxu0 0
  %342 = vmatpush1.bf16.msra.mxu0 %v263
  %343 = vmatprep.subr.bf16.mxu0 0
  %344 = vmatpush1.bf16.msra.mxu0 %v262
  %345 = vmatprep.subr.bf16.mxu0 0
  %346 = vmatpush1.bf16.msra.mxu0 %v261
  %347 = vmatprep.subr.bf16.mxu0 0
  %348 = vmatpush1.bf16.msra.mxu0 %v260
  %349 = vmatprep.subr.bf16.mxu0 0
  %350 = vmatpush1.bf16.msra.mxu0 %v259
  %351 = vmatprep.subr.bf16.mxu0 0
  %352 = vmatpush2.bf16.msra.mxu0 %v274
  %353 = vmatprep.subr.bf16.mxu0 0
  %354 = vmatpush2.bf16.msra.mxu0 %v273
  %355 = vmatprep.subr.bf16.mxu0 0
  %356 = vmatpush2.bf16.msra.mxu0 %v272
  %357 = vmatprep.subr.bf16.mxu0 0
  %358 = vmatpush2.bf16.msra.mxu0 %v271
  %359 = vmatprep.subr.bf16.mxu0 0
  %360 = vmatpush2.bf16.msra.mxu0 %v270
  %361 = vmatprep.subr.bf16.mxu0 0
  %362 = vmatpush2.bf16.msra.mxu0 %v269
  %363 = vmatprep.subr.bf16.mxu0 0
  %364 = vmatpush2.bf16.msra.mxu0 %v268
  %365 = vmatprep.subr.bf16.mxu0 0
  %366 = vmatpush2.bf16.msra.mxu0 %v267
  %367 = vmatprep.mubr.bf16.mxu0 %v107
  %368 = vmatmul.mubr.bf16.gmra.mxu0 %v106
  %v369 = vpop.f32.mrf.mxu0
  %v370 = vadd.f32 0.0, %v369
  %v371 = vpop.f32.mrf.mxu0
  %v372 = vpop.f32.mrf.mxu0
  %v373 = vadd.f32 0.0, %v372
  %v374 = vpop.f32.mrf.mxu0
  %375 = vdwg.mxu0
  %376 = vmatprep.subr.bf16.mxu0 0
  %377 = vmatpush1.bf16.msra.mxu0 %v282
  %378 = vmatprep.subr.bf16.mxu0 0
  %379 = vmatpush1.bf16.msra.mxu0 %v281
  %380 = vmatprep.subr.bf16.mxu0 0
  %381 = vmatpush1.bf16.msra.mxu0 %v280
  %382 = vmatprep.subr.bf16.mxu0 0
  %383 = vmatpush1.bf16.msra.mxu0 %v279
  %384 = vmatprep.subr.bf16.mxu0 0
  %385 = vmatpush1.bf16.msra.mxu0 %v278
  %386 = vmatprep.subr.bf16.mxu0 0
  %387 = vmatpush1.bf16.msra.mxu0 %v277
  %388 = vmatprep.subr.bf16.mxu0 0
  %389 = vmatpush1.bf16.msra.mxu0 %v276
  %390 = vmatprep.subr.bf16.mxu0 0
  %391 = vmatpush1.bf16.msra.mxu0 %v275
  %392 = vmatprep.subr.bf16.mxu0 0
  %393 = vmatpush2.bf16.msra.mxu0 %v290
  %394 = vmatprep.subr.bf16.mxu0 0
  %395 = vmatpush2.bf16.msra.mxu0 %v289
  %396 = vmatprep.subr.bf16.mxu0 0
  %397 = vmatpush2.bf16.msra.mxu0 %v288
  %398 = vmatprep.subr.bf16.mxu0 0
  %399 = vmatpush2.bf16.msra.mxu0 %v287
  %400 = vmatprep.subr.bf16.mxu0 0
  %401 = vmatpush2.bf16.msra.mxu0 %v286
  %402 = vmatprep.subr.bf16.mxu0 0
  %403 = vmatpush2.bf16.msra.mxu0 %v285
  %404 = vmatprep.subr.bf16.mxu0 0
  %405 = vmatpush2.bf16.msra.mxu0 %v284
  %406 = vmatprep.subr.bf16.mxu0 0
  %407 = vmatpush2.bf16.msra.mxu0 %v283
  %408 = vmatprep.mubr.bf16.mxu0 %v109
  %409 = vmatmul.mubr.bf16.gmra.mxu0 %v108
  %v410 = vpop.f32.mrf.mxu0
  %v411 = vadd.f32 %v370, %v410
  %v412 = vpop.f32.mrf.mxu0
  %v413 = vpop.f32.mrf.mxu0
  %v414 = vadd.f32 %v373, %v413
  %v415 = vpop.f32.mrf.mxu0
  %416 = vdwg.mxu0
  %417 = vmatprep.subr.bf16.mxu0 0
  %418 = vmatpush1.bf16.msra.mxu0 0
  %419 = vmatprep.subr.bf16.mxu0 0
  %420 = vmatpush1.bf16.msra.mxu0 0
  %421 = vmatprep.subr.bf16.mxu0 0
  %422 = vmatpush1.bf16.msra.mxu0 0
  %423 = vmatprep.subr.bf16.mxu0 0
  %424 = vmatpush1.bf16.msra.mxu0 0
  %425 = vmatprep.subr.bf16.mxu0 0
  %426 = vmatpush1.bf16.msra.mxu0 %v294
  %427 = vmatprep.subr.bf16.mxu0 0
  %428 = vmatpush1.bf16.msra.mxu0 %v293
  %429 = vmatprep.subr.bf16.mxu0 0
  %430 = vmatpush1.bf16.msra.mxu0 %v292
  %431 = vmatprep.subr.bf16.mxu0 0
  %432 = vmatpush1.bf16.msra.mxu0 %v291
  %433 = vmatprep.subr.bf16.mxu0 0
  %434 = vmatpush2.bf16.msra.mxu0 0
  %435 = vmatprep.subr.bf16.mxu0 0
  %436 = vmatpush2.bf16.msra.mxu0 0
  %437 = vmatprep.subr.bf16.mxu0 0
  %438 = vmatpush2.bf16.msra.mxu0 0
  %439 = vmatprep.subr.bf16.mxu0 0
  %440 = vmatpush2.bf16.msra.mxu0 0
  %441 = vmatprep.subr.bf16.mxu0 0
  %442 = vmatpush2.bf16.msra.mxu0 0
  %443 = vmatprep.subr.bf16.mxu0 0
  %444 = vmatpush2.bf16.msra.mxu0 0
  %445 = vmatprep.subr.bf16.mxu0 0
  %446 = vmatpush2.bf16.msra.mxu0 0
  %447 = vmatprep.subr.bf16.mxu0 0
  %448 = vmatpush2.bf16.msra.mxu0 0
  %449 = vmatprep.mubr.bf16.mxu0 0
  %450 = vmatmul.mubr.bf16.gmra.mxu0 %v333
  %v451 = vpop.f32.mrf.mxu0
  %v452 = vadd.f32 %v411, %v451
  %v453 = vpop.f32.mrf.mxu0
  %v454 = vpop.f32.mrf.mxu0
  %v455 = vadd.f32 %v414, %v454
  %v456 = vpop.f32.mrf.mxu0
  %457 = vdwg.mxu0
  %v458 = vadd.f32 %v452, %v455
  %v459 = vrot.slane %v458, 4
  %v460 = vadd.f32 %v458, %v459
  %v461 = vrot.slane %v460, 2
  %v462 = vadd.f32 %v460, %v461
  %v463 = vrot.slane %v462, 1
  %v464 = vadd.f32 %v462, %v463
  %v465 = vmul.f32 %v464, 0.125
  %v466 = vmul.f32 %v452, %v452
  %v467 = vmul.f32 %v455, %v455
  %v468 = vadd.f32 %v466, %v467
  %v469 = vrot.slane %v468, 4
  %v470 = vadd.f32 %v468, %v469
  %v471 = vrot.slane %v470, 2
  %v472 = vadd.f32 %v470, %v471
  %v473 = vrot.slane %v472, 1
  %v474 = vadd.f32 %v472, %v473
  %v475 = vmul.f32 %v474, 0.125
  %v476 = vmul.f32 %v465, %v465
  %v477 = vsub.f32 %v475, %v476
  %v478 = vmax.f32 %v477, 0.0
  %v479 = vadd.f32 %v478, 1e-05
  %v480 = vrsqrt.pop %v479
  %v481 = vsub.f32 0.0, %v465
  %v482 = vmul.f32 %v481, %v480
  %v483 = vmul.f32 %v452, %v480
  %v484 = vmul.f32 %v455, %v480
  %v485 = vadd.f32 %v483, %v482
  %v486 = vadd.f32 %v484, %v482
  %v487 = vmax.f32 %v485, 0.0
  %v488 = vmax.f32 %v486, 0.0
  %v489 = vpack.c.bf16 %v488, %v487
  %v491 = vunpack.c.l.b16 %v489
  %v492 = vunpack.c.h.b16 %v489
  %v493 = vpack.c.b16 %v491, %v491
  %v494 = vpack.c.b16 %v492, %v492
  %497 = vst [vmem:[%s2] sm:$0xf] %v493
  %498 = vst [vmem:[%s2 + $0x4] sm:$0xf] %v494
  // Predicated region
  $region10: #{cnn5max_forward.9} parent=0 // pred_check
    _
  $region11: #{cnn5max_forward.9} parent=0 // pred_check_branch
    %500 = sbr.rel (0) target = $region13
  $region12: #{cnn5max_forward.9} parent=0 // pred_region
    _
  $region13: #{cnn5max_forward.9} parent=0 // pred_fallthru
    _
  // Predicated region
  $region14: #{cnn5max_forward.9} parent=0 // pred_check
    _
  $region15: #{cnn5max_forward.9} parent=0 // pred_check_branch
    %502 = sbr.rel (0) target = $region17
  $region16: #{cnn5max_forward.9} parent=0 // pred_region
    _
  $region17: #{cnn5max_forward.9} parent=0 // pred_fallthru
    _

</llo_original>
